<compile_context>
chip_gen: v7x
topology: tpu7x:2x2x1
jax: 0.10.0
libtpu: 0.0.40
codegen_flags: <defaults>
</compile_context>

<pallas_src>
import functools
import jax
import jax.numpy as jnp
import numpy as np
from jax.experimental import pallas as pl
from jax.experimental.pallas import tpu as pltpu

# ---- module hyper-parameters (mirror CenterPivotConv4d.__init__) ----------------------
IN_CH = 4
OUT_CH = 16
KERNEL_SIZE = (3, 3, 3, 3)
STRIDE = (1, 1, 1, 1)          # stride[3] == 1 -> prune() branch is dead
PADDING = (1, 1, 1, 1)
NUM_HEADS = IN_CH if IN_CH < 8 else 8      # = 4
HEAD_DIM = OUT_CH // NUM_HEADS             # = 4
LN_EPS = 1e-5


# ================================ fused Pallas kernel ==================================
def _fused_kernel(xim_ref, wc_ref, bc_ref, g_ref, beta_ref,
                  wqkv_ref, bqkv_ref, wo_ref, bo_ref, o_ref, *, n, heads):
    """One (batch, token-tile) grid step: conv1 -> LayerNorm -> MHA over n -> residual.

    Activations are channel-major (E, T); T (a multiple of 128, or the full row) is a
    contiguous chunk of tokens ordered (ha, wa, n) so the per-position attention groups
    of n tokens never straddle a tile.

    xim_ref : (1, 9*C, T)  im2col'd conv patches (built once in the wrapper)
    wc_ref  : (E, 9*C)     conv taps            bc_ref   : (E, 1)
    g_ref   : (E, 1)       LN gamma             beta_ref : (E, 1)
    wqkv_ref: (3E, E)      packed in-proj (1/sqrt(d) pre-folded into the Q rows)
    bqkv_ref: (3E, 1)      wo_ref: (E, E)       bo_ref   : (E, 1)
    o_ref   : (1, E, T)    channel-first, lane-dense output tile
    """
    _, _, tt = xim_ref.shape
    e = wo_ref.shape[0]
    d = e // heads
    ht = tt // n                                    # spatial positions in this tile

    # ---- conv1: one K=9*C MXU matmul over the whole tile (N = T lane-dense) ----
    tokens = jnp.dot(wc_ref[...], xim_ref[0],
                     preferred_element_type=jnp.float32) + bc_ref[...]        # (E, T)

    # ---- LayerNorm over channels: channel axis is the sublane axis -> cheap reduce ----
    mu = jnp.mean(tokens, axis=0, keepdims=True)
    var = jnp.mean((tokens - mu) ** 2, axis=0, keepdims=True)
    xn = (tokens - mu) * jax.lax.rsqrt(var + LN_EPS) * g_ref[...] + beta_ref[...]

    # ---- packed QKV projection (q = k = v = normed tokens, as in the module) ----
    qkv = jnp.dot(wqkv_ref[...], xn,
                  preferred_element_type=jnp.float32) + bqkv_ref[...]         # (3E, T)

    # ---- attention over n per spatial position -------------------------------------
    # Relayout q/k to (heads, d, n, ht): the per-position axis ht lands on lanes, so the
    # score/softmax tensors are (heads, n, n, ht) (no (hw, n, n, E) blow-up, no hmask
    # matmuls).  v is relaid out only after the softmax to keep the live set small.
    qk = jnp.swapaxes(qkv[:2 * e].reshape(2 * e, ht, n), -1, -2)              # (2E, n, ht)
    qk = qk.reshape(2, heads, d, n, ht)
    q4, k4 = qk[0], qk[1]

    s = q4[:, 0, :, None, :] * k4[:, 0, None, :, :]                           # (H, n, n, ht)
    for c in range(1, d):
        s = s + q4[:, c, :, None, :] * k4[:, c, None, :, :]
    s = s - jnp.max(s, axis=2, keepdims=True)
    pa = jnp.exp(s)
    pa = pa * pl.reciprocal(jnp.sum(pa, axis=2, keepdims=True), approx=True)

    v4 = jnp.swapaxes(qkv[2 * e:].reshape(e, ht, n), -1, -2).reshape(heads, d, n, ht)
    ctx = jnp.stack(
        [jnp.sum(pa * v4[:, c, None, :, :], axis=2) for c in range(d)],
        axis=1)                                                               # (H, d, n, ht)

    # back to channel-major (E, T) (token order (p, i) matches `tokens`), out-proj, residual
    attn = jnp.swapaxes(ctx.reshape(e, n, ht), -1, -2).reshape(e, tt)
    attn = jnp.dot(wo_ref[...], attn, preferred_element_type=jnp.float32) + bo_ref[...]
    o_ref[0] = tokens + attn            # residual on pre-norm tokens; dropout = identity


# ===================================== wrapper =========================================
def center_pivot_conv4d_forward(x, params):
    """Forward pass equivalent to CenterPivotConv4d.forward (eval mode)."""
    x = x.reshape(x.shape[:5])                         # squeeze(-1).squeeze(-1)
    bsz, inch, ha, wa, n = x.shape
    outch = params["conv1_b"].shape[-1]
    kh, kw = KERNEL_SIZE[:2]
    ph, pw = PADDING[:2]
    t = ha * wa * n
    heads = NUM_HEADS

    # ---- wrapper-side im2col: (bsz, 9*C, t), lane-dense, token order (ha, wa, n) ----
    # HBM cost is only kh*kw*C*t*4 bytes per batch (~73 KiB at demo sizes).
    xp = jnp.pad(x, ((0, 0), (0, 0), (ph, ph), (pw, pw), (0, 0)))
    wins = [xp[:, :, ky:ky + ha, kx:kx + wa, :]
            for ky in range(kh) for kx in range(kw)]               # each (bsz, C, ha, wa, n)
    xim = jnp.stack(wins, axis=1).reshape(bsz, kh * kw * inch, t)  # rows ordered (ky, kx, c)

    # ---- weights in channel-major orientation ----
    wc = params["conv1_w"].transpose(0, 2, 3, 1).reshape(outch, kh * kw * inch)   # (E, 9C)
    bc = params["conv1_b"].reshape(outch, 1)
    g = params["ln_g"].reshape(outch, 1)
    beta = params["ln_b"].reshape(outch, 1)
    wqkv = params["w_qkv"].T                                       # (3E, E) == in_proj_weight
    bqkv = params["b_qkv"].reshape(3 * outch, 1)
    scale = float(1.0 / np.sqrt(outch // heads))                   # fold 1/sqrt(d) into Q rows
    wqkv = wqkv.at[:outch].multiply(scale)
    bqkv = bqkv.at[:outch].multiply(scale)
    wo = params["w_o"].T                                           # (E, E) == out_proj.weight
    bo = params["b_o"].reshape(outch, 1)

    # ---- token-tile: largest multiple of 128 lanes (and of n) giving >=2 tiles/batch ----
    tile = t
    for cand in (512, 256, 128):
        if t % cand == 0 and cand % n == 0 and t // cand >= 2:
            tile = cand
            break
    grid = (bsz, t // tile)

    kernel = functools.partial(_fused_kernel, n=n, heads=heads)
    y = pl.pallas_call(
        kernel,
        out_shape=jax.ShapeDtypeStruct((bsz, outch, t), jnp.float32),
        grid_spec=pltpu.PrefetchScalarGridSpec(
            num_scalar_prefetch=0,
            grid=grid,
            in_specs=[
                pl.BlockSpec((1, kh * kw * inch, tile), lambda b, s: (b, 0, s)),
                pl.BlockSpec((outch, kh * kw * inch), lambda b, s: (0, 0)),
                pl.BlockSpec((outch, 1), lambda b, s: (0, 0)),
                pl.BlockSpec((outch, 1), lambda b, s: (0, 0)),
                pl.BlockSpec((outch, 1), lambda b, s: (0, 0)),
                pl.BlockSpec((3 * outch, outch), lambda b, s: (0, 0)),
                pl.BlockSpec((3 * outch, 1), lambda b, s: (0, 0)),
                pl.BlockSpec((outch, outch), lambda b, s: (0, 0)),
                pl.BlockSpec((outch, 1), lambda b, s: (0, 0)),
            ],
            out_specs=pl.BlockSpec((1, outch, tile), lambda b, s: (b, 0, s)),
        ),
        # Padded per-step footprint: ~40 KiB x2 input tile + ~16 KiB x2 output tile +
        # ~70 KiB x2 lane-padded weights + <1 MiB of in-kernel temporaries/spill -- far
        # below the explicit 32 MiB limit and v7x's 64 MiB physical VMEM.
        compiler_params=pltpu.CompilerParams(
            dimension_semantics=("parallel", "parallel"),
            vmem_limit_bytes=32 * 1024 * 1024,
        ),
    )(xim, wc, bc, g, beta, wqkv, bqkv, wo, bo)

    # kernel wrote channel-first tokens ordered (ha, wa, n): metadata-only reshape.
    return y.reshape(bsz, outch, ha, wa, n)


# =============================== reference (pure JAX) ==================================
def reference_forward(x, params):
    x = x.reshape(x.shape[:5])
    bsz, inch, ha, wa, n = x.shape
    x2 = jnp.transpose(x, (0, 4, 1, 2, 3)).reshape(bsz * n, inch, ha, wa)
    out1 = jax.lax.conv_general_dilated(
        x2, params["conv1_w"], window_strides=STRIDE[:2],
        padding=[(PADDING[0], PADDING[0]), (PADDING[1], PADDING[1])],
        dimension_numbers=("NCHW", "OIHW", "NCHW"))
    out1 = out1 + params["conv1_b"][None, :, None, None]
    outch, o_ha, o_wa = out1.shape[1], out1.shape[2], out1.shape[3]
    out1 = out1.reshape(bsz, n, outch, o_ha, o_wa).transpose(0, 2, 3, 4, 1)
    B = bsz * o_ha * o_wa
    xs = out1.transpose(0, 2, 3, 1, 4).reshape(B, outch, n).transpose(2, 0, 1)  # (n, B, E)
    mu = xs.mean(-1, keepdims=True)
    var = ((xs - mu) ** 2).mean(-1, keepdims=True)
    xn = (xs - mu) / jnp.sqrt(var + LN_EPS) * params["ln_g"][0] + params["ln_b"][0]
    qkv = xn @ params["w_qkv"] + params["b_qkv"][0]
    q, k, v = jnp.split(qkv, 3, axis=-1)
    qh = q.reshape(n, B, NUM_HEADS, HEAD_DIM)
    kh = k.reshape(n, B, NUM_HEADS, HEAD_DIM)
    vh = v.reshape(n, B, NUM_HEADS, HEAD_DIM)
    s = jnp.einsum("qbhd,kbhd->bhqk", qh, kh) / (HEAD_DIM ** 0.5)
    p = jax.nn.softmax(s, axis=-1)
    ao = jnp.einsum("bhqk,kbhd->qbhd", p, vh).reshape(n, B, outch)
    ao = ao @ params["w_o"] + params["b_o"][0]
    out2 = xs + ao
    out2 = out2.transpose(1, 2, 0)                            # (B, E, n)
    return out2.reshape(bsz, o_ha, o_wa, outch, n).transpose(0, 3, 1, 2, 4)


# ================================= params & main =======================================
def init_params(key):
    ks = jax.random.split(key, 8)
    p = {}
    p["conv1_w"] = 0.1 * jax.random.normal(ks[0], (OUT_CH, IN_CH, KERNEL_SIZE[0], KERNEL_SIZE[1]), jnp.float32)
    p["conv1_b"] = 0.1 * jax.random.normal(ks[1], (OUT_CH,), jnp.float32)
    p["ln_g"] = jnp.ones((1, OUT_CH), jnp.float32) + 0.05 * jax.random.normal(ks[2], (1, OUT_CH), jnp.float32)
    p["ln_b"] = 0.05 * jax.random.normal(ks[3], (1, OUT_CH), jnp.float32)
    p["w_qkv"] = 0.1 * jax.random.normal(ks[4], (OUT_CH, 3 * OUT_CH), jnp.float32)   # == in_proj_weight.T
    p["b_qkv"] = 0.1 * jax.random.normal(ks[5], (1, 3 * OUT_CH), jnp.float32)
    p["w_o"] = 0.1 * jax.random.normal(ks[6], (OUT_CH, OUT_CH), jnp.float32)         # == out_proj.weight.T
    p["b_o"] = 0.1 * jax.random.normal(ks[7], (1, OUT_CH), jnp.float32)
    return p


if __name__ == "__main__":
    key = jax.random.PRNGKey(0)
    kp, kx = jax.random.split(key)
    params = init_params(kp)
    # x: (bsz, in_ch, ha, wa, n, 1, 1) -- trailing singleton dims are squeezed in forward()
    x = jax.random.normal(kx, (2, IN_CH, 8, 8, 8, 1, 1), jnp.float32)

    out = jax.jit(center_pivot_conv4d_forward)(x, params)
    out = jax.block_until_ready(out)

    ref = reference_forward(x, params)
    # 2e-3 tolerance: covers the approximate (EUP) softmax reciprocal and accumulation-order
    # differences between the fused kernel and the XLA reference.
    np.testing.assert_allclose(np.asarray(out), np.asarray(ref), rtol=2e-3, atol=2e-3)
    assert out.shape == (2, OUT_CH, 8, 8, 8)
    print("KERNEL_OK")
</pallas_src>

<mosaic_0001>
module attributes {stable_mosaic.version = 11 : i64} {
  func.func @_fused_kernel(%arg0: i32, %arg1: i32, %arg2: memref<1x36x256xf32, #tpu.memory_space<vmem>>, %arg3: memref<16x36xf32, #tpu.memory_space<vmem>>, %arg4: memref<16x1xf32, #tpu.memory_space<vmem>>, %arg5: memref<16x1xf32, #tpu.memory_space<vmem>>, %arg6: memref<16x1xf32, #tpu.memory_space<vmem>>, %arg7: memref<48x16xf32, #tpu.memory_space<vmem>>, %arg8: memref<48x1xf32, #tpu.memory_space<vmem>>, %arg9: memref<16x16xf32, #tpu.memory_space<vmem>>, %arg10: memref<16x1xf32, #tpu.memory_space<vmem>>, %arg11: memref<1x16x256xf32, #tpu.memory_space<vmem>>) attributes {dimension_semantics = [#tpu.dimension_semantics<parallel>, #tpu.dimension_semantics<parallel>], iteration_bounds = array<i64: 2, 2>, scalar_prefetch = 0 : i64, scratch_operands = 0 : i64, tpu.core_type = #tpu.core_type<tc>, window_params = [{transform_indices = @transform_0, window_bounds = array<i64: 1, 36, 256>}, {pipeline_mode = #tpu.pipeline_mode<synchronous>, transform_indices = @transform_1, window_bounds = array<i64: 16, 36>}, {pipeline_mode = #tpu.pipeline_mode<synchronous>, transform_indices = @transform_2, window_bounds = array<i64: 16, 1>}, {pipeline_mode = #tpu.pipeline_mode<synchronous>, transform_indices = @transform_3, window_bounds = array<i64: 16, 1>}, {pipeline_mode = #tpu.pipeline_mode<synchronous>, transform_indices = @transform_4, window_bounds = array<i64: 16, 1>}, {pipeline_mode = #tpu.pipeline_mode<synchronous>, transform_indices = @transform_5, window_bounds = array<i64: 48, 16>}, {pipeline_mode = #tpu.pipeline_mode<synchronous>, transform_indices = @transform_6, window_bounds = array<i64: 48, 1>}, {pipeline_mode = #tpu.pipeline_mode<synchronous>, transform_indices = @transform_7, window_bounds = array<i64: 16, 16>}, {pipeline_mode = #tpu.pipeline_mode<synchronous>, transform_indices = @transform_8, window_bounds = array<i64: 16, 1>}, {transform_indices = @transform_9, window_bounds = array<i64: 1, 16, 256>}]} {
    %c0 = arith.constant 0 : index
    %c0_0 = arith.constant 0 : index
    %0 = vector.load %arg3[%c0, %c0_0] : memref<16x36xf32, #tpu.memory_space<vmem>>, vector<16x36xf32>
    %c0_1 = arith.constant 0 : index
    %c0_2 = arith.constant 0 : index
    %c0_3 = arith.constant 0 : index
    %1 = vector.load %arg2[%c0_1, %c0_2, %c0_3] : memref<1x36x256xf32, #tpu.memory_space<vmem>>, vector<1x36x256xf32>
    %2 = vector.shape_cast %1 : vector<1x36x256xf32> to vector<36x256xf32>
    %cst = arith.constant dense<0.000000e+00> : vector<16x256xf32>
    %3 = tpu.matmul %0, %2, %cst {dimension_numbers = #tpu.dot_dimension_numbers<[1], [0], [0], [1], [0, 0, 1, 1], [], []>} : vector<16x36xf32>, vector<36x256xf32>, vector<16x256xf32> -> vector<16x256xf32>
    %c0_4 = arith.constant 0 : index
    %c0_5 = arith.constant 0 : index
    %4 = vector.load %arg4[%c0_4, %c0_5] : memref<16x1xf32, #tpu.memory_space<vmem>>, vector<16x1xf32>
    %5 = vector.broadcast %4 : vector<16x1xf32> to vector<16x256xf32>
    %6 = arith.addf %3, %5 : vector<16x256xf32>
    %cst_6 = arith.constant dense<0.000000e+00> : vector<256xf32>
    %7 = vector.multi_reduction <add>, %6, %cst_6 [0] : vector<16x256xf32> to vector<256xf32>
    %8 = vector.shape_cast %7 : vector<256xf32> to vector<1x256xf32>
    %cst_7 = arith.constant 1.600000e+01 : f32
    %9 = vector.broadcast %cst_7 : f32 to vector<1x256xf32>
    %10 = arith.divf %8, %9 : vector<1x256xf32>
    %11 = vector.broadcast %10 : vector<1x256xf32> to vector<16x256xf32>
    %12 = arith.subf %6, %11 : vector<16x256xf32>
    %13 = arith.mulf %12, %12 : vector<16x256xf32>
    %cst_8 = arith.constant dense<0.000000e+00> : vector<256xf32>
    %14 = vector.multi_reduction <add>, %13, %cst_8 [0] : vector<16x256xf32> to vector<256xf32>
    %15 = vector.shape_cast %14 : vector<256xf32> to vector<1x256xf32>
    %cst_9 = arith.constant 1.600000e+01 : f32
    %16 = vector.broadcast %cst_9 : f32 to vector<1x256xf32>
    %17 = arith.divf %15, %16 : vector<1x256xf32>
    %18 = vector.broadcast %10 : vector<1x256xf32> to vector<16x256xf32>
    %19 = arith.subf %6, %18 : vector<16x256xf32>
    %cst_10 = arith.constant 9.99999974E-6 : f32
    %20 = vector.broadcast %cst_10 : f32 to vector<1x256xf32>
    %21 = arith.addf %17, %20 : vector<1x256xf32>
    %22 = math.rsqrt %21 : vector<1x256xf32>
    %23 = vector.broadcast %22 : vector<1x256xf32> to vector<16x256xf32>
    %24 = arith.mulf %19, %23 : vector<16x256xf32>
    %c0_11 = arith.constant 0 : index
    %c0_12 = arith.constant 0 : index
    %25 = vector.load %arg5[%c0_11, %c0_12] : memref<16x1xf32, #tpu.memory_space<vmem>>, vector<16x1xf32>
    %26 = vector.broadcast %25 : vector<16x1xf32> to vector<16x256xf32>
    %27 = arith.mulf %24, %26 : vector<16x256xf32>
    %c0_13 = arith.constant 0 : index
    %c0_14 = arith.constant 0 : index
    %28 = vector.load %arg6[%c0_13, %c0_14] : memref<16x1xf32, #tpu.memory_space<vmem>>, vector<16x1xf32>
    %29 = vector.broadcast %28 : vector<16x1xf32> to vector<16x256xf32>
    %30 = arith.addf %27, %29 : vector<16x256xf32>
    %c0_15 = arith.constant 0 : index
    %c0_16 = arith.constant 0 : index
    %31 = vector.load %arg7[%c0_15, %c0_16] : memref<48x16xf32, #tpu.memory_space<vmem>>, vector<48x16xf32>
    %cst_17 = arith.constant dense<0.000000e+00> : vector<48x256xf32>
    %32 = tpu.matmul %31, %30, %cst_17 {dimension_numbers = #tpu.dot_dimension_numbers<[1], [0], [0], [1], [0, 0, 1, 1], [], []>} : vector<48x16xf32>, vector<16x256xf32>, vector<48x256xf32> -> vector<48x256xf32>
    %c0_18 = arith.constant 0 : index
    %c0_19 = arith.constant 0 : index
    %33 = vector.load %arg8[%c0_18, %c0_19] : memref<48x1xf32, #tpu.memory_space<vmem>>, vector<48x1xf32>
    %34 = vector.broadcast %33 : vector<48x1xf32> to vector<48x256xf32>
    %35 = arith.addf %32, %34 : vector<48x256xf32>
    %36 = vector.extract_strided_slice %35 {offsets = [0, 0], sizes = [32, 256], strides = [1, 1]} : vector<48x256xf32> to vector<32x256xf32>
    %37 = vector.shape_cast %36 : vector<32x256xf32> to vector<32x32x8xf32>
    %38 = tpu.transpose %37, [0, 2, 1] : vector<32x32x8xf32> -> vector<32x8x32xf32>
    %39 = vector.shape_cast %38 : vector<32x8x32xf32> to vector<2x4x4x8x32xf32>
    %40 = vector.extract_strided_slice %39 {offsets = [0, 0, 0, 0, 0], sizes = [1, 4, 4, 8, 32], strides = [1, 1, 1, 1, 1]} : vector<2x4x4x8x32xf32> to vector<1x4x4x8x32xf32>
    %41 = vector.shape_cast %40 : vector<1x4x4x8x32xf32> to vector<4x4x8x32xf32>
    %42 = vector.extract_strided_slice %39 {offsets = [1, 0, 0, 0, 0], sizes = [1, 4, 4, 8, 32], strides = [1, 1, 1, 1, 1]} : vector<2x4x4x8x32xf32> to vector<1x4x4x8x32xf32>
    %43 = vector.shape_cast %42 : vector<1x4x4x8x32xf32> to vector<4x4x8x32xf32>
    %44 = vector.extract_strided_slice %41 {offsets = [0, 0, 0, 0], sizes = [4, 1, 8, 32], strides = [1, 1, 1, 1]} : vector<4x4x8x32xf32> to vector<4x1x8x32xf32>
    %45 = vector.shape_cast %44 : vector<4x1x8x32xf32> to vector<4x8x32xf32>
    %46 = vector.shape_cast %45 : vector<4x8x32xf32> to vector<4x8x1x32xf32>
    %47 = vector.extract_strided_slice %43 {offsets = [0, 0, 0, 0], sizes = [4, 1, 8, 32], strides = [1, 1, 1, 1]} : vector<4x4x8x32xf32> to vector<4x1x8x32xf32>
    %48 = vector.shape_cast %47 : vector<4x1x8x32xf32> to vector<4x8x32xf32>
    %49 = vector.shape_cast %48 : vector<4x8x32xf32> to vector<4x1x8x32xf32>
    %50 = vector.broadcast %46 : vector<4x8x1x32xf32> to vector<4x8x8x32xf32>
    %51 = vector.broadcast %49 : vector<4x1x8x32xf32> to vector<4x8x8x32xf32>
    %52 = arith.mulf %50, %51 : vector<4x8x8x32xf32>
    %53 = vector.extract_strided_slice %41 {offsets = [0, 1, 0, 0], sizes = [4, 1, 8, 32], strides = [1, 1, 1, 1]} : vector<4x4x8x32xf32> to vector<4x1x8x32xf32>
    %54 = vector.shape_cast %53 : vector<4x1x8x32xf32> to vector<4x8x32xf32>
    %55 = vector.shape_cast %54 : vector<4x8x32xf32> to vector<4x8x1x32xf32>
    %56 = vector.extract_strided_slice %43 {offsets = [0, 1, 0, 0], sizes = [4, 1, 8, 32], strides = [1, 1, 1, 1]} : vector<4x4x8x32xf32> to vector<4x1x8x32xf32>
    %57 = vector.shape_cast %56 : vector<4x1x8x32xf32> to vector<4x8x32xf32>
    %58 = vector.shape_cast %57 : vector<4x8x32xf32> to vector<4x1x8x32xf32>
    %59 = vector.broadcast %55 : vector<4x8x1x32xf32> to vector<4x8x8x32xf32>
    %60 = vector.broadcast %58 : vector<4x1x8x32xf32> to vector<4x8x8x32xf32>
    %61 = arith.mulf %59, %60 : vector<4x8x8x32xf32>
    %62 = arith.addf %52, %61 : vector<4x8x8x32xf32>
    %63 = vector.extract_strided_slice %41 {offsets = [0, 2, 0, 0], sizes = [4, 1, 8, 32], strides = [1, 1, 1, 1]} : vector<4x4x8x32xf32> to vector<4x1x8x32xf32>
    %64 = vector.shape_cast %63 : vector<4x1x8x32xf32> to vector<4x8x32xf32>
    %65 = vector.shape_cast %64 : vector<4x8x32xf32> to vector<4x8x1x32xf32>
    %66 = vector.extract_strided_slice %43 {offsets = [0, 2, 0, 0], sizes = [4, 1, 8, 32], strides = [1, 1, 1, 1]} : vector<4x4x8x32xf32> to vector<4x1x8x32xf32>
    %67 = vector.shape_cast %66 : vector<4x1x8x32xf32> to vector<4x8x32xf32>
    %68 = vector.shape_cast %67 : vector<4x8x32xf32> to vector<4x1x8x32xf32>
    %69 = vector.broadcast %65 : vector<4x8x1x32xf32> to vector<4x8x8x32xf32>
    %70 = vector.broadcast %68 : vector<4x1x8x32xf32> to vector<4x8x8x32xf32>
    %71 = arith.mulf %69, %70 : vector<4x8x8x32xf32>
    %72 = arith.addf %62, %71 : vector<4x8x8x32xf32>
    %73 = vector.extract_strided_slice %41 {offsets = [0, 3, 0, 0], sizes = [4, 1, 8, 32], strides = [1, 1, 1, 1]} : vector<4x4x8x32xf32> to vector<4x1x8x32xf32>
    %74 = vector.shape_cast %73 : vector<4x1x8x32xf32> to vector<4x8x32xf32>
    %75 = vector.shape_cast %74 : vector<4x8x32xf32> to vector<4x8x1x32xf32>
    %76 = vector.extract_strided_slice %43 {offsets = [0, 3, 0, 0], sizes = [4, 1, 8, 32], strides = [1, 1, 1, 1]} : vector<4x4x8x32xf32> to vector<4x1x8x32xf32>
    %77 = vector.shape_cast %76 : vector<4x1x8x32xf32> to vector<4x8x32xf32>
    %78 = vector.shape_cast %77 : vector<4x8x32xf32> to vector<4x1x8x32xf32>
    %79 = vector.broadcast %75 : vector<4x8x1x32xf32> to vector<4x8x8x32xf32>
    %80 = vector.broadcast %78 : vector<4x1x8x32xf32> to vector<4x8x8x32xf32>
    %81 = arith.mulf %79, %80 : vector<4x8x8x32xf32>
    %82 = arith.addf %72, %81 : vector<4x8x8x32xf32>
    %cst_20 = arith.constant dense<0xFF800000> : vector<4x8x32xf32>
    %83 = vector.multi_reduction <maximumf>, %82, %cst_20 [2] : vector<4x8x8x32xf32> to vector<4x8x32xf32>
    %84 = vector.shape_cast %83 : vector<4x8x32xf32> to vector<4x8x1x32xf32>
    %85 = vector.broadcast %84 : vector<4x8x1x32xf32> to vector<4x8x8x32xf32>
    %86 = arith.subf %82, %85 : vector<4x8x8x32xf32>
    %87 = math.exp %86 : vector<4x8x8x32xf32>
    %cst_21 = arith.constant dense<0.000000e+00> : vector<4x8x32xf32>
    %88 = vector.multi_reduction <add>, %87, %cst_21 [2] : vector<4x8x8x32xf32> to vector<4x8x32xf32>
    %89 = vector.shape_cast %88 : vector<4x8x32xf32> to vector<4x8x1x32xf32>
    %90 = tpu.reciprocal %89 {approx = true} : vector<4x8x1x32xf32> -> vector<4x8x1x32xf32>
    %91 = vector.broadcast %90 : vector<4x8x1x32xf32> to vector<4x8x8x32xf32>
    %92 = arith.mulf %87, %91 : vector<4x8x8x32xf32>
    %93 = vector.extract_strided_slice %35 {offsets = [32, 0], sizes = [16, 256], strides = [1, 1]} : vector<48x256xf32> to vector<16x256xf32>
    %94 = vector.shape_cast %93 : vector<16x256xf32> to vector<16x32x8xf32>
    %95 = tpu.transpose %94, [0, 2, 1] : vector<16x32x8xf32> -> vector<16x8x32xf32>
    %96 = vector.shape_cast %95 : vector<16x8x32xf32> to vector<4x4x8x32xf32>
    %97 = vector.extract_strided_slice %96 {offsets = [0, 0, 0, 0], sizes = [4, 1, 8, 32], strides = [1, 1, 1, 1]} : vector<4x4x8x32xf32> to vector<4x1x8x32xf32>
    %98 = vector.shape_cast %97 : vector<4x1x8x32xf32> to vector<4x8x32xf32>
    %99 = vector.shape_cast %98 : vector<4x8x32xf32> to vector<4x1x8x32xf32>
    %100 = vector.broadcast %99 : vector<4x1x8x32xf32> to vector<4x8x8x32xf32>
    %101 = arith.mulf %92, %100 : vector<4x8x8x32xf32>
    %cst_22 = arith.constant dense<0.000000e+00> : vector<4x8x32xf32>
    %102 = vector.multi_reduction <add>, %101, %cst_22 [2] : vector<4x8x8x32xf32> to vector<4x8x32xf32>
    %103 = vector.extract_strided_slice %96 {offsets = [0, 1, 0, 0], sizes = [4, 1, 8, 32], strides = [1, 1, 1, 1]} : vector<4x4x8x32xf32> to vector<4x1x8x32xf32>
    %104 = vector.shape_cast %103 : vector<4x1x8x32xf32> to vector<4x8x32xf32>
    %105 = vector.shape_cast %104 : vector<4x8x32xf32> to vector<4x1x8x32xf32>
    %106 = vector.broadcast %105 : vector<4x1x8x32xf32> to vector<4x8x8x32xf32>
    %107 = arith.mulf %92, %106 : vector<4x8x8x32xf32>
    %cst_23 = arith.constant dense<0.000000e+00> : vector<4x8x32xf32>
    %108 = vector.multi_reduction <add>, %107, %cst_23 [2] : vector<4x8x8x32xf32> to vector<4x8x32xf32>
    %109 = vector.extract_strided_slice %96 {offsets = [0, 2, 0, 0], sizes = [4, 1, 8, 32], strides = [1, 1, 1, 1]} : vector<4x4x8x32xf32> to vector<4x1x8x32xf32>
    %110 = vector.shape_cast %109 : vector<4x1x8x32xf32> to vector<4x8x32xf32>
    %111 = vector.shape_cast %110 : vector<4x8x32xf32> to vector<4x1x8x32xf32>
    %112 = vector.broadcast %111 : vector<4x1x8x32xf32> to vector<4x8x8x32xf32>
    %113 = arith.mulf %92, %112 : vector<4x8x8x32xf32>
    %cst_24 = arith.constant dense<0.000000e+00> : vector<4x8x32xf32>
    %114 = vector.multi_reduction <add>, %113, %cst_24 [2] : vector<4x8x8x32xf32> to vector<4x8x32xf32>
    %115 = vector.extract_strided_slice %96 {offsets = [0, 3, 0, 0], sizes = [4, 1, 8, 32], strides = [1, 1, 1, 1]} : vector<4x4x8x32xf32> to vector<4x1x8x32xf32>
    %116 = vector.shape_cast %115 : vector<4x1x8x32xf32> to vector<4x8x32xf32>
    %117 = vector.shape_cast %116 : vector<4x8x32xf32> to vector<4x1x8x32xf32>
    %118 = vector.broadcast %117 : vector<4x1x8x32xf32> to vector<4x8x8x32xf32>
    %119 = arith.mulf %92, %118 : vector<4x8x8x32xf32>
    %cst_25 = arith.constant dense<0.000000e+00> : vector<4x8x32xf32>
    %120 = vector.multi_reduction <add>, %119, %cst_25 [2] : vector<4x8x8x32xf32> to vector<4x8x32xf32>
    %121 = vector.shape_cast %102 : vector<4x8x32xf32> to vector<4x1x8x32xf32>
    %122 = vector.shape_cast %108 : vector<4x8x32xf32> to vector<4x1x8x32xf32>
    %123 = vector.shape_cast %114 : vector<4x8x32xf32> to vector<4x1x8x32xf32>
    %124 = vector.shape_cast %120 : vector<4x8x32xf32> to vector<4x1x8x32xf32>
    %125 = tpu.concatenate %121, %122, %123, %124 in 1 : vector<4x1x8x32xf32>, vector<4x1x8x32xf32>, vector<4x1x8x32xf32>, vector<4x1x8x32xf32> -> vector<4x4x8x32xf32>
    %126 = vector.shape_cast %125 : vector<4x4x8x32xf32> to vector<16x8x32xf32>
    %127 = tpu.transpose %126, [0, 2, 1] : vector<16x8x32xf32> -> vector<16x32x8xf32>
    %128 = vector.shape_cast %127 : vector<16x32x8xf32> to vector<16x256xf32>
    %c0_26 = arith.constant 0 : index
    %c0_27 = arith.constant 0 : index
    %129 = vector.load %arg9[%c0_26, %c0_27] : memref<16x16xf32, #tpu.memory_space<vmem>>, vector<16x16xf32>
    %cst_28 = arith.constant dense<0.000000e+00> : vector<16x256xf32>
    %130 = tpu.matmul %129, %128, %cst_28 {dimension_numbers = #tpu.dot_dimension_numbers<[1], [0], [0], [1], [0, 0, 1, 1], [], []>} : vector<16x16xf32>, vector<16x256xf32>, vector<16x256xf32> -> vector<16x256xf32>
    %c0_29 = arith.constant 0 : index
    %c0_30 = arith.constant 0 : index
    %131 = vector.load %arg10[%c0_29, %c0_30] : memref<16x1xf32, #tpu.memory_space<vmem>>, vector<16x1xf32>
    %132 = vector.broadcast %131 : vector<16x1xf32> to vector<16x256xf32>
    %133 = arith.addf %130, %132 : vector<16x256xf32>
    %134 = arith.addf %6, %133 : vector<16x256xf32>
    %c0_31 = arith.constant 0 : index
    %c0_32 = arith.constant 0 : index
    %c0_33 = arith.constant 0 : index
    %135 = vector.load %arg11[%c0_31, %c0_32, %c0_33] : memref<1x16x256xf32, #tpu.memory_space<vmem>>, vector<1x16x256xf32>
    %136 = vector.shape_cast %135 : vector<1x16x256xf32> to vector<16x256xf32>
    %137 = vector.shape_cast %134 : vector<16x256xf32> to vector<1x16x256xf32>
    tpu.vector_store %arg11[%c0_31, %c0_32, %c0_33], %137 {strides = array<i32>} : memref<1x16x256xf32, #tpu.memory_space<vmem>>, vector<1x16x256xf32>,
    return
  }
  func.func @transform_0(%arg0: i32, %arg1: i32) -> (i32, i32, i32) {
    %c0_i32 = arith.constant 0 : i32
    %c0_i32_0 = arith.constant 0 : i32
    return %arg0, %c0_i32, %arg1 : i32, i32, i32
  }
  func.func @transform_1(%arg0: i32, %arg1: i32) -> (i32, i32) {
    %c0_i32 = arith.constant 0 : i32
    %c0_i32_0 = arith.constant 0 : i32
    %c0_i32_1 = arith.constant 0 : i32
    return %c0_i32, %c0_i32_0 : i32, i32
  }
  func.func @transform_2(%arg0: i32, %arg1: i32) -> (i32, i32) {
    %c0_i32 = arith.constant 0 : i32
    %c0_i32_0 = arith.constant 0 : i32
    %c0_i32_1 = arith.constant 0 : i32
    return %c0_i32, %c0_i32_0 : i32, i32
  }
  func.func @transform_3(%arg0: i32, %arg1: i32) -> (i32, i32) {
    %c0_i32 = arith.constant 0 : i32
    %c0_i32_0 = arith.constant 0 : i32
    %c0_i32_1 = arith.constant 0 : i32
    return %c0_i32, %c0_i32_0 : i32, i32
  }
  func.func @transform_4(%arg0: i32, %arg1: i32) -> (i32, i32) {
    %c0_i32 = arith.constant 0 : i32
    %c0_i32_0 = arith.constant 0 : i32
    %c0_i32_1 = arith.constant 0 : i32
    return %c0_i32, %c0_i32_0 : i32, i32
  }
  func.func @transform_5(%arg0: i32, %arg1: i32) -> (i32, i32) {
    %c0_i32 = arith.constant 0 : i32
    %c0_i32_0 = arith.constant 0 : i32
    %c0_i32_1 = arith.constant 0 : i32
    return %c0_i32, %c0_i32_0 : i32, i32
  }
  func.func @transform_6(%arg0: i32, %arg1: i32) -> (i32, i32) {
    %c0_i32 = arith.constant 0 : i32
    %c0_i32_0 = arith.constant 0 : i32
    %c0_i32_1 = arith.constant 0 : i32
    return %c0_i32, %c0_i32_0 : i32, i32
  }
  func.func @transform_7(%arg0: i32, %arg1: i32) -> (i32, i32) {
    %c0_i32 = arith.constant 0 : i32
    %c0_i32_0 = arith.constant 0 : i32
    %c0_i32_1 = arith.constant 0 : i32
    return %c0_i32, %c0_i32_0 : i32, i32
  }
  func.func @transform_8(%arg0: i32, %arg1: i32) -> (i32, i32) {
    %c0_i32 = arith.constant 0 : i32
    %c0_i32_0 = arith.constant 0 : i32
    %c0_i32_1 = arith.constant 0 : i32
    return %c0_i32, %c0_i32_0 : i32, i32
  }
  func.func @transform_9(%arg0: i32, %arg1: i32) -> (i32, i32, i32) {
    %c0_i32 = arith.constant 0 : i32
    %c0_i32_0 = arith.constant 0 : i32
    return %arg0, %c0_i32, %arg1 : i32, i32, i32
  }
}

</mosaic_0001>

<llo_original>
// kernel: center_pivot_conv4d_forward.1
$region0: #{center_pivot_conv4d_forward.1}
  #allocation0 [shape = 'u32[]', space=smem, size = 0x4, offset = 0x4, fixed_abs, tag = 'smem constant byte address 0x4 - core index']
  #allocation1 [shape = 'u32[144,128]{1,0:T(1,128)}', space=vmem, size = 0x12000, scoped, tag = 'internal scratch']
  %s0 = inlined_call_operand.vmem [shape: f32[2,36,512], index: 0, kind: input, shape index: {}]
  %s1 = inlined_call_operand.vmem [shape: f32[16,36], index: 1, kind: input, shape index: {}]
  %s2 = inlined_call_operand.vmem [shape: f32[16,1], index: 2, kind: input, shape index: {}]
  %s3 = inlined_call_operand.vmem [shape: f32[16,1], index: 3, kind: input, shape index: {}]
  %s4 = inlined_call_operand.vmem [shape: f32[16,1], index: 4, kind: input, shape index: {}]
  %s5 = inlined_call_operand.vmem [shape: f32[48,16], index: 5, kind: input, shape index: {}]
  %s6 = inlined_call_operand.vmem [shape: f32[48,1], index: 6, kind: input, shape index: {}]
  %s7 = inlined_call_operand.vmem [shape: f32[16,16], index: 7, kind: input, shape index: {}]
  %s8 = inlined_call_operand.vmem [shape: f32[16,1], index: 8, kind: input, shape index: {}]
  %s9 = inlined_call_operand.vmem [shape: f32[2,16,512], index: 9, kind: output, shape index: {}]
  %s10 = sld [smem:[#allocation0]]
  $region111: #{center_pivot_conv4d_forward.1} parent=0
    _
  %s12 = ssub.s32 1, %s10
  %s13 = scalar_select 0, %s12, %s10
  $region1: #{center_pivot_conv4d_forward.1} parent=0
    #allocation2 [shape = 'u8[81920]{0}', space=vmem, size = 0x14000, scoped, tag = 'input window, operand 0']
    #allocation3 [shape = 'u8[32768]{0}', space=vmem, size = 0x8000, scoped, tag = 'output window, operand 0']
    loop: start=0, step=1, limit=6
    $region2: #{center_pivot_conv4d_forward.1} parent=1 // loop_pre_header
      _
    $region3: #{center_pivot_conv4d_forward.1} parent=1 // loop_header
      %s15 = sphi 0, %s19
      %p16 = scmp.ge.s32.totalorder %s15, 6
      %s22 = sphi 0, %s34
      %s23 = sphi 0, %s30
      %s24 = sphi 0, %s22
      %s25 = sphi 0, %s23
      %s26 = sphi 0, %s24
      %s27 = sphi 0, %s25
      %s39 = sphi 0, %s41
      %s42 = sphi 0, %s39
      %s43 = sphi 0, %s42
      %s59 = sphi 0, %s43
      %s63 = sphi 0, %s63
      %s65 = sphi 0, %s63
      %s66 = sphi 0, %s65
      %s80 = sphi 0, %s66
      %s84 = sphi 0, %s84
      %s86 = sphi 0, %s84
      %s87 = sphi 0, %s86
      %s101 = sphi 0, %s87
      %s105 = sphi 0, %s105
      %s107 = sphi 0, %s105
      %s108 = sphi 0, %s107
      %s122 = sphi 0, %s108
      %s126 = sphi 0, %s126
      %s128 = sphi 0, %s126
      %s129 = sphi 0, %s128
      %s143 = sphi 0, %s129
      %s147 = sphi 0, %s147
      %s149 = sphi 0, %s147
      %s150 = sphi 0, %s149
      %s164 = sphi 0, %s150
      %s168 = sphi 0, %s168
      %s170 = sphi 0, %s168
      %s171 = sphi 0, %s170
      %s185 = sphi 0, %s171
      %s189 = sphi 0, %s189
      %s191 = sphi 0, %s189
      %s192 = sphi 0, %s191
      %s206 = sphi 0, %s192
      %s210 = sphi 0, %s210
      %s212 = sphi 0, %s210
      %s213 = sphi 0, %s212
      %s227 = sphi 0, %s213
      %s235 = sphi 0, %s237
      %s238 = sphi 0, %s235
      %s239 = sphi 0, %s238
      %s255 = sphi 0, %s239
    $region4: #{center_pivot_conv4d_forward.1} parent=1 // loop_header_branch
      %18 = sbr.rel (%p16) target = $region8
    $region5: #{center_pivot_conv4d_forward.1} parent=1 // loop_body
      %s20 = ssub.s32 %s15, 1
      %s21 = ssub.s32 %s15, 2
      %s28 = sadd.s32 1, %s23
      %p29 = scmp.ge.s32.totalorder %s28, 2
      %s30 = scalar_select %p29, 0, %s28
      %s31 = sadd.s32 1, %s22
      %s32 = scalar_select %p29, %s31, %s22
      %p33 = scmp.ge.s32.totalorder %s32, 2
      %s34 = scalar_select %p33, 0, %s32
      %s35 = ssub.s32 %s22, %s34
      %s36 = ssub.s32 %s23, %s30
      %s37 = sor.u32 %s35, %s36
      %p38 = scmp.eq.s32.totalorder %s37, 0
      %s40 = sadd.s32 %s39, 1
      %s41 = scalar_select %p38, %s39, %s40
      %p44 = pneg %p38
      %p45 = scmp.eq.s32.totalorder %s15, 3
      %p46 = por %p44, %p45
      %p47 = scmp.ne.s32.totalorder %s39, %s42
      %p48 = scmp.eq.s32.totalorder %s15, 0
      %p49 = por %p47, %p48
      %p50 = scmp.ne.s32.totalorder %s39, %s42
      %p51 = scmp.eq.s32.totalorder %s20, 3
      %p52 = por %p50, %p51
      %p53 = scmp.ne.s32.totalorder %s42, %s43
      %p54 = scmp.eq.s32.totalorder %s20, 0
      %p55 = por %p53, %p54
      %p56 = scmp.ne.s32.totalorder %s42, %s43
      %p57 = scmp.eq.s32.totalorder %s21, 3
      %p58 = por %p56, %p57
      %p60 = scmp.ne.s32.totalorder %s43, %s59
      %p61 = scmp.eq.s32.totalorder %s21, 0
      %p62 = por %p60, %p61
      %s64 = sadd.s32 %s63, 1
      %p67 = scmp.eq.s32.totalorder %s15, 3
      %p68 = scmp.ne.s32.totalorder %s63, %s65
      %p69 = scmp.eq.s32.totalorder %s15, 0
      %p70 = por %p68, %p69
      %p71 = scmp.ne.s32.totalorder %s63, %s65
      %p72 = scmp.eq.s32.totalorder %s20, 3
      %p73 = por %p71, %p72
      %p74 = scmp.ne.s32.totalorder %s65, %s66
      %p75 = scmp.eq.s32.totalorder %s20, 0
      %p76 = por %p74, %p75
      %p77 = scmp.ne.s32.totalorder %s65, %s66
      %p78 = scmp.eq.s32.totalorder %s21, 3
      %p79 = por %p77, %p78
      %p81 = scmp.ne.s32.totalorder %s66, %s80
      %p82 = scmp.eq.s32.totalorder %s21, 0
      %p83 = por %p81, %p82
      %s85 = sadd.s32 %s84, 1
      %p88 = scmp.eq.s32.totalorder %s15, 3
      %p89 = scmp.ne.s32.totalorder %s84, %s86
      %p90 = scmp.eq.s32.totalorder %s15, 0
      %p91 = por %p89, %p90
      %p92 = scmp.ne.s32.totalorder %s84, %s86
      %p93 = scmp.eq.s32.totalorder %s20, 3
      %p94 = por %p92, %p93
      %p95 = scmp.ne.s32.totalorder %s86, %s87
      %p96 = scmp.eq.s32.totalorder %s20, 0
      %p97 = por %p95, %p96
      %p98 = scmp.ne.s32.totalorder %s86, %s87
      %p99 = scmp.eq.s32.totalorder %s21, 3
      %p100 = por %p98, %p99
      %p102 = scmp.ne.s32.totalorder %s87, %s101
      %p103 = scmp.eq.s32.totalorder %s21, 0
      %p104 = por %p102, %p103
      %s106 = sadd.s32 %s105, 1
      %p109 = scmp.eq.s32.totalorder %s15, 3
      %p110 = scmp.ne.s32.totalorder %s105, %s107
      %p111 = scmp.eq.s32.totalorder %s15, 0
      %p112 = por %p110, %p111
      %p113 = scmp.ne.s32.totalorder %s105, %s107
      %p114 = scmp.eq.s32.totalorder %s20, 3
      %p115 = por %p113, %p114
      %p116 = scmp.ne.s32.totalorder %s107, %s108
      %p117 = scmp.eq.s32.totalorder %s20, 0
      %p118 = por %p116, %p117
      %p119 = scmp.ne.s32.totalorder %s107, %s108
      %p120 = scmp.eq.s32.totalorder %s21, 3
      %p121 = por %p119, %p120
      %p123 = scmp.ne.s32.totalorder %s108, %s122
      %p124 = scmp.eq.s32.totalorder %s21, 0
      %p125 = por %p123, %p124
      %s127 = sadd.s32 %s126, 1
      %p130 = scmp.eq.s32.totalorder %s15, 3
      %p131 = scmp.ne.s32.totalorder %s126, %s128
      %p132 = scmp.eq.s32.totalorder %s15, 0
      %p133 = por %p131, %p132
      %p134 = scmp.ne.s32.totalorder %s126, %s128
      %p135 = scmp.eq.s32.totalorder %s20, 3
      %p136 = por %p134, %p135
      %p137 = scmp.ne.s32.totalorder %s128, %s129
      %p138 = scmp.eq.s32.totalorder %s20, 0
      %p139 = por %p137, %p138
      %p140 = scmp.ne.s32.totalorder %s128, %s129
      %p141 = scmp.eq.s32.totalorder %s21, 3
      %p142 = por %p140, %p141
      %p144 = scmp.ne.s32.totalorder %s129, %s143
      %p145 = scmp.eq.s32.totalorder %s21, 0
      %p146 = por %p144, %p145
      %s148 = sadd.s32 %s147, 1
      %p151 = scmp.eq.s32.totalorder %s15, 3
      %p152 = scmp.ne.s32.totalorder %s147, %s149
      %p153 = scmp.eq.s32.totalorder %s15, 0
      %p154 = por %p152, %p153
      %p155 = scmp.ne.s32.totalorder %s147, %s149
      %p156 = scmp.eq.s32.totalorder %s20, 3
      %p157 = por %p155, %p156
      %p158 = scmp.ne.s32.totalorder %s149, %s150
      %p159 = scmp.eq.s32.totalorder %s20, 0
      %p160 = por %p158, %p159
      %p161 = scmp.ne.s32.totalorder %s149, %s150
      %p162 = scmp.eq.s32.totalorder %s21, 3
      %p163 = por %p161, %p162
      %p165 = scmp.ne.s32.totalorder %s150, %s164
      %p166 = scmp.eq.s32.totalorder %s21, 0
      %p167 = por %p165, %p166
      %s169 = sadd.s32 %s168, 1
      %p172 = scmp.eq.s32.totalorder %s15, 3
      %p173 = scmp.ne.s32.totalorder %s168, %s170
      %p174 = scmp.eq.s32.totalorder %s15, 0
      %p175 = por %p173, %p174
      %p176 = scmp.ne.s32.totalorder %s168, %s170
      %p177 = scmp.eq.s32.totalorder %s20, 3
      %p178 = por %p176, %p177
      %p179 = scmp.ne.s32.totalorder %s170, %s171
      %p180 = scmp.eq.s32.totalorder %s20, 0
      %p181 = por %p179, %p180
      %p182 = scmp.ne.s32.totalorder %s170, %s171
      %p183 = scmp.eq.s32.totalorder %s21, 3
      %p184 = por %p182, %p183
      %p186 = scmp.ne.s32.totalorder %s171, %s185
      %p187 = scmp.eq.s32.totalorder %s21, 0
      %p188 = por %p186, %p187
      %s190 = sadd.s32 %s189, 1
      %p193 = scmp.eq.s32.totalorder %s15, 3
      %p194 = scmp.ne.s32.totalorder %s189, %s191
      %p195 = scmp.eq.s32.totalorder %s15, 0
      %p196 = por %p194, %p195
      %p197 = scmp.ne.s32.totalorder %s189, %s191
      %p198 = scmp.eq.s32.totalorder %s20, 3
      %p199 = por %p197, %p198
      %p200 = scmp.ne.s32.totalorder %s191, %s192
      %p201 = scmp.eq.s32.totalorder %s20, 0
      %p202 = por %p200, %p201
      %p203 = scmp.ne.s32.totalorder %s191, %s192
      %p204 = scmp.eq.s32.totalorder %s21, 3
      %p205 = por %p203, %p204
      %p207 = scmp.ne.s32.totalorder %s192, %s206
      %p208 = scmp.eq.s32.totalorder %s21, 0
      %p209 = por %p207, %p208
      %s211 = sadd.s32 %s210, 1
      %p214 = scmp.eq.s32.totalorder %s15, 3
      %p215 = scmp.ne.s32.totalorder %s210, %s212
      %p216 = scmp.eq.s32.totalorder %s15, 0
      %p217 = por %p215, %p216
      %p218 = scmp.ne.s32.totalorder %s210, %s212
      %p219 = scmp.eq.s32.totalorder %s20, 3
      %p220 = por %p218, %p219
      %p221 = scmp.ne.s32.totalorder %s212, %s213
      %p222 = scmp.eq.s32.totalorder %s20, 0
      %p223 = por %p221, %p222
      %p224 = scmp.ne.s32.totalorder %s212, %s213
      %p225 = scmp.eq.s32.totalorder %s21, 3
      %p226 = por %p224, %p225
      %p228 = scmp.ne.s32.totalorder %s213, %s227
      %p229 = scmp.eq.s32.totalorder %s21, 0
      %p230 = por %p228, %p229
      %s231 = ssub.s32 %s22, %s34
      %s232 = ssub.s32 %s23, %s30
      %s233 = sor.u32 %s231, %s232
      %p234 = scmp.eq.s32.totalorder %s233, 0
      %s236 = sadd.s32 %s235, 1
      %s237 = scalar_select %p234, %s235, %s236
      %p240 = pneg %p234
      %p241 = scmp.eq.s32.totalorder %s15, 3
      %p242 = por %p240, %p241
      %p243 = scmp.ne.s32.totalorder %s235, %s238
      %p244 = scmp.eq.s32.totalorder %s15, 0
      %p245 = por %p243, %p244
      %p246 = scmp.ne.s32.totalorder %s235, %s238
      %p247 = scmp.eq.s32.totalorder %s20, 3
      %p248 = por %p246, %p247
      %p249 = scmp.ne.s32.totalorder %s238, %s239
      %p250 = scmp.eq.s32.totalorder %s20, 0
      %p251 = por %p249, %p250
      %p252 = scmp.ne.s32.totalorder %s238, %s239
      %p253 = scmp.eq.s32.totalorder %s21, 3
      %p254 = por %p252, %p253
      %p256 = scmp.ne.s32.totalorder %s239, %s255
      %p257 = scmp.eq.s32.totalorder %s21, 0
      %p258 = por %p256, %p257
      %p259 = scmp.le.s32.totalorder 1, %s15
      %p260 = scmp.lt.s32.totalorder %s15, 5
      %p261 = pnand %p259, %p260
      %p262 = pneg %p261
      // Predicated region
      $region9: #{center_pivot_conv4d_forward.1} parent=5 // pred_check
        _
      $region10: #{center_pivot_conv4d_forward.1} parent=5 // pred_check_branch
        %264 = sbr.rel (%p261) target = $region12
      $region11: #{center_pivot_conv4d_forward.1} parent=5 // pred_region
        %s265 = ssub.s32 %s15, 1
        // Predicated region
        $region13: #{center_pivot_conv4d_forward.1} parent=11 // pred_check
          %p266 = pneg %p76
        $region14: #{center_pivot_conv4d_forward.1} parent=11 // pred_check_branch
          %268 = sbr.rel (%p266) target = $region16
        $region15: #{center_pivot_conv4d_forward.1} parent=11 // pred_region
          _
        $region16: #{center_pivot_conv4d_forward.1} parent=11 // pred_fallthru
          _
        // Predicated region
        $region17: #{center_pivot_conv4d_forward.1} parent=11 // pred_check
          %p269 = pneg %p97
        $region18: #{center_pivot_conv4d_forward.1} parent=11 // pred_check_branch
          %271 = sbr.rel (%p269) target = $region20
        $region19: #{center_pivot_conv4d_forward.1} parent=11 // pred_region
          _
        $region20: #{center_pivot_conv4d_forward.1} parent=11 // pred_fallthru
          _
        // Predicated region
        $region21: #{center_pivot_conv4d_forward.1} parent=11 // pred_check
          %p272 = pneg %p118
        $region22: #{center_pivot_conv4d_forward.1} parent=11 // pred_check_branch
          %274 = sbr.rel (%p272) target = $region24
        $region23: #{center_pivot_conv4d_forward.1} parent=11 // pred_region
          _
        $region24: #{center_pivot_conv4d_forward.1} parent=11 // pred_fallthru
          _
        // Predicated region
        $region25: #{center_pivot_conv4d_forward.1} parent=11 // pred_check
          %p275 = pneg %p139
        $region26: #{center_pivot_conv4d_forward.1} parent=11 // pred_check_branch
          %277 = sbr.rel (%p275) target = $region28
        $region27: #{center_pivot_conv4d_forward.1} parent=11 // pred_region
          _
        $region28: #{center_pivot_conv4d_forward.1} parent=11 // pred_fallthru
          _
        // Predicated region
        $region29: #{center_pivot_conv4d_forward.1} parent=11 // pred_check
          %p278 = pneg %p160
        $region30: #{center_pivot_conv4d_forward.1} parent=11 // pred_check_branch
          %280 = sbr.rel (%p278) target = $region32
        $region31: #{center_pivot_conv4d_forward.1} parent=11 // pred_region
          _
        $region32: #{center_pivot_conv4d_forward.1} parent=11 // pred_fallthru
          _
        // Predicated region
        $region33: #{center_pivot_conv4d_forward.1} parent=11 // pred_check
          %p281 = pneg %p181
        $region34: #{center_pivot_conv4d_forward.1} parent=11 // pred_check_branch
          %283 = sbr.rel (%p281) target = $region36
        $region35: #{center_pivot_conv4d_forward.1} parent=11 // pred_region
          _
        $region36: #{center_pivot_conv4d_forward.1} parent=11 // pred_fallthru
          _
        // Predicated region
        $region37: #{center_pivot_conv4d_forward.1} parent=11 // pred_check
          %p284 = pneg %p202
        $region38: #{center_pivot_conv4d_forward.1} parent=11 // pred_check_branch
          %286 = sbr.rel (%p284) target = $region40
        $region39: #{center_pivot_conv4d_forward.1} parent=11 // pred_region
          _
        $region40: #{center_pivot_conv4d_forward.1} parent=11 // pred_fallthru
          _
        // Predicated region
        $region41: #{center_pivot_conv4d_forward.1} parent=11 // pred_check
          %p287 = pneg %p223
        $region42: #{center_pivot_conv4d_forward.1} parent=11 // pred_check_branch
          %289 = sbr.rel (%p287) target = $region44
        $region43: #{center_pivot_conv4d_forward.1} parent=11 // pred_region
          _
        $region44: #{center_pivot_conv4d_forward.1} parent=11 // pred_fallthru
          _
      $region12: #{center_pivot_conv4d_forward.1} parent=5 // pred_fallthru
        _
      %p290 = scmp.lt.s32.totalorder %s15, 4
      // Predicated region
      $region45: #{center_pivot_conv4d_forward.1} parent=5 // pred_check
        %p291 = pneg %p290
      $region46: #{center_pivot_conv4d_forward.1} parent=5 // pred_check_branch
        %293 = sbr.rel (%p291) target = $region48
      $region47: #{center_pivot_conv4d_forward.1} parent=5 // pred_region
        // Predicated region
        $region49: #{center_pivot_conv4d_forward.1} parent=47 // pred_check
          %p294 = pneg %p49
        $region50: #{center_pivot_conv4d_forward.1} parent=47 // pred_check_branch
          %296 = sbr.rel (%p294) target = $region52
        $region51: #{center_pivot_conv4d_forward.1} parent=47 // pred_region
          %s297 = sand.u32 %s39, 1
          %s298 = sand.u32 %s39, 1
          %s299 = smul.addr %s298, 80
          %s300 = scalar_lea.vmem [#allocation2], %s299
          %s301 = smul.u32 2, %s23
          %s302 = smul.addr %s22, 20
          %s303 = sadd.s32 %s301, %s302
          %s304 = smul.addr %s303, 8
          %s305 = scalar_lea.vmem %s0, %s304
          // Predicated region
          $region53: #{center_pivot_conv4d_forward.1} parent=51 // pred_check
            _
          $region54: #{center_pivot_conv4d_forward.1} parent=51 // pred_check_branch
            %307 = sbr.rel (0) target = $region56
          $region55: #{center_pivot_conv4d_forward.1} parent=51 // pred_region
            // Predicated region
            $region57: #{center_pivot_conv4d_forward.1} parent=55 // pred_check
              _
            $region58: #{center_pivot_conv4d_forward.1} parent=55 // pred_check_branch
              %309 = sbr.rel (0) target = $region60
            $region59: #{center_pivot_conv4d_forward.1} parent=55 // pred_region
              loop: start=0, step=1, limit=1
              $region61: #{center_pivot_conv4d_forward.1} parent=59 // loop_pre_header
                _
              $region62: #{center_pivot_conv4d_forward.1} parent=59 // loop_header
                %s311 = sphi 0, %s315
                %p312 = scmp.ge.s32.totalorder %s311, 1
                %s316 = sphi %s305, %s305
                %s317 = sphi %s300, %s300
              $region63: #{center_pivot_conv4d_forward.1} parent=59 // loop_header_branch
                %314 = sbr.rel (%p312) target = $region67
              $region64: #{center_pivot_conv4d_forward.1} parent=59 // loop_body
                %v318 = vld [vmem:[%s316] sm:$0xff]
                %319 = vst [vmem:[%s317] sm:$0xff] %v318
                %v320 = vld [vmem:[%s316 + $0x8] sm:$0xff]
                %321 = vst [vmem:[%s317 + $0x8] sm:$0xff] %v320
                %v322 = vld [vmem:[%s316 + $0x20] sm:$0xff]
                %323 = vst [vmem:[%s317 + $0x10] sm:$0xff] %v322
                %v324 = vld [vmem:[%s316 + $0x28] sm:$0xff]
                %325 = vst [vmem:[%s317 + $0x18] sm:$0xff] %v324
                %v326 = vld [vmem:[%s316 + $0x40] sm:$0xff]
                %327 = vst [vmem:[%s317 + $0x20] sm:$0xff] %v326
                %v328 = vld [vmem:[%s316 + $0x48] sm:$0xff]
                %329 = vst [vmem:[%s317 + $0x28] sm:$0xff] %v328
                %v330 = vld [vmem:[%s316 + $0x60] sm:$0xff]
                %331 = vst [vmem:[%s317 + $0x30] sm:$0xff] %v330
                %v332 = vld [vmem:[%s316 + $0x68] sm:$0xff]
                %333 = vst [vmem:[%s317 + $0x38] sm:$0xff] %v332
                %v334 = vld [vmem:[%s316 + $0x80] sm:$0xff]
                %335 = vst [vmem:[%s317 + $0x40] sm:$0xff] %v334
                %v336 = vld [vmem:[%s316 + $0x88] sm:$0xff]
                %337 = vst [vmem:[%s317 + $0x48] sm:$0xff] %v336
              $region65: #{center_pivot_conv4d_forward.1} parent=59 // loop_footer
                %s315 = sadd.s32 1, %s311
              $region66: #{center_pivot_conv4d_forward.1} parent=59 // loop_footer_branch
                %310 = sbr.rel target = $region62
              $region67: #{center_pivot_conv4d_forward.1} parent=59 // loop_exit
                _
            $region60: #{center_pivot_conv4d_forward.1} parent=55 // pred_fallthru
              _
            // Predicated region
            $region68: #{center_pivot_conv4d_forward.1} parent=55 // pred_check
              _
            $region69: #{center_pivot_conv4d_forward.1} parent=55 // pred_check_branch
              %339 = sbr.rel target = $region71
            $region70: #{center_pivot_conv4d_forward.1} parent=55 // pred_region
              _
            $region71: #{center_pivot_conv4d_forward.1} parent=55 // pred_fallthru
              _
          $region56: #{center_pivot_conv4d_forward.1} parent=51 // pred_fallthru
            _
          %340 = vnop
        $region52: #{center_pivot_conv4d_forward.1} parent=47 // pred_fallthru
          _
      $region48: #{center_pivot_conv4d_forward.1} parent=5 // pred_fallthru
        _
      %p341 = scmp.le.s32.totalorder 1, %s15
      %p342 = scmp.lt.s32.totalorder %s15, 5
      %p343 = pnand %p341, %p342
      %p344 = pneg %p343
      // Predicated region
      $region72: #{center_pivot_conv4d_forward.1} parent=5 // pred_check
        _
      $region73: #{center_pivot_conv4d_forward.1} parent=5 // pred_check_branch
        %346 = sbr.rel (%p343) target = $region75
      $region74: #{center_pivot_conv4d_forward.1} parent=5 // pred_region
        %s347 = ssub.s32 %s15, 1
        %s348 = sand.u32 %s42, 1
        %s349 = sand.u32 %s42, 1
        %s350 = smul.addr %s349, 80
        %s351 = scalar_lea.vmem [#allocation2], %s350
        // Predicated region
        $region76: #{center_pivot_conv4d_forward.1} parent=74 // pred_check
          %p352 = pneg %p55
        $region77: #{center_pivot_conv4d_forward.1} parent=74 // pred_check_branch
          %354 = sbr.rel (%p352) target = $region79
        $region78: #{center_pivot_conv4d_forward.1} parent=74 // pred_region
          _
        $region79: #{center_pivot_conv4d_forward.1} parent=74 // pred_fallthru
          _
        %s355 = sand.u32 %s42, 1
        %s356 = sand.u32 %s42, 1
        %s357 = smul.addr %s356, 80
        %s358 = scalar_lea.vmem [#allocation2], %s357
        %p359 = pneg %p55
        %p360 = pneg %p52
        %p361 = pneg %p76
        %p362 = pneg %p73
        %p363 = pneg %p97
        %p364 = pneg %p94
        %p365 = pneg %p118
        %p366 = pneg %p115
        %p367 = pneg %p139
        %p368 = pneg %p136
        %p369 = pneg %p160
        %p370 = pneg %p157
        %p371 = pneg %p181
        %p372 = pneg %p178
        %p373 = pneg %p202
        %p374 = pneg %p199
        %p375 = pneg %p223
        %p376 = pneg %p220
        %p377 = pneg %p251
        %p378 = pneg %p248
        %s379 = sand.u32 %s238, 1
        %s380 = sand.u32 %s238, 1
        %s381 = smul.addr %s380, 32
        %s382 = scalar_lea.vmem [#allocation3], %s381
        %s383 = smul.u32 2, %s25
        %s384 = smul.u32 2, %s25
        %v385 = vld [vmem:[%s1] sm:$0xff]
        %v386 = vld [vmem:[%s1 + $0x8] sm:$0xff]
        %v387 = vld [vmem:[%s351] sm:$0xff]
        %v388 = vld [vmem:[%s351 + $0x8] sm:$0xff]
        %v389 = vld [vmem:[%s351 + $0x10] sm:$0xff]
        %v390 = vld [vmem:[%s351 + $0x18] sm:$0xff]
        %v391 = vld [vmem:[%s351 + $0x20] sm:$0xff]
        %v392 = vld [vmem:[%s351 + $0x28] sm:$0xff]
        %v393 = vld [vmem:[%s351 + $0x30] sm:$0xff]
        %v394 = vld [vmem:[%s351 + $0x38] sm:$0xff]
        %v395 = vld [vmem:[%s351 + $0x40] sm:$0xf]
        %v396 = vld [vmem:[%s351 + $0x48] sm:$0xf]
        %v397 = vld [vmem:[%s2] sm:$0xff]
        %v398 = vld [vmem:[%s2 + $0x8] sm:$0xff]
        %400 = vset.pattern.permute.xlu0 0
        %401 = vperm.xlu0 %400, %v397
        %v402 = vpop.permute.xlu0 %401
        %405 = vset.pattern.permute.xlu0 0
        %406 = vperm.xlu0 %405, %v398
        %v407 = vpop.permute.xlu0 %406
        %vm409 = vcmask 293888
        %v411 = vsel %vm409, %v385, 0
        %v414 = vsel %vm409, %v386, 0
        %vm416 = vcmask 1043456
        %v418 = vsel %vm416, %v395, 0
        %v421 = vsel %vm416, %v396, 0
        %423 = vmatprep.subr.mxu0 %v388
        %424 = vmatpush1.msra.mxu0 %v387
        %425 = vmatprep.subr.mxu0 %v390
        %426 = vmatpush1.msra.mxu0 %v389
        %427 = vmatprep.subr.mxu0 %v392
        %428 = vmatpush1.msra.mxu0 %v391
        %429 = vmatprep.subr.mxu0 %v394
        %430 = vmatpush1.msra.mxu0 %v393
        %431 = vmatprep.subr.mxu0 %v421
        %432 = vmatpush1.msra.mxu0 %v418
        %433 = vmatprep.subr.mxu0 0.0
        %434 = vmatpush1.msra.mxu0 0.0
        %435 = vmatprep.subr.mxu0 0.0
        %436 = vmatpush1.msra.mxu0 0.0
        %437 = vmatprep.subr.mxu0 0.0
        %438 = vmatpush1.msra.mxu0 0.0
        %439 = vmatprep.subr.mxu0 0.0
        %440 = vmatpush1.msra.mxu0 0.0
        %441 = vmatprep.subr.mxu0 0.0
        %442 = vmatpush1.msra.mxu0 0.0
        %443 = vmatprep.subr.mxu0 0.0
        %444 = vmatpush1.msra.mxu0 0.0
        %445 = vmatprep.subr.mxu0 0.0
        %446 = vmatpush1.msra.mxu0 0.0
        %447 = vmatprep.subr.mxu0 0.0
        %448 = vmatpush1.msra.mxu0 0.0
        %449 = vmatprep.subr.mxu0 0.0
        %450 = vmatpush1.msra.mxu0 0.0
        %451 = vmatprep.subr.mxu0 0.0
        %452 = vmatpush1.msra.mxu0 0.0
        %453 = vmatprep.subr.mxu0 0.0
        %454 = vmatpush1.msra.mxu0 0.0
        %455 = vmatprep.subr.mxu0 0.0
        %456 = vmatpush1.msra.mxu0 0.0
        %457 = vmatprep.subr.mxu0 0.0
        %458 = vmatpush1.msra.mxu0 0.0
        %459 = vmatprep.subr.mxu0 0.0
        %460 = vmatpush1.msra.mxu0 0.0
        %461 = vmatprep.subr.mxu0 0.0
        %462 = vmatpush1.msra.mxu0 0.0
        %463 = vmatprep.subr.mxu0 0.0
        %464 = vmatpush1.msra.mxu0 0.0
        %465 = vmatprep.subr.mxu0 0.0
        %466 = vmatpush1.msra.mxu0 0.0
        %467 = vmatprep.subr.mxu0 0.0
        %468 = vmatpush1.msra.mxu0 0.0
        %469 = vmatprep.subr.mxu0 0.0
        %470 = vmatpush1.msra.mxu0 0.0
        %471 = vmatprep.subr.mxu0 0.0
        %472 = vmatpush1.msra.mxu0 0.0
        %473 = vmatprep.subr.mxu0 0.0
        %474 = vmatpush1.msra.mxu0 0.0
        %475 = vmatprep.subr.mxu0 0.0
        %476 = vmatpush1.msra.mxu0 0.0
        %477 = vmatprep.subr.mxu0 0.0
        %478 = vmatpush1.msra.mxu0 0.0
        %479 = vmatprep.subr.mxu0 0.0
        %480 = vmatpush1.msra.mxu0 0.0
        %481 = vmatprep.subr.mxu0 0.0
        %482 = vmatpush1.msra.mxu0 0.0
        %483 = vmatprep.subr.mxu0 0.0
        %484 = vmatpush1.msra.mxu0 0.0
        %485 = vmatprep.subr.mxu0 0.0
        %486 = vmatpush1.msra.mxu0 0.0
        %487 = vmatprep.mubr.f32.mxu0 0.0
        %488 = vmatmul.mubr.f32.gmra.mrb[0].mxu0 %v411
        %v489 = vpop.f32.mrb[0].mxu0
        %v490 = vadd.f32 %v402, %v489
        %v491 = vpop.f32.mrb[0].mxu0
        %v492 = vadd.f32 %v402, %v491
        %493 = vmatprep.mubr.f32.mxu0 0.0
        %494 = vmatmul.mubr.f32.gmra.mrb[0].mxu0 %v414
        %v495 = vpop.f32.mrb[0].mxu0
        %v496 = vadd.f32 %v407, %v495
        %v497 = vpop.f32.mrb[0].mxu0
        %v498 = vadd.f32 %v407, %v497
        %499 = vdwg.mxu0
        %v500 = vadd.f32 %v490, %v496
        %v501 = vrot.slane %v500, 4
        %v502 = vadd.f32 %v500, %v501
        %v503 = vrot.slane %v502, 2
        %v504 = vadd.f32 %v502, %v503
        %v505 = vrot.slane %v504, 1
        %v506 = vadd.f32 %v504, %v505
        %v507 = vadd.f32 %v492, %v498
        %v508 = vrot.slane %v507, 4
        %v509 = vadd.f32 %v507, %v508
        %v510 = vrot.slane %v509, 2
        %v511 = vadd.f32 %v509, %v510
        %v512 = vrot.slane %v511, 1
        %v513 = vadd.f32 %v511, %v512
        %v514 = vrcp.pop 16.0
        %v515 = vmul.f32 %v506, %v514
        %v516 = vmul.f32 %v513, %v514
        %v517 = vsub.f32 %v490, %v515
        %v518 = vsub.f32 %v492, %v516
        %v519 = vsub.f32 %v496, %v515
        %v520 = vsub.f32 %v498, %v516
        %v521 = vmul.f32 %v517, %v517
        %v522 = vmul.f32 %v518, %v518
        %v523 = vmul.f32 %v519, %v519
        %v524 = vmul.f32 %v520, %v520
        %v525 = vadd.f32 %v521, %v523
        %v526 = vrot.slane %v525, 4
        %v527 = vadd.f32 %v525, %v526
        %v528 = vrot.slane %v527, 2
        %v529 = vadd.f32 %v527, %v528
        %v530 = vrot.slane %v529, 1
        %v531 = vadd.f32 %v529, %v530
        %v532 = vadd.f32 %v522, %v524
        %v533 = vrot.slane %v532, 4
        %v534 = vadd.f32 %v532, %v533
        %v535 = vrot.slane %v534, 2
        %v536 = vadd.f32 %v534, %v535
        %v537 = vrot.slane %v536, 1
        %v538 = vadd.f32 %v536, %v537
        %v539 = vmul.f32 %v531, %v514
        %v540 = vmul.f32 %v538, %v514
        %v541 = vadd.f32 %v539, 1e-05
        %v542 = vadd.f32 %v540, 1e-05
        %v543 = vrsqrt.pop %v541
        %v544 = vrsqrt.pop %v542
        %v545 = vmul.f32 %v517, %v543
        %v546 = vmul.f32 %v518, %v544
        %v547 = vmul.f32 %v519, %v543
        %v548 = vmul.f32 %v520, %v544
        %v549 = vld [vmem:[%s3] sm:$0xff]
        %v550 = vld [vmem:[%s3 + $0x8] sm:$0xff]
        %552 = vset.pattern.permute.xlu0 0
        %553 = vperm.xlu0 %552, %v549
        %v554 = vpop.permute.xlu0 %553
        %557 = vset.pattern.permute.xlu0 0
        %558 = vperm.xlu0 %557, %v550
        %v559 = vpop.permute.xlu0 %558
        %v561 = vmul.f32 %v545, %v554
        %v562 = vmul.f32 %v546, %v554
        %v563 = vmul.f32 %v547, %v559
        %v564 = vmul.f32 %v548, %v559
        %v565 = vld [vmem:[%s4] sm:$0xff]
        %v566 = vld [vmem:[%s4 + $0x8] sm:$0xff]
        %568 = vset.pattern.permute.xlu0 0
        %569 = vperm.xlu0 %568, %v565
        %v570 = vpop.permute.xlu0 %569
        %573 = vset.pattern.permute.xlu0 0
        %574 = vperm.xlu0 %573, %v566
        %v575 = vpop.permute.xlu0 %574
        %v577 = vadd.f32 %v561, %v570
        %v578 = vadd.f32 %v562, %v570
        %v579 = vadd.f32 %v563, %v575
        %v580 = vadd.f32 %v564, %v575
        %v581 = vld [vmem:[%s5] sm:$0xff]
        %v582 = vld [vmem:[%s5 + $0x8] sm:$0xff]
        %v583 = vld [vmem:[%s5 + $0x10] sm:$0xff]
        %v584 = vld [vmem:[%s5 + $0x18] sm:$0xff]
        %v585 = vld [vmem:[%s5 + $0x20] sm:$0xff]
        %v586 = vld [vmem:[%s5 + $0x28] sm:$0xff]
        %v587 = vld [vmem:[%s6] sm:$0xff]
        %v588 = vld [vmem:[%s6 + $0x8] sm:$0xff]
        %v589 = vld [vmem:[%s6 + $0x10] sm:$0xff]
        %v590 = vld [vmem:[%s6 + $0x18] sm:$0xff]
        %v591 = vld [vmem:[%s6 + $0x20] sm:$0xff]
        %v592 = vld [vmem:[%s6 + $0x28] sm:$0xff]
        %594 = vset.pattern.permute.xlu0 0
        %595 = vperm.xlu0 %594, %v587
        %v596 = vpop.permute.xlu0 %595
        %599 = vset.pattern.permute.xlu0 0
        %600 = vperm.xlu0 %599, %v588
        %v601 = vpop.permute.xlu0 %600
        %604 = vset.pattern.permute.xlu0 0
        %605 = vperm.xlu0 %604, %v589
        %v606 = vpop.permute.xlu0 %605
        %609 = vset.pattern.permute.xlu0 0
        %610 = vperm.xlu0 %609, %v590
        %v611 = vpop.permute.xlu0 %610
        %614 = vset.pattern.permute.xlu0 0
        %615 = vperm.xlu0 %614, %v591
        %v616 = vpop.permute.xlu0 %615
        %619 = vset.pattern.permute.xlu0 0
        %620 = vperm.xlu0 %619, %v592
        %v621 = vpop.permute.xlu0 %620
        %vm623 = vcmask 130048
        %v625 = vsel %vm623, %v581, 0
        %v628 = vsel %vm623, %v582, 0
        %v631 = vsel %vm623, %v583, 0
        %v634 = vsel %vm623, %v584, 0
        %v637 = vsel %vm623, %v585, 0
        %v640 = vsel %vm623, %v586, 0
        %642 = vmatprep.subr.mxu0 %v578
        %643 = vmatpush1.msra.mxu0 %v577
        %644 = vmatprep.subr.mxu0 %v580
        %645 = vmatpush1.msra.mxu0 %v579
        %646 = vmatprep.subr.mxu0 0.0
        %647 = vmatpush1.msra.mxu0 0.0
        %648 = vmatprep.subr.mxu0 0.0
        %649 = vmatpush1.msra.mxu0 0.0
        %650 = vmatprep.subr.mxu0 0.0
        %651 = vmatpush1.msra.mxu0 0.0
        %652 = vmatprep.subr.mxu0 0.0
        %653 = vmatpush1.msra.mxu0 0.0
        %654 = vmatprep.subr.mxu0 0.0
        %655 = vmatpush1.msra.mxu0 0.0
        %656 = vmatprep.subr.mxu0 0.0
        %657 = vmatpush1.msra.mxu0 0.0
        %658 = vmatprep.subr.mxu0 0.0
        %659 = vmatpush1.msra.mxu0 0.0
        %660 = vmatprep.subr.mxu0 0.0
        %661 = vmatpush1.msra.mxu0 0.0
        %662 = vmatprep.subr.mxu0 0.0
        %663 = vmatpush1.msra.mxu0 0.0
        %664 = vmatprep.subr.mxu0 0.0
        %665 = vmatpush1.msra.mxu0 0.0
        %666 = vmatprep.subr.mxu0 0.0
        %667 = vmatpush1.msra.mxu0 0.0
        %668 = vmatprep.subr.mxu0 0.0
        %669 = vmatpush1.msra.mxu0 0.0
        %670 = vmatprep.subr.mxu0 0.0
        %671 = vmatpush1.msra.mxu0 0.0
        %672 = vmatprep.subr.mxu0 0.0
        %673 = vmatpush1.msra.mxu0 0.0
        %674 = vmatprep.subr.mxu0 0.0
        %675 = vmatpush1.msra.mxu0 0.0
        %676 = vmatprep.subr.mxu0 0.0
        %677 = vmatpush1.msra.mxu0 0.0
        %678 = vmatprep.subr.mxu0 0.0
        %679 = vmatpush1.msra.mxu0 0.0
        %680 = vmatprep.subr.mxu0 0.0
        %681 = vmatpush1.msra.mxu0 0.0
        %682 = vmatprep.subr.mxu0 0.0
        %683 = vmatpush1.msra.mxu0 0.0
        %684 = vmatprep.subr.mxu0 0.0
        %685 = vmatpush1.msra.mxu0 0.0
        %686 = vmatprep.subr.mxu0 0.0
        %687 = vmatpush1.msra.mxu0 0.0
        %688 = vmatprep.subr.mxu0 0.0
        %689 = vmatpush1.msra.mxu0 0.0
        %690 = vmatprep.subr.mxu0 0.0
        %691 = vmatpush1.msra.mxu0 0.0
        %692 = vmatprep.subr.mxu0 0.0
        %693 = vmatpush1.msra.mxu0 0.0
        %694 = vmatprep.subr.mxu0 0.0
        %695 = vmatpush1.msra.mxu0 0.0
        %696 = vmatprep.subr.mxu0 0.0
        %697 = vmatpush1.msra.mxu0 0.0
        %698 = vmatprep.subr.mxu0 0.0
        %699 = vmatpush1.msra.mxu0 0.0
        %700 = vmatprep.subr.mxu0 0.0
        %701 = vmatpush1.msra.mxu0 0.0
        %702 = vmatprep.subr.mxu0 0.0
        %703 = vmatpush1.msra.mxu0 0.0
        %704 = vmatprep.subr.mxu0 0.0
        %705 = vmatpush1.msra.mxu0 0.0
        %706 = vmatprep.mubr.f32.mxu0 0.0
        %707 = vmatmul.mubr.f32.gmra.mrb[0].mxu0 %v625
        %v708 = vpop.f32.mrb[0].mxu0
        %v709 = vadd.f32 %v596, %v708
        %v710 = vpop.f32.mrb[0].mxu0
        %v711 = vadd.f32 %v596, %v710
        %712 = vmatprep.mubr.f32.mxu0 0.0
        %713 = vmatmul.mubr.f32.gmra.mrb[0].mxu0 %v628
        %v714 = vpop.f32.mrb[0].mxu0
        %v715 = vadd.f32 %v601, %v714
        %v716 = vpop.f32.mrb[0].mxu0
        %v717 = vadd.f32 %v601, %v716
        %718 = vmatprep.mubr.f32.mxu0 0.0
        %719 = vmatmul.mubr.f32.gmra.mrb[0].mxu0 %v631
        %v720 = vpop.f32.mrb[0].mxu0
        %v721 = vadd.f32 %v606, %v720
        %v722 = vpop.f32.mrb[0].mxu0
        %v723 = vadd.f32 %v606, %v722
        %724 = vmatprep.mubr.f32.mxu0 0.0
        %725 = vmatmul.mubr.f32.gmra.mrb[0].mxu0 %v634
        %v726 = vpop.f32.mrb[0].mxu0
        %v727 = vadd.f32 %v611, %v726
        %v728 = vpop.f32.mrb[0].mxu0
        %v729 = vadd.f32 %v611, %v728
        %730 = vmatprep.mubr.f32.mxu0 0.0
        %731 = vmatmul.mubr.f32.gmra.mrb[0].mxu0 %v637
        %v732 = vpop.f32.mrb[0].mxu0
        %v733 = vadd.f32 %v616, %v732
        %v734 = vpop.f32.mrb[0].mxu0
        %v735 = vadd.f32 %v616, %v734
        %736 = vmatprep.mubr.f32.mxu0 0.0
        %737 = vmatmul.mubr.f32.gmra.mrb[0].mxu0 %v640
        %v738 = vpop.f32.mrb[0].mxu0
        %v739 = vadd.f32 %v621, %v738
        %v740 = vpop.f32.mrb[0].mxu0
        %v741 = vadd.f32 %v621, %v740
        %742 = vdwg.mxu0
        %747 = vrot.lane.b32.xlu0 %v709, 120
        %v748 = vpop.permute.xlu0 %747
        %749 = vrot.lane.b32.xlu0 %v715, 120
        %v750 = vpop.permute.xlu0 %749
        %751 = vrot.lane.b32.xlu0 %v721, 120
        %v752 = vpop.permute.xlu0 %751
        %753 = vrot.lane.b32.xlu0 %v727, 120
        %v754 = vpop.permute.xlu0 %753
        %759 = vrot.lane.b32.xlu0 %v709, 112
        %v760 = vpop.permute.xlu0 %759
        %761 = vrot.lane.b32.xlu0 %v715, 112
        %v762 = vpop.permute.xlu0 %761
        %763 = vrot.lane.b32.xlu0 %v721, 112
        %v764 = vpop.permute.xlu0 %763
        %765 = vrot.lane.b32.xlu0 %v727, 112
        %v766 = vpop.permute.xlu0 %765
        %771 = vrot.lane.b32.xlu0 %v709, 104
        %v772 = vpop.permute.xlu0 %771
        %773 = vrot.lane.b32.xlu0 %v715, 104
        %v774 = vpop.permute.xlu0 %773
        %775 = vrot.lane.b32.xlu0 %v721, 104
        %v776 = vpop.permute.xlu0 %775
        %777 = vrot.lane.b32.xlu0 %v727, 104
        %v778 = vpop.permute.xlu0 %777
        %783 = vrot.lane.b32.xlu0 %v709, 96
        %v784 = vpop.permute.xlu0 %783
        %785 = vrot.lane.b32.xlu0 %v715, 96
        %v786 = vpop.permute.xlu0 %785
        %787 = vrot.lane.b32.xlu0 %v721, 96
        %v788 = vpop.permute.xlu0 %787
        %789 = vrot.lane.b32.xlu0 %v727, 96
        %v790 = vpop.permute.xlu0 %789
        %795 = vrot.lane.b32.xlu0 %v709, 88
        %v796 = vpop.permute.xlu0 %795
        %797 = vrot.lane.b32.xlu0 %v715, 88
        %v798 = vpop.permute.xlu0 %797
        %799 = vrot.lane.b32.xlu0 %v721, 88
        %v800 = vpop.permute.xlu0 %799
        %801 = vrot.lane.b32.xlu0 %v727, 88
        %v802 = vpop.permute.xlu0 %801
        %807 = vrot.lane.b32.xlu0 %v709, 80
        %v808 = vpop.permute.xlu0 %807
        %809 = vrot.lane.b32.xlu0 %v715, 80
        %v810 = vpop.permute.xlu0 %809
        %811 = vrot.lane.b32.xlu0 %v721, 80
        %v812 = vpop.permute.xlu0 %811
        %813 = vrot.lane.b32.xlu0 %v727, 80
        %v814 = vpop.permute.xlu0 %813
        %819 = vrot.lane.b32.xlu0 %v709, 72
        %v820 = vpop.permute.xlu0 %819
        %821 = vrot.lane.b32.xlu0 %v715, 72
        %v822 = vpop.permute.xlu0 %821
        %823 = vrot.lane.b32.xlu0 %v721, 72
        %v824 = vpop.permute.xlu0 %823
        %825 = vrot.lane.b32.xlu0 %v727, 72
        %v826 = vpop.permute.xlu0 %825
        %831 = vrot.lane.b32.xlu0 %v709, 64
        %v832 = vpop.permute.xlu0 %831
        %833 = vrot.lane.b32.xlu0 %v715, 64
        %v834 = vpop.permute.xlu0 %833
        %835 = vrot.lane.b32.xlu0 %v721, 64
        %v836 = vpop.permute.xlu0 %835
        %837 = vrot.lane.b32.xlu0 %v727, 64
        %v838 = vpop.permute.xlu0 %837
        %843 = vrot.lane.b32.xlu0 %v709, 56
        %v844 = vpop.permute.xlu0 %843
        %845 = vrot.lane.b32.xlu0 %v715, 56
        %v846 = vpop.permute.xlu0 %845
        %847 = vrot.lane.b32.xlu0 %v721, 56
        %v848 = vpop.permute.xlu0 %847
        %849 = vrot.lane.b32.xlu0 %v727, 56
        %v850 = vpop.permute.xlu0 %849
        %855 = vrot.lane.b32.xlu0 %v709, 48
        %v856 = vpop.permute.xlu0 %855
        %857 = vrot.lane.b32.xlu0 %v715, 48
        %v858 = vpop.permute.xlu0 %857
        %859 = vrot.lane.b32.xlu0 %v721, 48
        %v860 = vpop.permute.xlu0 %859
        %861 = vrot.lane.b32.xlu0 %v727, 48
        %v862 = vpop.permute.xlu0 %861
        %867 = vrot.lane.b32.xlu0 %v709, 40
        %v868 = vpop.permute.xlu0 %867
        %869 = vrot.lane.b32.xlu0 %v715, 40
        %v870 = vpop.permute.xlu0 %869
        %871 = vrot.lane.b32.xlu0 %v721, 40
        %v872 = vpop.permute.xlu0 %871
        %873 = vrot.lane.b32.xlu0 %v727, 40
        %v874 = vpop.permute.xlu0 %873
        %879 = vrot.lane.b32.xlu0 %v709, 32
        %v880 = vpop.permute.xlu0 %879
        %881 = vrot.lane.b32.xlu0 %v715, 32
        %v882 = vpop.permute.xlu0 %881
        %883 = vrot.lane.b32.xlu0 %v721, 32
        %v884 = vpop.permute.xlu0 %883
        %885 = vrot.lane.b32.xlu0 %v727, 32
        %v886 = vpop.permute.xlu0 %885
        %891 = vrot.lane.b32.xlu0 %v709, 24
        %v892 = vpop.permute.xlu0 %891
        %893 = vrot.lane.b32.xlu0 %v715, 24
        %v894 = vpop.permute.xlu0 %893
        %895 = vrot.lane.b32.xlu0 %v721, 24
        %v896 = vpop.permute.xlu0 %895
        %897 = vrot.lane.b32.xlu0 %v727, 24
        %v898 = vpop.permute.xlu0 %897
        %903 = vrot.lane.b32.xlu0 %v709, 16
        %v904 = vpop.permute.xlu0 %903
        %905 = vrot.lane.b32.xlu0 %v715, 16
        %v906 = vpop.permute.xlu0 %905
        %907 = vrot.lane.b32.xlu0 %v721, 16
        %v908 = vpop.permute.xlu0 %907
        %909 = vrot.lane.b32.xlu0 %v727, 16
        %v910 = vpop.permute.xlu0 %909
        %915 = vrot.lane.b32.xlu0 %v709, 8
        %v916 = vpop.permute.xlu0 %915
        %917 = vrot.lane.b32.xlu0 %v715, 8
        %v918 = vpop.permute.xlu0 %917
        %919 = vrot.lane.b32.xlu0 %v721, 8
        %v920 = vpop.permute.xlu0 %919
        %921 = vrot.lane.b32.xlu0 %v727, 8
        %v922 = vpop.permute.xlu0 %921
        %931 = vrot.lane.b32.xlu0 %v711, 120
        %v932 = vpop.permute.xlu0 %931
        %933 = vrot.lane.b32.xlu0 %v717, 120
        %v934 = vpop.permute.xlu0 %933
        %935 = vrot.lane.b32.xlu0 %v723, 120
        %v936 = vpop.permute.xlu0 %935
        %937 = vrot.lane.b32.xlu0 %v729, 120
        %v938 = vpop.permute.xlu0 %937
        %943 = vrot.lane.b32.xlu0 %v711, 112
        %v944 = vpop.permute.xlu0 %943
        %945 = vrot.lane.b32.xlu0 %v717, 112
        %v946 = vpop.permute.xlu0 %945
        %947 = vrot.lane.b32.xlu0 %v723, 112
        %v948 = vpop.permute.xlu0 %947
        %949 = vrot.lane.b32.xlu0 %v729, 112
        %v950 = vpop.permute.xlu0 %949
        %955 = vrot.lane.b32.xlu0 %v711, 104
        %v956 = vpop.permute.xlu0 %955
        %957 = vrot.lane.b32.xlu0 %v717, 104
        %v958 = vpop.permute.xlu0 %957
        %959 = vrot.lane.b32.xlu0 %v723, 104
        %v960 = vpop.permute.xlu0 %959
        %961 = vrot.lane.b32.xlu0 %v729, 104
        %v962 = vpop.permute.xlu0 %961
        %967 = vrot.lane.b32.xlu0 %v711, 96
        %v968 = vpop.permute.xlu0 %967
        %969 = vrot.lane.b32.xlu0 %v717, 96
        %v970 = vpop.permute.xlu0 %969
        %971 = vrot.lane.b32.xlu0 %v723, 96
        %v972 = vpop.permute.xlu0 %971
        %973 = vrot.lane.b32.xlu0 %v729, 96
        %v974 = vpop.permute.xlu0 %973
        %979 = vrot.lane.b32.xlu0 %v711, 88
        %v980 = vpop.permute.xlu0 %979
        %981 = vrot.lane.b32.xlu0 %v717, 88
        %v982 = vpop.permute.xlu0 %981
        %983 = vrot.lane.b32.xlu0 %v723, 88
        %v984 = vpop.permute.xlu0 %983
        %985 = vrot.lane.b32.xlu0 %v729, 88
        %v986 = vpop.permute.xlu0 %985
        %991 = vrot.lane.b32.xlu0 %v711, 80
        %v992 = vpop.permute.xlu0 %991
        %993 = vrot.lane.b32.xlu0 %v717, 80
        %v994 = vpop.permute.xlu0 %993
        %995 = vrot.lane.b32.xlu0 %v723, 80
        %v996 = vpop.permute.xlu0 %995
        %997 = vrot.lane.b32.xlu0 %v729, 80
        %v998 = vpop.permute.xlu0 %997
        %1003 = vrot.lane.b32.xlu0 %v711, 72
        %v1004 = vpop.permute.xlu0 %1003
        %1005 = vrot.lane.b32.xlu0 %v717, 72
        %v1006 = vpop.permute.xlu0 %1005
        %1007 = vrot.lane.b32.xlu0 %v723, 72
        %v1008 = vpop.permute.xlu0 %1007
        %1009 = vrot.lane.b32.xlu0 %v729, 72
        %v1010 = vpop.permute.xlu0 %1009
        %1015 = vrot.lane.b32.xlu0 %v711, 64
        %v1016 = vpop.permute.xlu0 %1015
        %1017 = vrot.lane.b32.xlu0 %v717, 64
        %v1018 = vpop.permute.xlu0 %1017
        %1019 = vrot.lane.b32.xlu0 %v723, 64
        %v1020 = vpop.permute.xlu0 %1019
        %1021 = vrot.lane.b32.xlu0 %v729, 64
        %v1022 = vpop.permute.xlu0 %1021
        %1027 = vrot.lane.b32.xlu0 %v711, 56
        %v1028 = vpop.permute.xlu0 %1027
        %1029 = vrot.lane.b32.xlu0 %v717, 56
        %v1030 = vpop.permute.xlu0 %1029
        %1031 = vrot.lane.b32.xlu0 %v723, 56
        %v1032 = vpop.permute.xlu0 %1031
        %1033 = vrot.lane.b32.xlu0 %v729, 56
        %v1034 = vpop.permute.xlu0 %1033
        %1039 = vrot.lane.b32.xlu0 %v711, 48
        %v1040 = vpop.permute.xlu0 %1039
        %1041 = vrot.lane.b32.xlu0 %v717, 48
        %v1042 = vpop.permute.xlu0 %1041
        %1043 = vrot.lane.b32.xlu0 %v723, 48
        %v1044 = vpop.permute.xlu0 %1043
        %1045 = vrot.lane.b32.xlu0 %v729, 48
        %v1046 = vpop.permute.xlu0 %1045
        %1051 = vrot.lane.b32.xlu0 %v711, 40
        %v1052 = vpop.permute.xlu0 %1051
        %1053 = vrot.lane.b32.xlu0 %v717, 40
        %v1054 = vpop.permute.xlu0 %1053
        %1055 = vrot.lane.b32.xlu0 %v723, 40
        %v1056 = vpop.permute.xlu0 %1055
        %1057 = vrot.lane.b32.xlu0 %v729, 40
        %v1058 = vpop.permute.xlu0 %1057
        %1063 = vrot.lane.b32.xlu0 %v711, 32
        %v1064 = vpop.permute.xlu0 %1063
        %1065 = vrot.lane.b32.xlu0 %v717, 32
        %v1066 = vpop.permute.xlu0 %1065
        %1067 = vrot.lane.b32.xlu0 %v723, 32
        %v1068 = vpop.permute.xlu0 %1067
        %1069 = vrot.lane.b32.xlu0 %v729, 32
        %v1070 = vpop.permute.xlu0 %1069
        %1075 = vrot.lane.b32.xlu0 %v711, 24
        %v1076 = vpop.permute.xlu0 %1075
        %1077 = vrot.lane.b32.xlu0 %v717, 24
        %v1078 = vpop.permute.xlu0 %1077
        %1079 = vrot.lane.b32.xlu0 %v723, 24
        %v1080 = vpop.permute.xlu0 %1079
        %1081 = vrot.lane.b32.xlu0 %v729, 24
        %v1082 = vpop.permute.xlu0 %1081
        %1087 = vrot.lane.b32.xlu0 %v711, 16
        %v1088 = vpop.permute.xlu0 %1087
        %1089 = vrot.lane.b32.xlu0 %v717, 16
        %v1090 = vpop.permute.xlu0 %1089
        %1091 = vrot.lane.b32.xlu0 %v723, 16
        %v1092 = vpop.permute.xlu0 %1091
        %1093 = vrot.lane.b32.xlu0 %v729, 16
        %v1094 = vpop.permute.xlu0 %1093
        %1099 = vrot.lane.b32.xlu0 %v711, 8
        %v1100 = vpop.permute.xlu0 %1099
        %1101 = vrot.lane.b32.xlu0 %v717, 8
        %v1102 = vpop.permute.xlu0 %1101
        %1103 = vrot.lane.b32.xlu0 %v723, 8
        %v1104 = vpop.permute.xlu0 %1103
        %1105 = vrot.lane.b32.xlu0 %v729, 8
        %v1106 = vpop.permute.xlu0 %1105
        %v1111 = vcombine.low %v709, %v760
        %v1112 = vcombine.high %v709, %v760
        %v1114 = vunpack.c.l.s4 1983009808
        %v1115 = vunpack.c.0.s8 %v1114
        %v1116 = vlaneseq
        %v1117 = vshrl.u32 %v1116, 7
        %v1118 = vsub.s32 %v1115, %v1117
        %v1119 = vrot.slane %v1111, %v1118
        %v1121 = vunpack.c.l.s4 1983009808
        %v1122 = vunpack.c.0.s8 %v1121
        %v1123 = vlaneseq
        %v1124 = vshrl.u32 %v1123, 7
        %v1125 = vsub.s32 %v1122, %v1124
        %v1126 = vrot.slane %v1112, %v1125
        %v1127 = vcombine.low %v748, %v772
        %v1128 = vcombine.high %v748, %v772
        %v1130 = vunpack.c.l.s4 1983009808
        %v1131 = vunpack.c.0.s8 %v1130
        %v1132 = vlaneseq
        %v1133 = vshrl.u32 %v1132, 7
        %v1134 = vsub.s32 %v1131, %v1133
        %v1135 = vrot.slane %v1127, %v1134
        %v1137 = vunpack.c.l.s4 1983009808
        %v1138 = vunpack.c.0.s8 %v1137
        %v1139 = vlaneseq
        %v1140 = vshrl.u32 %v1139, 7
        %v1141 = vsub.s32 %v1138, %v1140
        %v1142 = vrot.slane %v1128, %v1141
        %v1143 = vcombine.low %v784, %v808
        %v1144 = vcombine.high %v784, %v808
        %v1146 = vunpack.c.l.s4 1983009808
        %v1147 = vunpack.c.0.s8 %v1146
        %v1148 = vlaneseq
        %v1149 = vshrl.u32 %v1148, 7
        %v1150 = vsub.s32 %v1147, %v1149
        %v1151 = vrot.slane %v1143, %v1150
        %v1153 = vunpack.c.l.s4 1983009808
        %v1154 = vunpack.c.0.s8 %v1153
        %v1155 = vlaneseq
        %v1156 = vshrl.u32 %v1155, 7
        %v1157 = vsub.s32 %v1154, %v1156
        %v1158 = vrot.slane %v1144, %v1157
        %v1159 = vcombine.low %v796, %v820
        %v1160 = vcombine.high %v796, %v820
        %v1162 = vunpack.c.l.s4 1983009808
        %v1163 = vunpack.c.0.s8 %v1162
        %v1164 = vlaneseq
        %v1165 = vshrl.u32 %v1164, 7
        %v1166 = vsub.s32 %v1163, %v1165
        %v1167 = vrot.slane %v1159, %v1166
        %v1169 = vunpack.c.l.s4 1983009808
        %v1170 = vunpack.c.0.s8 %v1169
        %v1171 = vlaneseq
        %v1172 = vshrl.u32 %v1171, 7
        %v1173 = vsub.s32 %v1170, %v1172
        %v1174 = vrot.slane %v1160, %v1173
        %v1175 = vcombine.low %v1119, %v1135
        %v1176 = vcombine.high %v1119, %v1135
        %v1178 = vunpack.c.l.s4 1934713408
        %v1179 = vunpack.c.0.s8 %v1178
        %v1180 = vlaneseq
        %v1181 = vshrl.u32 %v1180, 7
        %v1182 = vsub.s32 %v1179, %v1181
        %v1183 = vrot.slane %v1175, %v1182
        %v1185 = vunpack.c.l.s4 1934713408
        %v1186 = vunpack.c.0.s8 %v1185
        %v1187 = vlaneseq
        %v1188 = vshrl.u32 %v1187, 7
        %v1189 = vsub.s32 %v1186, %v1188
        %v1190 = vrot.slane %v1176, %v1189
        %v1191 = vcombine.low %v1126, %v1142
        %v1192 = vcombine.high %v1126, %v1142
        %v1194 = vunpack.c.l.s4 1934713408
        %v1195 = vunpack.c.0.s8 %v1194
        %v1196 = vlaneseq
        %v1197 = vshrl.u32 %v1196, 7
        %v1198 = vsub.s32 %v1195, %v1197
        %v1199 = vrot.slane %v1191, %v1198
        %v1201 = vunpack.c.l.s4 1934713408
        %v1202 = vunpack.c.0.s8 %v1201
        %v1203 = vlaneseq
        %v1204 = vshrl.u32 %v1203, 7
        %v1205 = vsub.s32 %v1202, %v1204
        %v1206 = vrot.slane %v1192, %v1205
        %v1207 = vcombine.low %v1151, %v1167
        %v1208 = vcombine.high %v1151, %v1167
        %v1210 = vunpack.c.l.s4 1934713408
        %v1211 = vunpack.c.0.s8 %v1210
        %v1212 = vlaneseq
        %v1213 = vshrl.u32 %v1212, 7
        %v1214 = vsub.s32 %v1211, %v1213
        %v1215 = vrot.slane %v1207, %v1214
        %v1217 = vunpack.c.l.s4 1934713408
        %v1218 = vunpack.c.0.s8 %v1217
        %v1219 = vlaneseq
        %v1220 = vshrl.u32 %v1219, 7
        %v1221 = vsub.s32 %v1218, %v1220
        %v1222 = vrot.slane %v1208, %v1221
        %v1223 = vcombine.low %v1158, %v1174
        %v1224 = vcombine.high %v1158, %v1174
        %v1226 = vunpack.c.l.s4 1934713408
        %v1227 = vunpack.c.0.s8 %v1226
        %v1228 = vlaneseq
        %v1229 = vshrl.u32 %v1228, 7
        %v1230 = vsub.s32 %v1227, %v1229
        %v1231 = vrot.slane %v1223, %v1230
        %v1233 = vunpack.c.l.s4 1934713408
        %v1234 = vunpack.c.0.s8 %v1233
        %v1235 = vlaneseq
        %v1236 = vshrl.u32 %v1235, 7
        %v1237 = vsub.s32 %v1234, %v1236
        %v1238 = vrot.slane %v1224, %v1237
        %v1239 = vcombine.low %v1183, %v1215
        %v1240 = vcombine.high %v1183, %v1215
        %v1241 = vcombine.low %v1190, %v1222
        %v1242 = vcombine.high %v1190, %v1222
        %v1243 = vcombine.low %v1199, %v1231
        %v1244 = vcombine.high %v1199, %v1231
        %v1245 = vcombine.low %v1206, %v1238
        %v1246 = vcombine.high %v1206, %v1238
        %v1247 = vcombine.low %v832, %v856
        %v1248 = vcombine.high %v832, %v856
        %v1250 = vunpack.c.l.s4 1983009808
        %v1251 = vunpack.c.0.s8 %v1250
        %v1252 = vlaneseq
        %v1253 = vshrl.u32 %v1252, 7
        %v1254 = vsub.s32 %v1251, %v1253
        %v1255 = vrot.slane %v1247, %v1254
        %v1257 = vunpack.c.l.s4 1983009808
        %v1258 = vunpack.c.0.s8 %v1257
        %v1259 = vlaneseq
        %v1260 = vshrl.u32 %v1259, 7
        %v1261 = vsub.s32 %v1258, %v1260
        %v1262 = vrot.slane %v1248, %v1261
        %v1263 = vcombine.low %v844, %v868
        %v1264 = vcombine.high %v844, %v868
        %v1266 = vunpack.c.l.s4 1983009808
        %v1267 = vunpack.c.0.s8 %v1266
        %v1268 = vlaneseq
        %v1269 = vshrl.u32 %v1268, 7
        %v1270 = vsub.s32 %v1267, %v1269
        %v1271 = vrot.slane %v1263, %v1270
        %v1273 = vunpack.c.l.s4 1983009808
        %v1274 = vunpack.c.0.s8 %v1273
        %v1275 = vlaneseq
        %v1276 = vshrl.u32 %v1275, 7
        %v1277 = vsub.s32 %v1274, %v1276
        %v1278 = vrot.slane %v1264, %v1277
        %v1279 = vcombine.low %v880, %v904
        %v1280 = vcombine.high %v880, %v904
        %v1282 = vunpack.c.l.s4 1983009808
        %v1283 = vunpack.c.0.s8 %v1282
        %v1284 = vlaneseq
        %v1285 = vshrl.u32 %v1284, 7
        %v1286 = vsub.s32 %v1283, %v1285
        %v1287 = vrot.slane %v1279, %v1286
        %v1289 = vunpack.c.l.s4 1983009808
        %v1290 = vunpack.c.0.s8 %v1289
        %v1291 = vlaneseq
        %v1292 = vshrl.u32 %v1291, 7
        %v1293 = vsub.s32 %v1290, %v1292
        %v1294 = vrot.slane %v1280, %v1293
        %v1295 = vcombine.low %v892, %v916
        %v1296 = vcombine.high %v892, %v916
        %v1298 = vunpack.c.l.s4 1983009808
        %v1299 = vunpack.c.0.s8 %v1298
        %v1300 = vlaneseq
        %v1301 = vshrl.u32 %v1300, 7
        %v1302 = vsub.s32 %v1299, %v1301
        %v1303 = vrot.slane %v1295, %v1302
        %v1305 = vunpack.c.l.s4 1983009808
        %v1306 = vunpack.c.0.s8 %v1305
        %v1307 = vlaneseq
        %v1308 = vshrl.u32 %v1307, 7
        %v1309 = vsub.s32 %v1306, %v1308
        %v1310 = vrot.slane %v1296, %v1309
        %v1311 = vcombine.low %v1255, %v1271
        %v1312 = vcombine.high %v1255, %v1271
        %v1314 = vunpack.c.l.s4 1934713408
        %v1315 = vunpack.c.0.s8 %v1314
        %v1316 = vlaneseq
        %v1317 = vshrl.u32 %v1316, 7
        %v1318 = vsub.s32 %v1315, %v1317
        %v1319 = vrot.slane %v1311, %v1318
        %v1321 = vunpack.c.l.s4 1934713408
        %v1322 = vunpack.c.0.s8 %v1321
        %v1323 = vlaneseq
        %v1324 = vshrl.u32 %v1323, 7
        %v1325 = vsub.s32 %v1322, %v1324
        %v1326 = vrot.slane %v1312, %v1325
        %v1327 = vcombine.low %v1262, %v1278
        %v1328 = vcombine.high %v1262, %v1278
        %v1330 = vunpack.c.l.s4 1934713408
        %v1331 = vunpack.c.0.s8 %v1330
        %v1332 = vlaneseq
        %v1333 = vshrl.u32 %v1332, 7
        %v1334 = vsub.s32 %v1331, %v1333
        %v1335 = vrot.slane %v1327, %v1334
        %v1337 = vunpack.c.l.s4 1934713408
        %v1338 = vunpack.c.0.s8 %v1337
        %v1339 = vlaneseq
        %v1340 = vshrl.u32 %v1339, 7
        %v1341 = vsub.s32 %v1338, %v1340
        %v1342 = vrot.slane %v1328, %v1341
        %v1343 = vcombine.low %v1287, %v1303
        %v1344 = vcombine.high %v1287, %v1303
        %v1346 = vunpack.c.l.s4 1934713408
        %v1347 = vunpack.c.0.s8 %v1346
        %v1348 = vlaneseq
        %v1349 = vshrl.u32 %v1348, 7
        %v1350 = vsub.s32 %v1347, %v1349
        %v1351 = vrot.slane %v1343, %v1350
        %v1353 = vunpack.c.l.s4 1934713408
        %v1354 = vunpack.c.0.s8 %v1353
        %v1355 = vlaneseq
        %v1356 = vshrl.u32 %v1355, 7
        %v1357 = vsub.s32 %v1354, %v1356
        %v1358 = vrot.slane %v1344, %v1357
        %v1359 = vcombine.low %v1294, %v1310
        %v1360 = vcombine.high %v1294, %v1310
        %v1362 = vunpack.c.l.s4 1934713408
        %v1363 = vunpack.c.0.s8 %v1362
        %v1364 = vlaneseq
        %v1365 = vshrl.u32 %v1364, 7
        %v1366 = vsub.s32 %v1363, %v1365
        %v1367 = vrot.slane %v1359, %v1366
        %v1369 = vunpack.c.l.s4 1934713408
        %v1370 = vunpack.c.0.s8 %v1369
        %v1371 = vlaneseq
        %v1372 = vshrl.u32 %v1371, 7
        %v1373 = vsub.s32 %v1370, %v1372
        %v1374 = vrot.slane %v1360, %v1373
        %v1375 = vcombine.low %v1319, %v1351
        %v1376 = vcombine.high %v1319, %v1351
        %v1377 = vcombine.low %v1326, %v1358
        %v1378 = vcombine.high %v1326, %v1358
        %v1379 = vcombine.low %v1335, %v1367
        %v1380 = vcombine.high %v1335, %v1367
        %v1381 = vcombine.low %v1342, %v1374
        %v1382 = vcombine.high %v1342, %v1374
        %v1383 = vcombine.low %v711, %v944
        %v1384 = vcombine.high %v711, %v944
        %v1386 = vunpack.c.l.s4 1983009808
        %v1387 = vunpack.c.0.s8 %v1386
        %v1388 = vlaneseq
        %v1389 = vshrl.u32 %v1388, 7
        %v1390 = vsub.s32 %v1387, %v1389
        %v1391 = vrot.slane %v1383, %v1390
        %v1393 = vunpack.c.l.s4 1983009808
        %v1394 = vunpack.c.0.s8 %v1393
        %v1395 = vlaneseq
        %v1396 = vshrl.u32 %v1395, 7
        %v1397 = vsub.s32 %v1394, %v1396
        %v1398 = vrot.slane %v1384, %v1397
        %v1399 = vcombine.low %v932, %v956
        %v1400 = vcombine.high %v932, %v956
        %v1402 = vunpack.c.l.s4 1983009808
        %v1403 = vunpack.c.0.s8 %v1402
        %v1404 = vlaneseq
        %v1405 = vshrl.u32 %v1404, 7
        %v1406 = vsub.s32 %v1403, %v1405
        %v1407 = vrot.slane %v1399, %v1406
        %v1409 = vunpack.c.l.s4 1983009808
        %v1410 = vunpack.c.0.s8 %v1409
        %v1411 = vlaneseq
        %v1412 = vshrl.u32 %v1411, 7
        %v1413 = vsub.s32 %v1410, %v1412
        %v1414 = vrot.slane %v1400, %v1413
        %v1415 = vcombine.low %v968, %v992
        %v1416 = vcombine.high %v968, %v992
        %v1418 = vunpack.c.l.s4 1983009808
        %v1419 = vunpack.c.0.s8 %v1418
        %v1420 = vlaneseq
        %v1421 = vshrl.u32 %v1420, 7
        %v1422 = vsub.s32 %v1419, %v1421
        %v1423 = vrot.slane %v1415, %v1422
        %v1425 = vunpack.c.l.s4 1983009808
        %v1426 = vunpack.c.0.s8 %v1425
        %v1427 = vlaneseq
        %v1428 = vshrl.u32 %v1427, 7
        %v1429 = vsub.s32 %v1426, %v1428
        %v1430 = vrot.slane %v1416, %v1429
        %v1431 = vcombine.low %v980, %v1004
        %v1432 = vcombine.high %v980, %v1004
        %v1434 = vunpack.c.l.s4 1983009808
        %v1435 = vunpack.c.0.s8 %v1434
        %v1436 = vlaneseq
        %v1437 = vshrl.u32 %v1436, 7
        %v1438 = vsub.s32 %v1435, %v1437
        %v1439 = vrot.slane %v1431, %v1438
        %v1441 = vunpack.c.l.s4 1983009808
        %v1442 = vunpack.c.0.s8 %v1441
        %v1443 = vlaneseq
        %v1444 = vshrl.u32 %v1443, 7
        %v1445 = vsub.s32 %v1442, %v1444
        %v1446 = vrot.slane %v1432, %v1445
        %v1447 = vcombine.low %v1391, %v1407
        %v1448 = vcombine.high %v1391, %v1407
        %v1450 = vunpack.c.l.s4 1934713408
        %v1451 = vunpack.c.0.s8 %v1450
        %v1452 = vlaneseq
        %v1453 = vshrl.u32 %v1452, 7
        %v1454 = vsub.s32 %v1451, %v1453
        %v1455 = vrot.slane %v1447, %v1454
        %v1457 = vunpack.c.l.s4 1934713408
        %v1458 = vunpack.c.0.s8 %v1457
        %v1459 = vlaneseq
        %v1460 = vshrl.u32 %v1459, 7
        %v1461 = vsub.s32 %v1458, %v1460
        %v1462 = vrot.slane %v1448, %v1461
        %v1463 = vcombine.low %v1398, %v1414
        %v1464 = vcombine.high %v1398, %v1414
        %v1466 = vunpack.c.l.s4 1934713408
        %v1467 = vunpack.c.0.s8 %v1466
        %v1468 = vlaneseq
        %v1469 = vshrl.u32 %v1468, 7
        %v1470 = vsub.s32 %v1467, %v1469
        %v1471 = vrot.slane %v1463, %v1470
        %v1473 = vunpack.c.l.s4 1934713408
        %v1474 = vunpack.c.0.s8 %v1473
        %v1475 = vlaneseq
        %v1476 = vshrl.u32 %v1475, 7
        %v1477 = vsub.s32 %v1474, %v1476
        %v1478 = vrot.slane %v1464, %v1477
        %v1479 = vcombine.low %v1423, %v1439
        %v1480 = vcombine.high %v1423, %v1439
        %v1482 = vunpack.c.l.s4 1934713408
        %v1483 = vunpack.c.0.s8 %v1482
        %v1484 = vlaneseq
        %v1485 = vshrl.u32 %v1484, 7
        %v1486 = vsub.s32 %v1483, %v1485
        %v1487 = vrot.slane %v1479, %v1486
        %v1489 = vunpack.c.l.s4 1934713408
        %v1490 = vunpack.c.0.s8 %v1489
        %v1491 = vlaneseq
        %v1492 = vshrl.u32 %v1491, 7
        %v1493 = vsub.s32 %v1490, %v1492
        %v1494 = vrot.slane %v1480, %v1493
        %v1495 = vcombine.low %v1430, %v1446
        %v1496 = vcombine.high %v1430, %v1446
        %v1498 = vunpack.c.l.s4 1934713408
        %v1499 = vunpack.c.0.s8 %v1498
        %v1500 = vlaneseq
        %v1501 = vshrl.u32 %v1500, 7
        %v1502 = vsub.s32 %v1499, %v1501
        %v1503 = vrot.slane %v1495, %v1502
        %v1505 = vunpack.c.l.s4 1934713408
        %v1506 = vunpack.c.0.s8 %v1505
        %v1507 = vlaneseq
        %v1508 = vshrl.u32 %v1507, 7
        %v1509 = vsub.s32 %v1506, %v1508
        %v1510 = vrot.slane %v1496, %v1509
        %v1511 = vcombine.low %v1455, %v1487
        %v1512 = vcombine.high %v1455, %v1487
        %v1513 = vcombine.low %v1462, %v1494
        %v1514 = vcombine.high %v1462, %v1494
        %v1515 = vcombine.low %v1471, %v1503
        %v1516 = vcombine.high %v1471, %v1503
        %v1517 = vcombine.low %v1478, %v1510
        %v1518 = vcombine.high %v1478, %v1510
        %v1519 = vcombine.low %v1016, %v1040
        %v1520 = vcombine.high %v1016, %v1040
        %v1522 = vunpack.c.l.s4 1983009808
        %v1523 = vunpack.c.0.s8 %v1522
        %v1524 = vlaneseq
        %v1525 = vshrl.u32 %v1524, 7
        %v1526 = vsub.s32 %v1523, %v1525
        %v1527 = vrot.slane %v1519, %v1526
        %v1529 = vunpack.c.l.s4 1983009808
        %v1530 = vunpack.c.0.s8 %v1529
        %v1531 = vlaneseq
        %v1532 = vshrl.u32 %v1531, 7
        %v1533 = vsub.s32 %v1530, %v1532
        %v1534 = vrot.slane %v1520, %v1533
        %v1535 = vcombine.low %v1028, %v1052
        %v1536 = vcombine.high %v1028, %v1052
        %v1538 = vunpack.c.l.s4 1983009808
        %v1539 = vunpack.c.0.s8 %v1538
        %v1540 = vlaneseq
        %v1541 = vshrl.u32 %v1540, 7
        %v1542 = vsub.s32 %v1539, %v1541
        %v1543 = vrot.slane %v1535, %v1542
        %v1545 = vunpack.c.l.s4 1983009808
        %v1546 = vunpack.c.0.s8 %v1545
        %v1547 = vlaneseq
        %v1548 = vshrl.u32 %v1547, 7
        %v1549 = vsub.s32 %v1546, %v1548
        %v1550 = vrot.slane %v1536, %v1549
        %v1551 = vcombine.low %v1064, %v1088
        %v1552 = vcombine.high %v1064, %v1088
        %v1554 = vunpack.c.l.s4 1983009808
        %v1555 = vunpack.c.0.s8 %v1554
        %v1556 = vlaneseq
        %v1557 = vshrl.u32 %v1556, 7
        %v1558 = vsub.s32 %v1555, %v1557
        %v1559 = vrot.slane %v1551, %v1558
        %v1561 = vunpack.c.l.s4 1983009808
        %v1562 = vunpack.c.0.s8 %v1561
        %v1563 = vlaneseq
        %v1564 = vshrl.u32 %v1563, 7
        %v1565 = vsub.s32 %v1562, %v1564
        %v1566 = vrot.slane %v1552, %v1565
        %v1567 = vcombine.low %v1076, %v1100
        %v1568 = vcombine.high %v1076, %v1100
        %v1570 = vunpack.c.l.s4 1983009808
        %v1571 = vunpack.c.0.s8 %v1570
        %v1572 = vlaneseq
        %v1573 = vshrl.u32 %v1572, 7
        %v1574 = vsub.s32 %v1571, %v1573
        %v1575 = vrot.slane %v1567, %v1574
        %v1577 = vunpack.c.l.s4 1983009808
        %v1578 = vunpack.c.0.s8 %v1577
        %v1579 = vlaneseq
        %v1580 = vshrl.u32 %v1579, 7
        %v1581 = vsub.s32 %v1578, %v1580
        %v1582 = vrot.slane %v1568, %v1581
        %v1583 = vcombine.low %v1527, %v1543
        %v1584 = vcombine.high %v1527, %v1543
        %v1586 = vunpack.c.l.s4 1934713408
        %v1587 = vunpack.c.0.s8 %v1586
        %v1588 = vlaneseq
        %v1589 = vshrl.u32 %v1588, 7
        %v1590 = vsub.s32 %v1587, %v1589
        %v1591 = vrot.slane %v1583, %v1590
        %v1593 = vunpack.c.l.s4 1934713408
        %v1594 = vunpack.c.0.s8 %v1593
        %v1595 = vlaneseq
        %v1596 = vshrl.u32 %v1595, 7
        %v1597 = vsub.s32 %v1594, %v1596
        %v1598 = vrot.slane %v1584, %v1597
        %v1599 = vcombine.low %v1534, %v1550
        %v1600 = vcombine.high %v1534, %v1550
        %v1602 = vunpack.c.l.s4 1934713408
        %v1603 = vunpack.c.0.s8 %v1602
        %v1604 = vlaneseq
        %v1605 = vshrl.u32 %v1604, 7
        %v1606 = vsub.s32 %v1603, %v1605
        %v1607 = vrot.slane %v1599, %v1606
        %v1609 = vunpack.c.l.s4 1934713408
        %v1610 = vunpack.c.0.s8 %v1609
        %v1611 = vlaneseq
        %v1612 = vshrl.u32 %v1611, 7
        %v1613 = vsub.s32 %v1610, %v1612
        %v1614 = vrot.slane %v1600, %v1613
        %v1615 = vcombine.low %v1559, %v1575
        %v1616 = vcombine.high %v1559, %v1575
        %v1618 = vunpack.c.l.s4 1934713408
        %v1619 = vunpack.c.0.s8 %v1618
        %v1620 = vlaneseq
        %v1621 = vshrl.u32 %v1620, 7
        %v1622 = vsub.s32 %v1619, %v1621
        %v1623 = vrot.slane %v1615, %v1622
        %v1625 = vunpack.c.l.s4 1934713408
        %v1626 = vunpack.c.0.s8 %v1625
        %v1627 = vlaneseq
        %v1628 = vshrl.u32 %v1627, 7
        %v1629 = vsub.s32 %v1626, %v1628
        %v1630 = vrot.slane %v1616, %v1629
        %v1631 = vcombine.low %v1566, %v1582
        %v1632 = vcombine.high %v1566, %v1582
        %v1634 = vunpack.c.l.s4 1934713408
        %v1635 = vunpack.c.0.s8 %v1634
        %v1636 = vlaneseq
        %v1637 = vshrl.u32 %v1636, 7
        %v1638 = vsub.s32 %v1635, %v1637
        %v1639 = vrot.slane %v1631, %v1638
        %v1641 = vunpack.c.l.s4 1934713408
        %v1642 = vunpack.c.0.s8 %v1641
        %v1643 = vlaneseq
        %v1644 = vshrl.u32 %v1643, 7
        %v1645 = vsub.s32 %v1642, %v1644
        %v1646 = vrot.slane %v1632, %v1645
        %v1647 = vcombine.low %v1591, %v1623
        %v1648 = vcombine.high %v1591, %v1623
        %v1649 = vcombine.low %v1598, %v1630
        %v1650 = vcombine.high %v1598, %v1630
        %v1651 = vcombine.low %v1607, %v1639
        %v1652 = vcombine.high %v1607, %v1639
        %v1653 = vcombine.low %v1614, %v1646
        %v1654 = vcombine.high %v1614, %v1646
        %v1655 = vcombine.low %v715, %v762
        %v1656 = vcombine.high %v715, %v762
        %v1658 = vunpack.c.l.s4 1983009808
        %v1659 = vunpack.c.0.s8 %v1658
        %v1660 = vlaneseq
        %v1661 = vshrl.u32 %v1660, 7
        %v1662 = vsub.s32 %v1659, %v1661
        %v1663 = vrot.slane %v1655, %v1662
        %v1665 = vunpack.c.l.s4 1983009808
        %v1666 = vunpack.c.0.s8 %v1665
        %v1667 = vlaneseq
        %v1668 = vshrl.u32 %v1667, 7
        %v1669 = vsub.s32 %v1666, %v1668
        %v1670 = vrot.slane %v1656, %v1669
        %v1671 = vcombine.low %v750, %v774
        %v1672 = vcombine.high %v750, %v774
        %v1674 = vunpack.c.l.s4 1983009808
        %v1675 = vunpack.c.0.s8 %v1674
        %v1676 = vlaneseq
        %v1677 = vshrl.u32 %v1676, 7
        %v1678 = vsub.s32 %v1675, %v1677
        %v1679 = vrot.slane %v1671, %v1678
        %v1681 = vunpack.c.l.s4 1983009808
        %v1682 = vunpack.c.0.s8 %v1681
        %v1683 = vlaneseq
        %v1684 = vshrl.u32 %v1683, 7
        %v1685 = vsub.s32 %v1682, %v1684
        %v1686 = vrot.slane %v1672, %v1685
        %v1687 = vcombine.low %v786, %v810
        %v1688 = vcombine.high %v786, %v810
        %v1690 = vunpack.c.l.s4 1983009808
        %v1691 = vunpack.c.0.s8 %v1690
        %v1692 = vlaneseq
        %v1693 = vshrl.u32 %v1692, 7
        %v1694 = vsub.s32 %v1691, %v1693
        %v1695 = vrot.slane %v1687, %v1694
        %v1697 = vunpack.c.l.s4 1983009808
        %v1698 = vunpack.c.0.s8 %v1697
        %v1699 = vlaneseq
        %v1700 = vshrl.u32 %v1699, 7
        %v1701 = vsub.s32 %v1698, %v1700
        %v1702 = vrot.slane %v1688, %v1701
        %v1703 = vcombine.low %v798, %v822
        %v1704 = vcombine.high %v798, %v822
        %v1706 = vunpack.c.l.s4 1983009808
        %v1707 = vunpack.c.0.s8 %v1706
        %v1708 = vlaneseq
        %v1709 = vshrl.u32 %v1708, 7
        %v1710 = vsub.s32 %v1707, %v1709
        %v1711 = vrot.slane %v1703, %v1710
        %v1713 = vunpack.c.l.s4 1983009808
        %v1714 = vunpack.c.0.s8 %v1713
        %v1715 = vlaneseq
        %v1716 = vshrl.u32 %v1715, 7
        %v1717 = vsub.s32 %v1714, %v1716
        %v1718 = vrot.slane %v1704, %v1717
        %v1719 = vcombine.low %v1663, %v1679
        %v1720 = vcombine.high %v1663, %v1679
        %v1722 = vunpack.c.l.s4 1934713408
        %v1723 = vunpack.c.0.s8 %v1722
        %v1724 = vlaneseq
        %v1725 = vshrl.u32 %v1724, 7
        %v1726 = vsub.s32 %v1723, %v1725
        %v1727 = vrot.slane %v1719, %v1726
        %v1729 = vunpack.c.l.s4 1934713408
        %v1730 = vunpack.c.0.s8 %v1729
        %v1731 = vlaneseq
        %v1732 = vshrl.u32 %v1731, 7
        %v1733 = vsub.s32 %v1730, %v1732
        %v1734 = vrot.slane %v1720, %v1733
        %v1735 = vcombine.low %v1670, %v1686
        %v1736 = vcombine.high %v1670, %v1686
        %v1738 = vunpack.c.l.s4 1934713408
        %v1739 = vunpack.c.0.s8 %v1738
        %v1740 = vlaneseq
        %v1741 = vshrl.u32 %v1740, 7
        %v1742 = vsub.s32 %v1739, %v1741
        %v1743 = vrot.slane %v1735, %v1742
        %v1745 = vunpack.c.l.s4 1934713408
        %v1746 = vunpack.c.0.s8 %v1745
        %v1747 = vlaneseq
        %v1748 = vshrl.u32 %v1747, 7
        %v1749 = vsub.s32 %v1746, %v1748
        %v1750 = vrot.slane %v1736, %v1749
        %v1751 = vcombine.low %v1695, %v1711
        %v1752 = vcombine.high %v1695, %v1711
        %v1754 = vunpack.c.l.s4 1934713408
        %v1755 = vunpack.c.0.s8 %v1754
        %v1756 = vlaneseq
        %v1757 = vshrl.u32 %v1756, 7
        %v1758 = vsub.s32 %v1755, %v1757
        %v1759 = vrot.slane %v1751, %v1758
        %v1761 = vunpack.c.l.s4 1934713408
        %v1762 = vunpack.c.0.s8 %v1761
        %v1763 = vlaneseq
        %v1764 = vshrl.u32 %v1763, 7
        %v1765 = vsub.s32 %v1762, %v1764
        %v1766 = vrot.slane %v1752, %v1765
        %v1767 = vcombine.low %v1702, %v1718
        %v1768 = vcombine.high %v1702, %v1718
        %v1770 = vunpack.c.l.s4 1934713408
        %v1771 = vunpack.c.0.s8 %v1770
        %v1772 = vlaneseq
        %v1773 = vshrl.u32 %v1772, 7
        %v1774 = vsub.s32 %v1771, %v1773
        %v1775 = vrot.slane %v1767, %v1774
        %v1777 = vunpack.c.l.s4 1934713408
        %v1778 = vunpack.c.0.s8 %v1777
        %v1779 = vlaneseq
        %v1780 = vshrl.u32 %v1779, 7
        %v1781 = vsub.s32 %v1778, %v1780
        %v1782 = vrot.slane %v1768, %v1781
        %v1783 = vcombine.low %v1727, %v1759
        %v1784 = vcombine.high %v1727, %v1759
        %v1785 = vcombine.low %v1734, %v1766
        %v1786 = vcombine.high %v1734, %v1766
        %v1787 = vcombine.low %v1743, %v1775
        %v1788 = vcombine.high %v1743, %v1775
        %v1789 = vcombine.low %v1750, %v1782
        %v1790 = vcombine.high %v1750, %v1782
        %v1791 = vcombine.low %v834, %v858
        %v1792 = vcombine.high %v834, %v858
        %v1794 = vunpack.c.l.s4 1983009808
        %v1795 = vunpack.c.0.s8 %v1794
        %v1796 = vlaneseq
        %v1797 = vshrl.u32 %v1796, 7
        %v1798 = vsub.s32 %v1795, %v1797
        %v1799 = vrot.slane %v1791, %v1798
        %v1801 = vunpack.c.l.s4 1983009808
        %v1802 = vunpack.c.0.s8 %v1801
        %v1803 = vlaneseq
        %v1804 = vshrl.u32 %v1803, 7
        %v1805 = vsub.s32 %v1802, %v1804
        %v1806 = vrot.slane %v1792, %v1805
        %v1807 = vcombine.low %v846, %v870
        %v1808 = vcombine.high %v846, %v870
        %v1810 = vunpack.c.l.s4 1983009808
        %v1811 = vunpack.c.0.s8 %v1810
        %v1812 = vlaneseq
        %v1813 = vshrl.u32 %v1812, 7
        %v1814 = vsub.s32 %v1811, %v1813
        %v1815 = vrot.slane %v1807, %v1814
        %v1817 = vunpack.c.l.s4 1983009808
        %v1818 = vunpack.c.0.s8 %v1817
        %v1819 = vlaneseq
        %v1820 = vshrl.u32 %v1819, 7
        %v1821 = vsub.s32 %v1818, %v1820
        %v1822 = vrot.slane %v1808, %v1821
        %v1823 = vcombine.low %v882, %v906
        %v1824 = vcombine.high %v882, %v906
        %v1826 = vunpack.c.l.s4 1983009808
        %v1827 = vunpack.c.0.s8 %v1826
        %v1828 = vlaneseq
        %v1829 = vshrl.u32 %v1828, 7
        %v1830 = vsub.s32 %v1827, %v1829
        %v1831 = vrot.slane %v1823, %v1830
        %v1833 = vunpack.c.l.s4 1983009808
        %v1834 = vunpack.c.0.s8 %v1833
        %v1835 = vlaneseq
        %v1836 = vshrl.u32 %v1835, 7
        %v1837 = vsub.s32 %v1834, %v1836
        %v1838 = vrot.slane %v1824, %v1837
        %v1839 = vcombine.low %v894, %v918
        %v1840 = vcombine.high %v894, %v918
        %v1842 = vunpack.c.l.s4 1983009808
        %v1843 = vunpack.c.0.s8 %v1842
        %v1844 = vlaneseq
        %v1845 = vshrl.u32 %v1844, 7
        %v1846 = vsub.s32 %v1843, %v1845
        %v1847 = vrot.slane %v1839, %v1846
        %v1849 = vunpack.c.l.s4 1983009808
        %v1850 = vunpack.c.0.s8 %v1849
        %v1851 = vlaneseq
        %v1852 = vshrl.u32 %v1851, 7
        %v1853 = vsub.s32 %v1850, %v1852
        %v1854 = vrot.slane %v1840, %v1853
        %v1855 = vcombine.low %v1799, %v1815
        %v1856 = vcombine.high %v1799, %v1815
        %v1858 = vunpack.c.l.s4 1934713408
        %v1859 = vunpack.c.0.s8 %v1858
        %v1860 = vlaneseq
        %v1861 = vshrl.u32 %v1860, 7
        %v1862 = vsub.s32 %v1859, %v1861
        %v1863 = vrot.slane %v1855, %v1862
        %v1865 = vunpack.c.l.s4 1934713408
        %v1866 = vunpack.c.0.s8 %v1865
        %v1867 = vlaneseq
        %v1868 = vshrl.u32 %v1867, 7
        %v1869 = vsub.s32 %v1866, %v1868
        %v1870 = vrot.slane %v1856, %v1869
        %v1871 = vcombine.low %v1806, %v1822
        %v1872 = vcombine.high %v1806, %v1822
        %v1874 = vunpack.c.l.s4 1934713408
        %v1875 = vunpack.c.0.s8 %v1874
        %v1876 = vlaneseq
        %v1877 = vshrl.u32 %v1876, 7
        %v1878 = vsub.s32 %v1875, %v1877
        %v1879 = vrot.slane %v1871, %v1878
        %v1881 = vunpack.c.l.s4 1934713408
        %v1882 = vunpack.c.0.s8 %v1881
        %v1883 = vlaneseq
        %v1884 = vshrl.u32 %v1883, 7
        %v1885 = vsub.s32 %v1882, %v1884
        %v1886 = vrot.slane %v1872, %v1885
        %v1887 = vcombine.low %v1831, %v1847
        %v1888 = vcombine.high %v1831, %v1847
        %v1890 = vunpack.c.l.s4 1934713408
        %v1891 = vunpack.c.0.s8 %v1890
        %v1892 = vlaneseq
        %v1893 = vshrl.u32 %v1892, 7
        %v1894 = vsub.s32 %v1891, %v1893
        %v1895 = vrot.slane %v1887, %v1894
        %v1897 = vunpack.c.l.s4 1934713408
        %v1898 = vunpack.c.0.s8 %v1897
        %v1899 = vlaneseq
        %v1900 = vshrl.u32 %v1899, 7
        %v1901 = vsub.s32 %v1898, %v1900
        %v1902 = vrot.slane %v1888, %v1901
        %v1903 = vcombine.low %v1838, %v1854
        %v1904 = vcombine.high %v1838, %v1854
        %v1906 = vunpack.c.l.s4 1934713408
        %v1907 = vunpack.c.0.s8 %v1906
        %v1908 = vlaneseq
        %v1909 = vshrl.u32 %v1908, 7
        %v1910 = vsub.s32 %v1907, %v1909
        %v1911 = vrot.slane %v1903, %v1910
        %v1913 = vunpack.c.l.s4 1934713408
        %v1914 = vunpack.c.0.s8 %v1913
        %v1915 = vlaneseq
        %v1916 = vshrl.u32 %v1915, 7
        %v1917 = vsub.s32 %v1914, %v1916
        %v1918 = vrot.slane %v1904, %v1917
        %v1919 = vcombine.low %v1863, %v1895
        %v1920 = vcombine.high %v1863, %v1895
        %v1921 = vcombine.low %v1870, %v1902
        %v1922 = vcombine.high %v1870, %v1902
        %v1923 = vcombine.low %v1879, %v1911
        %v1924 = vcombine.high %v1879, %v1911
        %v1925 = vcombine.low %v1886, %v1918
        %v1926 = vcombine.high %v1886, %v1918
        %v1927 = vcombine.low %v717, %v946
        %v1928 = vcombine.high %v717, %v946
        %v1930 = vunpack.c.l.s4 1983009808
        %v1931 = vunpack.c.0.s8 %v1930
        %v1932 = vlaneseq
        %v1933 = vshrl.u32 %v1932, 7
        %v1934 = vsub.s32 %v1931, %v1933
        %v1935 = vrot.slane %v1927, %v1934
        %v1937 = vunpack.c.l.s4 1983009808
        %v1938 = vunpack.c.0.s8 %v1937
        %v1939 = vlaneseq
        %v1940 = vshrl.u32 %v1939, 7
        %v1941 = vsub.s32 %v1938, %v1940
        %v1942 = vrot.slane %v1928, %v1941
        %v1943 = vcombine.low %v934, %v958
        %v1944 = vcombine.high %v934, %v958
        %v1946 = vunpack.c.l.s4 1983009808
        %v1947 = vunpack.c.0.s8 %v1946
        %v1948 = vlaneseq
        %v1949 = vshrl.u32 %v1948, 7
        %v1950 = vsub.s32 %v1947, %v1949
        %v1951 = vrot.slane %v1943, %v1950
        %v1953 = vunpack.c.l.s4 1983009808
        %v1954 = vunpack.c.0.s8 %v1953
        %v1955 = vlaneseq
        %v1956 = vshrl.u32 %v1955, 7
        %v1957 = vsub.s32 %v1954, %v1956
        %v1958 = vrot.slane %v1944, %v1957
        %v1959 = vcombine.low %v970, %v994
        %v1960 = vcombine.high %v970, %v994
        %v1962 = vunpack.c.l.s4 1983009808
        %v1963 = vunpack.c.0.s8 %v1962
        %v1964 = vlaneseq
        %v1965 = vshrl.u32 %v1964, 7
        %v1966 = vsub.s32 %v1963, %v1965
        %v1967 = vrot.slane %v1959, %v1966
        %v1969 = vunpack.c.l.s4 1983009808
        %v1970 = vunpack.c.0.s8 %v1969
        %v1971 = vlaneseq
        %v1972 = vshrl.u32 %v1971, 7
        %v1973 = vsub.s32 %v1970, %v1972
        %v1974 = vrot.slane %v1960, %v1973
        %v1975 = vcombine.low %v982, %v1006
        %v1976 = vcombine.high %v982, %v1006
        %v1978 = vunpack.c.l.s4 1983009808
        %v1979 = vunpack.c.0.s8 %v1978
        %v1980 = vlaneseq
        %v1981 = vshrl.u32 %v1980, 7
        %v1982 = vsub.s32 %v1979, %v1981
        %v1983 = vrot.slane %v1975, %v1982
        %v1985 = vunpack.c.l.s4 1983009808
        %v1986 = vunpack.c.0.s8 %v1985
        %v1987 = vlaneseq
        %v1988 = vshrl.u32 %v1987, 7
        %v1989 = vsub.s32 %v1986, %v1988
        %v1990 = vrot.slane %v1976, %v1989
        %v1991 = vcombine.low %v1935, %v1951
        %v1992 = vcombine.high %v1935, %v1951
        %v1994 = vunpack.c.l.s4 1934713408
        %v1995 = vunpack.c.0.s8 %v1994
        %v1996 = vlaneseq
        %v1997 = vshrl.u32 %v1996, 7
        %v1998 = vsub.s32 %v1995, %v1997
        %v1999 = vrot.slane %v1991, %v1998
        %v2001 = vunpack.c.l.s4 1934713408
        %v2002 = vunpack.c.0.s8 %v2001
        %v2003 = vlaneseq
        %v2004 = vshrl.u32 %v2003, 7
        %v2005 = vsub.s32 %v2002, %v2004
        %v2006 = vrot.slane %v1992, %v2005
        %v2007 = vcombine.low %v1942, %v1958
        %v2008 = vcombine.high %v1942, %v1958
        %v2010 = vunpack.c.l.s4 1934713408
        %v2011 = vunpack.c.0.s8 %v2010
        %v2012 = vlaneseq
        %v2013 = vshrl.u32 %v2012, 7
        %v2014 = vsub.s32 %v2011, %v2013
        %v2015 = vrot.slane %v2007, %v2014
        %v2017 = vunpack.c.l.s4 1934713408
        %v2018 = vunpack.c.0.s8 %v2017
        %v2019 = vlaneseq
        %v2020 = vshrl.u32 %v2019, 7
        %v2021 = vsub.s32 %v2018, %v2020
        %v2022 = vrot.slane %v2008, %v2021
        %v2023 = vcombine.low %v1967, %v1983
        %v2024 = vcombine.high %v1967, %v1983
        %v2026 = vunpack.c.l.s4 1934713408
        %v2027 = vunpack.c.0.s8 %v2026
        %v2028 = vlaneseq
        %v2029 = vshrl.u32 %v2028, 7
        %v2030 = vsub.s32 %v2027, %v2029
        %v2031 = vrot.slane %v2023, %v2030
        %v2033 = vunpack.c.l.s4 1934713408
        %v2034 = vunpack.c.0.s8 %v2033
        %v2035 = vlaneseq
        %v2036 = vshrl.u32 %v2035, 7
        %v2037 = vsub.s32 %v2034, %v2036
        %v2038 = vrot.slane %v2024, %v2037
        %v2039 = vcombine.low %v1974, %v1990
        %v2040 = vcombine.high %v1974, %v1990
        %v2042 = vunpack.c.l.s4 1934713408
        %v2043 = vunpack.c.0.s8 %v2042
        %v2044 = vlaneseq
        %v2045 = vshrl.u32 %v2044, 7
        %v2046 = vsub.s32 %v2043, %v2045
        %v2047 = vrot.slane %v2039, %v2046
        %v2049 = vunpack.c.l.s4 1934713408
        %v2050 = vunpack.c.0.s8 %v2049
        %v2051 = vlaneseq
        %v2052 = vshrl.u32 %v2051, 7
        %v2053 = vsub.s32 %v2050, %v2052
        %v2054 = vrot.slane %v2040, %v2053
        %v2055 = vcombine.low %v1999, %v2031
        %v2056 = vcombine.high %v1999, %v2031
        %v2057 = vcombine.low %v2006, %v2038
        %v2058 = vcombine.high %v2006, %v2038
        %v2059 = vcombine.low %v2015, %v2047
        %v2060 = vcombine.high %v2015, %v2047
        %v2061 = vcombine.low %v2022, %v2054
        %v2062 = vcombine.high %v2022, %v2054
        %v2063 = vcombine.low %v1018, %v1042
        %v2064 = vcombine.high %v1018, %v1042
        %v2066 = vunpack.c.l.s4 1983009808
        %v2067 = vunpack.c.0.s8 %v2066
        %v2068 = vlaneseq
        %v2069 = vshrl.u32 %v2068, 7
        %v2070 = vsub.s32 %v2067, %v2069
        %v2071 = vrot.slane %v2063, %v2070
        %v2073 = vunpack.c.l.s4 1983009808
        %v2074 = vunpack.c.0.s8 %v2073
        %v2075 = vlaneseq
        %v2076 = vshrl.u32 %v2075, 7
        %v2077 = vsub.s32 %v2074, %v2076
        %v2078 = vrot.slane %v2064, %v2077
        %v2079 = vcombine.low %v1030, %v1054
        %v2080 = vcombine.high %v1030, %v1054
        %v2082 = vunpack.c.l.s4 1983009808
        %v2083 = vunpack.c.0.s8 %v2082
        %v2084 = vlaneseq
        %v2085 = vshrl.u32 %v2084, 7
        %v2086 = vsub.s32 %v2083, %v2085
        %v2087 = vrot.slane %v2079, %v2086
        %v2089 = vunpack.c.l.s4 1983009808
        %v2090 = vunpack.c.0.s8 %v2089
        %v2091 = vlaneseq
        %v2092 = vshrl.u32 %v2091, 7
        %v2093 = vsub.s32 %v2090, %v2092
        %v2094 = vrot.slane %v2080, %v2093
        %v2095 = vcombine.low %v1066, %v1090
        %v2096 = vcombine.high %v1066, %v1090
        %v2098 = vunpack.c.l.s4 1983009808
        %v2099 = vunpack.c.0.s8 %v2098
        %v2100 = vlaneseq
        %v2101 = vshrl.u32 %v2100, 7
        %v2102 = vsub.s32 %v2099, %v2101
        %v2103 = vrot.slane %v2095, %v2102
        %v2105 = vunpack.c.l.s4 1983009808
        %v2106 = vunpack.c.0.s8 %v2105
        %v2107 = vlaneseq
        %v2108 = vshrl.u32 %v2107, 7
        %v2109 = vsub.s32 %v2106, %v2108
        %v2110 = vrot.slane %v2096, %v2109
        %v2111 = vcombine.low %v1078, %v1102
        %v2112 = vcombine.high %v1078, %v1102
        %v2114 = vunpack.c.l.s4 1983009808
        %v2115 = vunpack.c.0.s8 %v2114
        %v2116 = vlaneseq
        %v2117 = vshrl.u32 %v2116, 7
        %v2118 = vsub.s32 %v2115, %v2117
        %v2119 = vrot.slane %v2111, %v2118
        %v2121 = vunpack.c.l.s4 1983009808
        %v2122 = vunpack.c.0.s8 %v2121
        %v2123 = vlaneseq
        %v2124 = vshrl.u32 %v2123, 7
        %v2125 = vsub.s32 %v2122, %v2124
        %v2126 = vrot.slane %v2112, %v2125
        %v2127 = vcombine.low %v2071, %v2087
        %v2128 = vcombine.high %v2071, %v2087
        %v2130 = vunpack.c.l.s4 1934713408
        %v2131 = vunpack.c.0.s8 %v2130
        %v2132 = vlaneseq
        %v2133 = vshrl.u32 %v2132, 7
        %v2134 = vsub.s32 %v2131, %v2133
        %v2135 = vrot.slane %v2127, %v2134
        %v2137 = vunpack.c.l.s4 1934713408
        %v2138 = vunpack.c.0.s8 %v2137
        %v2139 = vlaneseq
        %v2140 = vshrl.u32 %v2139, 7
        %v2141 = vsub.s32 %v2138, %v2140
        %v2142 = vrot.slane %v2128, %v2141
        %v2143 = vcombine.low %v2078, %v2094
        %v2144 = vcombine.high %v2078, %v2094
        %v2146 = vunpack.c.l.s4 1934713408
        %v2147 = vunpack.c.0.s8 %v2146
        %v2148 = vlaneseq
        %v2149 = vshrl.u32 %v2148, 7
        %v2150 = vsub.s32 %v2147, %v2149
        %v2151 = vrot.slane %v2143, %v2150
        %v2153 = vunpack.c.l.s4 1934713408
        %v2154 = vunpack.c.0.s8 %v2153
        %v2155 = vlaneseq
        %v2156 = vshrl.u32 %v2155, 7
        %v2157 = vsub.s32 %v2154, %v2156
        %v2158 = vrot.slane %v2144, %v2157
        %v2159 = vcombine.low %v2103, %v2119
        %v2160 = vcombine.high %v2103, %v2119
        %v2162 = vunpack.c.l.s4 1934713408
        %v2163 = vunpack.c.0.s8 %v2162
        %v2164 = vlaneseq
        %v2165 = vshrl.u32 %v2164, 7
        %v2166 = vsub.s32 %v2163, %v2165
        %v2167 = vrot.slane %v2159, %v2166
        %v2169 = vunpack.c.l.s4 1934713408
        %v2170 = vunpack.c.0.s8 %v2169
        %v2171 = vlaneseq
        %v2172 = vshrl.u32 %v2171, 7
        %v2173 = vsub.s32 %v2170, %v2172
        %v2174 = vrot.slane %v2160, %v2173
        %v2175 = vcombine.low %v2110, %v2126
        %v2176 = vcombine.high %v2110, %v2126
        %v2178 = vunpack.c.l.s4 1934713408
        %v2179 = vunpack.c.0.s8 %v2178
        %v2180 = vlaneseq
        %v2181 = vshrl.u32 %v2180, 7
        %v2182 = vsub.s32 %v2179, %v2181
        %v2183 = vrot.slane %v2175, %v2182
        %v2185 = vunpack.c.l.s4 1934713408
        %v2186 = vunpack.c.0.s8 %v2185
        %v2187 = vlaneseq
        %v2188 = vshrl.u32 %v2187, 7
        %v2189 = vsub.s32 %v2186, %v2188
        %v2190 = vrot.slane %v2176, %v2189
        %v2191 = vcombine.low %v2135, %v2167
        %v2192 = vcombine.high %v2135, %v2167
        %v2193 = vcombine.low %v2142, %v2174
        %v2194 = vcombine.high %v2142, %v2174
        %v2195 = vcombine.low %v2151, %v2183
        %v2196 = vcombine.high %v2151, %v2183
        %v2197 = vcombine.low %v2158, %v2190
        %v2198 = vcombine.high %v2158, %v2190
        %v2199 = vcombine.low %v721, %v764
        %v2200 = vcombine.high %v721, %v764
        %v2202 = vunpack.c.l.s4 1983009808
        %v2203 = vunpack.c.0.s8 %v2202
        %v2204 = vlaneseq
        %v2205 = vshrl.u32 %v2204, 7
        %v2206 = vsub.s32 %v2203, %v2205
        %v2207 = vrot.slane %v2199, %v2206
        %v2209 = vunpack.c.l.s4 1983009808
        %v2210 = vunpack.c.0.s8 %v2209
        %v2211 = vlaneseq
        %v2212 = vshrl.u32 %v2211, 7
        %v2213 = vsub.s32 %v2210, %v2212
        %v2214 = vrot.slane %v2200, %v2213
        %v2215 = vcombine.low %v752, %v776
        %v2216 = vcombine.high %v752, %v776
        %v2218 = vunpack.c.l.s4 1983009808
        %v2219 = vunpack.c.0.s8 %v2218
        %v2220 = vlaneseq
        %v2221 = vshrl.u32 %v2220, 7
        %v2222 = vsub.s32 %v2219, %v2221
        %v2223 = vrot.slane %v2215, %v2222
        %v2225 = vunpack.c.l.s4 1983009808
        %v2226 = vunpack.c.0.s8 %v2225
        %v2227 = vlaneseq
        %v2228 = vshrl.u32 %v2227, 7
        %v2229 = vsub.s32 %v2226, %v2228
        %v2230 = vrot.slane %v2216, %v2229
        %v2231 = vcombine.low %v788, %v812
        %v2232 = vcombine.high %v788, %v812
        %v2234 = vunpack.c.l.s4 1983009808
        %v2235 = vunpack.c.0.s8 %v2234
        %v2236 = vlaneseq
        %v2237 = vshrl.u32 %v2236, 7
        %v2238 = vsub.s32 %v2235, %v2237
        %v2239 = vrot.slane %v2231, %v2238
        %v2241 = vunpack.c.l.s4 1983009808
        %v2242 = vunpack.c.0.s8 %v2241
        %v2243 = vlaneseq
        %v2244 = vshrl.u32 %v2243, 7
        %v2245 = vsub.s32 %v2242, %v2244
        %v2246 = vrot.slane %v2232, %v2245
        %v2247 = vcombine.low %v800, %v824
        %v2248 = vcombine.high %v800, %v824
        %v2250 = vunpack.c.l.s4 1983009808
        %v2251 = vunpack.c.0.s8 %v2250
        %v2252 = vlaneseq
        %v2253 = vshrl.u32 %v2252, 7
        %v2254 = vsub.s32 %v2251, %v2253
        %v2255 = vrot.slane %v2247, %v2254
        %v2257 = vunpack.c.l.s4 1983009808
        %v2258 = vunpack.c.0.s8 %v2257
        %v2259 = vlaneseq
        %v2260 = vshrl.u32 %v2259, 7
        %v2261 = vsub.s32 %v2258, %v2260
        %v2262 = vrot.slane %v2248, %v2261
        %v2263 = vcombine.low %v2207, %v2223
        %v2264 = vcombine.high %v2207, %v2223
        %v2266 = vunpack.c.l.s4 1934713408
        %v2267 = vunpack.c.0.s8 %v2266
        %v2268 = vlaneseq
        %v2269 = vshrl.u32 %v2268, 7
        %v2270 = vsub.s32 %v2267, %v2269
        %v2271 = vrot.slane %v2263, %v2270
        %v2273 = vunpack.c.l.s4 1934713408
        %v2274 = vunpack.c.0.s8 %v2273
        %v2275 = vlaneseq
        %v2276 = vshrl.u32 %v2275, 7
        %v2277 = vsub.s32 %v2274, %v2276
        %v2278 = vrot.slane %v2264, %v2277
        %v2279 = vcombine.low %v2214, %v2230
        %v2280 = vcombine.high %v2214, %v2230
        %v2282 = vunpack.c.l.s4 1934713408
        %v2283 = vunpack.c.0.s8 %v2282
        %v2284 = vlaneseq
        %v2285 = vshrl.u32 %v2284, 7
        %v2286 = vsub.s32 %v2283, %v2285
        %v2287 = vrot.slane %v2279, %v2286
        %v2289 = vunpack.c.l.s4 1934713408
        %v2290 = vunpack.c.0.s8 %v2289
        %v2291 = vlaneseq
        %v2292 = vshrl.u32 %v2291, 7
        %v2293 = vsub.s32 %v2290, %v2292
        %v2294 = vrot.slane %v2280, %v2293
        %v2295 = vcombine.low %v2239, %v2255
        %v2296 = vcombine.high %v2239, %v2255
        %v2298 = vunpack.c.l.s4 1934713408
        %v2299 = vunpack.c.0.s8 %v2298
        %v2300 = vlaneseq
        %v2301 = vshrl.u32 %v2300, 7
        %v2302 = vsub.s32 %v2299, %v2301
        %v2303 = vrot.slane %v2295, %v2302
        %v2305 = vunpack.c.l.s4 1934713408
        %v2306 = vunpack.c.0.s8 %v2305
        %v2307 = vlaneseq
        %v2308 = vshrl.u32 %v2307, 7
        %v2309 = vsub.s32 %v2306, %v2308
        %v2310 = vrot.slane %v2296, %v2309
        %v2311 = vcombine.low %v2246, %v2262
        %v2312 = vcombine.high %v2246, %v2262
        %v2314 = vunpack.c.l.s4 1934713408
        %v2315 = vunpack.c.0.s8 %v2314
        %v2316 = vlaneseq
        %v2317 = vshrl.u32 %v2316, 7
        %v2318 = vsub.s32 %v2315, %v2317
        %v2319 = vrot.slane %v2311, %v2318
        %v2321 = vunpack.c.l.s4 1934713408
        %v2322 = vunpack.c.0.s8 %v2321
        %v2323 = vlaneseq
        %v2324 = vshrl.u32 %v2323, 7
        %v2325 = vsub.s32 %v2322, %v2324
        %v2326 = vrot.slane %v2312, %v2325
        %v2327 = vcombine.low %v2271, %v2303
        %v2328 = vcombine.high %v2271, %v2303
        %v2329 = vcombine.low %v2278, %v2310
        %v2330 = vcombine.high %v2278, %v2310
        %v2331 = vcombine.low %v2287, %v2319
        %v2332 = vcombine.high %v2287, %v2319
        %v2333 = vcombine.low %v2294, %v2326
        %v2334 = vcombine.high %v2294, %v2326
        %v2335 = vcombine.low %v836, %v860
        %v2336 = vcombine.high %v836, %v860
        %v2338 = vunpack.c.l.s4 1983009808
        %v2339 = vunpack.c.0.s8 %v2338
        %v2340 = vlaneseq
        %v2341 = vshrl.u32 %v2340, 7
        %v2342 = vsub.s32 %v2339, %v2341
        %v2343 = vrot.slane %v2335, %v2342
        %v2345 = vunpack.c.l.s4 1983009808
        %v2346 = vunpack.c.0.s8 %v2345
        %v2347 = vlaneseq
        %v2348 = vshrl.u32 %v2347, 7
        %v2349 = vsub.s32 %v2346, %v2348
        %v2350 = vrot.slane %v2336, %v2349
        %v2351 = vcombine.low %v848, %v872
        %v2352 = vcombine.high %v848, %v872
        %v2354 = vunpack.c.l.s4 1983009808
        %v2355 = vunpack.c.0.s8 %v2354
        %v2356 = vlaneseq
        %v2357 = vshrl.u32 %v2356, 7
        %v2358 = vsub.s32 %v2355, %v2357
        %v2359 = vrot.slane %v2351, %v2358
        %v2361 = vunpack.c.l.s4 1983009808
        %v2362 = vunpack.c.0.s8 %v2361
        %v2363 = vlaneseq
        %v2364 = vshrl.u32 %v2363, 7
        %v2365 = vsub.s32 %v2362, %v2364
        %v2366 = vrot.slane %v2352, %v2365
        %v2367 = vcombine.low %v884, %v908
        %v2368 = vcombine.high %v884, %v908
        %v2370 = vunpack.c.l.s4 1983009808
        %v2371 = vunpack.c.0.s8 %v2370
        %v2372 = vlaneseq
        %v2373 = vshrl.u32 %v2372, 7
        %v2374 = vsub.s32 %v2371, %v2373
        %v2375 = vrot.slane %v2367, %v2374
        %v2377 = vunpack.c.l.s4 1983009808
        %v2378 = vunpack.c.0.s8 %v2377
        %v2379 = vlaneseq
        %v2380 = vshrl.u32 %v2379, 7
        %v2381 = vsub.s32 %v2378, %v2380
        %v2382 = vrot.slane %v2368, %v2381
        %v2383 = vcombine.low %v896, %v920
        %v2384 = vcombine.high %v896, %v920
        %v2386 = vunpack.c.l.s4 1983009808
        %v2387 = vunpack.c.0.s8 %v2386
        %v2388 = vlaneseq
        %v2389 = vshrl.u32 %v2388, 7
        %v2390 = vsub.s32 %v2387, %v2389
        %v2391 = vrot.slane %v2383, %v2390
        %v2393 = vunpack.c.l.s4 1983009808
        %v2394 = vunpack.c.0.s8 %v2393
        %v2395 = vlaneseq
        %v2396 = vshrl.u32 %v2395, 7
        %v2397 = vsub.s32 %v2394, %v2396
        %v2398 = vrot.slane %v2384, %v2397
        %v2399 = vcombine.low %v2343, %v2359
        %v2400 = vcombine.high %v2343, %v2359
        %v2402 = vunpack.c.l.s4 1934713408
        %v2403 = vunpack.c.0.s8 %v2402
        %v2404 = vlaneseq
        %v2405 = vshrl.u32 %v2404, 7
        %v2406 = vsub.s32 %v2403, %v2405
        %v2407 = vrot.slane %v2399, %v2406
        %v2409 = vunpack.c.l.s4 1934713408
        %v2410 = vunpack.c.0.s8 %v2409
        %v2411 = vlaneseq
        %v2412 = vshrl.u32 %v2411, 7
        %v2413 = vsub.s32 %v2410, %v2412
        %v2414 = vrot.slane %v2400, %v2413
        %v2415 = vcombine.low %v2350, %v2366
        %v2416 = vcombine.high %v2350, %v2366
        %v2418 = vunpack.c.l.s4 1934713408
        %v2419 = vunpack.c.0.s8 %v2418
        %v2420 = vlaneseq
        %v2421 = vshrl.u32 %v2420, 7
        %v2422 = vsub.s32 %v2419, %v2421
        %v2423 = vrot.slane %v2415, %v2422
        %v2425 = vunpack.c.l.s4 1934713408
        %v2426 = vunpack.c.0.s8 %v2425
        %v2427 = vlaneseq
        %v2428 = vshrl.u32 %v2427, 7
        %v2429 = vsub.s32 %v2426, %v2428
        %v2430 = vrot.slane %v2416, %v2429
        %v2431 = vcombine.low %v2375, %v2391
        %v2432 = vcombine.high %v2375, %v2391
        %v2434 = vunpack.c.l.s4 1934713408
        %v2435 = vunpack.c.0.s8 %v2434
        %v2436 = vlaneseq
        %v2437 = vshrl.u32 %v2436, 7
        %v2438 = vsub.s32 %v2435, %v2437
        %v2439 = vrot.slane %v2431, %v2438
        %v2441 = vunpack.c.l.s4 1934713408
        %v2442 = vunpack.c.0.s8 %v2441
        %v2443 = vlaneseq
        %v2444 = vshrl.u32 %v2443, 7
        %v2445 = vsub.s32 %v2442, %v2444
        %v2446 = vrot.slane %v2432, %v2445
        %v2447 = vcombine.low %v2382, %v2398
        %v2448 = vcombine.high %v2382, %v2398
        %v2450 = vunpack.c.l.s4 1934713408
        %v2451 = vunpack.c.0.s8 %v2450
        %v2452 = vlaneseq
        %v2453 = vshrl.u32 %v2452, 7
        %v2454 = vsub.s32 %v2451, %v2453
        %v2455 = vrot.slane %v2447, %v2454
        %v2457 = vunpack.c.l.s4 1934713408
        %v2458 = vunpack.c.0.s8 %v2457
        %v2459 = vlaneseq
        %v2460 = vshrl.u32 %v2459, 7
        %v2461 = vsub.s32 %v2458, %v2460
        %v2462 = vrot.slane %v2448, %v2461
        %v2463 = vcombine.low %v2407, %v2439
        %v2464 = vcombine.high %v2407, %v2439
        %v2465 = vcombine.low %v2414, %v2446
        %v2466 = vcombine.high %v2414, %v2446
        %v2467 = vcombine.low %v2423, %v2455
        %v2468 = vcombine.high %v2423, %v2455
        %v2469 = vcombine.low %v2430, %v2462
        %v2470 = vcombine.high %v2430, %v2462
        %v2471 = vcombine.low %v723, %v948
        %v2472 = vcombine.high %v723, %v948
        %v2474 = vunpack.c.l.s4 1983009808
        %v2475 = vunpack.c.0.s8 %v2474
        %v2476 = vlaneseq
        %v2477 = vshrl.u32 %v2476, 7
        %v2478 = vsub.s32 %v2475, %v2477
        %v2479 = vrot.slane %v2471, %v2478
        %v2481 = vunpack.c.l.s4 1983009808
        %v2482 = vunpack.c.0.s8 %v2481
        %v2483 = vlaneseq
        %v2484 = vshrl.u32 %v2483, 7
        %v2485 = vsub.s32 %v2482, %v2484
        %v2486 = vrot.slane %v2472, %v2485
        %v2487 = vcombine.low %v936, %v960
        %v2488 = vcombine.high %v936, %v960
        %v2490 = vunpack.c.l.s4 1983009808
        %v2491 = vunpack.c.0.s8 %v2490
        %v2492 = vlaneseq
        %v2493 = vshrl.u32 %v2492, 7
        %v2494 = vsub.s32 %v2491, %v2493
        %v2495 = vrot.slane %v2487, %v2494
        %v2497 = vunpack.c.l.s4 1983009808
        %v2498 = vunpack.c.0.s8 %v2497
        %v2499 = vlaneseq
        %v2500 = vshrl.u32 %v2499, 7
        %v2501 = vsub.s32 %v2498, %v2500
        %v2502 = vrot.slane %v2488, %v2501
        %v2503 = vcombine.low %v972, %v996
        %v2504 = vcombine.high %v972, %v996
        %v2506 = vunpack.c.l.s4 1983009808
        %v2507 = vunpack.c.0.s8 %v2506
        %v2508 = vlaneseq
        %v2509 = vshrl.u32 %v2508, 7
        %v2510 = vsub.s32 %v2507, %v2509
        %v2511 = vrot.slane %v2503, %v2510
        %v2513 = vunpack.c.l.s4 1983009808
        %v2514 = vunpack.c.0.s8 %v2513
        %v2515 = vlaneseq
        %v2516 = vshrl.u32 %v2515, 7
        %v2517 = vsub.s32 %v2514, %v2516
        %v2518 = vrot.slane %v2504, %v2517
        %v2519 = vcombine.low %v984, %v1008
        %v2520 = vcombine.high %v984, %v1008
        %v2522 = vunpack.c.l.s4 1983009808
        %v2523 = vunpack.c.0.s8 %v2522
        %v2524 = vlaneseq
        %v2525 = vshrl.u32 %v2524, 7
        %v2526 = vsub.s32 %v2523, %v2525
        %v2527 = vrot.slane %v2519, %v2526
        %v2529 = vunpack.c.l.s4 1983009808
        %v2530 = vunpack.c.0.s8 %v2529
        %v2531 = vlaneseq
        %v2532 = vshrl.u32 %v2531, 7
        %v2533 = vsub.s32 %v2530, %v2532
        %v2534 = vrot.slane %v2520, %v2533
        %v2535 = vcombine.low %v2479, %v2495
        %v2536 = vcombine.high %v2479, %v2495
        %v2538 = vunpack.c.l.s4 1934713408
        %v2539 = vunpack.c.0.s8 %v2538
        %v2540 = vlaneseq
        %v2541 = vshrl.u32 %v2540, 7
        %v2542 = vsub.s32 %v2539, %v2541
        %v2543 = vrot.slane %v2535, %v2542
        %v2545 = vunpack.c.l.s4 1934713408
        %v2546 = vunpack.c.0.s8 %v2545
        %v2547 = vlaneseq
        %v2548 = vshrl.u32 %v2547, 7
        %v2549 = vsub.s32 %v2546, %v2548
        %v2550 = vrot.slane %v2536, %v2549
        %v2551 = vcombine.low %v2486, %v2502
        %v2552 = vcombine.high %v2486, %v2502
        %v2554 = vunpack.c.l.s4 1934713408
        %v2555 = vunpack.c.0.s8 %v2554
        %v2556 = vlaneseq
        %v2557 = vshrl.u32 %v2556, 7
        %v2558 = vsub.s32 %v2555, %v2557
        %v2559 = vrot.slane %v2551, %v2558
        %v2561 = vunpack.c.l.s4 1934713408
        %v2562 = vunpack.c.0.s8 %v2561
        %v2563 = vlaneseq
        %v2564 = vshrl.u32 %v2563, 7
        %v2565 = vsub.s32 %v2562, %v2564
        %v2566 = vrot.slane %v2552, %v2565
        %v2567 = vcombine.low %v2511, %v2527
        %v2568 = vcombine.high %v2511, %v2527
        %v2570 = vunpack.c.l.s4 1934713408
        %v2571 = vunpack.c.0.s8 %v2570
        %v2572 = vlaneseq
        %v2573 = vshrl.u32 %v2572, 7
        %v2574 = vsub.s32 %v2571, %v2573
        %v2575 = vrot.slane %v2567, %v2574
        %v2577 = vunpack.c.l.s4 1934713408
        %v2578 = vunpack.c.0.s8 %v2577
        %v2579 = vlaneseq
        %v2580 = vshrl.u32 %v2579, 7
        %v2581 = vsub.s32 %v2578, %v2580
        %v2582 = vrot.slane %v2568, %v2581
        %v2583 = vcombine.low %v2518, %v2534
        %v2584 = vcombine.high %v2518, %v2534
        %v2586 = vunpack.c.l.s4 1934713408
        %v2587 = vunpack.c.0.s8 %v2586
        %v2588 = vlaneseq
        %v2589 = vshrl.u32 %v2588, 7
        %v2590 = vsub.s32 %v2587, %v2589
        %v2591 = vrot.slane %v2583, %v2590
        %v2593 = vunpack.c.l.s4 1934713408
        %v2594 = vunpack.c.0.s8 %v2593
        %v2595 = vlaneseq
        %v2596 = vshrl.u32 %v2595, 7
        %v2597 = vsub.s32 %v2594, %v2596
        %v2598 = vrot.slane %v2584, %v2597
        %v2599 = vcombine.low %v2543, %v2575
        %v2600 = vcombine.high %v2543, %v2575
        %v2601 = vcombine.low %v2550, %v2582
        %v2602 = vcombine.high %v2550, %v2582
        %v2603 = vcombine.low %v2559, %v2591
        %v2604 = vcombine.high %v2559, %v2591
        %v2605 = vcombine.low %v2566, %v2598
        %v2606 = vcombine.high %v2566, %v2598
        %v2607 = vcombine.low %v1020, %v1044
        %v2608 = vcombine.high %v1020, %v1044
        %v2610 = vunpack.c.l.s4 1983009808
        %v2611 = vunpack.c.0.s8 %v2610
        %v2612 = vlaneseq
        %v2613 = vshrl.u32 %v2612, 7
        %v2614 = vsub.s32 %v2611, %v2613
        %v2615 = vrot.slane %v2607, %v2614
        %v2617 = vunpack.c.l.s4 1983009808
        %v2618 = vunpack.c.0.s8 %v2617
        %v2619 = vlaneseq
        %v2620 = vshrl.u32 %v2619, 7
        %v2621 = vsub.s32 %v2618, %v2620
        %v2622 = vrot.slane %v2608, %v2621
        %v2623 = vcombine.low %v1032, %v1056
        %v2624 = vcombine.high %v1032, %v1056
        %v2626 = vunpack.c.l.s4 1983009808
        %v2627 = vunpack.c.0.s8 %v2626
        %v2628 = vlaneseq
        %v2629 = vshrl.u32 %v2628, 7
        %v2630 = vsub.s32 %v2627, %v2629
        %v2631 = vrot.slane %v2623, %v2630
        %v2633 = vunpack.c.l.s4 1983009808
        %v2634 = vunpack.c.0.s8 %v2633
        %v2635 = vlaneseq
        %v2636 = vshrl.u32 %v2635, 7
        %v2637 = vsub.s32 %v2634, %v2636
        %v2638 = vrot.slane %v2624, %v2637
        %v2639 = vcombine.low %v1068, %v1092
        %v2640 = vcombine.high %v1068, %v1092
        %v2642 = vunpack.c.l.s4 1983009808
        %v2643 = vunpack.c.0.s8 %v2642
        %v2644 = vlaneseq
        %v2645 = vshrl.u32 %v2644, 7
        %v2646 = vsub.s32 %v2643, %v2645
        %v2647 = vrot.slane %v2639, %v2646
        %v2649 = vunpack.c.l.s4 1983009808
        %v2650 = vunpack.c.0.s8 %v2649
        %v2651 = vlaneseq
        %v2652 = vshrl.u32 %v2651, 7
        %v2653 = vsub.s32 %v2650, %v2652
        %v2654 = vrot.slane %v2640, %v2653
        %v2655 = vcombine.low %v1080, %v1104
        %v2656 = vcombine.high %v1080, %v1104
        %v2658 = vunpack.c.l.s4 1983009808
        %v2659 = vunpack.c.0.s8 %v2658
        %v2660 = vlaneseq
        %v2661 = vshrl.u32 %v2660, 7
        %v2662 = vsub.s32 %v2659, %v2661
        %v2663 = vrot.slane %v2655, %v2662
        %v2665 = vunpack.c.l.s4 1983009808
        %v2666 = vunpack.c.0.s8 %v2665
        %v2667 = vlaneseq
        %v2668 = vshrl.u32 %v2667, 7
        %v2669 = vsub.s32 %v2666, %v2668
        %v2670 = vrot.slane %v2656, %v2669
        %v2671 = vcombine.low %v2615, %v2631
        %v2672 = vcombine.high %v2615, %v2631
        %v2674 = vunpack.c.l.s4 1934713408
        %v2675 = vunpack.c.0.s8 %v2674
        %v2676 = vlaneseq
        %v2677 = vshrl.u32 %v2676, 7
        %v2678 = vsub.s32 %v2675, %v2677
        %v2679 = vrot.slane %v2671, %v2678
        %v2681 = vunpack.c.l.s4 1934713408
        %v2682 = vunpack.c.0.s8 %v2681
        %v2683 = vlaneseq
        %v2684 = vshrl.u32 %v2683, 7
        %v2685 = vsub.s32 %v2682, %v2684
        %v2686 = vrot.slane %v2672, %v2685
        %v2687 = vcombine.low %v2622, %v2638
        %v2688 = vcombine.high %v2622, %v2638
        %v2690 = vunpack.c.l.s4 1934713408
        %v2691 = vunpack.c.0.s8 %v2690
        %v2692 = vlaneseq
        %v2693 = vshrl.u32 %v2692, 7
        %v2694 = vsub.s32 %v2691, %v2693
        %v2695 = vrot.slane %v2687, %v2694
        %v2697 = vunpack.c.l.s4 1934713408
        %v2698 = vunpack.c.0.s8 %v2697
        %v2699 = vlaneseq
        %v2700 = vshrl.u32 %v2699, 7
        %v2701 = vsub.s32 %v2698, %v2700
        %v2702 = vrot.slane %v2688, %v2701
        %v2703 = vcombine.low %v2647, %v2663
        %v2704 = vcombine.high %v2647, %v2663
        %v2706 = vunpack.c.l.s4 1934713408
        %v2707 = vunpack.c.0.s8 %v2706
        %v2708 = vlaneseq
        %v2709 = vshrl.u32 %v2708, 7
        %v2710 = vsub.s32 %v2707, %v2709
        %v2711 = vrot.slane %v2703, %v2710
        %v2713 = vunpack.c.l.s4 1934713408
        %v2714 = vunpack.c.0.s8 %v2713
        %v2715 = vlaneseq
        %v2716 = vshrl.u32 %v2715, 7
        %v2717 = vsub.s32 %v2714, %v2716
        %v2718 = vrot.slane %v2704, %v2717
        %v2719 = vcombine.low %v2654, %v2670
        %v2720 = vcombine.high %v2654, %v2670
        %v2722 = vunpack.c.l.s4 1934713408
        %v2723 = vunpack.c.0.s8 %v2722
        %v2724 = vlaneseq
        %v2725 = vshrl.u32 %v2724, 7
        %v2726 = vsub.s32 %v2723, %v2725
        %v2727 = vrot.slane %v2719, %v2726
        %v2729 = vunpack.c.l.s4 1934713408
        %v2730 = vunpack.c.0.s8 %v2729
        %v2731 = vlaneseq
        %v2732 = vshrl.u32 %v2731, 7
        %v2733 = vsub.s32 %v2730, %v2732
        %v2734 = vrot.slane %v2720, %v2733
        %v2735 = vcombine.low %v2679, %v2711
        %v2736 = vcombine.high %v2679, %v2711
        %v2737 = vcombine.low %v2686, %v2718
        %v2738 = vcombine.high %v2686, %v2718
        %v2739 = vcombine.low %v2695, %v2727
        %v2740 = vcombine.high %v2695, %v2727
        %v2741 = vcombine.low %v2702, %v2734
        %v2742 = vcombine.high %v2702, %v2734
        %v2743 = vcombine.low %v727, %v766
        %v2744 = vcombine.high %v727, %v766
        %v2746 = vunpack.c.l.s4 1983009808
        %v2747 = vunpack.c.0.s8 %v2746
        %v2748 = vlaneseq
        %v2749 = vshrl.u32 %v2748, 7
        %v2750 = vsub.s32 %v2747, %v2749
        %v2751 = vrot.slane %v2743, %v2750
        %v2753 = vunpack.c.l.s4 1983009808
        %v2754 = vunpack.c.0.s8 %v2753
        %v2755 = vlaneseq
        %v2756 = vshrl.u32 %v2755, 7
        %v2757 = vsub.s32 %v2754, %v2756
        %v2758 = vrot.slane %v2744, %v2757
        %v2759 = vcombine.low %v754, %v778
        %v2760 = vcombine.high %v754, %v778
        %v2762 = vunpack.c.l.s4 1983009808
        %v2763 = vunpack.c.0.s8 %v2762
        %v2764 = vlaneseq
        %v2765 = vshrl.u32 %v2764, 7
        %v2766 = vsub.s32 %v2763, %v2765
        %v2767 = vrot.slane %v2759, %v2766
        %v2769 = vunpack.c.l.s4 1983009808
        %v2770 = vunpack.c.0.s8 %v2769
        %v2771 = vlaneseq
        %v2772 = vshrl.u32 %v2771, 7
        %v2773 = vsub.s32 %v2770, %v2772
        %v2774 = vrot.slane %v2760, %v2773
        %v2775 = vcombine.low %v790, %v814
        %v2776 = vcombine.high %v790, %v814
        %v2778 = vunpack.c.l.s4 1983009808
        %v2779 = vunpack.c.0.s8 %v2778
        %v2780 = vlaneseq
        %v2781 = vshrl.u32 %v2780, 7
        %v2782 = vsub.s32 %v2779, %v2781
        %v2783 = vrot.slane %v2775, %v2782
        %v2785 = vunpack.c.l.s4 1983009808
        %v2786 = vunpack.c.0.s8 %v2785
        %v2787 = vlaneseq
        %v2788 = vshrl.u32 %v2787, 7
        %v2789 = vsub.s32 %v2786, %v2788
        %v2790 = vrot.slane %v2776, %v2789
        %v2791 = vcombine.low %v802, %v826
        %v2792 = vcombine.high %v802, %v826
        %v2794 = vunpack.c.l.s4 1983009808
        %v2795 = vunpack.c.0.s8 %v2794
        %v2796 = vlaneseq
        %v2797 = vshrl.u32 %v2796, 7
        %v2798 = vsub.s32 %v2795, %v2797
        %v2799 = vrot.slane %v2791, %v2798
        %v2801 = vunpack.c.l.s4 1983009808
        %v2802 = vunpack.c.0.s8 %v2801
        %v2803 = vlaneseq
        %v2804 = vshrl.u32 %v2803, 7
        %v2805 = vsub.s32 %v2802, %v2804
        %v2806 = vrot.slane %v2792, %v2805
        %v2807 = vcombine.low %v2751, %v2767
        %v2808 = vcombine.high %v2751, %v2767
        %v2810 = vunpack.c.l.s4 1934713408
        %v2811 = vunpack.c.0.s8 %v2810
        %v2812 = vlaneseq
        %v2813 = vshrl.u32 %v2812, 7
        %v2814 = vsub.s32 %v2811, %v2813
        %v2815 = vrot.slane %v2807, %v2814
        %v2817 = vunpack.c.l.s4 1934713408
        %v2818 = vunpack.c.0.s8 %v2817
        %v2819 = vlaneseq
        %v2820 = vshrl.u32 %v2819, 7
        %v2821 = vsub.s32 %v2818, %v2820
        %v2822 = vrot.slane %v2808, %v2821
        %v2823 = vcombine.low %v2758, %v2774
        %v2824 = vcombine.high %v2758, %v2774
        %v2826 = vunpack.c.l.s4 1934713408
        %v2827 = vunpack.c.0.s8 %v2826
        %v2828 = vlaneseq
        %v2829 = vshrl.u32 %v2828, 7
        %v2830 = vsub.s32 %v2827, %v2829
        %v2831 = vrot.slane %v2823, %v2830
        %v2833 = vunpack.c.l.s4 1934713408
        %v2834 = vunpack.c.0.s8 %v2833
        %v2835 = vlaneseq
        %v2836 = vshrl.u32 %v2835, 7
        %v2837 = vsub.s32 %v2834, %v2836
        %v2838 = vrot.slane %v2824, %v2837
        %v2839 = vcombine.low %v2783, %v2799
        %v2840 = vcombine.high %v2783, %v2799
        %v2842 = vunpack.c.l.s4 1934713408
        %v2843 = vunpack.c.0.s8 %v2842
        %v2844 = vlaneseq
        %v2845 = vshrl.u32 %v2844, 7
        %v2846 = vsub.s32 %v2843, %v2845
        %v2847 = vrot.slane %v2839, %v2846
        %v2849 = vunpack.c.l.s4 1934713408
        %v2850 = vunpack.c.0.s8 %v2849
        %v2851 = vlaneseq
        %v2852 = vshrl.u32 %v2851, 7
        %v2853 = vsub.s32 %v2850, %v2852
        %v2854 = vrot.slane %v2840, %v2853
        %v2855 = vcombine.low %v2790, %v2806
        %v2856 = vcombine.high %v2790, %v2806
        %v2858 = vunpack.c.l.s4 1934713408
        %v2859 = vunpack.c.0.s8 %v2858
        %v2860 = vlaneseq
        %v2861 = vshrl.u32 %v2860, 7
        %v2862 = vsub.s32 %v2859, %v2861
        %v2863 = vrot.slane %v2855, %v2862
        %v2865 = vunpack.c.l.s4 1934713408
        %v2866 = vunpack.c.0.s8 %v2865
        %v2867 = vlaneseq
        %v2868 = vshrl.u32 %v2867, 7
        %v2869 = vsub.s32 %v2866, %v2868
        %v2870 = vrot.slane %v2856, %v2869
        %v2871 = vcombine.low %v2815, %v2847
        %v2872 = vcombine.high %v2815, %v2847
        %v2873 = vcombine.low %v2822, %v2854
        %v2874 = vcombine.high %v2822, %v2854
        %v2875 = vcombine.low %v2831, %v2863
        %v2876 = vcombine.high %v2831, %v2863
        %v2877 = vcombine.low %v2838, %v2870
        %v2878 = vcombine.high %v2838, %v2870
        %v2879 = vcombine.low %v838, %v862
        %v2880 = vcombine.high %v838, %v862
        %v2882 = vunpack.c.l.s4 1983009808
        %v2883 = vunpack.c.0.s8 %v2882
        %v2884 = vlaneseq
        %v2885 = vshrl.u32 %v2884, 7
        %v2886 = vsub.s32 %v2883, %v2885
        %v2887 = vrot.slane %v2879, %v2886
        %v2889 = vunpack.c.l.s4 1983009808
        %v2890 = vunpack.c.0.s8 %v2889
        %v2891 = vlaneseq
        %v2892 = vshrl.u32 %v2891, 7
        %v2893 = vsub.s32 %v2890, %v2892
        %v2894 = vrot.slane %v2880, %v2893
        %v2895 = vcombine.low %v850, %v874
        %v2896 = vcombine.high %v850, %v874
        %v2898 = vunpack.c.l.s4 1983009808
        %v2899 = vunpack.c.0.s8 %v2898
        %v2900 = vlaneseq
        %v2901 = vshrl.u32 %v2900, 7
        %v2902 = vsub.s32 %v2899, %v2901
        %v2903 = vrot.slane %v2895, %v2902
        %v2905 = vunpack.c.l.s4 1983009808
        %v2906 = vunpack.c.0.s8 %v2905
        %v2907 = vlaneseq
        %v2908 = vshrl.u32 %v2907, 7
        %v2909 = vsub.s32 %v2906, %v2908
        %v2910 = vrot.slane %v2896, %v2909
        %v2911 = vcombine.low %v886, %v910
        %v2912 = vcombine.high %v886, %v910
        %v2914 = vunpack.c.l.s4 1983009808
        %v2915 = vunpack.c.0.s8 %v2914
        %v2916 = vlaneseq
        %v2917 = vshrl.u32 %v2916, 7
        %v2918 = vsub.s32 %v2915, %v2917
        %v2919 = vrot.slane %v2911, %v2918
        %v2921 = vunpack.c.l.s4 1983009808
        %v2922 = vunpack.c.0.s8 %v2921
        %v2923 = vlaneseq
        %v2924 = vshrl.u32 %v2923, 7
        %v2925 = vsub.s32 %v2922, %v2924
        %v2926 = vrot.slane %v2912, %v2925
        %v2927 = vcombine.low %v898, %v922
        %v2928 = vcombine.high %v898, %v922
        %v2930 = vunpack.c.l.s4 1983009808
        %v2931 = vunpack.c.0.s8 %v2930
        %v2932 = vlaneseq
        %v2933 = vshrl.u32 %v2932, 7
        %v2934 = vsub.s32 %v2931, %v2933
        %v2935 = vrot.slane %v2927, %v2934
        %v2937 = vunpack.c.l.s4 1983009808
        %v2938 = vunpack.c.0.s8 %v2937
        %v2939 = vlaneseq
        %v2940 = vshrl.u32 %v2939, 7
        %v2941 = vsub.s32 %v2938, %v2940
        %v2942 = vrot.slane %v2928, %v2941
        %v2943 = vcombine.low %v2887, %v2903
        %v2944 = vcombine.high %v2887, %v2903
        %v2946 = vunpack.c.l.s4 1934713408
        %v2947 = vunpack.c.0.s8 %v2946
        %v2948 = vlaneseq
        %v2949 = vshrl.u32 %v2948, 7
        %v2950 = vsub.s32 %v2947, %v2949
        %v2951 = vrot.slane %v2943, %v2950
        %v2953 = vunpack.c.l.s4 1934713408
        %v2954 = vunpack.c.0.s8 %v2953
        %v2955 = vlaneseq
        %v2956 = vshrl.u32 %v2955, 7
        %v2957 = vsub.s32 %v2954, %v2956
        %v2958 = vrot.slane %v2944, %v2957
        %v2959 = vcombine.low %v2894, %v2910
        %v2960 = vcombine.high %v2894, %v2910
        %v2962 = vunpack.c.l.s4 1934713408
        %v2963 = vunpack.c.0.s8 %v2962
        %v2964 = vlaneseq
        %v2965 = vshrl.u32 %v2964, 7
        %v2966 = vsub.s32 %v2963, %v2965
        %v2967 = vrot.slane %v2959, %v2966
        %v2969 = vunpack.c.l.s4 1934713408
        %v2970 = vunpack.c.0.s8 %v2969
        %v2971 = vlaneseq
        %v2972 = vshrl.u32 %v2971, 7
        %v2973 = vsub.s32 %v2970, %v2972
        %v2974 = vrot.slane %v2960, %v2973
        %v2975 = vcombine.low %v2919, %v2935
        %v2976 = vcombine.high %v2919, %v2935
        %v2978 = vunpack.c.l.s4 1934713408
        %v2979 = vunpack.c.0.s8 %v2978
        %v2980 = vlaneseq
        %v2981 = vshrl.u32 %v2980, 7
        %v2982 = vsub.s32 %v2979, %v2981
        %v2983 = vrot.slane %v2975, %v2982
        %v2985 = vunpack.c.l.s4 1934713408
        %v2986 = vunpack.c.0.s8 %v2985
        %v2987 = vlaneseq
        %v2988 = vshrl.u32 %v2987, 7
        %v2989 = vsub.s32 %v2986, %v2988
        %v2990 = vrot.slane %v2976, %v2989
        %v2991 = vcombine.low %v2926, %v2942
        %v2992 = vcombine.high %v2926, %v2942
        %v2994 = vunpack.c.l.s4 1934713408
        %v2995 = vunpack.c.0.s8 %v2994
        %v2996 = vlaneseq
        %v2997 = vshrl.u32 %v2996, 7
        %v2998 = vsub.s32 %v2995, %v2997
        %v2999 = vrot.slane %v2991, %v2998
        %v3001 = vunpack.c.l.s4 1934713408
        %v3002 = vunpack.c.0.s8 %v3001
        %v3003 = vlaneseq
        %v3004 = vshrl.u32 %v3003, 7
        %v3005 = vsub.s32 %v3002, %v3004
        %v3006 = vrot.slane %v2992, %v3005
        %v3007 = vcombine.low %v2951, %v2983
        %v3008 = vcombine.high %v2951, %v2983
        %v3009 = vcombine.low %v2958, %v2990
        %v3010 = vcombine.high %v2958, %v2990
        %v3011 = vcombine.low %v2967, %v2999
        %v3012 = vcombine.high %v2967, %v2999
        %v3013 = vcombine.low %v2974, %v3006
        %v3014 = vcombine.high %v2974, %v3006
        %v3015 = vcombine.low %v729, %v950
        %v3016 = vcombine.high %v729, %v950
        %v3018 = vunpack.c.l.s4 1983009808
        %v3019 = vunpack.c.0.s8 %v3018
        %v3020 = vlaneseq
        %v3021 = vshrl.u32 %v3020, 7
        %v3022 = vsub.s32 %v3019, %v3021
        %v3023 = vrot.slane %v3015, %v3022
        %v3025 = vunpack.c.l.s4 1983009808
        %v3026 = vunpack.c.0.s8 %v3025
        %v3027 = vlaneseq
        %v3028 = vshrl.u32 %v3027, 7
        %v3029 = vsub.s32 %v3026, %v3028
        %v3030 = vrot.slane %v3016, %v3029
        %v3031 = vcombine.low %v938, %v962
        %v3032 = vcombine.high %v938, %v962
        %v3034 = vunpack.c.l.s4 1983009808
        %v3035 = vunpack.c.0.s8 %v3034
        %v3036 = vlaneseq
        %v3037 = vshrl.u32 %v3036, 7
        %v3038 = vsub.s32 %v3035, %v3037
        %v3039 = vrot.slane %v3031, %v3038
        %v3041 = vunpack.c.l.s4 1983009808
        %v3042 = vunpack.c.0.s8 %v3041
        %v3043 = vlaneseq
        %v3044 = vshrl.u32 %v3043, 7
        %v3045 = vsub.s32 %v3042, %v3044
        %v3046 = vrot.slane %v3032, %v3045
        %v3047 = vcombine.low %v974, %v998
        %v3048 = vcombine.high %v974, %v998
        %v3050 = vunpack.c.l.s4 1983009808
        %v3051 = vunpack.c.0.s8 %v3050
        %v3052 = vlaneseq
        %v3053 = vshrl.u32 %v3052, 7
        %v3054 = vsub.s32 %v3051, %v3053
        %v3055 = vrot.slane %v3047, %v3054
        %v3057 = vunpack.c.l.s4 1983009808
        %v3058 = vunpack.c.0.s8 %v3057
        %v3059 = vlaneseq
        %v3060 = vshrl.u32 %v3059, 7
        %v3061 = vsub.s32 %v3058, %v3060
        %v3062 = vrot.slane %v3048, %v3061
        %v3063 = vcombine.low %v986, %v1010
        %v3064 = vcombine.high %v986, %v1010
        %v3066 = vunpack.c.l.s4 1983009808
        %v3067 = vunpack.c.0.s8 %v3066
        %v3068 = vlaneseq
        %v3069 = vshrl.u32 %v3068, 7
        %v3070 = vsub.s32 %v3067, %v3069
        %v3071 = vrot.slane %v3063, %v3070
        %v3073 = vunpack.c.l.s4 1983009808
        %v3074 = vunpack.c.0.s8 %v3073
        %v3075 = vlaneseq
        %v3076 = vshrl.u32 %v3075, 7
        %v3077 = vsub.s32 %v3074, %v3076
        %v3078 = vrot.slane %v3064, %v3077
        %v3079 = vcombine.low %v3023, %v3039
        %v3080 = vcombine.high %v3023, %v3039
        %v3082 = vunpack.c.l.s4 1934713408
        %v3083 = vunpack.c.0.s8 %v3082
        %v3084 = vlaneseq
        %v3085 = vshrl.u32 %v3084, 7
        %v3086 = vsub.s32 %v3083, %v3085
        %v3087 = vrot.slane %v3079, %v3086
        %v3089 = vunpack.c.l.s4 1934713408
        %v3090 = vunpack.c.0.s8 %v3089
        %v3091 = vlaneseq
        %v3092 = vshrl.u32 %v3091, 7
        %v3093 = vsub.s32 %v3090, %v3092
        %v3094 = vrot.slane %v3080, %v3093
        %v3095 = vcombine.low %v3030, %v3046
        %v3096 = vcombine.high %v3030, %v3046
        %v3098 = vunpack.c.l.s4 1934713408
        %v3099 = vunpack.c.0.s8 %v3098
        %v3100 = vlaneseq
        %v3101 = vshrl.u32 %v3100, 7
        %v3102 = vsub.s32 %v3099, %v3101
        %v3103 = vrot.slane %v3095, %v3102
        %v3105 = vunpack.c.l.s4 1934713408
        %v3106 = vunpack.c.0.s8 %v3105
        %v3107 = vlaneseq
        %v3108 = vshrl.u32 %v3107, 7
        %v3109 = vsub.s32 %v3106, %v3108
        %v3110 = vrot.slane %v3096, %v3109
        %v3111 = vcombine.low %v3055, %v3071
        %v3112 = vcombine.high %v3055, %v3071
        %v3114 = vunpack.c.l.s4 1934713408
        %v3115 = vunpack.c.0.s8 %v3114
        %v3116 = vlaneseq
        %v3117 = vshrl.u32 %v3116, 7
        %v3118 = vsub.s32 %v3115, %v3117
        %v3119 = vrot.slane %v3111, %v3118
        %v3121 = vunpack.c.l.s4 1934713408
        %v3122 = vunpack.c.0.s8 %v3121
        %v3123 = vlaneseq
        %v3124 = vshrl.u32 %v3123, 7
        %v3125 = vsub.s32 %v3122, %v3124
        %v3126 = vrot.slane %v3112, %v3125
        %v3127 = vcombine.low %v3062, %v3078
        %v3128 = vcombine.high %v3062, %v3078
        %v3130 = vunpack.c.l.s4 1934713408
        %v3131 = vunpack.c.0.s8 %v3130
        %v3132 = vlaneseq
        %v3133 = vshrl.u32 %v3132, 7
        %v3134 = vsub.s32 %v3131, %v3133
        %v3135 = vrot.slane %v3127, %v3134
        %v3137 = vunpack.c.l.s4 1934713408
        %v3138 = vunpack.c.0.s8 %v3137
        %v3139 = vlaneseq
        %v3140 = vshrl.u32 %v3139, 7
        %v3141 = vsub.s32 %v3138, %v3140
        %v3142 = vrot.slane %v3128, %v3141
        %v3143 = vcombine.low %v3087, %v3119
        %v3144 = vcombine.high %v3087, %v3119
        %v3145 = vcombine.low %v3094, %v3126
        %v3146 = vcombine.high %v3094, %v3126
        %v3147 = vcombine.low %v3103, %v3135
        %v3148 = vcombine.high %v3103, %v3135
        %v3149 = vcombine.low %v3110, %v3142
        %v3150 = vcombine.high %v3110, %v3142
        %v3151 = vcombine.low %v1022, %v1046
        %v3152 = vcombine.high %v1022, %v1046
        %v3154 = vunpack.c.l.s4 1983009808
        %v3155 = vunpack.c.0.s8 %v3154
        %v3156 = vlaneseq
        %v3157 = vshrl.u32 %v3156, 7
        %v3158 = vsub.s32 %v3155, %v3157
        %v3159 = vrot.slane %v3151, %v3158
        %v3161 = vunpack.c.l.s4 1983009808
        %v3162 = vunpack.c.0.s8 %v3161
        %v3163 = vlaneseq
        %v3164 = vshrl.u32 %v3163, 7
        %v3165 = vsub.s32 %v3162, %v3164
        %v3166 = vrot.slane %v3152, %v3165
        %v3167 = vcombine.low %v1034, %v1058
        %v3168 = vcombine.high %v1034, %v1058
        %v3170 = vunpack.c.l.s4 1983009808
        %v3171 = vunpack.c.0.s8 %v3170
        %v3172 = vlaneseq
        %v3173 = vshrl.u32 %v3172, 7
        %v3174 = vsub.s32 %v3171, %v3173
        %v3175 = vrot.slane %v3167, %v3174
        %v3177 = vunpack.c.l.s4 1983009808
        %v3178 = vunpack.c.0.s8 %v3177
        %v3179 = vlaneseq
        %v3180 = vshrl.u32 %v3179, 7
        %v3181 = vsub.s32 %v3178, %v3180
        %v3182 = vrot.slane %v3168, %v3181
        %v3183 = vcombine.low %v1070, %v1094
        %v3184 = vcombine.high %v1070, %v1094
        %v3186 = vunpack.c.l.s4 1983009808
        %v3187 = vunpack.c.0.s8 %v3186
        %v3188 = vlaneseq
        %v3189 = vshrl.u32 %v3188, 7
        %v3190 = vsub.s32 %v3187, %v3189
        %v3191 = vrot.slane %v3183, %v3190
        %v3193 = vunpack.c.l.s4 1983009808
        %v3194 = vunpack.c.0.s8 %v3193
        %v3195 = vlaneseq
        %v3196 = vshrl.u32 %v3195, 7
        %v3197 = vsub.s32 %v3194, %v3196
        %v3198 = vrot.slane %v3184, %v3197
        %v3199 = vcombine.low %v1082, %v1106
        %v3200 = vcombine.high %v1082, %v1106
        %v3202 = vunpack.c.l.s4 1983009808
        %v3203 = vunpack.c.0.s8 %v3202
        %v3204 = vlaneseq
        %v3205 = vshrl.u32 %v3204, 7
        %v3206 = vsub.s32 %v3203, %v3205
        %v3207 = vrot.slane %v3199, %v3206
        %v3209 = vunpack.c.l.s4 1983009808
        %v3210 = vunpack.c.0.s8 %v3209
        %v3211 = vlaneseq
        %v3212 = vshrl.u32 %v3211, 7
        %v3213 = vsub.s32 %v3210, %v3212
        %v3214 = vrot.slane %v3200, %v3213
        %v3215 = vcombine.low %v3159, %v3175
        %v3216 = vcombine.high %v3159, %v3175
        %v3218 = vunpack.c.l.s4 1934713408
        %v3219 = vunpack.c.0.s8 %v3218
        %v3220 = vlaneseq
        %v3221 = vshrl.u32 %v3220, 7
        %v3222 = vsub.s32 %v3219, %v3221
        %v3223 = vrot.slane %v3215, %v3222
        %v3225 = vunpack.c.l.s4 1934713408
        %v3226 = vunpack.c.0.s8 %v3225
        %v3227 = vlaneseq
        %v3228 = vshrl.u32 %v3227, 7
        %v3229 = vsub.s32 %v3226, %v3228
        %v3230 = vrot.slane %v3216, %v3229
        %v3231 = vcombine.low %v3166, %v3182
        %v3232 = vcombine.high %v3166, %v3182
        %v3234 = vunpack.c.l.s4 1934713408
        %v3235 = vunpack.c.0.s8 %v3234
        %v3236 = vlaneseq
        %v3237 = vshrl.u32 %v3236, 7
        %v3238 = vsub.s32 %v3235, %v3237
        %v3239 = vrot.slane %v3231, %v3238
        %v3241 = vunpack.c.l.s4 1934713408
        %v3242 = vunpack.c.0.s8 %v3241
        %v3243 = vlaneseq
        %v3244 = vshrl.u32 %v3243, 7
        %v3245 = vsub.s32 %v3242, %v3244
        %v3246 = vrot.slane %v3232, %v3245
        %v3247 = vcombine.low %v3191, %v3207
        %v3248 = vcombine.high %v3191, %v3207
        %v3250 = vunpack.c.l.s4 1934713408
        %v3251 = vunpack.c.0.s8 %v3250
        %v3252 = vlaneseq
        %v3253 = vshrl.u32 %v3252, 7
        %v3254 = vsub.s32 %v3251, %v3253
        %v3255 = vrot.slane %v3247, %v3254
        %v3257 = vunpack.c.l.s4 1934713408
        %v3258 = vunpack.c.0.s8 %v3257
        %v3259 = vlaneseq
        %v3260 = vshrl.u32 %v3259, 7
        %v3261 = vsub.s32 %v3258, %v3260
        %v3262 = vrot.slane %v3248, %v3261
        %v3263 = vcombine.low %v3198, %v3214
        %v3264 = vcombine.high %v3198, %v3214
        %v3266 = vunpack.c.l.s4 1934713408
        %v3267 = vunpack.c.0.s8 %v3266
        %v3268 = vlaneseq
        %v3269 = vshrl.u32 %v3268, 7
        %v3270 = vsub.s32 %v3267, %v3269
        %v3271 = vrot.slane %v3263, %v3270
        %v3273 = vunpack.c.l.s4 1934713408
        %v3274 = vunpack.c.0.s8 %v3273
        %v3275 = vlaneseq
        %v3276 = vshrl.u32 %v3275, 7
        %v3277 = vsub.s32 %v3274, %v3276
        %v3278 = vrot.slane %v3264, %v3277
        %v3279 = vcombine.low %v3223, %v3255
        %v3280 = vcombine.high %v3223, %v3255
        %v3281 = vcombine.low %v3230, %v3262
        %v3282 = vcombine.high %v3230, %v3262
        %v3283 = vcombine.low %v3239, %v3271
        %v3284 = vcombine.high %v3239, %v3271
        %v3285 = vcombine.low %v3246, %v3278
        %v3286 = vcombine.high %v3246, %v3278
        %3287 = vxpose.xlu0.b32.start [1/16] %v1239, 128
        %3288 = vxpose.xlu0.b32.cont [2/16] %v1375, 128
        %3289 = vxpose.xlu0.b32.cont [3/16] %v1511, 128
        %3290 = vxpose.xlu0.b32.cont [4/16] %v1647, 128
        %3291 = vxpose.xlu0.b32.cont [5/16] 0.0, 128
        %3292 = vxpose.xlu0.b32.cont [6/16] 0.0, 128
        %3293 = vxpose.xlu0.b32.cont [7/16] 0.0, 128
        %3294 = vxpose.xlu0.b32.cont [8/16] 0.0, 128
        %3295 = vxpose.xlu0.b32.cont [9/16] 0.0, 128
        %3296 = vxpose.xlu0.b32.cont [10/16] 0.0, 128
        %3297 = vxpose.xlu0.b32.cont [11/16] 0.0, 128
        %3298 = vxpose.xlu0.b32.cont [12/16] 0.0, 128
        %3299 = vxpose.xlu0.b32.cont [13/16] 0.0, 128
        %3300 = vxpose.xlu0.b32.cont [14/16] 0.0, 128
        %3301 = vxpose.xlu0.b32.cont [15/16] 0.0, 128
        %3302 = vxpose.xlu0.b32.end [16/16] 0.0, 128
        %v3303 = vpop.trf.xlu0
        %v3304 = vpop.trf.xlu0
        %v3305 = vpop.trf.xlu0
        %v3306 = vpop.trf.xlu0
        %v3307 = vpop.trf.xlu0
        %v3308 = vpop.trf.xlu0
        %v3309 = vpop.trf.xlu0
        %v3310 = vpop.trf.xlu0
        %v3311 = vpop.trf.xlu0
        %v3312 = vpop.trf.xlu0
        %v3313 = vpop.trf.xlu0
        %v3314 = vpop.trf.xlu0
        %v3315 = vpop.trf.xlu0
        %v3316 = vpop.trf.xlu0
        %v3317 = vpop.trf.xlu0
        %v3318 = vpop.trf.xlu0
        %3319 = vxpose.xlu0.b32.start [1/16] %v1240, 128
        %3320 = vxpose.xlu0.b32.cont [2/16] %v1376, 128
        %3321 = vxpose.xlu0.b32.cont [3/16] %v1512, 128
        %3322 = vxpose.xlu0.b32.cont [4/16] %v1648, 128
        %3323 = vxpose.xlu0.b32.cont [5/16] 0.0, 128
        %3324 = vxpose.xlu0.b32.cont [6/16] 0.0, 128
        %3325 = vxpose.xlu0.b32.cont [7/16] 0.0, 128
        %3326 = vxpose.xlu0.b32.cont [8/16] 0.0, 128
        %3327 = vxpose.xlu0.b32.cont [9/16] 0.0, 128
        %3328 = vxpose.xlu0.b32.cont [10/16] 0.0, 128
        %3329 = vxpose.xlu0.b32.cont [11/16] 0.0, 128
        %3330 = vxpose.xlu0.b32.cont [12/16] 0.0, 128
        %3331 = vxpose.xlu0.b32.cont [13/16] 0.0, 128
        %3332 = vxpose.xlu0.b32.cont [14/16] 0.0, 128
        %3333 = vxpose.xlu0.b32.cont [15/16] 0.0, 128
        %3334 = vxpose.xlu0.b32.end [16/16] 0.0, 128
        %v3335 = vpop.trf.xlu0
        %v3336 = vpop.trf.xlu0
        %v3337 = vpop.trf.xlu0
        %v3338 = vpop.trf.xlu0
        %v3339 = vpop.trf.xlu0
        %v3340 = vpop.trf.xlu0
        %v3341 = vpop.trf.xlu0
        %v3342 = vpop.trf.xlu0
        %v3343 = vpop.trf.xlu0
        %v3344 = vpop.trf.xlu0
        %v3345 = vpop.trf.xlu0
        %v3346 = vpop.trf.xlu0
        %v3347 = vpop.trf.xlu0
        %v3348 = vpop.trf.xlu0
        %v3349 = vpop.trf.xlu0
        %v3350 = vpop.trf.xlu0
        %3351 = vxpose.xlu0.b32.start [1/16] %v1241, 128
        %3352 = vxpose.xlu0.b32.cont [2/16] %v1377, 128
        %3353 = vxpose.xlu0.b32.cont [3/16] %v1513, 128
        %3354 = vxpose.xlu0.b32.cont [4/16] %v1649, 128
        %3355 = vxpose.xlu0.b32.cont [5/16] 0.0, 128
        %3356 = vxpose.xlu0.b32.cont [6/16] 0.0, 128
        %3357 = vxpose.xlu0.b32.cont [7/16] 0.0, 128
        %3358 = vxpose.xlu0.b32.cont [8/16] 0.0, 128
        %3359 = vxpose.xlu0.b32.cont [9/16] 0.0, 128
        %3360 = vxpose.xlu0.b32.cont [10/16] 0.0, 128
        %3361 = vxpose.xlu0.b32.cont [11/16] 0.0, 128
        %3362 = vxpose.xlu0.b32.cont [12/16] 0.0, 128
        %3363 = vxpose.xlu0.b32.cont [13/16] 0.0, 128
        %3364 = vxpose.xlu0.b32.cont [14/16] 0.0, 128
        %3365 = vxpose.xlu0.b32.cont [15/16] 0.0, 128
        %3366 = vxpose.xlu0.b32.end [16/16] 0.0, 128
        %v3367 = vpop.trf.xlu0
        %v3368 = vpop.trf.xlu0
        %v3369 = vpop.trf.xlu0
        %v3370 = vpop.trf.xlu0
        %v3371 = vpop.trf.xlu0
        %v3372 = vpop.trf.xlu0
        %v3373 = vpop.trf.xlu0
        %v3374 = vpop.trf.xlu0
        %v3375 = vpop.trf.xlu0
        %v3376 = vpop.trf.xlu0
        %v3377 = vpop.trf.xlu0
        %v3378 = vpop.trf.xlu0
        %v3379 = vpop.trf.xlu0
        %v3380 = vpop.trf.xlu0
        %v3381 = vpop.trf.xlu0
        %v3382 = vpop.trf.xlu0
        %3383 = vxpose.xlu0.b32.start [1/16] %v1242, 128
        %3384 = vxpose.xlu0.b32.cont [2/16] %v1378, 128
        %3385 = vxpose.xlu0.b32.cont [3/16] %v1514, 128
        %3386 = vxpose.xlu0.b32.cont [4/16] %v1650, 128
        %3387 = vxpose.xlu0.b32.cont [5/16] 0.0, 128
        %3388 = vxpose.xlu0.b32.cont [6/16] 0.0, 128
        %3389 = vxpose.xlu0.b32.cont [7/16] 0.0, 128
        %3390 = vxpose.xlu0.b32.cont [8/16] 0.0, 128
        %3391 = vxpose.xlu0.b32.cont [9/16] 0.0, 128
        %3392 = vxpose.xlu0.b32.cont [10/16] 0.0, 128
        %3393 = vxpose.xlu0.b32.cont [11/16] 0.0, 128
        %3394 = vxpose.xlu0.b32.cont [12/16] 0.0, 128
        %3395 = vxpose.xlu0.b32.cont [13/16] 0.0, 128
        %3396 = vxpose.xlu0.b32.cont [14/16] 0.0, 128
        %3397 = vxpose.xlu0.b32.cont [15/16] 0.0, 128
        %3398 = vxpose.xlu0.b32.end [16/16] 0.0, 128
        %v3399 = vpop.trf.xlu0
        %v3400 = vpop.trf.xlu0
        %v3401 = vpop.trf.xlu0
        %v3402 = vpop.trf.xlu0
        %v3403 = vpop.trf.xlu0
        %v3404 = vpop.trf.xlu0
        %v3405 = vpop.trf.xlu0
        %v3406 = vpop.trf.xlu0
        %v3407 = vpop.trf.xlu0
        %v3408 = vpop.trf.xlu0
        %v3409 = vpop.trf.xlu0
        %v3410 = vpop.trf.xlu0
        %v3411 = vpop.trf.xlu0
        %v3412 = vpop.trf.xlu0
        %v3413 = vpop.trf.xlu0
        %v3414 = vpop.trf.xlu0
        %3415 = vxpose.xlu0.b32.start [1/16] %v1243, 128
        %3416 = vxpose.xlu0.b32.cont [2/16] %v1379, 128
        %3417 = vxpose.xlu0.b32.cont [3/16] %v1515, 128
        %3418 = vxpose.xlu0.b32.cont [4/16] %v1651, 128
        %3419 = vxpose.xlu0.b32.cont [5/16] 0.0, 128
        %3420 = vxpose.xlu0.b32.cont [6/16] 0.0, 128
        %3421 = vxpose.xlu0.b32.cont [7/16] 0.0, 128
        %3422 = vxpose.xlu0.b32.cont [8/16] 0.0, 128
        %3423 = vxpose.xlu0.b32.cont [9/16] 0.0, 128
        %3424 = vxpose.xlu0.b32.cont [10/16] 0.0, 128
        %3425 = vxpose.xlu0.b32.cont [11/16] 0.0, 128
        %3426 = vxpose.xlu0.b32.cont [12/16] 0.0, 128
        %3427 = vxpose.xlu0.b32.cont [13/16] 0.0, 128
        %3428 = vxpose.xlu0.b32.cont [14/16] 0.0, 128
        %3429 = vxpose.xlu0.b32.cont [15/16] 0.0, 128
        %3430 = vxpose.xlu0.b32.end [16/16] 0.0, 128
        %v3431 = vpop.trf.xlu0
        %v3432 = vpop.trf.xlu0
        %v3433 = vpop.trf.xlu0
        %v3434 = vpop.trf.xlu0
        %v3435 = vpop.trf.xlu0
        %v3436 = vpop.trf.xlu0
        %v3437 = vpop.trf.xlu0
        %v3438 = vpop.trf.xlu0
        %v3439 = vpop.trf.xlu0
        %v3440 = vpop.trf.xlu0
        %v3441 = vpop.trf.xlu0
        %v3442 = vpop.trf.xlu0
        %v3443 = vpop.trf.xlu0
        %v3444 = vpop.trf.xlu0
        %v3445 = vpop.trf.xlu0
        %v3446 = vpop.trf.xlu0
        %3447 = vxpose.xlu0.b32.start [1/16] %v1244, 128
        %3448 = vxpose.xlu0.b32.cont [2/16] %v1380, 128
        %3449 = vxpose.xlu0.b32.cont [3/16] %v1516, 128
        %3450 = vxpose.xlu0.b32.cont [4/16] %v1652, 128
        %3451 = vxpose.xlu0.b32.cont [5/16] 0.0, 128
        %3452 = vxpose.xlu0.b32.cont [6/16] 0.0, 128
        %3453 = vxpose.xlu0.b32.cont [7/16] 0.0, 128
        %3454 = vxpose.xlu0.b32.cont [8/16] 0.0, 128
        %3455 = vxpose.xlu0.b32.cont [9/16] 0.0, 128
        %3456 = vxpose.xlu0.b32.cont [10/16] 0.0, 128
        %3457 = vxpose.xlu0.b32.cont [11/16] 0.0, 128
        %3458 = vxpose.xlu0.b32.cont [12/16] 0.0, 128
        %3459 = vxpose.xlu0.b32.cont [13/16] 0.0, 128
        %3460 = vxpose.xlu0.b32.cont [14/16] 0.0, 128
        %3461 = vxpose.xlu0.b32.cont [15/16] 0.0, 128
        %3462 = vxpose.xlu0.b32.end [16/16] 0.0, 128
        %v3463 = vpop.trf.xlu0
        %v3464 = vpop.trf.xlu0
        %v3465 = vpop.trf.xlu0
        %v3466 = vpop.trf.xlu0
        %v3467 = vpop.trf.xlu0
        %v3468 = vpop.trf.xlu0
        %v3469 = vpop.trf.xlu0
        %v3470 = vpop.trf.xlu0
        %v3471 = vpop.trf.xlu0
        %v3472 = vpop.trf.xlu0
        %v3473 = vpop.trf.xlu0
        %v3474 = vpop.trf.xlu0
        %v3475 = vpop.trf.xlu0
        %v3476 = vpop.trf.xlu0
        %v3477 = vpop.trf.xlu0
        %v3478 = vpop.trf.xlu0
        %3479 = vxpose.xlu0.b32.start [1/16] %v1245, 128
        %3480 = vxpose.xlu0.b32.cont [2/16] %v1381, 128
        %3481 = vxpose.xlu0.b32.cont [3/16] %v1517, 128
        %3482 = vxpose.xlu0.b32.cont [4/16] %v1653, 128
        %3483 = vxpose.xlu0.b32.cont [5/16] 0.0, 128
        %3484 = vxpose.xlu0.b32.cont [6/16] 0.0, 128
        %3485 = vxpose.xlu0.b32.cont [7/16] 0.0, 128
        %3486 = vxpose.xlu0.b32.cont [8/16] 0.0, 128
        %3487 = vxpose.xlu0.b32.cont [9/16] 0.0, 128
        %3488 = vxpose.xlu0.b32.cont [10/16] 0.0, 128
        %3489 = vxpose.xlu0.b32.cont [11/16] 0.0, 128
        %3490 = vxpose.xlu0.b32.cont [12/16] 0.0, 128
        %3491 = vxpose.xlu0.b32.cont [13/16] 0.0, 128
        %3492 = vxpose.xlu0.b32.cont [14/16] 0.0, 128
        %3493 = vxpose.xlu0.b32.cont [15/16] 0.0, 128
        %3494 = vxpose.xlu0.b32.end [16/16] 0.0, 128
        %v3495 = vpop.trf.xlu0
        %v3496 = vpop.trf.xlu0
        %v3497 = vpop.trf.xlu0
        %v3498 = vpop.trf.xlu0
        %v3499 = vpop.trf.xlu0
        %v3500 = vpop.trf.xlu0
        %v3501 = vpop.trf.xlu0
        %v3502 = vpop.trf.xlu0
        %v3503 = vpop.trf.xlu0
        %v3504 = vpop.trf.xlu0
        %v3505 = vpop.trf.xlu0
        %v3506 = vpop.trf.xlu0
        %v3507 = vpop.trf.xlu0
        %v3508 = vpop.trf.xlu0
        %v3509 = vpop.trf.xlu0
        %v3510 = vpop.trf.xlu0
        %3511 = vxpose.xlu0.b32.start [1/16] %v1246, 128
        %3512 = vxpose.xlu0.b32.cont [2/16] %v1382, 128
        %3513 = vxpose.xlu0.b32.cont [3/16] %v1518, 128
        %3514 = vxpose.xlu0.b32.cont [4/16] %v1654, 128
        %3515 = vxpose.xlu0.b32.cont [5/16] 0.0, 128
        %3516 = vxpose.xlu0.b32.cont [6/16] 0.0, 128
        %3517 = vxpose.xlu0.b32.cont [7/16] 0.0, 128
        %3518 = vxpose.xlu0.b32.cont [8/16] 0.0, 128
        %3519 = vxpose.xlu0.b32.cont [9/16] 0.0, 128
        %3520 = vxpose.xlu0.b32.cont [10/16] 0.0, 128
        %3521 = vxpose.xlu0.b32.cont [11/16] 0.0, 128
        %3522 = vxpose.xlu0.b32.cont [12/16] 0.0, 128
        %3523 = vxpose.xlu0.b32.cont [13/16] 0.0, 128
        %3524 = vxpose.xlu0.b32.cont [14/16] 0.0, 128
        %3525 = vxpose.xlu0.b32.cont [15/16] 0.0, 128
        %3526 = vxpose.xlu0.b32.end [16/16] 0.0, 128
        %v3527 = vpop.trf.xlu0
        %v3528 = vpop.trf.xlu0
        %v3529 = vpop.trf.xlu0
        %v3530 = vpop.trf.xlu0
        %v3531 = vpop.trf.xlu0
        %v3532 = vpop.trf.xlu0
        %v3533 = vpop.trf.xlu0
        %v3534 = vpop.trf.xlu0
        %v3535 = vpop.trf.xlu0
        %v3536 = vpop.trf.xlu0
        %v3537 = vpop.trf.xlu0
        %v3538 = vpop.trf.xlu0
        %v3539 = vpop.trf.xlu0
        %v3540 = vpop.trf.xlu0
        %v3541 = vpop.trf.xlu0
        %v3542 = vpop.trf.xlu0
        %3543 = vxpose.xlu0.b32.start [1/16] %v1783, 128
        %3544 = vxpose.xlu0.b32.cont [2/16] %v1919, 128
        %3545 = vxpose.xlu0.b32.cont [3/16] %v2055, 128
        %3546 = vxpose.xlu0.b32.cont [4/16] %v2191, 128
        %3547 = vxpose.xlu0.b32.cont [5/16] 0.0, 128
        %3548 = vxpose.xlu0.b32.cont [6/16] 0.0, 128
        %3549 = vxpose.xlu0.b32.cont [7/16] 0.0, 128
        %3550 = vxpose.xlu0.b32.cont [8/16] 0.0, 128
        %3551 = vxpose.xlu0.b32.cont [9/16] 0.0, 128
        %3552 = vxpose.xlu0.b32.cont [10/16] 0.0, 128
        %3553 = vxpose.xlu0.b32.cont [11/16] 0.0, 128
        %3554 = vxpose.xlu0.b32.cont [12/16] 0.0, 128
        %3555 = vxpose.xlu0.b32.cont [13/16] 0.0, 128
        %3556 = vxpose.xlu0.b32.cont [14/16] 0.0, 128
        %3557 = vxpose.xlu0.b32.cont [15/16] 0.0, 128
        %3558 = vxpose.xlu0.b32.end [16/16] 0.0, 128
        %v3559 = vpop.trf.xlu0
        %v3560 = vpop.trf.xlu0
        %v3561 = vpop.trf.xlu0
        %v3562 = vpop.trf.xlu0
        %v3563 = vpop.trf.xlu0
        %v3564 = vpop.trf.xlu0
        %v3565 = vpop.trf.xlu0
        %v3566 = vpop.trf.xlu0
        %v3567 = vpop.trf.xlu0
        %v3568 = vpop.trf.xlu0
        %v3569 = vpop.trf.xlu0
        %v3570 = vpop.trf.xlu0
        %v3571 = vpop.trf.xlu0
        %v3572 = vpop.trf.xlu0
        %v3573 = vpop.trf.xlu0
        %v3574 = vpop.trf.xlu0
        %3575 = vxpose.xlu0.b32.start [1/16] %v1784, 128
        %3576 = vxpose.xlu0.b32.cont [2/16] %v1920, 128
        %3577 = vxpose.xlu0.b32.cont [3/16] %v2056, 128
        %3578 = vxpose.xlu0.b32.cont [4/16] %v2192, 128
        %3579 = vxpose.xlu0.b32.cont [5/16] 0.0, 128
        %3580 = vxpose.xlu0.b32.cont [6/16] 0.0, 128
        %3581 = vxpose.xlu0.b32.cont [7/16] 0.0, 128
        %3582 = vxpose.xlu0.b32.cont [8/16] 0.0, 128
        %3583 = vxpose.xlu0.b32.cont [9/16] 0.0, 128
        %3584 = vxpose.xlu0.b32.cont [10/16] 0.0, 128
        %3585 = vxpose.xlu0.b32.cont [11/16] 0.0, 128
        %3586 = vxpose.xlu0.b32.cont [12/16] 0.0, 128
        %3587 = vxpose.xlu0.b32.cont [13/16] 0.0, 128
        %3588 = vxpose.xlu0.b32.cont [14/16] 0.0, 128
        %3589 = vxpose.xlu0.b32.cont [15/16] 0.0, 128
        %3590 = vxpose.xlu0.b32.end [16/16] 0.0, 128
        %v3591 = vpop.trf.xlu0
        %v3592 = vpop.trf.xlu0
        %v3593 = vpop.trf.xlu0
        %v3594 = vpop.trf.xlu0
        %v3595 = vpop.trf.xlu0
        %v3596 = vpop.trf.xlu0
        %v3597 = vpop.trf.xlu0
        %v3598 = vpop.trf.xlu0
        %v3599 = vpop.trf.xlu0
        %v3600 = vpop.trf.xlu0
        %v3601 = vpop.trf.xlu0
        %v3602 = vpop.trf.xlu0
        %v3603 = vpop.trf.xlu0
        %v3604 = vpop.trf.xlu0
        %v3605 = vpop.trf.xlu0
        %v3606 = vpop.trf.xlu0
        %3607 = vxpose.xlu0.b32.start [1/16] %v1785, 128
        %3608 = vxpose.xlu0.b32.cont [2/16] %v1921, 128
        %3609 = vxpose.xlu0.b32.cont [3/16] %v2057, 128
        %3610 = vxpose.xlu0.b32.cont [4/16] %v2193, 128
        %3611 = vxpose.xlu0.b32.cont [5/16] 0.0, 128
        %3612 = vxpose.xlu0.b32.cont [6/16] 0.0, 128
        %3613 = vxpose.xlu0.b32.cont [7/16] 0.0, 128
        %3614 = vxpose.xlu0.b32.cont [8/16] 0.0, 128
        %3615 = vxpose.xlu0.b32.cont [9/16] 0.0, 128
        %3616 = vxpose.xlu0.b32.cont [10/16] 0.0, 128
        %3617 = vxpose.xlu0.b32.cont [11/16] 0.0, 128
        %3618 = vxpose.xlu0.b32.cont [12/16] 0.0, 128
        %3619 = vxpose.xlu0.b32.cont [13/16] 0.0, 128
        %3620 = vxpose.xlu0.b32.cont [14/16] 0.0, 128
        %3621 = vxpose.xlu0.b32.cont [15/16] 0.0, 128
        %3622 = vxpose.xlu0.b32.end [16/16] 0.0, 128
        %v3623 = vpop.trf.xlu0
        %v3624 = vpop.trf.xlu0
        %v3625 = vpop.trf.xlu0
        %v3626 = vpop.trf.xlu0
        %v3627 = vpop.trf.xlu0
        %v3628 = vpop.trf.xlu0
        %v3629 = vpop.trf.xlu0
        %v3630 = vpop.trf.xlu0
        %v3631 = vpop.trf.xlu0
        %v3632 = vpop.trf.xlu0
        %v3633 = vpop.trf.xlu0
        %v3634 = vpop.trf.xlu0
        %v3635 = vpop.trf.xlu0
        %v3636 = vpop.trf.xlu0
        %v3637 = vpop.trf.xlu0
        %v3638 = vpop.trf.xlu0
        %3639 = vxpose.xlu0.b32.start [1/16] %v1786, 128
        %3640 = vxpose.xlu0.b32.cont [2/16] %v1922, 128
        %3641 = vxpose.xlu0.b32.cont [3/16] %v2058, 128
        %3642 = vxpose.xlu0.b32.cont [4/16] %v2194, 128
        %3643 = vxpose.xlu0.b32.cont [5/16] 0.0, 128
        %3644 = vxpose.xlu0.b32.cont [6/16] 0.0, 128
        %3645 = vxpose.xlu0.b32.cont [7/16] 0.0, 128
        %3646 = vxpose.xlu0.b32.cont [8/16] 0.0, 128
        %3647 = vxpose.xlu0.b32.cont [9/16] 0.0, 128
        %3648 = vxpose.xlu0.b32.cont [10/16] 0.0, 128
        %3649 = vxpose.xlu0.b32.cont [11/16] 0.0, 128
        %3650 = vxpose.xlu0.b32.cont [12/16] 0.0, 128
        %3651 = vxpose.xlu0.b32.cont [13/16] 0.0, 128
        %3652 = vxpose.xlu0.b32.cont [14/16] 0.0, 128
        %3653 = vxpose.xlu0.b32.cont [15/16] 0.0, 128
        %3654 = vxpose.xlu0.b32.end [16/16] 0.0, 128
        %v3655 = vpop.trf.xlu0
        %v3656 = vpop.trf.xlu0
        %v3657 = vpop.trf.xlu0
        %v3658 = vpop.trf.xlu0
        %v3659 = vpop.trf.xlu0
        %v3660 = vpop.trf.xlu0
        %v3661 = vpop.trf.xlu0
        %v3662 = vpop.trf.xlu0
        %v3663 = vpop.trf.xlu0
        %v3664 = vpop.trf.xlu0
        %v3665 = vpop.trf.xlu0
        %v3666 = vpop.trf.xlu0
        %v3667 = vpop.trf.xlu0
        %v3668 = vpop.trf.xlu0
        %v3669 = vpop.trf.xlu0
        %v3670 = vpop.trf.xlu0
        %3671 = vxpose.xlu0.b32.start [1/16] %v1787, 128
        %3672 = vxpose.xlu0.b32.cont [2/16] %v1923, 128
        %3673 = vxpose.xlu0.b32.cont [3/16] %v2059, 128
        %3674 = vxpose.xlu0.b32.cont [4/16] %v2195, 128
        %3675 = vxpose.xlu0.b32.cont [5/16] 0.0, 128
        %3676 = vxpose.xlu0.b32.cont [6/16] 0.0, 128
        %3677 = vxpose.xlu0.b32.cont [7/16] 0.0, 128
        %3678 = vxpose.xlu0.b32.cont [8/16] 0.0, 128
        %3679 = vxpose.xlu0.b32.cont [9/16] 0.0, 128
        %3680 = vxpose.xlu0.b32.cont [10/16] 0.0, 128
        %3681 = vxpose.xlu0.b32.cont [11/16] 0.0, 128
        %3682 = vxpose.xlu0.b32.cont [12/16] 0.0, 128
        %3683 = vxpose.xlu0.b32.cont [13/16] 0.0, 128
        %3684 = vxpose.xlu0.b32.cont [14/16] 0.0, 128
        %3685 = vxpose.xlu0.b32.cont [15/16] 0.0, 128
        %3686 = vxpose.xlu0.b32.end [16/16] 0.0, 128
        %v3687 = vpop.trf.xlu0
        %v3688 = vpop.trf.xlu0
        %v3689 = vpop.trf.xlu0
        %v3690 = vpop.trf.xlu0
        %v3691 = vpop.trf.xlu0
        %v3692 = vpop.trf.xlu0
        %v3693 = vpop.trf.xlu0
        %v3694 = vpop.trf.xlu0
        %v3695 = vpop.trf.xlu0
        %v3696 = vpop.trf.xlu0
        %v3697 = vpop.trf.xlu0
        %v3698 = vpop.trf.xlu0
        %v3699 = vpop.trf.xlu0
        %v3700 = vpop.trf.xlu0
        %v3701 = vpop.trf.xlu0
        %v3702 = vpop.trf.xlu0
        %3703 = vxpose.xlu0.b32.start [1/16] %v1788, 128
        %3704 = vxpose.xlu0.b32.cont [2/16] %v1924, 128
        %3705 = vxpose.xlu0.b32.cont [3/16] %v2060, 128
        %3706 = vxpose.xlu0.b32.cont [4/16] %v2196, 128
        %3707 = vxpose.xlu0.b32.cont [5/16] 0.0, 128
        %3708 = vxpose.xlu0.b32.cont [6/16] 0.0, 128
        %3709 = vxpose.xlu0.b32.cont [7/16] 0.0, 128
        %3710 = vxpose.xlu0.b32.cont [8/16] 0.0, 128
        %3711 = vxpose.xlu0.b32.cont [9/16] 0.0, 128
        %3712 = vxpose.xlu0.b32.cont [10/16] 0.0, 128
        %3713 = vxpose.xlu0.b32.cont [11/16] 0.0, 128
        %3714 = vxpose.xlu0.b32.cont [12/16] 0.0, 128
        %3715 = vxpose.xlu0.b32.cont [13/16] 0.0, 128
        %3716 = vxpose.xlu0.b32.cont [14/16] 0.0, 128
        %3717 = vxpose.xlu0.b32.cont [15/16] 0.0, 128
        %3718 = vxpose.xlu0.b32.end [16/16] 0.0, 128
        %v3719 = vpop.trf.xlu0
        %v3720 = vpop.trf.xlu0
        %v3721 = vpop.trf.xlu0
        %v3722 = vpop.trf.xlu0
        %v3723 = vpop.trf.xlu0
        %v3724 = vpop.trf.xlu0
        %v3725 = vpop.trf.xlu0
        %v3726 = vpop.trf.xlu0
        %v3727 = vpop.trf.xlu0
        %v3728 = vpop.trf.xlu0
        %v3729 = vpop.trf.xlu0
        %v3730 = vpop.trf.xlu0
        %v3731 = vpop.trf.xlu0
        %v3732 = vpop.trf.xlu0
        %v3733 = vpop.trf.xlu0
        %v3734 = vpop.trf.xlu0
        %3735 = vxpose.xlu0.b32.start [1/16] %v1789, 128
        %3736 = vxpose.xlu0.b32.cont [2/16] %v1925, 128
        %3737 = vxpose.xlu0.b32.cont [3/16] %v2061, 128
        %3738 = vxpose.xlu0.b32.cont [4/16] %v2197, 128
        %3739 = vxpose.xlu0.b32.cont [5/16] 0.0, 128
        %3740 = vxpose.xlu0.b32.cont [6/16] 0.0, 128
        %3741 = vxpose.xlu0.b32.cont [7/16] 0.0, 128
        %3742 = vxpose.xlu0.b32.cont [8/16] 0.0, 128
        %3743 = vxpose.xlu0.b32.cont [9/16] 0.0, 128
        %3744 = vxpose.xlu0.b32.cont [10/16] 0.0, 128
        %3745 = vxpose.xlu0.b32.cont [11/16] 0.0, 128
        %3746 = vxpose.xlu0.b32.cont [12/16] 0.0, 128
        %3747 = vxpose.xlu0.b32.cont [13/16] 0.0, 128
        %3748 = vxpose.xlu0.b32.cont [14/16] 0.0, 128
        %3749 = vxpose.xlu0.b32.cont [15/16] 0.0, 128
        %3750 = vxpose.xlu0.b32.end [16/16] 0.0, 128
        %v3751 = vpop.trf.xlu0
        %v3752 = vpop.trf.xlu0
        %v3753 = vpop.trf.xlu0
        %v3754 = vpop.trf.xlu0
        %v3755 = vpop.trf.xlu0
        %v3756 = vpop.trf.xlu0
        %v3757 = vpop.trf.xlu0
        %v3758 = vpop.trf.xlu0
        %v3759 = vpop.trf.xlu0
        %v3760 = vpop.trf.xlu0
        %v3761 = vpop.trf.xlu0
        %v3762 = vpop.trf.xlu0
        %v3763 = vpop.trf.xlu0
        %v3764 = vpop.trf.xlu0
        %v3765 = vpop.trf.xlu0
        %v3766 = vpop.trf.xlu0
        %3767 = vxpose.xlu0.b32.start [1/16] %v1790, 128
        %3768 = vxpose.xlu0.b32.cont [2/16] %v1926, 128
        %3769 = vxpose.xlu0.b32.cont [3/16] %v2062, 128
        %3770 = vxpose.xlu0.b32.cont [4/16] %v2198, 128
        %3771 = vxpose.xlu0.b32.cont [5/16] 0.0, 128
        %3772 = vxpose.xlu0.b32.cont [6/16] 0.0, 128
        %3773 = vxpose.xlu0.b32.cont [7/16] 0.0, 128
        %3774 = vxpose.xlu0.b32.cont [8/16] 0.0, 128
        %3775 = vxpose.xlu0.b32.cont [9/16] 0.0, 128
        %3776 = vxpose.xlu0.b32.cont [10/16] 0.0, 128
        %3777 = vxpose.xlu0.b32.cont [11/16] 0.0, 128
        %3778 = vxpose.xlu0.b32.cont [12/16] 0.0, 128
        %3779 = vxpose.xlu0.b32.cont [13/16] 0.0, 128
        %3780 = vxpose.xlu0.b32.cont [14/16] 0.0, 128
        %3781 = vxpose.xlu0.b32.cont [15/16] 0.0, 128
        %3782 = vxpose.xlu0.b32.end [16/16] 0.0, 128
        %v3783 = vpop.trf.xlu0
        %v3784 = vpop.trf.xlu0
        %v3785 = vpop.trf.xlu0
        %v3786 = vpop.trf.xlu0
        %v3787 = vpop.trf.xlu0
        %v3788 = vpop.trf.xlu0
        %v3789 = vpop.trf.xlu0
        %v3790 = vpop.trf.xlu0
        %v3791 = vpop.trf.xlu0
        %v3792 = vpop.trf.xlu0
        %v3793 = vpop.trf.xlu0
        %v3794 = vpop.trf.xlu0
        %v3795 = vpop.trf.xlu0
        %v3796 = vpop.trf.xlu0
        %v3797 = vpop.trf.xlu0
        %v3798 = vpop.trf.xlu0
        %3799 = vxpose.xlu0.b32.start [1/16] %v2327, 128
        %3800 = vxpose.xlu0.b32.cont [2/16] %v2463, 128
        %3801 = vxpose.xlu0.b32.cont [3/16] %v2599, 128
        %3802 = vxpose.xlu0.b32.cont [4/16] %v2735, 128
        %3803 = vxpose.xlu0.b32.cont [5/16] 0.0, 128
        %3804 = vxpose.xlu0.b32.cont [6/16] 0.0, 128
        %3805 = vxpose.xlu0.b32.cont [7/16] 0.0, 128
        %3806 = vxpose.xlu0.b32.cont [8/16] 0.0, 128
        %3807 = vxpose.xlu0.b32.cont [9/16] 0.0, 128
        %3808 = vxpose.xlu0.b32.cont [10/16] 0.0, 128
        %3809 = vxpose.xlu0.b32.cont [11/16] 0.0, 128
        %3810 = vxpose.xlu0.b32.cont [12/16] 0.0, 128
        %3811 = vxpose.xlu0.b32.cont [13/16] 0.0, 128
        %3812 = vxpose.xlu0.b32.cont [14/16] 0.0, 128
        %3813 = vxpose.xlu0.b32.cont [15/16] 0.0, 128
        %3814 = vxpose.xlu0.b32.end [16/16] 0.0, 128
        %v3815 = vpop.trf.xlu0
        %v3816 = vpop.trf.xlu0
        %v3817 = vpop.trf.xlu0
        %v3818 = vpop.trf.xlu0
        %v3819 = vpop.trf.xlu0
        %v3820 = vpop.trf.xlu0
        %v3821 = vpop.trf.xlu0
        %v3822 = vpop.trf.xlu0
        %v3823 = vpop.trf.xlu0
        %v3824 = vpop.trf.xlu0
        %v3825 = vpop.trf.xlu0
        %v3826 = vpop.trf.xlu0
        %v3827 = vpop.trf.xlu0
        %v3828 = vpop.trf.xlu0
        %v3829 = vpop.trf.xlu0
        %v3830 = vpop.trf.xlu0
        %3831 = vxpose.xlu0.b32.start [1/16] %v2328, 128
        %3832 = vxpose.xlu0.b32.cont [2/16] %v2464, 128
        %3833 = vxpose.xlu0.b32.cont [3/16] %v2600, 128
        %3834 = vxpose.xlu0.b32.cont [4/16] %v2736, 128
        %3835 = vxpose.xlu0.b32.cont [5/16] 0.0, 128
        %3836 = vxpose.xlu0.b32.cont [6/16] 0.0, 128
        %3837 = vxpose.xlu0.b32.cont [7/16] 0.0, 128
        %3838 = vxpose.xlu0.b32.cont [8/16] 0.0, 128
        %3839 = vxpose.xlu0.b32.cont [9/16] 0.0, 128
        %3840 = vxpose.xlu0.b32.cont [10/16] 0.0, 128
        %3841 = vxpose.xlu0.b32.cont [11/16] 0.0, 128
        %3842 = vxpose.xlu0.b32.cont [12/16] 0.0, 128
        %3843 = vxpose.xlu0.b32.cont [13/16] 0.0, 128
        %3844 = vxpose.xlu0.b32.cont [14/16] 0.0, 128
        %3845 = vxpose.xlu0.b32.cont [15/16] 0.0, 128
        %3846 = vxpose.xlu0.b32.end [16/16] 0.0, 128
        %v3847 = vpop.trf.xlu0
        %v3848 = vpop.trf.xlu0
        %v3849 = vpop.trf.xlu0
        %v3850 = vpop.trf.xlu0
        %v3851 = vpop.trf.xlu0
        %v3852 = vpop.trf.xlu0
        %v3853 = vpop.trf.xlu0
        %v3854 = vpop.trf.xlu0
        %v3855 = vpop.trf.xlu0
        %v3856 = vpop.trf.xlu0
        %v3857 = vpop.trf.xlu0
        %v3858 = vpop.trf.xlu0
        %v3859 = vpop.trf.xlu0
        %v3860 = vpop.trf.xlu0
        %v3861 = vpop.trf.xlu0
        %v3862 = vpop.trf.xlu0
        %3863 = vxpose.xlu0.b32.start [1/16] %v2329, 128
        %3864 = vxpose.xlu0.b32.cont [2/16] %v2465, 128
        %3865 = vxpose.xlu0.b32.cont [3/16] %v2601, 128
        %3866 = vxpose.xlu0.b32.cont [4/16] %v2737, 128
        %3867 = vxpose.xlu0.b32.cont [5/16] 0.0, 128
        %3868 = vxpose.xlu0.b32.cont [6/16] 0.0, 128
        %3869 = vxpose.xlu0.b32.cont [7/16] 0.0, 128
        %3870 = vxpose.xlu0.b32.cont [8/16] 0.0, 128
        %3871 = vxpose.xlu0.b32.cont [9/16] 0.0, 128
        %3872 = vxpose.xlu0.b32.cont [10/16] 0.0, 128
        %3873 = vxpose.xlu0.b32.cont [11/16] 0.0, 128
        %3874 = vxpose.xlu0.b32.cont [12/16] 0.0, 128
        %3875 = vxpose.xlu0.b32.cont [13/16] 0.0, 128
        %3876 = vxpose.xlu0.b32.cont [14/16] 0.0, 128
        %3877 = vxpose.xlu0.b32.cont [15/16] 0.0, 128
        %3878 = vxpose.xlu0.b32.end [16/16] 0.0, 128
        %v3879 = vpop.trf.xlu0
        %v3880 = vpop.trf.xlu0
        %v3881 = vpop.trf.xlu0
        %v3882 = vpop.trf.xlu0
        %v3883 = vpop.trf.xlu0
        %v3884 = vpop.trf.xlu0
        %v3885 = vpop.trf.xlu0
        %v3886 = vpop.trf.xlu0
        %v3887 = vpop.trf.xlu0
        %v3888 = vpop.trf.xlu0
        %v3889 = vpop.trf.xlu0
        %v3890 = vpop.trf.xlu0
        %v3891 = vpop.trf.xlu0
        %v3892 = vpop.trf.xlu0
        %v3893 = vpop.trf.xlu0
        %v3894 = vpop.trf.xlu0
        %3895 = vxpose.xlu0.b32.start [1/16] %v2330, 128
        %3896 = vxpose.xlu0.b32.cont [2/16] %v2466, 128
        %3897 = vxpose.xlu0.b32.cont [3/16] %v2602, 128
        %3898 = vxpose.xlu0.b32.cont [4/16] %v2738, 128
        %3899 = vxpose.xlu0.b32.cont [5/16] 0.0, 128
        %3900 = vxpose.xlu0.b32.cont [6/16] 0.0, 128
        %3901 = vxpose.xlu0.b32.cont [7/16] 0.0, 128
        %3902 = vxpose.xlu0.b32.cont [8/16] 0.0, 128
        %3903 = vxpose.xlu0.b32.cont [9/16] 0.0, 128
        %3904 = vxpose.xlu0.b32.cont [10/16] 0.0, 128
        %3905 = vxpose.xlu0.b32.cont [11/16] 0.0, 128
        %3906 = vxpose.xlu0.b32.cont [12/16] 0.0, 128
        %3907 = vxpose.xlu0.b32.cont [13/16] 0.0, 128
        %3908 = vxpose.xlu0.b32.cont [14/16] 0.0, 128
        %3909 = vxpose.xlu0.b32.cont [15/16] 0.0, 128
        %3910 = vxpose.xlu0.b32.end [16/16] 0.0, 128
        %v3911 = vpop.trf.xlu0
        %v3912 = vpop.trf.xlu0
        %v3913 = vpop.trf.xlu0
        %v3914 = vpop.trf.xlu0
        %v3915 = vpop.trf.xlu0
        %v3916 = vpop.trf.xlu0
        %v3917 = vpop.trf.xlu0
        %v3918 = vpop.trf.xlu0
        %v3919 = vpop.trf.xlu0
        %v3920 = vpop.trf.xlu0
        %v3921 = vpop.trf.xlu0
        %v3922 = vpop.trf.xlu0
        %v3923 = vpop.trf.xlu0
        %v3924 = vpop.trf.xlu0
        %v3925 = vpop.trf.xlu0
        %v3926 = vpop.trf.xlu0
        %3927 = vxpose.xlu0.b32.start [1/16] %v2331, 128
        %3928 = vxpose.xlu0.b32.cont [2/16] %v2467, 128
        %3929 = vxpose.xlu0.b32.cont [3/16] %v2603, 128
        %3930 = vxpose.xlu0.b32.cont [4/16] %v2739, 128
        %3931 = vxpose.xlu0.b32.cont [5/16] 0.0, 128
        %3932 = vxpose.xlu0.b32.cont [6/16] 0.0, 128
        %3933 = vxpose.xlu0.b32.cont [7/16] 0.0, 128
        %3934 = vxpose.xlu0.b32.cont [8/16] 0.0, 128
        %3935 = vxpose.xlu0.b32.cont [9/16] 0.0, 128
        %3936 = vxpose.xlu0.b32.cont [10/16] 0.0, 128
        %3937 = vxpose.xlu0.b32.cont [11/16] 0.0, 128
        %3938 = vxpose.xlu0.b32.cont [12/16] 0.0, 128
        %3939 = vxpose.xlu0.b32.cont [13/16] 0.0, 128
        %3940 = vxpose.xlu0.b32.cont [14/16] 0.0, 128
        %3941 = vxpose.xlu0.b32.cont [15/16] 0.0, 128
        %3942 = vxpose.xlu0.b32.end [16/16] 0.0, 128
        %v3943 = vpop.trf.xlu0
        %v3944 = vpop.trf.xlu0
        %v3945 = vpop.trf.xlu0
        %v3946 = vpop.trf.xlu0
        %v3947 = vpop.trf.xlu0
        %v3948 = vpop.trf.xlu0
        %v3949 = vpop.trf.xlu0
        %v3950 = vpop.trf.xlu0
        %v3951 = vpop.trf.xlu0
        %v3952 = vpop.trf.xlu0
        %v3953 = vpop.trf.xlu0
        %v3954 = vpop.trf.xlu0
        %v3955 = vpop.trf.xlu0
        %v3956 = vpop.trf.xlu0
        %v3957 = vpop.trf.xlu0
        %v3958 = vpop.trf.xlu0
        %3959 = vxpose.xlu0.b32.start [1/16] %v2332, 128
        %3960 = vxpose.xlu0.b32.cont [2/16] %v2468, 128
        %3961 = vxpose.xlu0.b32.cont [3/16] %v2604, 128
        %3962 = vxpose.xlu0.b32.cont [4/16] %v2740, 128
        %3963 = vxpose.xlu0.b32.cont [5/16] 0.0, 128
        %3964 = vxpose.xlu0.b32.cont [6/16] 0.0, 128
        %3965 = vxpose.xlu0.b32.cont [7/16] 0.0, 128
        %3966 = vxpose.xlu0.b32.cont [8/16] 0.0, 128
        %3967 = vxpose.xlu0.b32.cont [9/16] 0.0, 128
        %3968 = vxpose.xlu0.b32.cont [10/16] 0.0, 128
        %3969 = vxpose.xlu0.b32.cont [11/16] 0.0, 128
        %3970 = vxpose.xlu0.b32.cont [12/16] 0.0, 128
        %3971 = vxpose.xlu0.b32.cont [13/16] 0.0, 128
        %3972 = vxpose.xlu0.b32.cont [14/16] 0.0, 128
        %3973 = vxpose.xlu0.b32.cont [15/16] 0.0, 128
        %3974 = vxpose.xlu0.b32.end [16/16] 0.0, 128
        %v3975 = vpop.trf.xlu0
        %v3976 = vpop.trf.xlu0
        %v3977 = vpop.trf.xlu0
        %v3978 = vpop.trf.xlu0
        %v3979 = vpop.trf.xlu0
        %v3980 = vpop.trf.xlu0
        %v3981 = vpop.trf.xlu0
        %v3982 = vpop.trf.xlu0
        %v3983 = vpop.trf.xlu0
        %v3984 = vpop.trf.xlu0
        %v3985 = vpop.trf.xlu0
        %v3986 = vpop.trf.xlu0
        %v3987 = vpop.trf.xlu0
        %v3988 = vpop.trf.xlu0
        %v3989 = vpop.trf.xlu0
        %v3990 = vpop.trf.xlu0
        %3991 = vxpose.xlu0.b32.start [1/16] %v2333, 128
        %3992 = vxpose.xlu0.b32.cont [2/16] %v2469, 128
        %3993 = vxpose.xlu0.b32.cont [3/16] %v2605, 128
        %3994 = vxpose.xlu0.b32.cont [4/16] %v2741, 128
        %3995 = vxpose.xlu0.b32.cont [5/16] 0.0, 128
        %3996 = vxpose.xlu0.b32.cont [6/16] 0.0, 128
        %3997 = vxpose.xlu0.b32.cont [7/16] 0.0, 128
        %3998 = vxpose.xlu0.b32.cont [8/16] 0.0, 128
        %3999 = vxpose.xlu0.b32.cont [9/16] 0.0, 128
        %4000 = vxpose.xlu0.b32.cont [10/16] 0.0, 128
        %4001 = vxpose.xlu0.b32.cont [11/16] 0.0, 128
        %4002 = vxpose.xlu0.b32.cont [12/16] 0.0, 128
        %4003 = vxpose.xlu0.b32.cont [13/16] 0.0, 128
        %4004 = vxpose.xlu0.b32.cont [14/16] 0.0, 128
        %4005 = vxpose.xlu0.b32.cont [15/16] 0.0, 128
        %4006 = vxpose.xlu0.b32.end [16/16] 0.0, 128
        %v4007 = vpop.trf.xlu0
        %v4008 = vpop.trf.xlu0
        %v4009 = vpop.trf.xlu0
        %v4010 = vpop.trf.xlu0
        %v4011 = vpop.trf.xlu0
        %v4012 = vpop.trf.xlu0
        %v4013 = vpop.trf.xlu0
        %v4014 = vpop.trf.xlu0
        %v4015 = vpop.trf.xlu0
        %v4016 = vpop.trf.xlu0
        %v4017 = vpop.trf.xlu0
        %v4018 = vpop.trf.xlu0
        %v4019 = vpop.trf.xlu0
        %v4020 = vpop.trf.xlu0
        %v4021 = vpop.trf.xlu0
        %v4022 = vpop.trf.xlu0
        %4023 = vxpose.xlu0.b32.start [1/16] %v2334, 128
        %4024 = vxpose.xlu0.b32.cont [2/16] %v2470, 128
        %4025 = vxpose.xlu0.b32.cont [3/16] %v2606, 128
        %4026 = vxpose.xlu0.b32.cont [4/16] %v2742, 128
        %4027 = vxpose.xlu0.b32.cont [5/16] 0.0, 128
        %4028 = vxpose.xlu0.b32.cont [6/16] 0.0, 128
        %4029 = vxpose.xlu0.b32.cont [7/16] 0.0, 128
        %4030 = vxpose.xlu0.b32.cont [8/16] 0.0, 128
        %4031 = vxpose.xlu0.b32.cont [9/16] 0.0, 128
        %4032 = vxpose.xlu0.b32.cont [10/16] 0.0, 128
        %4033 = vxpose.xlu0.b32.cont [11/16] 0.0, 128
        %4034 = vxpose.xlu0.b32.cont [12/16] 0.0, 128
        %4035 = vxpose.xlu0.b32.cont [13/16] 0.0, 128
        %4036 = vxpose.xlu0.b32.cont [14/16] 0.0, 128
        %4037 = vxpose.xlu0.b32.cont [15/16] 0.0, 128
        %4038 = vxpose.xlu0.b32.end [16/16] 0.0, 128
        %v4039 = vpop.trf.xlu0
        %v4040 = vpop.trf.xlu0
        %v4041 = vpop.trf.xlu0
        %v4042 = vpop.trf.xlu0
        %v4043 = vpop.trf.xlu0
        %v4044 = vpop.trf.xlu0
        %v4045 = vpop.trf.xlu0
        %v4046 = vpop.trf.xlu0
        %v4047 = vpop.trf.xlu0
        %v4048 = vpop.trf.xlu0
        %v4049 = vpop.trf.xlu0
        %v4050 = vpop.trf.xlu0
        %v4051 = vpop.trf.xlu0
        %v4052 = vpop.trf.xlu0
        %v4053 = vpop.trf.xlu0
        %v4054 = vpop.trf.xlu0
        %4055 = vxpose.xlu0.b32.start [1/16] %v2871, 128
        %4056 = vxpose.xlu0.b32.cont [2/16] %v3007, 128
        %4057 = vxpose.xlu0.b32.cont [3/16] %v3143, 128
        %4058 = vxpose.xlu0.b32.cont [4/16] %v3279, 128
        %4059 = vxpose.xlu0.b32.cont [5/16] 0.0, 128
        %4060 = vxpose.xlu0.b32.cont [6/16] 0.0, 128
        %4061 = vxpose.xlu0.b32.cont [7/16] 0.0, 128
        %4062 = vxpose.xlu0.b32.cont [8/16] 0.0, 128
        %4063 = vxpose.xlu0.b32.cont [9/16] 0.0, 128
        %4064 = vxpose.xlu0.b32.cont [10/16] 0.0, 128
        %4065 = vxpose.xlu0.b32.cont [11/16] 0.0, 128
        %4066 = vxpose.xlu0.b32.cont [12/16] 0.0, 128
        %4067 = vxpose.xlu0.b32.cont [13/16] 0.0, 128
        %4068 = vxpose.xlu0.b32.cont [14/16] 0.0, 128
        %4069 = vxpose.xlu0.b32.cont [15/16] 0.0, 128
        %4070 = vxpose.xlu0.b32.end [16/16] 0.0, 128
        %v4071 = vpop.trf.xlu0
        %v4072 = vpop.trf.xlu0
        %v4073 = vpop.trf.xlu0
        %v4074 = vpop.trf.xlu0
        %v4075 = vpop.trf.xlu0
        %v4076 = vpop.trf.xlu0
        %v4077 = vpop.trf.xlu0
        %v4078 = vpop.trf.xlu0
        %v4079 = vpop.trf.xlu0
        %v4080 = vpop.trf.xlu0
        %v4081 = vpop.trf.xlu0
        %v4082 = vpop.trf.xlu0
        %v4083 = vpop.trf.xlu0
        %v4084 = vpop.trf.xlu0
        %v4085 = vpop.trf.xlu0
        %v4086 = vpop.trf.xlu0
        %4087 = vxpose.xlu0.b32.start [1/16] %v2872, 128
        %4088 = vxpose.xlu0.b32.cont [2/16] %v3008, 128
        %4089 = vxpose.xlu0.b32.cont [3/16] %v3144, 128
        %4090 = vxpose.xlu0.b32.cont [4/16] %v3280, 128
        %4091 = vxpose.xlu0.b32.cont [5/16] 0.0, 128
        %4092 = vxpose.xlu0.b32.cont [6/16] 0.0, 128
        %4093 = vxpose.xlu0.b32.cont [7/16] 0.0, 128
        %4094 = vxpose.xlu0.b32.cont [8/16] 0.0, 128
        %4095 = vxpose.xlu0.b32.cont [9/16] 0.0, 128
        %4096 = vxpose.xlu0.b32.cont [10/16] 0.0, 128
        %4097 = vxpose.xlu0.b32.cont [11/16] 0.0, 128
        %4098 = vxpose.xlu0.b32.cont [12/16] 0.0, 128
        %4099 = vxpose.xlu0.b32.cont [13/16] 0.0, 128
        %4100 = vxpose.xlu0.b32.cont [14/16] 0.0, 128
        %4101 = vxpose.xlu0.b32.cont [15/16] 0.0, 128
        %4102 = vxpose.xlu0.b32.end [16/16] 0.0, 128
        %v4103 = vpop.trf.xlu0
        %v4104 = vpop.trf.xlu0
        %v4105 = vpop.trf.xlu0
        %v4106 = vpop.trf.xlu0
        %v4107 = vpop.trf.xlu0
        %v4108 = vpop.trf.xlu0
        %v4109 = vpop.trf.xlu0
        %v4110 = vpop.trf.xlu0
        %v4111 = vpop.trf.xlu0
        %v4112 = vpop.trf.xlu0
        %v4113 = vpop.trf.xlu0
        %v4114 = vpop.trf.xlu0
        %v4115 = vpop.trf.xlu0
        %v4116 = vpop.trf.xlu0
        %v4117 = vpop.trf.xlu0
        %v4118 = vpop.trf.xlu0
        %4119 = vxpose.xlu0.b32.start [1/16] %v2873, 128
        %4120 = vxpose.xlu0.b32.cont [2/16] %v3009, 128
        %4121 = vxpose.xlu0.b32.cont [3/16] %v3145, 128
        %4122 = vxpose.xlu0.b32.cont [4/16] %v3281, 128
        %4123 = vxpose.xlu0.b32.cont [5/16] 0.0, 128
        %4124 = vxpose.xlu0.b32.cont [6/16] 0.0, 128
        %4125 = vxpose.xlu0.b32.cont [7/16] 0.0, 128
        %4126 = vxpose.xlu0.b32.cont [8/16] 0.0, 128
        %4127 = vxpose.xlu0.b32.cont [9/16] 0.0, 128
        %4128 = vxpose.xlu0.b32.cont [10/16] 0.0, 128
        %4129 = vxpose.xlu0.b32.cont [11/16] 0.0, 128
        %4130 = vxpose.xlu0.b32.cont [12/16] 0.0, 128
        %4131 = vxpose.xlu0.b32.cont [13/16] 0.0, 128
        %4132 = vxpose.xlu0.b32.cont [14/16] 0.0, 128
        %4133 = vxpose.xlu0.b32.cont [15/16] 0.0, 128
        %4134 = vxpose.xlu0.b32.end [16/16] 0.0, 128
        %v4135 = vpop.trf.xlu0
        %v4136 = vpop.trf.xlu0
        %v4137 = vpop.trf.xlu0
        %v4138 = vpop.trf.xlu0
        %v4139 = vpop.trf.xlu0
        %v4140 = vpop.trf.xlu0
        %v4141 = vpop.trf.xlu0
        %v4142 = vpop.trf.xlu0
        %v4143 = vpop.trf.xlu0
        %v4144 = vpop.trf.xlu0
        %v4145 = vpop.trf.xlu0
        %v4146 = vpop.trf.xlu0
        %v4147 = vpop.trf.xlu0
        %v4148 = vpop.trf.xlu0
        %v4149 = vpop.trf.xlu0
        %v4150 = vpop.trf.xlu0
        %4151 = vxpose.xlu0.b32.start [1/16] %v2874, 128
        %4152 = vxpose.xlu0.b32.cont [2/16] %v3010, 128
        %4153 = vxpose.xlu0.b32.cont [3/16] %v3146, 128
        %4154 = vxpose.xlu0.b32.cont [4/16] %v3282, 128
        %4155 = vxpose.xlu0.b32.cont [5/16] 0.0, 128
        %4156 = vxpose.xlu0.b32.cont [6/16] 0.0, 128
        %4157 = vxpose.xlu0.b32.cont [7/16] 0.0, 128
        %4158 = vxpose.xlu0.b32.cont [8/16] 0.0, 128
        %4159 = vxpose.xlu0.b32.cont [9/16] 0.0, 128
        %4160 = vxpose.xlu0.b32.cont [10/16] 0.0, 128
        %4161 = vxpose.xlu0.b32.cont [11/16] 0.0, 128
        %4162 = vxpose.xlu0.b32.cont [12/16] 0.0, 128
        %4163 = vxpose.xlu0.b32.cont [13/16] 0.0, 128
        %4164 = vxpose.xlu0.b32.cont [14/16] 0.0, 128
        %4165 = vxpose.xlu0.b32.cont [15/16] 0.0, 128
        %4166 = vxpose.xlu0.b32.end [16/16] 0.0, 128
        %v4167 = vpop.trf.xlu0
        %v4168 = vpop.trf.xlu0
        %v4169 = vpop.trf.xlu0
        %v4170 = vpop.trf.xlu0
        %v4171 = vpop.trf.xlu0
        %v4172 = vpop.trf.xlu0
        %v4173 = vpop.trf.xlu0
        %v4174 = vpop.trf.xlu0
        %v4175 = vpop.trf.xlu0
        %v4176 = vpop.trf.xlu0
        %v4177 = vpop.trf.xlu0
        %v4178 = vpop.trf.xlu0
        %v4179 = vpop.trf.xlu0
        %v4180 = vpop.trf.xlu0
        %v4181 = vpop.trf.xlu0
        %v4182 = vpop.trf.xlu0
        %4183 = vxpose.xlu0.b32.start [1/16] %v2875, 128
        %4184 = vxpose.xlu0.b32.cont [2/16] %v3011, 128
        %4185 = vxpose.xlu0.b32.cont [3/16] %v3147, 128
        %4186 = vxpose.xlu0.b32.cont [4/16] %v3283, 128
        %4187 = vxpose.xlu0.b32.cont [5/16] 0.0, 128
        %4188 = vxpose.xlu0.b32.cont [6/16] 0.0, 128
        %4189 = vxpose.xlu0.b32.cont [7/16] 0.0, 128
        %4190 = vxpose.xlu0.b32.cont [8/16] 0.0, 128
        %4191 = vxpose.xlu0.b32.cont [9/16] 0.0, 128
        %4192 = vxpose.xlu0.b32.cont [10/16] 0.0, 128
        %4193 = vxpose.xlu0.b32.cont [11/16] 0.0, 128
        %4194 = vxpose.xlu0.b32.cont [12/16] 0.0, 128
        %4195 = vxpose.xlu0.b32.cont [13/16] 0.0, 128
        %4196 = vxpose.xlu0.b32.cont [14/16] 0.0, 128
        %4197 = vxpose.xlu0.b32.cont [15/16] 0.0, 128
        %4198 = vxpose.xlu0.b32.end [16/16] 0.0, 128
        %v4199 = vpop.trf.xlu0
        %v4200 = vpop.trf.xlu0
        %v4201 = vpop.trf.xlu0
        %v4202 = vpop.trf.xlu0
        %v4203 = vpop.trf.xlu0
        %v4204 = vpop.trf.xlu0
        %v4205 = vpop.trf.xlu0
        %v4206 = vpop.trf.xlu0
        %v4207 = vpop.trf.xlu0
        %v4208 = vpop.trf.xlu0
        %v4209 = vpop.trf.xlu0
        %v4210 = vpop.trf.xlu0
        %v4211 = vpop.trf.xlu0
        %v4212 = vpop.trf.xlu0
        %v4213 = vpop.trf.xlu0
        %v4214 = vpop.trf.xlu0
        %4215 = vxpose.xlu0.b32.start [1/16] %v2876, 128
        %4216 = vxpose.xlu0.b32.cont [2/16] %v3012, 128
        %4217 = vxpose.xlu0.b32.cont [3/16] %v3148, 128
        %4218 = vxpose.xlu0.b32.cont [4/16] %v3284, 128
        %4219 = vxpose.xlu0.b32.cont [5/16] 0.0, 128
        %4220 = vxpose.xlu0.b32.cont [6/16] 0.0, 128
        %4221 = vxpose.xlu0.b32.cont [7/16] 0.0, 128
        %4222 = vxpose.xlu0.b32.cont [8/16] 0.0, 128
        %4223 = vxpose.xlu0.b32.cont [9/16] 0.0, 128
        %4224 = vxpose.xlu0.b32.cont [10/16] 0.0, 128
        %4225 = vxpose.xlu0.b32.cont [11/16] 0.0, 128
        %4226 = vxpose.xlu0.b32.cont [12/16] 0.0, 128
        %4227 = vxpose.xlu0.b32.cont [13/16] 0.0, 128
        %4228 = vxpose.xlu0.b32.cont [14/16] 0.0, 128
        %4229 = vxpose.xlu0.b32.cont [15/16] 0.0, 128
        %4230 = vxpose.xlu0.b32.end [16/16] 0.0, 128
        %v4231 = vpop.trf.xlu0
        %v4232 = vpop.trf.xlu0
        %v4233 = vpop.trf.xlu0
        %v4234 = vpop.trf.xlu0
        %v4235 = vpop.trf.xlu0
        %v4236 = vpop.trf.xlu0
        %v4237 = vpop.trf.xlu0
        %v4238 = vpop.trf.xlu0
        %v4239 = vpop.trf.xlu0
        %v4240 = vpop.trf.xlu0
        %v4241 = vpop.trf.xlu0
        %v4242 = vpop.trf.xlu0
        %v4243 = vpop.trf.xlu0
        %v4244 = vpop.trf.xlu0
        %v4245 = vpop.trf.xlu0
        %v4246 = vpop.trf.xlu0
        %4247 = vxpose.xlu0.b32.start [1/16] %v2877, 128
        %4248 = vxpose.xlu0.b32.cont [2/16] %v3013, 128
        %4249 = vxpose.xlu0.b32.cont [3/16] %v3149, 128
        %4250 = vxpose.xlu0.b32.cont [4/16] %v3285, 128
        %4251 = vxpose.xlu0.b32.cont [5/16] 0.0, 128
        %4252 = vxpose.xlu0.b32.cont [6/16] 0.0, 128
        %4253 = vxpose.xlu0.b32.cont [7/16] 0.0, 128
        %4254 = vxpose.xlu0.b32.cont [8/16] 0.0, 128
        %4255 = vxpose.xlu0.b32.cont [9/16] 0.0, 128
        %4256 = vxpose.xlu0.b32.cont [10/16] 0.0, 128
        %4257 = vxpose.xlu0.b32.cont [11/16] 0.0, 128
        %4258 = vxpose.xlu0.b32.cont [12/16] 0.0, 128
        %4259 = vxpose.xlu0.b32.cont [13/16] 0.0, 128
        %4260 = vxpose.xlu0.b32.cont [14/16] 0.0, 128
        %4261 = vxpose.xlu0.b32.cont [15/16] 0.0, 128
        %4262 = vxpose.xlu0.b32.end [16/16] 0.0, 128
        %v4263 = vpop.trf.xlu0
        %v4264 = vpop.trf.xlu0
        %v4265 = vpop.trf.xlu0
        %v4266 = vpop.trf.xlu0
        %v4267 = vpop.trf.xlu0
        %v4268 = vpop.trf.xlu0
        %v4269 = vpop.trf.xlu0
        %v4270 = vpop.trf.xlu0
        %v4271 = vpop.trf.xlu0
        %v4272 = vpop.trf.xlu0
        %v4273 = vpop.trf.xlu0
        %v4274 = vpop.trf.xlu0
        %v4275 = vpop.trf.xlu0
        %v4276 = vpop.trf.xlu0
        %v4277 = vpop.trf.xlu0
        %v4278 = vpop.trf.xlu0
        %4279 = vxpose.xlu0.b32.start [1/16] %v2878, 128
        %4280 = vxpose.xlu0.b32.cont [2/16] %v3014, 128
        %4281 = vxpose.xlu0.b32.cont [3/16] %v3150, 128
        %4282 = vxpose.xlu0.b32.cont [4/16] %v3286, 128
        %4283 = vxpose.xlu0.b32.cont [5/16] 0.0, 128
        %4284 = vxpose.xlu0.b32.cont [6/16] 0.0, 128
        %4285 = vxpose.xlu0.b32.cont [7/16] 0.0, 128
        %4286 = vxpose.xlu0.b32.cont [8/16] 0.0, 128
        %4287 = vxpose.xlu0.b32.cont [9/16] 0.0, 128
        %4288 = vxpose.xlu0.b32.cont [10/16] 0.0, 128
        %4289 = vxpose.xlu0.b32.cont [11/16] 0.0, 128
        %4290 = vxpose.xlu0.b32.cont [12/16] 0.0, 128
        %4291 = vxpose.xlu0.b32.cont [13/16] 0.0, 128
        %4292 = vxpose.xlu0.b32.cont [14/16] 0.0, 128
        %4293 = vxpose.xlu0.b32.cont [15/16] 0.0, 128
        %4294 = vxpose.xlu0.b32.end [16/16] 0.0, 128
        %v4295 = vpop.trf.xlu0
        %v4296 = vpop.trf.xlu0
        %v4297 = vpop.trf.xlu0
        %v4298 = vpop.trf.xlu0
        %v4299 = vpop.trf.xlu0
        %v4300 = vpop.trf.xlu0
        %v4301 = vpop.trf.xlu0
        %v4302 = vpop.trf.xlu0
        %v4303 = vpop.trf.xlu0
        %v4304 = vpop.trf.xlu0
        %v4305 = vpop.trf.xlu0
        %v4306 = vpop.trf.xlu0
        %v4307 = vpop.trf.xlu0
        %v4308 = vpop.trf.xlu0
        %v4309 = vpop.trf.xlu0
        %v4310 = vpop.trf.xlu0
        %v4315 = vcombine.high %v3303, %v3303
        %v4317 = vunpack.c.l.s4 1966171168
        %v4318 = vunpack.c.0.s8 %v4317
        %v4319 = vlaneseq
        %v4320 = vshrl.u32 %v4319, 7
        %v4321 = vsub.s32 %v4318, %v4320
        %v4322 = vrot.slane %v3303, %v4321
        %v4324 = vunpack.c.l.s4 1966171168
        %v4325 = vunpack.c.0.s8 %v4324
        %v4326 = vlaneseq
        %v4327 = vshrl.u32 %v4326, 7
        %v4328 = vsub.s32 %v4325, %v4327
        %v4329 = vrot.slane %v4315, %v4328
        %v4330 = vcombine.high %v4322, %v4322
        %v4331 = vcombine.high %v4329, %v4329
        %v4333 = vunpack.c.l.s4 1966171168
        %v4334 = vunpack.c.0.s8 %v4333
        %v4335 = vlaneseq
        %v4336 = vshrl.u32 %v4335, 7
        %v4337 = vsub.s32 %v4334, %v4336
        %v4338 = vrot.slane %v4322, %v4337
        %v4340 = vunpack.c.l.s4 1966171168
        %v4341 = vunpack.c.0.s8 %v4340
        %v4342 = vlaneseq
        %v4343 = vshrl.u32 %v4342, 7
        %v4344 = vsub.s32 %v4341, %v4343
        %v4345 = vrot.slane %v4329, %v4344
        %v4347 = vunpack.c.l.s4 1966171168
        %v4348 = vunpack.c.0.s8 %v4347
        %v4349 = vlaneseq
        %v4350 = vshrl.u32 %v4349, 7
        %v4351 = vsub.s32 %v4348, %v4350
        %v4352 = vrot.slane %v4330, %v4351
        %v4354 = vunpack.c.l.s4 1966171168
        %v4355 = vunpack.c.0.s8 %v4354
        %v4356 = vlaneseq
        %v4357 = vshrl.u32 %v4356, 7
        %v4358 = vsub.s32 %v4355, %v4357
        %v4359 = vrot.slane %v4331, %v4358
        %v4360 = vcombine.high %v4338, %v4338
        %v4361 = vcombine.high %v4345, %v4345
        %v4362 = vcombine.high %v4352, %v4352
        %v4363 = vcombine.high %v4359, %v4359
        %v4364 = vcombine.high %v3431, %v3431
        %v4366 = vunpack.c.l.s4 1966171168
        %v4367 = vunpack.c.0.s8 %v4366
        %v4368 = vlaneseq
        %v4369 = vshrl.u32 %v4368, 7
        %v4370 = vsub.s32 %v4367, %v4369
        %v4371 = vrot.slane %v3431, %v4370
        %v4373 = vunpack.c.l.s4 1966171168
        %v4374 = vunpack.c.0.s8 %v4373
        %v4375 = vlaneseq
        %v4376 = vshrl.u32 %v4375, 7
        %v4377 = vsub.s32 %v4374, %v4376
        %v4378 = vrot.slane %v4364, %v4377
        %v4379 = vcombine.high %v4371, %v4371
        %v4380 = vcombine.high %v4378, %v4378
        %v4382 = vunpack.c.l.s4 1966171168
        %v4383 = vunpack.c.0.s8 %v4382
        %v4384 = vlaneseq
        %v4385 = vshrl.u32 %v4384, 7
        %v4386 = vsub.s32 %v4383, %v4385
        %v4387 = vrot.slane %v4371, %v4386
        %v4389 = vunpack.c.l.s4 1966171168
        %v4390 = vunpack.c.0.s8 %v4389
        %v4391 = vlaneseq
        %v4392 = vshrl.u32 %v4391, 7
        %v4393 = vsub.s32 %v4390, %v4392
        %v4394 = vrot.slane %v4378, %v4393
        %v4396 = vunpack.c.l.s4 1966171168
        %v4397 = vunpack.c.0.s8 %v4396
        %v4398 = vlaneseq
        %v4399 = vshrl.u32 %v4398, 7
        %v4400 = vsub.s32 %v4397, %v4399
        %v4401 = vrot.slane %v4379, %v4400
        %v4403 = vunpack.c.l.s4 1966171168
        %v4404 = vunpack.c.0.s8 %v4403
        %v4405 = vlaneseq
        %v4406 = vshrl.u32 %v4405, 7
        %v4407 = vsub.s32 %v4404, %v4406
        %v4408 = vrot.slane %v4380, %v4407
        %v4409 = vcombine.high %v4387, %v4387
        %v4410 = vcombine.high %v4394, %v4394
        %v4411 = vcombine.high %v4401, %v4401
        %v4412 = vcombine.high %v4408, %v4408
        %v4413 = vcombine.high %v3559, %v3559
        %v4415 = vunpack.c.l.s4 1966171168
        %v4416 = vunpack.c.0.s8 %v4415
        %v4417 = vlaneseq
        %v4418 = vshrl.u32 %v4417, 7
        %v4419 = vsub.s32 %v4416, %v4418
        %v4420 = vrot.slane %v3559, %v4419
        %v4422 = vunpack.c.l.s4 1966171168
        %v4423 = vunpack.c.0.s8 %v4422
        %v4424 = vlaneseq
        %v4425 = vshrl.u32 %v4424, 7
        %v4426 = vsub.s32 %v4423, %v4425
        %v4427 = vrot.slane %v4413, %v4426
        %v4428 = vcombine.high %v4420, %v4420
        %v4429 = vcombine.high %v4427, %v4427
        %v4431 = vunpack.c.l.s4 1966171168
        %v4432 = vunpack.c.0.s8 %v4431
        %v4433 = vlaneseq
        %v4434 = vshrl.u32 %v4433, 7
        %v4435 = vsub.s32 %v4432, %v4434
        %v4436 = vrot.slane %v4420, %v4435
        %v4438 = vunpack.c.l.s4 1966171168
        %v4439 = vunpack.c.0.s8 %v4438
        %v4440 = vlaneseq
        %v4441 = vshrl.u32 %v4440, 7
        %v4442 = vsub.s32 %v4439, %v4441
        %v4443 = vrot.slane %v4427, %v4442
        %v4445 = vunpack.c.l.s4 1966171168
        %v4446 = vunpack.c.0.s8 %v4445
        %v4447 = vlaneseq
        %v4448 = vshrl.u32 %v4447, 7
        %v4449 = vsub.s32 %v4446, %v4448
        %v4450 = vrot.slane %v4428, %v4449
        %v4452 = vunpack.c.l.s4 1966171168
        %v4453 = vunpack.c.0.s8 %v4452
        %v4454 = vlaneseq
        %v4455 = vshrl.u32 %v4454, 7
        %v4456 = vsub.s32 %v4453, %v4455
        %v4457 = vrot.slane %v4429, %v4456
        %v4458 = vcombine.high %v4436, %v4436
        %v4459 = vcombine.high %v4443, %v4443
        %v4460 = vcombine.high %v4450, %v4450
        %v4461 = vcombine.high %v4457, %v4457
        %v4462 = vcombine.high %v3687, %v3687
        %v4464 = vunpack.c.l.s4 1966171168
        %v4465 = vunpack.c.0.s8 %v4464
        %v4466 = vlaneseq
        %v4467 = vshrl.u32 %v4466, 7
        %v4468 = vsub.s32 %v4465, %v4467
        %v4469 = vrot.slane %v3687, %v4468
        %v4471 = vunpack.c.l.s4 1966171168
        %v4472 = vunpack.c.0.s8 %v4471
        %v4473 = vlaneseq
        %v4474 = vshrl.u32 %v4473, 7
        %v4475 = vsub.s32 %v4472, %v4474
        %v4476 = vrot.slane %v4462, %v4475
        %v4477 = vcombine.high %v4469, %v4469
        %v4478 = vcombine.high %v4476, %v4476
        %v4480 = vunpack.c.l.s4 1966171168
        %v4481 = vunpack.c.0.s8 %v4480
        %v4482 = vlaneseq
        %v4483 = vshrl.u32 %v4482, 7
        %v4484 = vsub.s32 %v4481, %v4483
        %v4485 = vrot.slane %v4469, %v4484
        %v4487 = vunpack.c.l.s4 1966171168
        %v4488 = vunpack.c.0.s8 %v4487
        %v4489 = vlaneseq
        %v4490 = vshrl.u32 %v4489, 7
        %v4491 = vsub.s32 %v4488, %v4490
        %v4492 = vrot.slane %v4476, %v4491
        %v4494 = vunpack.c.l.s4 1966171168
        %v4495 = vunpack.c.0.s8 %v4494
        %v4496 = vlaneseq
        %v4497 = vshrl.u32 %v4496, 7
        %v4498 = vsub.s32 %v4495, %v4497
        %v4499 = vrot.slane %v4477, %v4498
        %v4501 = vunpack.c.l.s4 1966171168
        %v4502 = vunpack.c.0.s8 %v4501
        %v4503 = vlaneseq
        %v4504 = vshrl.u32 %v4503, 7
        %v4505 = vsub.s32 %v4502, %v4504
        %v4506 = vrot.slane %v4478, %v4505
        %v4507 = vcombine.high %v4485, %v4485
        %v4508 = vcombine.high %v4492, %v4492
        %v4509 = vcombine.high %v4499, %v4499
        %v4510 = vcombine.high %v4506, %v4506
        %v4511 = vlaneseq
        %v4512 = vshrl.u32 %v4511, 7
        %v4513 = vsub.s32 0, %v4512
        %v4514 = vrot.slane %v4338, %v4513
        %v4515 = vlaneseq
        %v4516 = vshrl.u32 %v4515, 7
        %v4517 = vsub.s32 0, %v4516
        %v4518 = vrot.slane %v4352, %v4517
        %v4519 = vlaneseq
        %v4520 = vshrl.u32 %v4519, 7
        %v4521 = vsub.s32 0, %v4520
        %v4522 = vrot.slane %v4360, %v4521
        %v4523 = vlaneseq
        %v4524 = vshrl.u32 %v4523, 7
        %v4525 = vsub.s32 0, %v4524
        %v4526 = vrot.slane %v4362, %v4525
        %v4527 = vlaneseq
        %v4528 = vshrl.u32 %v4527, 7
        %v4529 = vsub.s32 0, %v4528
        %v4530 = vrot.slane %v4345, %v4529
        %v4531 = vlaneseq
        %v4532 = vshrl.u32 %v4531, 7
        %v4533 = vsub.s32 0, %v4532
        %v4534 = vrot.slane %v4359, %v4533
        %v4535 = vlaneseq
        %v4536 = vshrl.u32 %v4535, 7
        %v4537 = vsub.s32 0, %v4536
        %v4538 = vrot.slane %v4361, %v4537
        %v4539 = vlaneseq
        %v4540 = vshrl.u32 %v4539, 7
        %v4541 = vsub.s32 0, %v4540
        %v4542 = vrot.slane %v4363, %v4541
        %v4543 = vlaneseq
        %v4544 = vshrl.u32 %v4543, 7
        %v4545 = vsub.s32 0, %v4544
        %v4546 = vrot.slane %v4387, %v4545
        %v4547 = vlaneseq
        %v4548 = vshrl.u32 %v4547, 7
        %v4549 = vsub.s32 0, %v4548
        %v4550 = vrot.slane %v4401, %v4549
        %v4551 = vlaneseq
        %v4552 = vshrl.u32 %v4551, 7
        %v4553 = vsub.s32 0, %v4552
        %v4554 = vrot.slane %v4409, %v4553
        %v4555 = vlaneseq
        %v4556 = vshrl.u32 %v4555, 7
        %v4557 = vsub.s32 0, %v4556
        %v4558 = vrot.slane %v4411, %v4557
        %v4559 = vlaneseq
        %v4560 = vshrl.u32 %v4559, 7
        %v4561 = vsub.s32 0, %v4560
        %v4562 = vrot.slane %v4394, %v4561
        %v4563 = vlaneseq
        %v4564 = vshrl.u32 %v4563, 7
        %v4565 = vsub.s32 0, %v4564
        %v4566 = vrot.slane %v4408, %v4565
        %v4567 = vlaneseq
        %v4568 = vshrl.u32 %v4567, 7
        %v4569 = vsub.s32 0, %v4568
        %v4570 = vrot.slane %v4410, %v4569
        %v4571 = vlaneseq
        %v4572 = vshrl.u32 %v4571, 7
        %v4573 = vsub.s32 0, %v4572
        %v4574 = vrot.slane %v4412, %v4573
        %v4575 = vlaneseq
        %v4576 = vshrl.u32 %v4575, 7
        %v4577 = vsub.s32 0, %v4576
        %v4578 = vrot.slane %v4436, %v4577
        %v4579 = vlaneseq
        %v4580 = vshrl.u32 %v4579, 7
        %v4581 = vsub.s32 0, %v4580
        %v4582 = vrot.slane %v4450, %v4581
        %v4583 = vlaneseq
        %v4584 = vshrl.u32 %v4583, 7
        %v4585 = vsub.s32 0, %v4584
        %v4586 = vrot.slane %v4458, %v4585
        %v4587 = vlaneseq
        %v4588 = vshrl.u32 %v4587, 7
        %v4589 = vsub.s32 0, %v4588
        %v4590 = vrot.slane %v4460, %v4589
        %v4591 = vlaneseq
        %v4592 = vshrl.u32 %v4591, 7
        %v4593 = vsub.s32 0, %v4592
        %v4594 = vrot.slane %v4443, %v4593
        %v4595 = vlaneseq
        %v4596 = vshrl.u32 %v4595, 7
        %v4597 = vsub.s32 0, %v4596
        %v4598 = vrot.slane %v4457, %v4597
        %v4599 = vlaneseq
        %v4600 = vshrl.u32 %v4599, 7
        %v4601 = vsub.s32 0, %v4600
        %v4602 = vrot.slane %v4459, %v4601
        %v4603 = vlaneseq
        %v4604 = vshrl.u32 %v4603, 7
        %v4605 = vsub.s32 0, %v4604
        %v4606 = vrot.slane %v4461, %v4605
        %v4607 = vlaneseq
        %v4608 = vshrl.u32 %v4607, 7
        %v4609 = vsub.s32 0, %v4608
        %v4610 = vrot.slane %v4485, %v4609
        %v4611 = vlaneseq
        %v4612 = vshrl.u32 %v4611, 7
        %v4613 = vsub.s32 0, %v4612
        %v4614 = vrot.slane %v4499, %v4613
        %v4615 = vlaneseq
        %v4616 = vshrl.u32 %v4615, 7
        %v4617 = vsub.s32 0, %v4616
        %v4618 = vrot.slane %v4507, %v4617
        %v4619 = vlaneseq
        %v4620 = vshrl.u32 %v4619, 7
        %v4621 = vsub.s32 0, %v4620
        %v4622 = vrot.slane %v4509, %v4621
        %v4623 = vlaneseq
        %v4624 = vshrl.u32 %v4623, 7
        %v4625 = vsub.s32 0, %v4624
        %v4626 = vrot.slane %v4492, %v4625
        %v4627 = vlaneseq
        %v4628 = vshrl.u32 %v4627, 7
        %v4629 = vsub.s32 0, %v4628
        %v4630 = vrot.slane %v4506, %v4629
        %v4631 = vlaneseq
        %v4632 = vshrl.u32 %v4631, 7
        %v4633 = vsub.s32 0, %v4632
        %v4634 = vrot.slane %v4508, %v4633
        %v4635 = vlaneseq
        %v4636 = vshrl.u32 %v4635, 7
        %v4637 = vsub.s32 0, %v4636
        %v4638 = vrot.slane %v4510, %v4637
        %v4671 = vmul.f32 %v4514, %v3815
        %v4672 = vmul.f32 %v4518, %v3815
        %v4673 = vmul.f32 %v4522, %v3815
        %v4674 = vmul.f32 %v4526, %v3815
        %v4675 = vmul.f32 %v4530, %v3815
        %v4676 = vmul.f32 %v4534, %v3815
        %v4677 = vmul.f32 %v4538, %v3815
        %v4678 = vmul.f32 %v4542, %v3815
        %v4679 = vmul.f32 %v4546, %v3943
        %v4680 = vmul.f32 %v4550, %v3943
        %v4681 = vmul.f32 %v4554, %v3943
        %v4682 = vmul.f32 %v4558, %v3943
        %v4683 = vmul.f32 %v4562, %v3943
        %v4684 = vmul.f32 %v4566, %v3943
        %v4685 = vmul.f32 %v4570, %v3943
        %v4686 = vmul.f32 %v4574, %v3943
        %v4687 = vmul.f32 %v4578, %v4071
        %v4688 = vmul.f32 %v4582, %v4071
        %v4689 = vmul.f32 %v4586, %v4071
        %v4690 = vmul.f32 %v4590, %v4071
        %v4691 = vmul.f32 %v4594, %v4071
        %v4692 = vmul.f32 %v4598, %v4071
        %v4693 = vmul.f32 %v4602, %v4071
        %v4694 = vmul.f32 %v4606, %v4071
        %v4695 = vmul.f32 %v4610, %v4199
        %v4696 = vmul.f32 %v4614, %v4199
        %v4697 = vmul.f32 %v4618, %v4199
        %v4698 = vmul.f32 %v4622, %v4199
        %v4699 = vmul.f32 %v4626, %v4199
        %v4700 = vmul.f32 %v4630, %v4199
        %v4701 = vmul.f32 %v4634, %v4199
        %v4702 = vmul.f32 %v4638, %v4199
        %v4707 = vcombine.high %v3335, %v3335
        %v4709 = vunpack.c.l.s4 1966171168
        %v4710 = vunpack.c.0.s8 %v4709
        %v4711 = vlaneseq
        %v4712 = vshrl.u32 %v4711, 7
        %v4713 = vsub.s32 %v4710, %v4712
        %v4714 = vrot.slane %v3335, %v4713
        %v4716 = vunpack.c.l.s4 1966171168
        %v4717 = vunpack.c.0.s8 %v4716
        %v4718 = vlaneseq
        %v4719 = vshrl.u32 %v4718, 7
        %v4720 = vsub.s32 %v4717, %v4719
        %v4721 = vrot.slane %v4707, %v4720
        %v4722 = vcombine.high %v4714, %v4714
        %v4723 = vcombine.high %v4721, %v4721
        %v4725 = vunpack.c.l.s4 1966171168
        %v4726 = vunpack.c.0.s8 %v4725
        %v4727 = vlaneseq
        %v4728 = vshrl.u32 %v4727, 7
        %v4729 = vsub.s32 %v4726, %v4728
        %v4730 = vrot.slane %v4714, %v4729
        %v4732 = vunpack.c.l.s4 1966171168
        %v4733 = vunpack.c.0.s8 %v4732
        %v4734 = vlaneseq
        %v4735 = vshrl.u32 %v4734, 7
        %v4736 = vsub.s32 %v4733, %v4735
        %v4737 = vrot.slane %v4721, %v4736
        %v4739 = vunpack.c.l.s4 1966171168
        %v4740 = vunpack.c.0.s8 %v4739
        %v4741 = vlaneseq
        %v4742 = vshrl.u32 %v4741, 7
        %v4743 = vsub.s32 %v4740, %v4742
        %v4744 = vrot.slane %v4722, %v4743
        %v4746 = vunpack.c.l.s4 1966171168
        %v4747 = vunpack.c.0.s8 %v4746
        %v4748 = vlaneseq
        %v4749 = vshrl.u32 %v4748, 7
        %v4750 = vsub.s32 %v4747, %v4749
        %v4751 = vrot.slane %v4723, %v4750
        %v4752 = vcombine.high %v4730, %v4730
        %v4753 = vcombine.high %v4737, %v4737
        %v4754 = vcombine.high %v4744, %v4744
        %v4755 = vcombine.high %v4751, %v4751
        %v4756 = vcombine.high %v3463, %v3463
        %v4758 = vunpack.c.l.s4 1966171168
        %v4759 = vunpack.c.0.s8 %v4758
        %v4760 = vlaneseq
        %v4761 = vshrl.u32 %v4760, 7
        %v4762 = vsub.s32 %v4759, %v4761
        %v4763 = vrot.slane %v3463, %v4762
        %v4765 = vunpack.c.l.s4 1966171168
        %v4766 = vunpack.c.0.s8 %v4765
        %v4767 = vlaneseq
        %v4768 = vshrl.u32 %v4767, 7
        %v4769 = vsub.s32 %v4766, %v4768
        %v4770 = vrot.slane %v4756, %v4769
        %v4771 = vcombine.high %v4763, %v4763
        %v4772 = vcombine.high %v4770, %v4770
        %v4774 = vunpack.c.l.s4 1966171168
        %v4775 = vunpack.c.0.s8 %v4774
        %v4776 = vlaneseq
        %v4777 = vshrl.u32 %v4776, 7
        %v4778 = vsub.s32 %v4775, %v4777
        %v4779 = vrot.slane %v4763, %v4778
        %v4781 = vunpack.c.l.s4 1966171168
        %v4782 = vunpack.c.0.s8 %v4781
        %v4783 = vlaneseq
        %v4784 = vshrl.u32 %v4783, 7
        %v4785 = vsub.s32 %v4782, %v4784
        %v4786 = vrot.slane %v4770, %v4785
        %v4788 = vunpack.c.l.s4 1966171168
        %v4789 = vunpack.c.0.s8 %v4788
        %v4790 = vlaneseq
        %v4791 = vshrl.u32 %v4790, 7
        %v4792 = vsub.s32 %v4789, %v4791
        %v4793 = vrot.slane %v4771, %v4792
        %v4795 = vunpack.c.l.s4 1966171168
        %v4796 = vunpack.c.0.s8 %v4795
        %v4797 = vlaneseq
        %v4798 = vshrl.u32 %v4797, 7
        %v4799 = vsub.s32 %v4796, %v4798
        %v4800 = vrot.slane %v4772, %v4799
        %v4801 = vcombine.high %v4779, %v4779
        %v4802 = vcombine.high %v4786, %v4786
        %v4803 = vcombine.high %v4793, %v4793
        %v4804 = vcombine.high %v4800, %v4800
        %v4805 = vcombine.high %v3591, %v3591
        %v4807 = vunpack.c.l.s4 1966171168
        %v4808 = vunpack.c.0.s8 %v4807
        %v4809 = vlaneseq
        %v4810 = vshrl.u32 %v4809, 7
        %v4811 = vsub.s32 %v4808, %v4810
        %v4812 = vrot.slane %v3591, %v4811
        %v4814 = vunpack.c.l.s4 1966171168
        %v4815 = vunpack.c.0.s8 %v4814
        %v4816 = vlaneseq
        %v4817 = vshrl.u32 %v4816, 7
        %v4818 = vsub.s32 %v4815, %v4817
        %v4819 = vrot.slane %v4805, %v4818
        %v4820 = vcombine.high %v4812, %v4812
        %v4821 = vcombine.high %v4819, %v4819
        %v4823 = vunpack.c.l.s4 1966171168
        %v4824 = vunpack.c.0.s8 %v4823
        %v4825 = vlaneseq
        %v4826 = vshrl.u32 %v4825, 7
        %v4827 = vsub.s32 %v4824, %v4826
        %v4828 = vrot.slane %v4812, %v4827
        %v4830 = vunpack.c.l.s4 1966171168
        %v4831 = vunpack.c.0.s8 %v4830
        %v4832 = vlaneseq
        %v4833 = vshrl.u32 %v4832, 7
        %v4834 = vsub.s32 %v4831, %v4833
        %v4835 = vrot.slane %v4819, %v4834
        %v4837 = vunpack.c.l.s4 1966171168
        %v4838 = vunpack.c.0.s8 %v4837
        %v4839 = vlaneseq
        %v4840 = vshrl.u32 %v4839, 7
        %v4841 = vsub.s32 %v4838, %v4840
        %v4842 = vrot.slane %v4820, %v4841
        %v4844 = vunpack.c.l.s4 1966171168
        %v4845 = vunpack.c.0.s8 %v4844
        %v4846 = vlaneseq
        %v4847 = vshrl.u32 %v4846, 7
        %v4848 = vsub.s32 %v4845, %v4847
        %v4849 = vrot.slane %v4821, %v4848
        %v4850 = vcombine.high %v4828, %v4828
        %v4851 = vcombine.high %v4835, %v4835
        %v4852 = vcombine.high %v4842, %v4842
        %v4853 = vcombine.high %v4849, %v4849
        %v4854 = vcombine.high %v3719, %v3719
        %v4856 = vunpack.c.l.s4 1966171168
        %v4857 = vunpack.c.0.s8 %v4856
        %v4858 = vlaneseq
        %v4859 = vshrl.u32 %v4858, 7
        %v4860 = vsub.s32 %v4857, %v4859
        %v4861 = vrot.slane %v3719, %v4860
        %v4863 = vunpack.c.l.s4 1966171168
        %v4864 = vunpack.c.0.s8 %v4863
        %v4865 = vlaneseq
        %v4866 = vshrl.u32 %v4865, 7
        %v4867 = vsub.s32 %v4864, %v4866
        %v4868 = vrot.slane %v4854, %v4867
        %v4869 = vcombine.high %v4861, %v4861
        %v4870 = vcombine.high %v4868, %v4868
        %v4872 = vunpack.c.l.s4 1966171168
        %v4873 = vunpack.c.0.s8 %v4872
        %v4874 = vlaneseq
        %v4875 = vshrl.u32 %v4874, 7
        %v4876 = vsub.s32 %v4873, %v4875
        %v4877 = vrot.slane %v4861, %v4876
        %v4879 = vunpack.c.l.s4 1966171168
        %v4880 = vunpack.c.0.s8 %v4879
        %v4881 = vlaneseq
        %v4882 = vshrl.u32 %v4881, 7
        %v4883 = vsub.s32 %v4880, %v4882
        %v4884 = vrot.slane %v4868, %v4883
        %v4886 = vunpack.c.l.s4 1966171168
        %v4887 = vunpack.c.0.s8 %v4886
        %v4888 = vlaneseq
        %v4889 = vshrl.u32 %v4888, 7
        %v4890 = vsub.s32 %v4887, %v4889
        %v4891 = vrot.slane %v4869, %v4890
        %v4893 = vunpack.c.l.s4 1966171168
        %v4894 = vunpack.c.0.s8 %v4893
        %v4895 = vlaneseq
        %v4896 = vshrl.u32 %v4895, 7
        %v4897 = vsub.s32 %v4894, %v4896
        %v4898 = vrot.slane %v4870, %v4897
        %v4899 = vcombine.high %v4877, %v4877
        %v4900 = vcombine.high %v4884, %v4884
        %v4901 = vcombine.high %v4891, %v4891
        %v4902 = vcombine.high %v4898, %v4898
        %v4903 = vlaneseq
        %v4904 = vshrl.u32 %v4903, 7
        %v4905 = vsub.s32 0, %v4904
        %v4906 = vrot.slane %v4730, %v4905
        %v4907 = vlaneseq
        %v4908 = vshrl.u32 %v4907, 7
        %v4909 = vsub.s32 0, %v4908
        %v4910 = vrot.slane %v4744, %v4909
        %v4911 = vlaneseq
        %v4912 = vshrl.u32 %v4911, 7
        %v4913 = vsub.s32 0, %v4912
        %v4914 = vrot.slane %v4752, %v4913
        %v4915 = vlaneseq
        %v4916 = vshrl.u32 %v4915, 7
        %v4917 = vsub.s32 0, %v4916
        %v4918 = vrot.slane %v4754, %v4917
        %v4919 = vlaneseq
        %v4920 = vshrl.u32 %v4919, 7
        %v4921 = vsub.s32 0, %v4920
        %v4922 = vrot.slane %v4737, %v4921
        %v4923 = vlaneseq
        %v4924 = vshrl.u32 %v4923, 7
        %v4925 = vsub.s32 0, %v4924
        %v4926 = vrot.slane %v4751, %v4925
        %v4927 = vlaneseq
        %v4928 = vshrl.u32 %v4927, 7
        %v4929 = vsub.s32 0, %v4928
        %v4930 = vrot.slane %v4753, %v4929
        %v4931 = vlaneseq
        %v4932 = vshrl.u32 %v4931, 7
        %v4933 = vsub.s32 0, %v4932
        %v4934 = vrot.slane %v4755, %v4933
        %v4935 = vlaneseq
        %v4936 = vshrl.u32 %v4935, 7
        %v4937 = vsub.s32 0, %v4936
        %v4938 = vrot.slane %v4779, %v4937
        %v4939 = vlaneseq
        %v4940 = vshrl.u32 %v4939, 7
        %v4941 = vsub.s32 0, %v4940
        %v4942 = vrot.slane %v4793, %v4941
        %v4943 = vlaneseq
        %v4944 = vshrl.u32 %v4943, 7
        %v4945 = vsub.s32 0, %v4944
        %v4946 = vrot.slane %v4801, %v4945
        %v4947 = vlaneseq
        %v4948 = vshrl.u32 %v4947, 7
        %v4949 = vsub.s32 0, %v4948
        %v4950 = vrot.slane %v4803, %v4949
        %v4951 = vlaneseq
        %v4952 = vshrl.u32 %v4951, 7
        %v4953 = vsub.s32 0, %v4952
        %v4954 = vrot.slane %v4786, %v4953
        %v4955 = vlaneseq
        %v4956 = vshrl.u32 %v4955, 7
        %v4957 = vsub.s32 0, %v4956
        %v4958 = vrot.slane %v4800, %v4957
        %v4959 = vlaneseq
        %v4960 = vshrl.u32 %v4959, 7
        %v4961 = vsub.s32 0, %v4960
        %v4962 = vrot.slane %v4802, %v4961
        %v4963 = vlaneseq
        %v4964 = vshrl.u32 %v4963, 7
        %v4965 = vsub.s32 0, %v4964
        %v4966 = vrot.slane %v4804, %v4965
        %v4967 = vlaneseq
        %v4968 = vshrl.u32 %v4967, 7
        %v4969 = vsub.s32 0, %v4968
        %v4970 = vrot.slane %v4828, %v4969
        %v4971 = vlaneseq
        %v4972 = vshrl.u32 %v4971, 7
        %v4973 = vsub.s32 0, %v4972
        %v4974 = vrot.slane %v4842, %v4973
        %v4975 = vlaneseq
        %v4976 = vshrl.u32 %v4975, 7
        %v4977 = vsub.s32 0, %v4976
        %v4978 = vrot.slane %v4850, %v4977
        %v4979 = vlaneseq
        %v4980 = vshrl.u32 %v4979, 7
        %v4981 = vsub.s32 0, %v4980
        %v4982 = vrot.slane %v4852, %v4981
        %v4983 = vlaneseq
        %v4984 = vshrl.u32 %v4983, 7
        %v4985 = vsub.s32 0, %v4984
        %v4986 = vrot.slane %v4835, %v4985
        %v4987 = vlaneseq
        %v4988 = vshrl.u32 %v4987, 7
        %v4989 = vsub.s32 0, %v4988
        %v4990 = vrot.slane %v4849, %v4989
        %v4991 = vlaneseq
        %v4992 = vshrl.u32 %v4991, 7
        %v4993 = vsub.s32 0, %v4992
        %v4994 = vrot.slane %v4851, %v4993
        %v4995 = vlaneseq
        %v4996 = vshrl.u32 %v4995, 7
        %v4997 = vsub.s32 0, %v4996
        %v4998 = vrot.slane %v4853, %v4997
        %v4999 = vlaneseq
        %v5000 = vshrl.u32 %v4999, 7
        %v5001 = vsub.s32 0, %v5000
        %v5002 = vrot.slane %v4877, %v5001
        %v5003 = vlaneseq
        %v5004 = vshrl.u32 %v5003, 7
        %v5005 = vsub.s32 0, %v5004
        %v5006 = vrot.slane %v4891, %v5005
        %v5007 = vlaneseq
        %v5008 = vshrl.u32 %v5007, 7
        %v5009 = vsub.s32 0, %v5008
        %v5010 = vrot.slane %v4899, %v5009
        %v5011 = vlaneseq
        %v5012 = vshrl.u32 %v5011, 7
        %v5013 = vsub.s32 0, %v5012
        %v5014 = vrot.slane %v4901, %v5013
        %v5015 = vlaneseq
        %v5016 = vshrl.u32 %v5015, 7
        %v5017 = vsub.s32 0, %v5016
        %v5018 = vrot.slane %v4884, %v5017
        %v5019 = vlaneseq
        %v5020 = vshrl.u32 %v5019, 7
        %v5021 = vsub.s32 0, %v5020
        %v5022 = vrot.slane %v4898, %v5021
        %v5023 = vlaneseq
        %v5024 = vshrl.u32 %v5023, 7
        %v5025 = vsub.s32 0, %v5024
        %v5026 = vrot.slane %v4900, %v5025
        %v5027 = vlaneseq
        %v5028 = vshrl.u32 %v5027, 7
        %v5029 = vsub.s32 0, %v5028
        %v5030 = vrot.slane %v4902, %v5029
        %v5063 = vmul.f32 %v4906, %v3847
        %v5064 = vmul.f32 %v4910, %v3847
        %v5065 = vmul.f32 %v4914, %v3847
        %v5066 = vmul.f32 %v4918, %v3847
        %v5067 = vmul.f32 %v4922, %v3847
        %v5068 = vmul.f32 %v4926, %v3847
        %v5069 = vmul.f32 %v4930, %v3847
        %v5070 = vmul.f32 %v4934, %v3847
        %v5071 = vmul.f32 %v4938, %v3975
        %v5072 = vmul.f32 %v4942, %v3975
        %v5073 = vmul.f32 %v4946, %v3975
        %v5074 = vmul.f32 %v4950, %v3975
        %v5075 = vmul.f32 %v4954, %v3975
        %v5076 = vmul.f32 %v4958, %v3975
        %v5077 = vmul.f32 %v4962, %v3975
        %v5078 = vmul.f32 %v4966, %v3975
        %v5079 = vmul.f32 %v4970, %v4103
        %v5080 = vmul.f32 %v4974, %v4103
        %v5081 = vmul.f32 %v4978, %v4103
        %v5082 = vmul.f32 %v4982, %v4103
        %v5083 = vmul.f32 %v4986, %v4103
        %v5084 = vmul.f32 %v4990, %v4103
        %v5085 = vmul.f32 %v4994, %v4103
        %v5086 = vmul.f32 %v4998, %v4103
        %v5087 = vmul.f32 %v5002, %v4231
        %v5088 = vmul.f32 %v5006, %v4231
        %v5089 = vmul.f32 %v5010, %v4231
        %v5090 = vmul.f32 %v5014, %v4231
        %v5091 = vmul.f32 %v5018, %v4231
        %v5092 = vmul.f32 %v5022, %v4231
        %v5093 = vmul.f32 %v5026, %v4231
        %v5094 = vmul.f32 %v5030, %v4231
        %v5095 = vadd.f32 %v4671, %v5063
        %v5096 = vadd.f32 %v4672, %v5064
        %v5097 = vadd.f32 %v4673, %v5065
        %v5098 = vadd.f32 %v4674, %v5066
        %v5099 = vadd.f32 %v4675, %v5067
        %v5100 = vadd.f32 %v4676, %v5068
        %v5101 = vadd.f32 %v4677, %v5069
        %v5102 = vadd.f32 %v4678, %v5070
        %v5103 = vadd.f32 %v4679, %v5071
        %v5104 = vadd.f32 %v4680, %v5072
        %v5105 = vadd.f32 %v4681, %v5073
        %v5106 = vadd.f32 %v4682, %v5074
        %v5107 = vadd.f32 %v4683, %v5075
        %v5108 = vadd.f32 %v4684, %v5076
        %v5109 = vadd.f32 %v4685, %v5077
        %v5110 = vadd.f32 %v4686, %v5078
        %v5111 = vadd.f32 %v4687, %v5079
        %v5112 = vadd.f32 %v4688, %v5080
        %v5113 = vadd.f32 %v4689, %v5081
        %v5114 = vadd.f32 %v4690, %v5082
        %v5115 = vadd.f32 %v4691, %v5083
        %v5116 = vadd.f32 %v4692, %v5084
        %v5117 = vadd.f32 %v4693, %v5085
        %v5118 = vadd.f32 %v4694, %v5086
        %v5119 = vadd.f32 %v4695, %v5087
        %v5120 = vadd.f32 %v4696, %v5088
        %v5121 = vadd.f32 %v4697, %v5089
        %v5122 = vadd.f32 %v4698, %v5090
        %v5123 = vadd.f32 %v4699, %v5091
        %v5124 = vadd.f32 %v4700, %v5092
        %v5125 = vadd.f32 %v4701, %v5093
        %v5126 = vadd.f32 %v4702, %v5094
        %v5131 = vcombine.high %v3367, %v3367
        %v5133 = vunpack.c.l.s4 1966171168
        %v5134 = vunpack.c.0.s8 %v5133
        %v5135 = vlaneseq
        %v5136 = vshrl.u32 %v5135, 7
        %v5137 = vsub.s32 %v5134, %v5136
        %v5138 = vrot.slane %v3367, %v5137
        %v5140 = vunpack.c.l.s4 1966171168
        %v5141 = vunpack.c.0.s8 %v5140
        %v5142 = vlaneseq
        %v5143 = vshrl.u32 %v5142, 7
        %v5144 = vsub.s32 %v5141, %v5143
        %v5145 = vrot.slane %v5131, %v5144
        %v5146 = vcombine.high %v5138, %v5138
        %v5147 = vcombine.high %v5145, %v5145
        %v5149 = vunpack.c.l.s4 1966171168
        %v5150 = vunpack.c.0.s8 %v5149
        %v5151 = vlaneseq
        %v5152 = vshrl.u32 %v5151, 7
        %v5153 = vsub.s32 %v5150, %v5152
        %v5154 = vrot.slane %v5138, %v5153
        %v5156 = vunpack.c.l.s4 1966171168
        %v5157 = vunpack.c.0.s8 %v5156
        %v5158 = vlaneseq
        %v5159 = vshrl.u32 %v5158, 7
        %v5160 = vsub.s32 %v5157, %v5159
        %v5161 = vrot.slane %v5145, %v5160
        %v5163 = vunpack.c.l.s4 1966171168
        %v5164 = vunpack.c.0.s8 %v5163
        %v5165 = vlaneseq
        %v5166 = vshrl.u32 %v5165, 7
        %v5167 = vsub.s32 %v5164, %v5166
        %v5168 = vrot.slane %v5146, %v5167
        %v5170 = vunpack.c.l.s4 1966171168
        %v5171 = vunpack.c.0.s8 %v5170
        %v5172 = vlaneseq
        %v5173 = vshrl.u32 %v5172, 7
        %v5174 = vsub.s32 %v5171, %v5173
        %v5175 = vrot.slane %v5147, %v5174
        %v5176 = vcombine.high %v5154, %v5154
        %v5177 = vcombine.high %v5161, %v5161
        %v5178 = vcombine.high %v5168, %v5168
        %v5179 = vcombine.high %v5175, %v5175
        %v5180 = vcombine.high %v3495, %v3495
        %v5182 = vunpack.c.l.s4 1966171168
        %v5183 = vunpack.c.0.s8 %v5182
        %v5184 = vlaneseq
        %v5185 = vshrl.u32 %v5184, 7
        %v5186 = vsub.s32 %v5183, %v5185
        %v5187 = vrot.slane %v3495, %v5186
        %v5189 = vunpack.c.l.s4 1966171168
        %v5190 = vunpack.c.0.s8 %v5189
        %v5191 = vlaneseq
        %v5192 = vshrl.u32 %v5191, 7
        %v5193 = vsub.s32 %v5190, %v5192
        %v5194 = vrot.slane %v5180, %v5193
        %v5195 = vcombine.high %v5187, %v5187
        %v5196 = vcombine.high %v5194, %v5194
        %v5198 = vunpack.c.l.s4 1966171168
        %v5199 = vunpack.c.0.s8 %v5198
        %v5200 = vlaneseq
        %v5201 = vshrl.u32 %v5200, 7
        %v5202 = vsub.s32 %v5199, %v5201
        %v5203 = vrot.slane %v5187, %v5202
        %v5205 = vunpack.c.l.s4 1966171168
        %v5206 = vunpack.c.0.s8 %v5205
        %v5207 = vlaneseq
        %v5208 = vshrl.u32 %v5207, 7
        %v5209 = vsub.s32 %v5206, %v5208
        %v5210 = vrot.slane %v5194, %v5209
        %v5212 = vunpack.c.l.s4 1966171168
        %v5213 = vunpack.c.0.s8 %v5212
        %v5214 = vlaneseq
        %v5215 = vshrl.u32 %v5214, 7
        %v5216 = vsub.s32 %v5213, %v5215
        %v5217 = vrot.slane %v5195, %v5216
        %v5219 = vunpack.c.l.s4 1966171168
        %v5220 = vunpack.c.0.s8 %v5219
        %v5221 = vlaneseq
        %v5222 = vshrl.u32 %v5221, 7
        %v5223 = vsub.s32 %v5220, %v5222
        %v5224 = vrot.slane %v5196, %v5223
        %v5225 = vcombine.high %v5203, %v5203
        %v5226 = vcombine.high %v5210, %v5210
        %v5227 = vcombine.high %v5217, %v5217
        %v5228 = vcombine.high %v5224, %v5224
        %v5229 = vcombine.high %v3623, %v3623
        %v5231 = vunpack.c.l.s4 1966171168
        %v5232 = vunpack.c.0.s8 %v5231
        %v5233 = vlaneseq
        %v5234 = vshrl.u32 %v5233, 7
        %v5235 = vsub.s32 %v5232, %v5234
        %v5236 = vrot.slane %v3623, %v5235
        %v5238 = vunpack.c.l.s4 1966171168
        %v5239 = vunpack.c.0.s8 %v5238
        %v5240 = vlaneseq
        %v5241 = vshrl.u32 %v5240, 7
        %v5242 = vsub.s32 %v5239, %v5241
        %v5243 = vrot.slane %v5229, %v5242
        %v5244 = vcombine.high %v5236, %v5236
        %v5245 = vcombine.high %v5243, %v5243
        %v5247 = vunpack.c.l.s4 1966171168
        %v5248 = vunpack.c.0.s8 %v5247
        %v5249 = vlaneseq
        %v5250 = vshrl.u32 %v5249, 7
        %v5251 = vsub.s32 %v5248, %v5250
        %v5252 = vrot.slane %v5236, %v5251
        %v5254 = vunpack.c.l.s4 1966171168
        %v5255 = vunpack.c.0.s8 %v5254
        %v5256 = vlaneseq
        %v5257 = vshrl.u32 %v5256, 7
        %v5258 = vsub.s32 %v5255, %v5257
        %v5259 = vrot.slane %v5243, %v5258
        %v5261 = vunpack.c.l.s4 1966171168
        %v5262 = vunpack.c.0.s8 %v5261
        %v5263 = vlaneseq
        %v5264 = vshrl.u32 %v5263, 7
        %v5265 = vsub.s32 %v5262, %v5264
        %v5266 = vrot.slane %v5244, %v5265
        %v5268 = vunpack.c.l.s4 1966171168
        %v5269 = vunpack.c.0.s8 %v5268
        %v5270 = vlaneseq
        %v5271 = vshrl.u32 %v5270, 7
        %v5272 = vsub.s32 %v5269, %v5271
        %v5273 = vrot.slane %v5245, %v5272
        %v5274 = vcombine.high %v5252, %v5252
        %v5275 = vcombine.high %v5259, %v5259
        %v5276 = vcombine.high %v5266, %v5266
        %v5277 = vcombine.high %v5273, %v5273
        %v5278 = vcombine.high %v3751, %v3751
        %v5280 = vunpack.c.l.s4 1966171168
        %v5281 = vunpack.c.0.s8 %v5280
        %v5282 = vlaneseq
        %v5283 = vshrl.u32 %v5282, 7
        %v5284 = vsub.s32 %v5281, %v5283
        %v5285 = vrot.slane %v3751, %v5284
        %v5287 = vunpack.c.l.s4 1966171168
        %v5288 = vunpack.c.0.s8 %v5287
        %v5289 = vlaneseq
        %v5290 = vshrl.u32 %v5289, 7
        %v5291 = vsub.s32 %v5288, %v5290
        %v5292 = vrot.slane %v5278, %v5291
        %v5293 = vcombine.high %v5285, %v5285
        %v5294 = vcombine.high %v5292, %v5292
        %v5296 = vunpack.c.l.s4 1966171168
        %v5297 = vunpack.c.0.s8 %v5296
        %v5298 = vlaneseq
        %v5299 = vshrl.u32 %v5298, 7
        %v5300 = vsub.s32 %v5297, %v5299
        %v5301 = vrot.slane %v5285, %v5300
        %v5303 = vunpack.c.l.s4 1966171168
        %v5304 = vunpack.c.0.s8 %v5303
        %v5305 = vlaneseq
        %v5306 = vshrl.u32 %v5305, 7
        %v5307 = vsub.s32 %v5304, %v5306
        %v5308 = vrot.slane %v5292, %v5307
        %v5310 = vunpack.c.l.s4 1966171168
        %v5311 = vunpack.c.0.s8 %v5310
        %v5312 = vlaneseq
        %v5313 = vshrl.u32 %v5312, 7
        %v5314 = vsub.s32 %v5311, %v5313
        %v5315 = vrot.slane %v5293, %v5314
        %v5317 = vunpack.c.l.s4 1966171168
        %v5318 = vunpack.c.0.s8 %v5317
        %v5319 = vlaneseq
        %v5320 = vshrl.u32 %v5319, 7
        %v5321 = vsub.s32 %v5318, %v5320
        %v5322 = vrot.slane %v5294, %v5321
        %v5323 = vcombine.high %v5301, %v5301
        %v5324 = vcombine.high %v5308, %v5308
        %v5325 = vcombine.high %v5315, %v5315
        %v5326 = vcombine.high %v5322, %v5322
        %v5327 = vlaneseq
        %v5328 = vshrl.u32 %v5327, 7
        %v5329 = vsub.s32 0, %v5328
        %v5330 = vrot.slane %v5154, %v5329
        %v5331 = vlaneseq
        %v5332 = vshrl.u32 %v5331, 7
        %v5333 = vsub.s32 0, %v5332
        %v5334 = vrot.slane %v5168, %v5333
        %v5335 = vlaneseq
        %v5336 = vshrl.u32 %v5335, 7
        %v5337 = vsub.s32 0, %v5336
        %v5338 = vrot.slane %v5176, %v5337
        %v5339 = vlaneseq
        %v5340 = vshrl.u32 %v5339, 7
        %v5341 = vsub.s32 0, %v5340
        %v5342 = vrot.slane %v5178, %v5341
        %v5343 = vlaneseq
        %v5344 = vshrl.u32 %v5343, 7
        %v5345 = vsub.s32 0, %v5344
        %v5346 = vrot.slane %v5161, %v5345
        %v5347 = vlaneseq
        %v5348 = vshrl.u32 %v5347, 7
        %v5349 = vsub.s32 0, %v5348
        %v5350 = vrot.slane %v5175, %v5349
        %v5351 = vlaneseq
        %v5352 = vshrl.u32 %v5351, 7
        %v5353 = vsub.s32 0, %v5352
        %v5354 = vrot.slane %v5177, %v5353
        %v5355 = vlaneseq
        %v5356 = vshrl.u32 %v5355, 7
        %v5357 = vsub.s32 0, %v5356
        %v5358 = vrot.slane %v5179, %v5357
        %v5359 = vlaneseq
        %v5360 = vshrl.u32 %v5359, 7
        %v5361 = vsub.s32 0, %v5360
        %v5362 = vrot.slane %v5203, %v5361
        %v5363 = vlaneseq
        %v5364 = vshrl.u32 %v5363, 7
        %v5365 = vsub.s32 0, %v5364
        %v5366 = vrot.slane %v5217, %v5365
        %v5367 = vlaneseq
        %v5368 = vshrl.u32 %v5367, 7
        %v5369 = vsub.s32 0, %v5368
        %v5370 = vrot.slane %v5225, %v5369
        %v5371 = vlaneseq
        %v5372 = vshrl.u32 %v5371, 7
        %v5373 = vsub.s32 0, %v5372
        %v5374 = vrot.slane %v5227, %v5373
        %v5375 = vlaneseq
        %v5376 = vshrl.u32 %v5375, 7
        %v5377 = vsub.s32 0, %v5376
        %v5378 = vrot.slane %v5210, %v5377
        %v5379 = vlaneseq
        %v5380 = vshrl.u32 %v5379, 7
        %v5381 = vsub.s32 0, %v5380
        %v5382 = vrot.slane %v5224, %v5381
        %v5383 = vlaneseq
        %v5384 = vshrl.u32 %v5383, 7
        %v5385 = vsub.s32 0, %v5384
        %v5386 = vrot.slane %v5226, %v5385
        %v5387 = vlaneseq
        %v5388 = vshrl.u32 %v5387, 7
        %v5389 = vsub.s32 0, %v5388
        %v5390 = vrot.slane %v5228, %v5389
        %v5391 = vlaneseq
        %v5392 = vshrl.u32 %v5391, 7
        %v5393 = vsub.s32 0, %v5392
        %v5394 = vrot.slane %v5252, %v5393
        %v5395 = vlaneseq
        %v5396 = vshrl.u32 %v5395, 7
        %v5397 = vsub.s32 0, %v5396
        %v5398 = vrot.slane %v5266, %v5397
        %v5399 = vlaneseq
        %v5400 = vshrl.u32 %v5399, 7
        %v5401 = vsub.s32 0, %v5400
        %v5402 = vrot.slane %v5274, %v5401
        %v5403 = vlaneseq
        %v5404 = vshrl.u32 %v5403, 7
        %v5405 = vsub.s32 0, %v5404
        %v5406 = vrot.slane %v5276, %v5405
        %v5407 = vlaneseq
        %v5408 = vshrl.u32 %v5407, 7
        %v5409 = vsub.s32 0, %v5408
        %v5410 = vrot.slane %v5259, %v5409
        %v5411 = vlaneseq
        %v5412 = vshrl.u32 %v5411, 7
        %v5413 = vsub.s32 0, %v5412
        %v5414 = vrot.slane %v5273, %v5413
        %v5415 = vlaneseq
        %v5416 = vshrl.u32 %v5415, 7
        %v5417 = vsub.s32 0, %v5416
        %v5418 = vrot.slane %v5275, %v5417
        %v5419 = vlaneseq
        %v5420 = vshrl.u32 %v5419, 7
        %v5421 = vsub.s32 0, %v5420
        %v5422 = vrot.slane %v5277, %v5421
        %v5423 = vlaneseq
        %v5424 = vshrl.u32 %v5423, 7
        %v5425 = vsub.s32 0, %v5424
        %v5426 = vrot.slane %v5301, %v5425
        %v5427 = vlaneseq
        %v5428 = vshrl.u32 %v5427, 7
        %v5429 = vsub.s32 0, %v5428
        %v5430 = vrot.slane %v5315, %v5429
        %v5431 = vlaneseq
        %v5432 = vshrl.u32 %v5431, 7
        %v5433 = vsub.s32 0, %v5432
        %v5434 = vrot.slane %v5323, %v5433
        %v5435 = vlaneseq
        %v5436 = vshrl.u32 %v5435, 7
        %v5437 = vsub.s32 0, %v5436
        %v5438 = vrot.slane %v5325, %v5437
        %v5439 = vlaneseq
        %v5440 = vshrl.u32 %v5439, 7
        %v5441 = vsub.s32 0, %v5440
        %v5442 = vrot.slane %v5308, %v5441
        %v5443 = vlaneseq
        %v5444 = vshrl.u32 %v5443, 7
        %v5445 = vsub.s32 0, %v5444
        %v5446 = vrot.slane %v5322, %v5445
        %v5447 = vlaneseq
        %v5448 = vshrl.u32 %v5447, 7
        %v5449 = vsub.s32 0, %v5448
        %v5450 = vrot.slane %v5324, %v5449
        %v5451 = vlaneseq
        %v5452 = vshrl.u32 %v5451, 7
        %v5453 = vsub.s32 0, %v5452
        %v5454 = vrot.slane %v5326, %v5453
        %v5487 = vmul.f32 %v5330, %v3879
        %v5488 = vmul.f32 %v5334, %v3879
        %v5489 = vmul.f32 %v5338, %v3879
        %v5490 = vmul.f32 %v5342, %v3879
        %v5491 = vmul.f32 %v5346, %v3879
        %v5492 = vmul.f32 %v5350, %v3879
        %v5493 = vmul.f32 %v5354, %v3879
        %v5494 = vmul.f32 %v5358, %v3879
        %v5495 = vmul.f32 %v5362, %v4007
        %v5496 = vmul.f32 %v5366, %v4007
        %v5497 = vmul.f32 %v5370, %v4007
        %v5498 = vmul.f32 %v5374, %v4007
        %v5499 = vmul.f32 %v5378, %v4007
        %v5500 = vmul.f32 %v5382, %v4007
        %v5501 = vmul.f32 %v5386, %v4007
        %v5502 = vmul.f32 %v5390, %v4007
        %v5503 = vmul.f32 %v5394, %v4135
        %v5504 = vmul.f32 %v5398, %v4135
        %v5505 = vmul.f32 %v5402, %v4135
        %v5506 = vmul.f32 %v5406, %v4135
        %v5507 = vmul.f32 %v5410, %v4135
        %v5508 = vmul.f32 %v5414, %v4135
        %v5509 = vmul.f32 %v5418, %v4135
        %v5510 = vmul.f32 %v5422, %v4135
        %v5511 = vmul.f32 %v5426, %v4263
        %v5512 = vmul.f32 %v5430, %v4263
        %v5513 = vmul.f32 %v5434, %v4263
        %v5514 = vmul.f32 %v5438, %v4263
        %v5515 = vmul.f32 %v5442, %v4263
        %v5516 = vmul.f32 %v5446, %v4263
        %v5517 = vmul.f32 %v5450, %v4263
        %v5518 = vmul.f32 %v5454, %v4263
        %v5519 = vadd.f32 %v5095, %v5487
        %v5520 = vadd.f32 %v5096, %v5488
        %v5521 = vadd.f32 %v5097, %v5489
        %v5522 = vadd.f32 %v5098, %v5490
        %v5523 = vadd.f32 %v5099, %v5491
        %v5524 = vadd.f32 %v5100, %v5492
        %v5525 = vadd.f32 %v5101, %v5493
        %v5526 = vadd.f32 %v5102, %v5494
        %v5527 = vadd.f32 %v5103, %v5495
        %v5528 = vadd.f32 %v5104, %v5496
        %v5529 = vadd.f32 %v5105, %v5497
        %v5530 = vadd.f32 %v5106, %v5498
        %v5531 = vadd.f32 %v5107, %v5499
        %v5532 = vadd.f32 %v5108, %v5500
        %v5533 = vadd.f32 %v5109, %v5501
        %v5534 = vadd.f32 %v5110, %v5502
        %v5535 = vadd.f32 %v5111, %v5503
        %v5536 = vadd.f32 %v5112, %v5504
        %v5537 = vadd.f32 %v5113, %v5505
        %v5538 = vadd.f32 %v5114, %v5506
        %v5539 = vadd.f32 %v5115, %v5507
        %v5540 = vadd.f32 %v5116, %v5508
        %v5541 = vadd.f32 %v5117, %v5509
        %v5542 = vadd.f32 %v5118, %v5510
        %v5543 = vadd.f32 %v5119, %v5511
        %v5544 = vadd.f32 %v5120, %v5512
        %v5545 = vadd.f32 %v5121, %v5513
        %v5546 = vadd.f32 %v5122, %v5514
        %v5547 = vadd.f32 %v5123, %v5515
        %v5548 = vadd.f32 %v5124, %v5516
        %v5549 = vadd.f32 %v5125, %v5517
        %v5550 = vadd.f32 %v5126, %v5518
        %v5555 = vcombine.high %v3399, %v3399
        %v5557 = vunpack.c.l.s4 1966171168
        %v5558 = vunpack.c.0.s8 %v5557
        %v5559 = vlaneseq
        %v5560 = vshrl.u32 %v5559, 7
        %v5561 = vsub.s32 %v5558, %v5560
        %v5562 = vrot.slane %v3399, %v5561
        %v5564 = vunpack.c.l.s4 1966171168
        %v5565 = vunpack.c.0.s8 %v5564
        %v5566 = vlaneseq
        %v5567 = vshrl.u32 %v5566, 7
        %v5568 = vsub.s32 %v5565, %v5567
        %v5569 = vrot.slane %v5555, %v5568
        %v5570 = vcombine.high %v5562, %v5562
        %v5571 = vcombine.high %v5569, %v5569
        %v5573 = vunpack.c.l.s4 1966171168
        %v5574 = vunpack.c.0.s8 %v5573
        %v5575 = vlaneseq
        %v5576 = vshrl.u32 %v5575, 7
        %v5577 = vsub.s32 %v5574, %v5576
        %v5578 = vrot.slane %v5562, %v5577
        %v5580 = vunpack.c.l.s4 1966171168
        %v5581 = vunpack.c.0.s8 %v5580
        %v5582 = vlaneseq
        %v5583 = vshrl.u32 %v5582, 7
        %v5584 = vsub.s32 %v5581, %v5583
        %v5585 = vrot.slane %v5569, %v5584
        %v5587 = vunpack.c.l.s4 1966171168
        %v5588 = vunpack.c.0.s8 %v5587
        %v5589 = vlaneseq
        %v5590 = vshrl.u32 %v5589, 7
        %v5591 = vsub.s32 %v5588, %v5590
        %v5592 = vrot.slane %v5570, %v5591
        %v5594 = vunpack.c.l.s4 1966171168
        %v5595 = vunpack.c.0.s8 %v5594
        %v5596 = vlaneseq
        %v5597 = vshrl.u32 %v5596, 7
        %v5598 = vsub.s32 %v5595, %v5597
        %v5599 = vrot.slane %v5571, %v5598
        %v5600 = vcombine.high %v5578, %v5578
        %v5601 = vcombine.high %v5585, %v5585
        %v5602 = vcombine.high %v5592, %v5592
        %v5603 = vcombine.high %v5599, %v5599
        %v5604 = vcombine.high %v3527, %v3527
        %v5606 = vunpack.c.l.s4 1966171168
        %v5607 = vunpack.c.0.s8 %v5606
        %v5608 = vlaneseq
        %v5609 = vshrl.u32 %v5608, 7
        %v5610 = vsub.s32 %v5607, %v5609
        %v5611 = vrot.slane %v3527, %v5610
        %v5613 = vunpack.c.l.s4 1966171168
        %v5614 = vunpack.c.0.s8 %v5613
        %v5615 = vlaneseq
        %v5616 = vshrl.u32 %v5615, 7
        %v5617 = vsub.s32 %v5614, %v5616
        %v5618 = vrot.slane %v5604, %v5617
        %v5619 = vcombine.high %v5611, %v5611
        %v5620 = vcombine.high %v5618, %v5618
        %v5622 = vunpack.c.l.s4 1966171168
        %v5623 = vunpack.c.0.s8 %v5622
        %v5624 = vlaneseq
        %v5625 = vshrl.u32 %v5624, 7
        %v5626 = vsub.s32 %v5623, %v5625
        %v5627 = vrot.slane %v5611, %v5626
        %v5629 = vunpack.c.l.s4 1966171168
        %v5630 = vunpack.c.0.s8 %v5629
        %v5631 = vlaneseq
        %v5632 = vshrl.u32 %v5631, 7
        %v5633 = vsub.s32 %v5630, %v5632
        %v5634 = vrot.slane %v5618, %v5633
        %v5636 = vunpack.c.l.s4 1966171168
        %v5637 = vunpack.c.0.s8 %v5636
        %v5638 = vlaneseq
        %v5639 = vshrl.u32 %v5638, 7
        %v5640 = vsub.s32 %v5637, %v5639
        %v5641 = vrot.slane %v5619, %v5640
        %v5643 = vunpack.c.l.s4 1966171168
        %v5644 = vunpack.c.0.s8 %v5643
        %v5645 = vlaneseq
        %v5646 = vshrl.u32 %v5645, 7
        %v5647 = vsub.s32 %v5644, %v5646
        %v5648 = vrot.slane %v5620, %v5647
        %v5649 = vcombine.high %v5627, %v5627
        %v5650 = vcombine.high %v5634, %v5634
        %v5651 = vcombine.high %v5641, %v5641
        %v5652 = vcombine.high %v5648, %v5648
        %v5653 = vcombine.high %v3655, %v3655
        %v5655 = vunpack.c.l.s4 1966171168
        %v5656 = vunpack.c.0.s8 %v5655
        %v5657 = vlaneseq
        %v5658 = vshrl.u32 %v5657, 7
        %v5659 = vsub.s32 %v5656, %v5658
        %v5660 = vrot.slane %v3655, %v5659
        %v5662 = vunpack.c.l.s4 1966171168
        %v5663 = vunpack.c.0.s8 %v5662
        %v5664 = vlaneseq
        %v5665 = vshrl.u32 %v5664, 7
        %v5666 = vsub.s32 %v5663, %v5665
        %v5667 = vrot.slane %v5653, %v5666
        %v5668 = vcombine.high %v5660, %v5660
        %v5669 = vcombine.high %v5667, %v5667
        %v5671 = vunpack.c.l.s4 1966171168
        %v5672 = vunpack.c.0.s8 %v5671
        %v5673 = vlaneseq
        %v5674 = vshrl.u32 %v5673, 7
        %v5675 = vsub.s32 %v5672, %v5674
        %v5676 = vrot.slane %v5660, %v5675
        %v5678 = vunpack.c.l.s4 1966171168
        %v5679 = vunpack.c.0.s8 %v5678
        %v5680 = vlaneseq
        %v5681 = vshrl.u32 %v5680, 7
        %v5682 = vsub.s32 %v5679, %v5681
        %v5683 = vrot.slane %v5667, %v5682
        %v5685 = vunpack.c.l.s4 1966171168
        %v5686 = vunpack.c.0.s8 %v5685
        %v5687 = vlaneseq
        %v5688 = vshrl.u32 %v5687, 7
        %v5689 = vsub.s32 %v5686, %v5688
        %v5690 = vrot.slane %v5668, %v5689
        %v5692 = vunpack.c.l.s4 1966171168
        %v5693 = vunpack.c.0.s8 %v5692
        %v5694 = vlaneseq
        %v5695 = vshrl.u32 %v5694, 7
        %v5696 = vsub.s32 %v5693, %v5695
        %v5697 = vrot.slane %v5669, %v5696
        %v5698 = vcombine.high %v5676, %v5676
        %v5699 = vcombine.high %v5683, %v5683
        %v5700 = vcombine.high %v5690, %v5690
        %v5701 = vcombine.high %v5697, %v5697
        %v5702 = vcombine.high %v3783, %v3783
        %v5704 = vunpack.c.l.s4 1966171168
        %v5705 = vunpack.c.0.s8 %v5704
        %v5706 = vlaneseq
        %v5707 = vshrl.u32 %v5706, 7
        %v5708 = vsub.s32 %v5705, %v5707
        %v5709 = vrot.slane %v3783, %v5708
        %v5711 = vunpack.c.l.s4 1966171168
        %v5712 = vunpack.c.0.s8 %v5711
        %v5713 = vlaneseq
        %v5714 = vshrl.u32 %v5713, 7
        %v5715 = vsub.s32 %v5712, %v5714
        %v5716 = vrot.slane %v5702, %v5715
        %v5717 = vcombine.high %v5709, %v5709
        %v5718 = vcombine.high %v5716, %v5716
        %v5720 = vunpack.c.l.s4 1966171168
        %v5721 = vunpack.c.0.s8 %v5720
        %v5722 = vlaneseq
        %v5723 = vshrl.u32 %v5722, 7
        %v5724 = vsub.s32 %v5721, %v5723
        %v5725 = vrot.slane %v5709, %v5724
        %v5727 = vunpack.c.l.s4 1966171168
        %v5728 = vunpack.c.0.s8 %v5727
        %v5729 = vlaneseq
        %v5730 = vshrl.u32 %v5729, 7
        %v5731 = vsub.s32 %v5728, %v5730
        %v5732 = vrot.slane %v5716, %v5731
        %v5734 = vunpack.c.l.s4 1966171168
        %v5735 = vunpack.c.0.s8 %v5734
        %v5736 = vlaneseq
        %v5737 = vshrl.u32 %v5736, 7
        %v5738 = vsub.s32 %v5735, %v5737
        %v5739 = vrot.slane %v5717, %v5738
        %v5741 = vunpack.c.l.s4 1966171168
        %v5742 = vunpack.c.0.s8 %v5741
        %v5743 = vlaneseq
        %v5744 = vshrl.u32 %v5743, 7
        %v5745 = vsub.s32 %v5742, %v5744
        %v5746 = vrot.slane %v5718, %v5745
        %v5747 = vcombine.high %v5725, %v5725
        %v5748 = vcombine.high %v5732, %v5732
        %v5749 = vcombine.high %v5739, %v5739
        %v5750 = vcombine.high %v5746, %v5746
        %v5751 = vlaneseq
        %v5752 = vshrl.u32 %v5751, 7
        %v5753 = vsub.s32 0, %v5752
        %v5754 = vrot.slane %v5578, %v5753
        %v5755 = vlaneseq
        %v5756 = vshrl.u32 %v5755, 7
        %v5757 = vsub.s32 0, %v5756
        %v5758 = vrot.slane %v5592, %v5757
        %v5759 = vlaneseq
        %v5760 = vshrl.u32 %v5759, 7
        %v5761 = vsub.s32 0, %v5760
        %v5762 = vrot.slane %v5600, %v5761
        %v5763 = vlaneseq
        %v5764 = vshrl.u32 %v5763, 7
        %v5765 = vsub.s32 0, %v5764
        %v5766 = vrot.slane %v5602, %v5765
        %v5767 = vlaneseq
        %v5768 = vshrl.u32 %v5767, 7
        %v5769 = vsub.s32 0, %v5768
        %v5770 = vrot.slane %v5585, %v5769
        %v5771 = vlaneseq
        %v5772 = vshrl.u32 %v5771, 7
        %v5773 = vsub.s32 0, %v5772
        %v5774 = vrot.slane %v5599, %v5773
        %v5775 = vlaneseq
        %v5776 = vshrl.u32 %v5775, 7
        %v5777 = vsub.s32 0, %v5776
        %v5778 = vrot.slane %v5601, %v5777
        %v5779 = vlaneseq
        %v5780 = vshrl.u32 %v5779, 7
        %v5781 = vsub.s32 0, %v5780
        %v5782 = vrot.slane %v5603, %v5781
        %v5783 = vlaneseq
        %v5784 = vshrl.u32 %v5783, 7
        %v5785 = vsub.s32 0, %v5784
        %v5786 = vrot.slane %v5627, %v5785
        %v5787 = vlaneseq
        %v5788 = vshrl.u32 %v5787, 7
        %v5789 = vsub.s32 0, %v5788
        %v5790 = vrot.slane %v5641, %v5789
        %v5791 = vlaneseq
        %v5792 = vshrl.u32 %v5791, 7
        %v5793 = vsub.s32 0, %v5792
        %v5794 = vrot.slane %v5649, %v5793
        %v5795 = vlaneseq
        %v5796 = vshrl.u32 %v5795, 7
        %v5797 = vsub.s32 0, %v5796
        %v5798 = vrot.slane %v5651, %v5797
        %v5799 = vlaneseq
        %v5800 = vshrl.u32 %v5799, 7
        %v5801 = vsub.s32 0, %v5800
        %v5802 = vrot.slane %v5634, %v5801
        %v5803 = vlaneseq
        %v5804 = vshrl.u32 %v5803, 7
        %v5805 = vsub.s32 0, %v5804
        %v5806 = vrot.slane %v5648, %v5805
        %v5807 = vlaneseq
        %v5808 = vshrl.u32 %v5807, 7
        %v5809 = vsub.s32 0, %v5808
        %v5810 = vrot.slane %v5650, %v5809
        %v5811 = vlaneseq
        %v5812 = vshrl.u32 %v5811, 7
        %v5813 = vsub.s32 0, %v5812
        %v5814 = vrot.slane %v5652, %v5813
        %v5815 = vlaneseq
        %v5816 = vshrl.u32 %v5815, 7
        %v5817 = vsub.s32 0, %v5816
        %v5818 = vrot.slane %v5676, %v5817
        %v5819 = vlaneseq
        %v5820 = vshrl.u32 %v5819, 7
        %v5821 = vsub.s32 0, %v5820
        %v5822 = vrot.slane %v5690, %v5821
        %v5823 = vlaneseq
        %v5824 = vshrl.u32 %v5823, 7
        %v5825 = vsub.s32 0, %v5824
        %v5826 = vrot.slane %v5698, %v5825
        %v5827 = vlaneseq
        %v5828 = vshrl.u32 %v5827, 7
        %v5829 = vsub.s32 0, %v5828
        %v5830 = vrot.slane %v5700, %v5829
        %v5831 = vlaneseq
        %v5832 = vshrl.u32 %v5831, 7
        %v5833 = vsub.s32 0, %v5832
        %v5834 = vrot.slane %v5683, %v5833
        %v5835 = vlaneseq
        %v5836 = vshrl.u32 %v5835, 7
        %v5837 = vsub.s32 0, %v5836
        %v5838 = vrot.slane %v5697, %v5837
        %v5839 = vlaneseq
        %v5840 = vshrl.u32 %v5839, 7
        %v5841 = vsub.s32 0, %v5840
        %v5842 = vrot.slane %v5699, %v5841
        %v5843 = vlaneseq
        %v5844 = vshrl.u32 %v5843, 7
        %v5845 = vsub.s32 0, %v5844
        %v5846 = vrot.slane %v5701, %v5845
        %v5847 = vlaneseq
        %v5848 = vshrl.u32 %v5847, 7
        %v5849 = vsub.s32 0, %v5848
        %v5850 = vrot.slane %v5725, %v5849
        %v5851 = vlaneseq
        %v5852 = vshrl.u32 %v5851, 7
        %v5853 = vsub.s32 0, %v5852
        %v5854 = vrot.slane %v5739, %v5853
        %v5855 = vlaneseq
        %v5856 = vshrl.u32 %v5855, 7
        %v5857 = vsub.s32 0, %v5856
        %v5858 = vrot.slane %v5747, %v5857
        %v5859 = vlaneseq
        %v5860 = vshrl.u32 %v5859, 7
        %v5861 = vsub.s32 0, %v5860
        %v5862 = vrot.slane %v5749, %v5861
        %v5863 = vlaneseq
        %v5864 = vshrl.u32 %v5863, 7
        %v5865 = vsub.s32 0, %v5864
        %v5866 = vrot.slane %v5732, %v5865
        %v5867 = vlaneseq
        %v5868 = vshrl.u32 %v5867, 7
        %v5869 = vsub.s32 0, %v5868
        %v5870 = vrot.slane %v5746, %v5869
        %v5871 = vlaneseq
        %v5872 = vshrl.u32 %v5871, 7
        %v5873 = vsub.s32 0, %v5872
        %v5874 = vrot.slane %v5748, %v5873
        %v5875 = vlaneseq
        %v5876 = vshrl.u32 %v5875, 7
        %v5877 = vsub.s32 0, %v5876
        %v5878 = vrot.slane %v5750, %v5877
        %v5911 = vmul.f32 %v5754, %v3911
        %v5912 = vmul.f32 %v5758, %v3911
        %v5913 = vmul.f32 %v5762, %v3911
        %v5914 = vmul.f32 %v5766, %v3911
        %v5915 = vmul.f32 %v5770, %v3911
        %v5916 = vmul.f32 %v5774, %v3911
        %v5917 = vmul.f32 %v5778, %v3911
        %v5918 = vmul.f32 %v5782, %v3911
        %v5919 = vmul.f32 %v5786, %v4039
        %v5920 = vmul.f32 %v5790, %v4039
        %v5921 = vmul.f32 %v5794, %v4039
        %v5922 = vmul.f32 %v5798, %v4039
        %v5923 = vmul.f32 %v5802, %v4039
        %v5924 = vmul.f32 %v5806, %v4039
        %v5925 = vmul.f32 %v5810, %v4039
        %v5926 = vmul.f32 %v5814, %v4039
        %v5927 = vmul.f32 %v5818, %v4167
        %v5928 = vmul.f32 %v5822, %v4167
        %v5929 = vmul.f32 %v5826, %v4167
        %v5930 = vmul.f32 %v5830, %v4167
        %v5931 = vmul.f32 %v5834, %v4167
        %v5932 = vmul.f32 %v5838, %v4167
        %v5933 = vmul.f32 %v5842, %v4167
        %v5934 = vmul.f32 %v5846, %v4167
        %v5935 = vmul.f32 %v5850, %v4295
        %v5936 = vmul.f32 %v5854, %v4295
        %v5937 = vmul.f32 %v5858, %v4295
        %v5938 = vmul.f32 %v5862, %v4295
        %v5939 = vmul.f32 %v5866, %v4295
        %v5940 = vmul.f32 %v5870, %v4295
        %v5941 = vmul.f32 %v5874, %v4295
        %v5942 = vmul.f32 %v5878, %v4295
        %v5943 = vadd.f32 %v5519, %v5911
        %v5944 = vadd.f32 %v5520, %v5912
        %v5945 = vadd.f32 %v5521, %v5913
        %v5946 = vadd.f32 %v5522, %v5914
        %v5947 = vadd.f32 %v5523, %v5915
        %v5948 = vadd.f32 %v5524, %v5916
        %v5949 = vadd.f32 %v5525, %v5917
        %v5950 = vadd.f32 %v5526, %v5918
        %v5951 = vadd.f32 %v5527, %v5919
        %v5952 = vadd.f32 %v5528, %v5920
        %v5953 = vadd.f32 %v5529, %v5921
        %v5954 = vadd.f32 %v5530, %v5922
        %v5955 = vadd.f32 %v5531, %v5923
        %v5956 = vadd.f32 %v5532, %v5924
        %v5957 = vadd.f32 %v5533, %v5925
        %v5958 = vadd.f32 %v5534, %v5926
        %v5959 = vadd.f32 %v5535, %v5927
        %v5960 = vadd.f32 %v5536, %v5928
        %v5961 = vadd.f32 %v5537, %v5929
        %v5962 = vadd.f32 %v5538, %v5930
        %v5963 = vadd.f32 %v5539, %v5931
        %v5964 = vadd.f32 %v5540, %v5932
        %v5965 = vadd.f32 %v5541, %v5933
        %v5966 = vadd.f32 %v5542, %v5934
        %v5967 = vadd.f32 %v5543, %v5935
        %v5968 = vadd.f32 %v5544, %v5936
        %v5969 = vadd.f32 %v5545, %v5937
        %v5970 = vadd.f32 %v5546, %v5938
        %v5971 = vadd.f32 %v5547, %v5939
        %v5972 = vadd.f32 %v5548, %v5940
        %v5973 = vadd.f32 %v5549, %v5941
        %v5974 = vadd.f32 %v5550, %v5942
        %vm5975 = vcmask 261120
        %v5976 = vsel %vm5975, %v5943, -inf
        %v5977 = vrot.slane %v5976, 4
        %v5978 = vmax.f32 %v5976, %v5977
        %v5979 = vrot.slane %v5978, 2
        %v5980 = vmax.f32 %v5978, %v5979
        %v5981 = vrot.slane %v5980, 1
        %v5982 = vmax.f32 %v5980, %v5981
        %v5983 = vsel %vm5975, %v5944, -inf
        %v5984 = vrot.slane %v5983, 4
        %v5985 = vmax.f32 %v5983, %v5984
        %v5986 = vrot.slane %v5985, 2
        %v5987 = vmax.f32 %v5985, %v5986
        %v5988 = vrot.slane %v5987, 1
        %v5989 = vmax.f32 %v5987, %v5988
        %v5990 = vsel %vm5975, %v5945, -inf
        %v5991 = vrot.slane %v5990, 4
        %v5992 = vmax.f32 %v5990, %v5991
        %v5993 = vrot.slane %v5992, 2
        %v5994 = vmax.f32 %v5992, %v5993
        %v5995 = vrot.slane %v5994, 1
        %v5996 = vmax.f32 %v5994, %v5995
        %v5997 = vsel %vm5975, %v5946, -inf
        %v5998 = vrot.slane %v5997, 4
        %v5999 = vmax.f32 %v5997, %v5998
        %v6000 = vrot.slane %v5999, 2
        %v6001 = vmax.f32 %v5999, %v6000
        %v6002 = vrot.slane %v6001, 1
        %v6003 = vmax.f32 %v6001, %v6002
        %v6004 = vsel %vm5975, %v5947, -inf
        %v6005 = vrot.slane %v6004, 4
        %v6006 = vmax.f32 %v6004, %v6005
        %v6007 = vrot.slane %v6006, 2
        %v6008 = vmax.f32 %v6006, %v6007
        %v6009 = vrot.slane %v6008, 1
        %v6010 = vmax.f32 %v6008, %v6009
        %v6011 = vsel %vm5975, %v5948, -inf
        %v6012 = vrot.slane %v6011, 4
        %v6013 = vmax.f32 %v6011, %v6012
        %v6014 = vrot.slane %v6013, 2
        %v6015 = vmax.f32 %v6013, %v6014
        %v6016 = vrot.slane %v6015, 1
        %v6017 = vmax.f32 %v6015, %v6016
        %v6018 = vsel %vm5975, %v5949, -inf
        %v6019 = vrot.slane %v6018, 4
        %v6020 = vmax.f32 %v6018, %v6019
        %v6021 = vrot.slane %v6020, 2
        %v6022 = vmax.f32 %v6020, %v6021
        %v6023 = vrot.slane %v6022, 1
        %v6024 = vmax.f32 %v6022, %v6023
        %v6025 = vsel %vm5975, %v5950, -inf
        %v6026 = vrot.slane %v6025, 4
        %v6027 = vmax.f32 %v6025, %v6026
        %v6028 = vrot.slane %v6027, 2
        %v6029 = vmax.f32 %v6027, %v6028
        %v6030 = vrot.slane %v6029, 1
        %v6031 = vmax.f32 %v6029, %v6030
        %v6032 = vsel %vm5975, %v5951, -inf
        %v6033 = vrot.slane %v6032, 4
        %v6034 = vmax.f32 %v6032, %v6033
        %v6035 = vrot.slane %v6034, 2
        %v6036 = vmax.f32 %v6034, %v6035
        %v6037 = vrot.slane %v6036, 1
        %v6038 = vmax.f32 %v6036, %v6037
        %v6039 = vsel %vm5975, %v5952, -inf
        %v6040 = vrot.slane %v6039, 4
        %v6041 = vmax.f32 %v6039, %v6040
        %v6042 = vrot.slane %v6041, 2
        %v6043 = vmax.f32 %v6041, %v6042
        %v6044 = vrot.slane %v6043, 1
        %v6045 = vmax.f32 %v6043, %v6044
        %v6046 = vsel %vm5975, %v5953, -inf
        %v6047 = vrot.slane %v6046, 4
        %v6048 = vmax.f32 %v6046, %v6047
        %v6049 = vrot.slane %v6048, 2
        %v6050 = vmax.f32 %v6048, %v6049
        %v6051 = vrot.slane %v6050, 1
        %v6052 = vmax.f32 %v6050, %v6051
        %v6053 = vsel %vm5975, %v5954, -inf
        %v6054 = vrot.slane %v6053, 4
        %v6055 = vmax.f32 %v6053, %v6054
        %v6056 = vrot.slane %v6055, 2
        %v6057 = vmax.f32 %v6055, %v6056
        %v6058 = vrot.slane %v6057, 1
        %v6059 = vmax.f32 %v6057, %v6058
        %v6060 = vsel %vm5975, %v5955, -inf
        %v6061 = vrot.slane %v6060, 4
        %v6062 = vmax.f32 %v6060, %v6061
        %v6063 = vrot.slane %v6062, 2
        %v6064 = vmax.f32 %v6062, %v6063
        %v6065 = vrot.slane %v6064, 1
        %v6066 = vmax.f32 %v6064, %v6065
        %v6067 = vsel %vm5975, %v5956, -inf
        %v6068 = vrot.slane %v6067, 4
        %v6069 = vmax.f32 %v6067, %v6068
        %v6070 = vrot.slane %v6069, 2
        %v6071 = vmax.f32 %v6069, %v6070
        %v6072 = vrot.slane %v6071, 1
        %v6073 = vmax.f32 %v6071, %v6072
        %v6074 = vsel %vm5975, %v5957, -inf
        %v6075 = vrot.slane %v6074, 4
        %v6076 = vmax.f32 %v6074, %v6075
        %v6077 = vrot.slane %v6076, 2
        %v6078 = vmax.f32 %v6076, %v6077
        %v6079 = vrot.slane %v6078, 1
        %v6080 = vmax.f32 %v6078, %v6079
        %v6081 = vsel %vm5975, %v5958, -inf
        %v6082 = vrot.slane %v6081, 4
        %v6083 = vmax.f32 %v6081, %v6082
        %v6084 = vrot.slane %v6083, 2
        %v6085 = vmax.f32 %v6083, %v6084
        %v6086 = vrot.slane %v6085, 1
        %v6087 = vmax.f32 %v6085, %v6086
        %v6088 = vsel %vm5975, %v5959, -inf
        %v6089 = vrot.slane %v6088, 4
        %v6090 = vmax.f32 %v6088, %v6089
        %v6091 = vrot.slane %v6090, 2
        %v6092 = vmax.f32 %v6090, %v6091
        %v6093 = vrot.slane %v6092, 1
        %v6094 = vmax.f32 %v6092, %v6093
        %v6095 = vsel %vm5975, %v5960, -inf
        %v6096 = vrot.slane %v6095, 4
        %v6097 = vmax.f32 %v6095, %v6096
        %v6098 = vrot.slane %v6097, 2
        %v6099 = vmax.f32 %v6097, %v6098
        %v6100 = vrot.slane %v6099, 1
        %v6101 = vmax.f32 %v6099, %v6100
        %v6102 = vsel %vm5975, %v5961, -inf
        %v6103 = vrot.slane %v6102, 4
        %v6104 = vmax.f32 %v6102, %v6103
        %v6105 = vrot.slane %v6104, 2
        %v6106 = vmax.f32 %v6104, %v6105
        %v6107 = vrot.slane %v6106, 1
        %v6108 = vmax.f32 %v6106, %v6107
        %v6109 = vsel %vm5975, %v5962, -inf
        %v6110 = vrot.slane %v6109, 4
        %v6111 = vmax.f32 %v6109, %v6110
        %v6112 = vrot.slane %v6111, 2
        %v6113 = vmax.f32 %v6111, %v6112
        %v6114 = vrot.slane %v6113, 1
        %v6115 = vmax.f32 %v6113, %v6114
        %v6116 = vsel %vm5975, %v5963, -inf
        %v6117 = vrot.slane %v6116, 4
        %v6118 = vmax.f32 %v6116, %v6117
        %v6119 = vrot.slane %v6118, 2
        %v6120 = vmax.f32 %v6118, %v6119
        %v6121 = vrot.slane %v6120, 1
        %v6122 = vmax.f32 %v6120, %v6121
        %v6123 = vsel %vm5975, %v5964, -inf
        %v6124 = vrot.slane %v6123, 4
        %v6125 = vmax.f32 %v6123, %v6124
        %v6126 = vrot.slane %v6125, 2
        %v6127 = vmax.f32 %v6125, %v6126
        %v6128 = vrot.slane %v6127, 1
        %v6129 = vmax.f32 %v6127, %v6128
        %v6130 = vsel %vm5975, %v5965, -inf
        %v6131 = vrot.slane %v6130, 4
        %v6132 = vmax.f32 %v6130, %v6131
        %v6133 = vrot.slane %v6132, 2
        %v6134 = vmax.f32 %v6132, %v6133
        %v6135 = vrot.slane %v6134, 1
        %v6136 = vmax.f32 %v6134, %v6135
        %v6137 = vsel %vm5975, %v5966, -inf
        %v6138 = vrot.slane %v6137, 4
        %v6139 = vmax.f32 %v6137, %v6138
        %v6140 = vrot.slane %v6139, 2
        %v6141 = vmax.f32 %v6139, %v6140
        %v6142 = vrot.slane %v6141, 1
        %v6143 = vmax.f32 %v6141, %v6142
        %v6144 = vsel %vm5975, %v5967, -inf
        %v6145 = vrot.slane %v6144, 4
        %v6146 = vmax.f32 %v6144, %v6145
        %v6147 = vrot.slane %v6146, 2
        %v6148 = vmax.f32 %v6146, %v6147
        %v6149 = vrot.slane %v6148, 1
        %v6150 = vmax.f32 %v6148, %v6149
        %v6151 = vsel %vm5975, %v5968, -inf
        %v6152 = vrot.slane %v6151, 4
        %v6153 = vmax.f32 %v6151, %v6152
        %v6154 = vrot.slane %v6153, 2
        %v6155 = vmax.f32 %v6153, %v6154
        %v6156 = vrot.slane %v6155, 1
        %v6157 = vmax.f32 %v6155, %v6156
        %v6158 = vsel %vm5975, %v5969, -inf
        %v6159 = vrot.slane %v6158, 4
        %v6160 = vmax.f32 %v6158, %v6159
        %v6161 = vrot.slane %v6160, 2
        %v6162 = vmax.f32 %v6160, %v6161
        %v6163 = vrot.slane %v6162, 1
        %v6164 = vmax.f32 %v6162, %v6163
        %v6165 = vsel %vm5975, %v5970, -inf
        %v6166 = vrot.slane %v6165, 4
        %v6167 = vmax.f32 %v6165, %v6166
        %v6168 = vrot.slane %v6167, 2
        %v6169 = vmax.f32 %v6167, %v6168
        %v6170 = vrot.slane %v6169, 1
        %v6171 = vmax.f32 %v6169, %v6170
        %v6172 = vsel %vm5975, %v5971, -inf
        %v6173 = vrot.slane %v6172, 4
        %v6174 = vmax.f32 %v6172, %v6173
        %v6175 = vrot.slane %v6174, 2
        %v6176 = vmax.f32 %v6174, %v6175
        %v6177 = vrot.slane %v6176, 1
        %v6178 = vmax.f32 %v6176, %v6177
        %v6179 = vsel %vm5975, %v5972, -inf
        %v6180 = vrot.slane %v6179, 4
        %v6181 = vmax.f32 %v6179, %v6180
        %v6182 = vrot.slane %v6181, 2
        %v6183 = vmax.f32 %v6181, %v6182
        %v6184 = vrot.slane %v6183, 1
        %v6185 = vmax.f32 %v6183, %v6184
        %v6186 = vsel %vm5975, %v5973, -inf
        %v6187 = vrot.slane %v6186, 4
        %v6188 = vmax.f32 %v6186, %v6187
        %v6189 = vrot.slane %v6188, 2
        %v6190 = vmax.f32 %v6188, %v6189
        %v6191 = vrot.slane %v6190, 1
        %v6192 = vmax.f32 %v6190, %v6191
        %v6193 = vsel %vm5975, %v5974, -inf
        %v6194 = vrot.slane %v6193, 4
        %v6195 = vmax.f32 %v6193, %v6194
        %v6196 = vrot.slane %v6195, 2
        %v6197 = vmax.f32 %v6195, %v6196
        %v6198 = vrot.slane %v6197, 1
        %v6199 = vmax.f32 %v6197, %v6198
        %v6200 = vsub.f32 %v5943, %v5982
        %v6201 = vsub.f32 %v5944, %v5989
        %v6202 = vsub.f32 %v5945, %v5996
        %v6203 = vsub.f32 %v5946, %v6003
        %v6204 = vsub.f32 %v5947, %v6010
        %v6205 = vsub.f32 %v5948, %v6017
        %v6206 = vsub.f32 %v5949, %v6024
        %v6207 = vsub.f32 %v5950, %v6031
        %v6208 = vsub.f32 %v5951, %v6038
        %v6209 = vsub.f32 %v5952, %v6045
        %v6210 = vsub.f32 %v5953, %v6052
        %v6211 = vsub.f32 %v5954, %v6059
        %v6212 = vsub.f32 %v5955, %v6066
        %v6213 = vsub.f32 %v5956, %v6073
        %v6214 = vsub.f32 %v5957, %v6080
        %v6215 = vsub.f32 %v5958, %v6087
        %v6216 = vsub.f32 %v5959, %v6094
        %v6217 = vsub.f32 %v5960, %v6101
        %v6218 = vsub.f32 %v5961, %v6108
        %v6219 = vsub.f32 %v5962, %v6115
        %v6220 = vsub.f32 %v5963, %v6122
        %v6221 = vsub.f32 %v5964, %v6129
        %v6222 = vsub.f32 %v5965, %v6136
        %v6223 = vsub.f32 %v5966, %v6143
        %v6224 = vsub.f32 %v5967, %v6150
        %v6225 = vsub.f32 %v5968, %v6157
        %v6226 = vsub.f32 %v5969, %v6164
        %v6227 = vsub.f32 %v5970, %v6171
        %v6228 = vsub.f32 %v5971, %v6178
        %v6229 = vsub.f32 %v5972, %v6185
        %v6230 = vsub.f32 %v5973, %v6192
        %v6231 = vsub.f32 %v5974, %v6199
        %v6232 = vmul.f32 %v6200, 1.442695
        %v6233 = vpow.pop %v6232
        %v6234 = vmul.f32 %v6201, 1.442695
        %v6235 = vpow.pop %v6234
        %v6236 = vmul.f32 %v6202, 1.442695
        %v6237 = vpow.pop %v6236
        %v6238 = vmul.f32 %v6203, 1.442695
        %v6239 = vpow.pop %v6238
        %v6240 = vmul.f32 %v6204, 1.442695
        %v6241 = vpow.pop %v6240
        %v6242 = vmul.f32 %v6205, 1.442695
        %v6243 = vpow.pop %v6242
        %v6244 = vmul.f32 %v6206, 1.442695
        %v6245 = vpow.pop %v6244
        %v6246 = vmul.f32 %v6207, 1.442695
        %v6247 = vpow.pop %v6246
        %v6248 = vmul.f32 %v6208, 1.442695
        %v6249 = vpow.pop %v6248
        %v6250 = vmul.f32 %v6209, 1.442695
        %v6251 = vpow.pop %v6250
        %v6252 = vmul.f32 %v6210, 1.442695
        %v6253 = vpow.pop %v6252
        %v6254 = vmul.f32 %v6211, 1.442695
        %v6255 = vpow.pop %v6254
        %v6256 = vmul.f32 %v6212, 1.442695
        %v6257 = vpow.pop %v6256
        %v6258 = vmul.f32 %v6213, 1.442695
        %v6259 = vpow.pop %v6258
        %v6260 = vmul.f32 %v6214, 1.442695
        %v6261 = vpow.pop %v6260
        %v6262 = vmul.f32 %v6215, 1.442695
        %v6263 = vpow.pop %v6262
        %v6264 = vmul.f32 %v6216, 1.442695
        %v6265 = vpow.pop %v6264
        %v6266 = vmul.f32 %v6217, 1.442695
        %v6267 = vpow.pop %v6266
        %v6268 = vmul.f32 %v6218, 1.442695
        %v6269 = vpow.pop %v6268
        %v6270 = vmul.f32 %v6219, 1.442695
        %v6271 = vpow.pop %v6270
        %v6272 = vmul.f32 %v6220, 1.442695
        %v6273 = vpow.pop %v6272
        %v6274 = vmul.f32 %v6221, 1.442695
        %v6275 = vpow.pop %v6274
        %v6276 = vmul.f32 %v6222, 1.442695
        %v6277 = vpow.pop %v6276
        %v6278 = vmul.f32 %v6223, 1.442695
        %v6279 = vpow.pop %v6278
        %v6280 = vmul.f32 %v6224, 1.442695
        %v6281 = vpow.pop %v6280
        %v6282 = vmul.f32 %v6225, 1.442695
        %v6283 = vpow.pop %v6282
        %v6284 = vmul.f32 %v6226, 1.442695
        %v6285 = vpow.pop %v6284
        %v6286 = vmul.f32 %v6227, 1.442695
        %v6287 = vpow.pop %v6286
        %v6288 = vmul.f32 %v6228, 1.442695
        %v6289 = vpow.pop %v6288
        %v6290 = vmul.f32 %v6229, 1.442695
        %v6291 = vpow.pop %v6290
        %v6292 = vmul.f32 %v6230, 1.442695
        %v6293 = vpow.pop %v6292
        %v6294 = vmul.f32 %v6231, 1.442695
        %v6295 = vpow.pop %v6294
        %v6296 = vsel %vm5975, %v6233, 0.0
        %v6297 = vrot.slane %v6296, 4
        %v6298 = vadd.f32 %v6296, %v6297
        %v6299 = vrot.slane %v6298, 2
        %v6300 = vadd.f32 %v6298, %v6299
        %v6301 = vrot.slane %v6300, 1
        %v6302 = vadd.f32 %v6300, %v6301
        %v6303 = vsel %vm5975, %v6235, 0.0
        %v6304 = vrot.slane %v6303, 4
        %v6305 = vadd.f32 %v6303, %v6304
        %v6306 = vrot.slane %v6305, 2
        %v6307 = vadd.f32 %v6305, %v6306
        %v6308 = vrot.slane %v6307, 1
        %v6309 = vadd.f32 %v6307, %v6308
        %v6310 = vsel %vm5975, %v6237, 0.0
        %v6311 = vrot.slane %v6310, 4
        %v6312 = vadd.f32 %v6310, %v6311
        %v6313 = vrot.slane %v6312, 2
        %v6314 = vadd.f32 %v6312, %v6313
        %v6315 = vrot.slane %v6314, 1
        %v6316 = vadd.f32 %v6314, %v6315
        %v6317 = vsel %vm5975, %v6239, 0.0
        %v6318 = vrot.slane %v6317, 4
        %v6319 = vadd.f32 %v6317, %v6318
        %v6320 = vrot.slane %v6319, 2
        %v6321 = vadd.f32 %v6319, %v6320
        %v6322 = vrot.slane %v6321, 1
        %v6323 = vadd.f32 %v6321, %v6322
        %v6324 = vsel %vm5975, %v6241, 0.0
        %v6325 = vrot.slane %v6324, 4
        %v6326 = vadd.f32 %v6324, %v6325
        %v6327 = vrot.slane %v6326, 2
        %v6328 = vadd.f32 %v6326, %v6327
        %v6329 = vrot.slane %v6328, 1
        %v6330 = vadd.f32 %v6328, %v6329
        %v6331 = vsel %vm5975, %v6243, 0.0
        %v6332 = vrot.slane %v6331, 4
        %v6333 = vadd.f32 %v6331, %v6332
        %v6334 = vrot.slane %v6333, 2
        %v6335 = vadd.f32 %v6333, %v6334
        %v6336 = vrot.slane %v6335, 1
        %v6337 = vadd.f32 %v6335, %v6336
        %v6338 = vsel %vm5975, %v6245, 0.0
        %v6339 = vrot.slane %v6338, 4
        %v6340 = vadd.f32 %v6338, %v6339
        %v6341 = vrot.slane %v6340, 2
        %v6342 = vadd.f32 %v6340, %v6341
        %v6343 = vrot.slane %v6342, 1
        %v6344 = vadd.f32 %v6342, %v6343
        %v6345 = vsel %vm5975, %v6247, 0.0
        %v6346 = vrot.slane %v6345, 4
        %v6347 = vadd.f32 %v6345, %v6346
        %v6348 = vrot.slane %v6347, 2
        %v6349 = vadd.f32 %v6347, %v6348
        %v6350 = vrot.slane %v6349, 1
        %v6351 = vadd.f32 %v6349, %v6350
        %v6352 = vsel %vm5975, %v6249, 0.0
        %v6353 = vrot.slane %v6352, 4
        %v6354 = vadd.f32 %v6352, %v6353
        %v6355 = vrot.slane %v6354, 2
        %v6356 = vadd.f32 %v6354, %v6355
        %v6357 = vrot.slane %v6356, 1
        %v6358 = vadd.f32 %v6356, %v6357
        %v6359 = vsel %vm5975, %v6251, 0.0
        %v6360 = vrot.slane %v6359, 4
        %v6361 = vadd.f32 %v6359, %v6360
        %v6362 = vrot.slane %v6361, 2
        %v6363 = vadd.f32 %v6361, %v6362
        %v6364 = vrot.slane %v6363, 1
        %v6365 = vadd.f32 %v6363, %v6364
        %v6366 = vsel %vm5975, %v6253, 0.0
        %v6367 = vrot.slane %v6366, 4
        %v6368 = vadd.f32 %v6366, %v6367
        %v6369 = vrot.slane %v6368, 2
        %v6370 = vadd.f32 %v6368, %v6369
        %v6371 = vrot.slane %v6370, 1
        %v6372 = vadd.f32 %v6370, %v6371
        %v6373 = vsel %vm5975, %v6255, 0.0
        %v6374 = vrot.slane %v6373, 4
        %v6375 = vadd.f32 %v6373, %v6374
        %v6376 = vrot.slane %v6375, 2
        %v6377 = vadd.f32 %v6375, %v6376
        %v6378 = vrot.slane %v6377, 1
        %v6379 = vadd.f32 %v6377, %v6378
        %v6380 = vsel %vm5975, %v6257, 0.0
        %v6381 = vrot.slane %v6380, 4
        %v6382 = vadd.f32 %v6380, %v6381
        %v6383 = vrot.slane %v6382, 2
        %v6384 = vadd.f32 %v6382, %v6383
        %v6385 = vrot.slane %v6384, 1
        %v6386 = vadd.f32 %v6384, %v6385
        %v6387 = vsel %vm5975, %v6259, 0.0
        %v6388 = vrot.slane %v6387, 4
        %v6389 = vadd.f32 %v6387, %v6388
        %v6390 = vrot.slane %v6389, 2
        %v6391 = vadd.f32 %v6389, %v6390
        %v6392 = vrot.slane %v6391, 1
        %v6393 = vadd.f32 %v6391, %v6392
        %v6394 = vsel %vm5975, %v6261, 0.0
        %v6395 = vrot.slane %v6394, 4
        %v6396 = vadd.f32 %v6394, %v6395
        %v6397 = vrot.slane %v6396, 2
        %v6398 = vadd.f32 %v6396, %v6397
        %v6399 = vrot.slane %v6398, 1
        %v6400 = vadd.f32 %v6398, %v6399
        %v6401 = vsel %vm5975, %v6263, 0.0
        %v6402 = vrot.slane %v6401, 4
        %v6403 = vadd.f32 %v6401, %v6402
        %v6404 = vrot.slane %v6403, 2
        %v6405 = vadd.f32 %v6403, %v6404
        %v6406 = vrot.slane %v6405, 1
        %v6407 = vadd.f32 %v6405, %v6406
        %v6408 = vsel %vm5975, %v6265, 0.0
        %v6409 = vrot.slane %v6408, 4
        %v6410 = vadd.f32 %v6408, %v6409
        %v6411 = vrot.slane %v6410, 2
        %v6412 = vadd.f32 %v6410, %v6411
        %v6413 = vrot.slane %v6412, 1
        %v6414 = vadd.f32 %v6412, %v6413
        %v6415 = vsel %vm5975, %v6267, 0.0
        %v6416 = vrot.slane %v6415, 4
        %v6417 = vadd.f32 %v6415, %v6416
        %v6418 = vrot.slane %v6417, 2
        %v6419 = vadd.f32 %v6417, %v6418
        %v6420 = vrot.slane %v6419, 1
        %v6421 = vadd.f32 %v6419, %v6420
        %v6422 = vsel %vm5975, %v6269, 0.0
        %v6423 = vrot.slane %v6422, 4
        %v6424 = vadd.f32 %v6422, %v6423
        %v6425 = vrot.slane %v6424, 2
        %v6426 = vadd.f32 %v6424, %v6425
        %v6427 = vrot.slane %v6426, 1
        %v6428 = vadd.f32 %v6426, %v6427
        %v6429 = vsel %vm5975, %v6271, 0.0
        %v6430 = vrot.slane %v6429, 4
        %v6431 = vadd.f32 %v6429, %v6430
        %v6432 = vrot.slane %v6431, 2
        %v6433 = vadd.f32 %v6431, %v6432
        %v6434 = vrot.slane %v6433, 1
        %v6435 = vadd.f32 %v6433, %v6434
        %v6436 = vsel %vm5975, %v6273, 0.0
        %v6437 = vrot.slane %v6436, 4
        %v6438 = vadd.f32 %v6436, %v6437
        %v6439 = vrot.slane %v6438, 2
        %v6440 = vadd.f32 %v6438, %v6439
        %v6441 = vrot.slane %v6440, 1
        %v6442 = vadd.f32 %v6440, %v6441
        %v6443 = vsel %vm5975, %v6275, 0.0
        %v6444 = vrot.slane %v6443, 4
        %v6445 = vadd.f32 %v6443, %v6444
        %v6446 = vrot.slane %v6445, 2
        %v6447 = vadd.f32 %v6445, %v6446
        %v6448 = vrot.slane %v6447, 1
        %v6449 = vadd.f32 %v6447, %v6448
        %v6450 = vsel %vm5975, %v6277, 0.0
        %v6451 = vrot.slane %v6450, 4
        %v6452 = vadd.f32 %v6450, %v6451
        %v6453 = vrot.slane %v6452, 2
        %v6454 = vadd.f32 %v6452, %v6453
        %v6455 = vrot.slane %v6454, 1
        %v6456 = vadd.f32 %v6454, %v6455
        %v6457 = vsel %vm5975, %v6279, 0.0
        %v6458 = vrot.slane %v6457, 4
        %v6459 = vadd.f32 %v6457, %v6458
        %v6460 = vrot.slane %v6459, 2
        %v6461 = vadd.f32 %v6459, %v6460
        %v6462 = vrot.slane %v6461, 1
        %v6463 = vadd.f32 %v6461, %v6462
        %v6464 = vsel %vm5975, %v6281, 0.0
        %v6465 = vrot.slane %v6464, 4
        %v6466 = vadd.f32 %v6464, %v6465
        %v6467 = vrot.slane %v6466, 2
        %v6468 = vadd.f32 %v6466, %v6467
        %v6469 = vrot.slane %v6468, 1
        %v6470 = vadd.f32 %v6468, %v6469
        %v6471 = vsel %vm5975, %v6283, 0.0
        %v6472 = vrot.slane %v6471, 4
        %v6473 = vadd.f32 %v6471, %v6472
        %v6474 = vrot.slane %v6473, 2
        %v6475 = vadd.f32 %v6473, %v6474
        %v6476 = vrot.slane %v6475, 1
        %v6477 = vadd.f32 %v6475, %v6476
        %v6478 = vsel %vm5975, %v6285, 0.0
        %v6479 = vrot.slane %v6478, 4
        %v6480 = vadd.f32 %v6478, %v6479
        %v6481 = vrot.slane %v6480, 2
        %v6482 = vadd.f32 %v6480, %v6481
        %v6483 = vrot.slane %v6482, 1
        %v6484 = vadd.f32 %v6482, %v6483
        %v6485 = vsel %vm5975, %v6287, 0.0
        %v6486 = vrot.slane %v6485, 4
        %v6487 = vadd.f32 %v6485, %v6486
        %v6488 = vrot.slane %v6487, 2
        %v6489 = vadd.f32 %v6487, %v6488
        %v6490 = vrot.slane %v6489, 1
        %v6491 = vadd.f32 %v6489, %v6490
        %v6492 = vsel %vm5975, %v6289, 0.0
        %v6493 = vrot.slane %v6492, 4
        %v6494 = vadd.f32 %v6492, %v6493
        %v6495 = vrot.slane %v6494, 2
        %v6496 = vadd.f32 %v6494, %v6495
        %v6497 = vrot.slane %v6496, 1
        %v6498 = vadd.f32 %v6496, %v6497
        %v6499 = vsel %vm5975, %v6291, 0.0
        %v6500 = vrot.slane %v6499, 4
        %v6501 = vadd.f32 %v6499, %v6500
        %v6502 = vrot.slane %v6501, 2
        %v6503 = vadd.f32 %v6501, %v6502
        %v6504 = vrot.slane %v6503, 1
        %v6505 = vadd.f32 %v6503, %v6504
        %v6506 = vsel %vm5975, %v6293, 0.0
        %v6507 = vrot.slane %v6506, 4
        %v6508 = vadd.f32 %v6506, %v6507
        %v6509 = vrot.slane %v6508, 2
        %v6510 = vadd.f32 %v6508, %v6509
        %v6511 = vrot.slane %v6510, 1
        %v6512 = vadd.f32 %v6510, %v6511
        %v6513 = vsel %vm5975, %v6295, 0.0
        %v6514 = vrot.slane %v6513, 4
        %v6515 = vadd.f32 %v6513, %v6514
        %v6516 = vrot.slane %v6515, 2
        %v6517 = vadd.f32 %v6515, %v6516
        %v6518 = vrot.slane %v6517, 1
        %v6519 = vadd.f32 %v6517, %v6518
        %v6520 = vrcp.pop %v6302
        %v6521 = vrcp.pop %v6309
        %v6522 = vrcp.pop %v6316
        %v6523 = vrcp.pop %v6323
        %v6524 = vrcp.pop %v6330
        %v6525 = vrcp.pop %v6337
        %v6526 = vrcp.pop %v6344
        %v6527 = vrcp.pop %v6351
        %v6528 = vrcp.pop %v6358
        %v6529 = vrcp.pop %v6365
        %v6530 = vrcp.pop %v6372
        %v6531 = vrcp.pop %v6379
        %v6532 = vrcp.pop %v6386
        %v6533 = vrcp.pop %v6393
        %v6534 = vrcp.pop %v6400
        %v6535 = vrcp.pop %v6407
        %v6536 = vrcp.pop %v6414
        %v6537 = vrcp.pop %v6421
        %v6538 = vrcp.pop %v6428
        %v6539 = vrcp.pop %v6435
        %v6540 = vrcp.pop %v6442
        %v6541 = vrcp.pop %v6449
        %v6542 = vrcp.pop %v6456
        %v6543 = vrcp.pop %v6463
        %v6544 = vrcp.pop %v6470
        %v6545 = vrcp.pop %v6477
        %v6546 = vrcp.pop %v6484
        %v6547 = vrcp.pop %v6491
        %v6548 = vrcp.pop %v6498
        %v6549 = vrcp.pop %v6505
        %v6550 = vrcp.pop %v6512
        %v6551 = vrcp.pop %v6519
        %v6552 = vmul.f32 %v6233, %v6520
        %v6553 = vmul.f32 %v6235, %v6521
        %v6554 = vmul.f32 %v6237, %v6522
        %v6555 = vmul.f32 %v6239, %v6523
        %v6556 = vmul.f32 %v6241, %v6524
        %v6557 = vmul.f32 %v6243, %v6525
        %v6558 = vmul.f32 %v6245, %v6526
        %v6559 = vmul.f32 %v6247, %v6527
        %v6560 = vmul.f32 %v6249, %v6528
        %v6561 = vmul.f32 %v6251, %v6529
        %v6562 = vmul.f32 %v6253, %v6530
        %v6563 = vmul.f32 %v6255, %v6531
        %v6564 = vmul.f32 %v6257, %v6532
        %v6565 = vmul.f32 %v6259, %v6533
        %v6566 = vmul.f32 %v6261, %v6534
        %v6567 = vmul.f32 %v6263, %v6535
        %v6568 = vmul.f32 %v6265, %v6536
        %v6569 = vmul.f32 %v6267, %v6537
        %v6570 = vmul.f32 %v6269, %v6538
        %v6571 = vmul.f32 %v6271, %v6539
        %v6572 = vmul.f32 %v6273, %v6540
        %v6573 = vmul.f32 %v6275, %v6541
        %v6574 = vmul.f32 %v6277, %v6542
        %v6575 = vmul.f32 %v6279, %v6543
        %v6576 = vmul.f32 %v6281, %v6544
        %v6577 = vmul.f32 %v6283, %v6545
        %v6578 = vmul.f32 %v6285, %v6546
        %v6579 = vmul.f32 %v6287, %v6547
        %v6580 = vmul.f32 %v6289, %v6548
        %v6581 = vmul.f32 %v6291, %v6549
        %v6582 = vmul.f32 %v6293, %v6550
        %v6583 = vmul.f32 %v6295, %v6551
        %6586 = vrot.lane.b32.xlu0 %v733, 120
        %v6587 = vpop.permute.xlu0 %6586
        %6588 = vrot.lane.b32.xlu0 %v739, 120
        %v6589 = vpop.permute.xlu0 %6588
        %6592 = vrot.lane.b32.xlu0 %v733, 112
        %v6593 = vpop.permute.xlu0 %6592
        %6594 = vrot.lane.b32.xlu0 %v739, 112
        %v6595 = vpop.permute.xlu0 %6594
        %6598 = vrot.lane.b32.xlu0 %v733, 104
        %v6599 = vpop.permute.xlu0 %6598
        %6600 = vrot.lane.b32.xlu0 %v739, 104
        %v6601 = vpop.permute.xlu0 %6600
        %6604 = vrot.lane.b32.xlu0 %v733, 96
        %v6605 = vpop.permute.xlu0 %6604
        %6606 = vrot.lane.b32.xlu0 %v739, 96
        %v6607 = vpop.permute.xlu0 %6606
        %6610 = vrot.lane.b32.xlu0 %v733, 88
        %v6611 = vpop.permute.xlu0 %6610
        %6612 = vrot.lane.b32.xlu0 %v739, 88
        %v6613 = vpop.permute.xlu0 %6612
        %6616 = vrot.lane.b32.xlu0 %v733, 80
        %v6617 = vpop.permute.xlu0 %6616
        %6618 = vrot.lane.b32.xlu0 %v739, 80
        %v6619 = vpop.permute.xlu0 %6618
        %6622 = vrot.lane.b32.xlu0 %v733, 72
        %v6623 = vpop.permute.xlu0 %6622
        %6624 = vrot.lane.b32.xlu0 %v739, 72
        %v6625 = vpop.permute.xlu0 %6624
        %6628 = vrot.lane.b32.xlu0 %v733, 64
        %v6629 = vpop.permute.xlu0 %6628
        %6630 = vrot.lane.b32.xlu0 %v739, 64
        %v6631 = vpop.permute.xlu0 %6630
        %6634 = vrot.lane.b32.xlu0 %v733, 56
        %v6635 = vpop.permute.xlu0 %6634
        %6636 = vrot.lane.b32.xlu0 %v739, 56
        %v6637 = vpop.permute.xlu0 %6636
        %6640 = vrot.lane.b32.xlu0 %v733, 48
        %v6641 = vpop.permute.xlu0 %6640
        %6642 = vrot.lane.b32.xlu0 %v739, 48
        %v6643 = vpop.permute.xlu0 %6642
        %6646 = vrot.lane.b32.xlu0 %v733, 40
        %v6647 = vpop.permute.xlu0 %6646
        %6648 = vrot.lane.b32.xlu0 %v739, 40
        %v6649 = vpop.permute.xlu0 %6648
        %6652 = vrot.lane.b32.xlu0 %v733, 32
        %v6653 = vpop.permute.xlu0 %6652
        %6654 = vrot.lane.b32.xlu0 %v739, 32
        %v6655 = vpop.permute.xlu0 %6654
        %6658 = vrot.lane.b32.xlu0 %v733, 24
        %v6659 = vpop.permute.xlu0 %6658
        %6660 = vrot.lane.b32.xlu0 %v739, 24
        %v6661 = vpop.permute.xlu0 %6660
        %6664 = vrot.lane.b32.xlu0 %v733, 16
        %v6665 = vpop.permute.xlu0 %6664
        %6666 = vrot.lane.b32.xlu0 %v739, 16
        %v6667 = vpop.permute.xlu0 %6666
        %6670 = vrot.lane.b32.xlu0 %v733, 8
        %v6671 = vpop.permute.xlu0 %6670
        %6672 = vrot.lane.b32.xlu0 %v739, 8
        %v6673 = vpop.permute.xlu0 %6672
        %6678 = vrot.lane.b32.xlu0 %v735, 120
        %v6679 = vpop.permute.xlu0 %6678
        %6680 = vrot.lane.b32.xlu0 %v741, 120
        %v6681 = vpop.permute.xlu0 %6680
        %6684 = vrot.lane.b32.xlu0 %v735, 112
        %v6685 = vpop.permute.xlu0 %6684
        %6686 = vrot.lane.b32.xlu0 %v741, 112
        %v6687 = vpop.permute.xlu0 %6686
        %6690 = vrot.lane.b32.xlu0 %v735, 104
        %v6691 = vpop.permute.xlu0 %6690
        %6692 = vrot.lane.b32.xlu0 %v741, 104
        %v6693 = vpop.permute.xlu0 %6692
        %6696 = vrot.lane.b32.xlu0 %v735, 96
        %v6697 = vpop.permute.xlu0 %6696
        %6698 = vrot.lane.b32.xlu0 %v741, 96
        %v6699 = vpop.permute.xlu0 %6698
        %6702 = vrot.lane.b32.xlu0 %v735, 88
        %v6703 = vpop.permute.xlu0 %6702
        %6704 = vrot.lane.b32.xlu0 %v741, 88
        %v6705 = vpop.permute.xlu0 %6704
        %6708 = vrot.lane.b32.xlu0 %v735, 80
        %v6709 = vpop.permute.xlu0 %6708
        %6710 = vrot.lane.b32.xlu0 %v741, 80
        %v6711 = vpop.permute.xlu0 %6710
        %6714 = vrot.lane.b32.xlu0 %v735, 72
        %v6715 = vpop.permute.xlu0 %6714
        %6716 = vrot.lane.b32.xlu0 %v741, 72
        %v6717 = vpop.permute.xlu0 %6716
        %6720 = vrot.lane.b32.xlu0 %v735, 64
        %v6721 = vpop.permute.xlu0 %6720
        %6722 = vrot.lane.b32.xlu0 %v741, 64
        %v6723 = vpop.permute.xlu0 %6722
        %6726 = vrot.lane.b32.xlu0 %v735, 56
        %v6727 = vpop.permute.xlu0 %6726
        %6728 = vrot.lane.b32.xlu0 %v741, 56
        %v6729 = vpop.permute.xlu0 %6728
        %6732 = vrot.lane.b32.xlu0 %v735, 48
        %v6733 = vpop.permute.xlu0 %6732
        %6734 = vrot.lane.b32.xlu0 %v741, 48
        %v6735 = vpop.permute.xlu0 %6734
        %6738 = vrot.lane.b32.xlu0 %v735, 40
        %v6739 = vpop.permute.xlu0 %6738
        %6740 = vrot.lane.b32.xlu0 %v741, 40
        %v6741 = vpop.permute.xlu0 %6740
        %6744 = vrot.lane.b32.xlu0 %v735, 32
        %v6745 = vpop.permute.xlu0 %6744
        %6746 = vrot.lane.b32.xlu0 %v741, 32
        %v6747 = vpop.permute.xlu0 %6746
        %6750 = vrot.lane.b32.xlu0 %v735, 24
        %v6751 = vpop.permute.xlu0 %6750
        %6752 = vrot.lane.b32.xlu0 %v741, 24
        %v6753 = vpop.permute.xlu0 %6752
        %6756 = vrot.lane.b32.xlu0 %v735, 16
        %v6757 = vpop.permute.xlu0 %6756
        %6758 = vrot.lane.b32.xlu0 %v741, 16
        %v6759 = vpop.permute.xlu0 %6758
        %6762 = vrot.lane.b32.xlu0 %v735, 8
        %v6763 = vpop.permute.xlu0 %6762
        %6764 = vrot.lane.b32.xlu0 %v741, 8
        %v6765 = vpop.permute.xlu0 %6764
        %v6768 = vcombine.low %v733, %v6593
        %v6769 = vcombine.high %v733, %v6593
        %v6771 = vunpack.c.l.s4 1983009808
        %v6772 = vunpack.c.0.s8 %v6771
        %v6773 = vlaneseq
        %v6774 = vshrl.u32 %v6773, 7
        %v6775 = vsub.s32 %v6772, %v6774
        %v6776 = vrot.slane %v6768, %v6775
        %v6778 = vunpack.c.l.s4 1983009808
        %v6779 = vunpack.c.0.s8 %v6778
        %v6780 = vlaneseq
        %v6781 = vshrl.u32 %v6780, 7
        %v6782 = vsub.s32 %v6779, %v6781
        %v6783 = vrot.slane %v6769, %v6782
        %v6784 = vcombine.low %v6587, %v6599
        %v6785 = vcombine.high %v6587, %v6599
        %v6787 = vunpack.c.l.s4 1983009808
        %v6788 = vunpack.c.0.s8 %v6787
        %v6789 = vlaneseq
        %v6790 = vshrl.u32 %v6789, 7
        %v6791 = vsub.s32 %v6788, %v6790
        %v6792 = vrot.slane %v6784, %v6791
        %v6794 = vunpack.c.l.s4 1983009808
        %v6795 = vunpack.c.0.s8 %v6794
        %v6796 = vlaneseq
        %v6797 = vshrl.u32 %v6796, 7
        %v6798 = vsub.s32 %v6795, %v6797
        %v6799 = vrot.slane %v6785, %v6798
        %v6800 = vcombine.low %v6605, %v6617
        %v6801 = vcombine.high %v6605, %v6617
        %v6803 = vunpack.c.l.s4 1983009808
        %v6804 = vunpack.c.0.s8 %v6803
        %v6805 = vlaneseq
        %v6806 = vshrl.u32 %v6805, 7
        %v6807 = vsub.s32 %v6804, %v6806
        %v6808 = vrot.slane %v6800, %v6807
        %v6810 = vunpack.c.l.s4 1983009808
        %v6811 = vunpack.c.0.s8 %v6810
        %v6812 = vlaneseq
        %v6813 = vshrl.u32 %v6812, 7
        %v6814 = vsub.s32 %v6811, %v6813
        %v6815 = vrot.slane %v6801, %v6814
        %v6816 = vcombine.low %v6611, %v6623
        %v6817 = vcombine.high %v6611, %v6623
        %v6819 = vunpack.c.l.s4 1983009808
        %v6820 = vunpack.c.0.s8 %v6819
        %v6821 = vlaneseq
        %v6822 = vshrl.u32 %v6821, 7
        %v6823 = vsub.s32 %v6820, %v6822
        %v6824 = vrot.slane %v6816, %v6823
        %v6826 = vunpack.c.l.s4 1983009808
        %v6827 = vunpack.c.0.s8 %v6826
        %v6828 = vlaneseq
        %v6829 = vshrl.u32 %v6828, 7
        %v6830 = vsub.s32 %v6827, %v6829
        %v6831 = vrot.slane %v6817, %v6830
        %v6832 = vcombine.low %v6776, %v6792
        %v6833 = vcombine.high %v6776, %v6792
        %v6835 = vunpack.c.l.s4 1934713408
        %v6836 = vunpack.c.0.s8 %v6835
        %v6837 = vlaneseq
        %v6838 = vshrl.u32 %v6837, 7
        %v6839 = vsub.s32 %v6836, %v6838
        %v6840 = vrot.slane %v6832, %v6839
        %v6842 = vunpack.c.l.s4 1934713408
        %v6843 = vunpack.c.0.s8 %v6842
        %v6844 = vlaneseq
        %v6845 = vshrl.u32 %v6844, 7
        %v6846 = vsub.s32 %v6843, %v6845
        %v6847 = vrot.slane %v6833, %v6846
        %v6848 = vcombine.low %v6783, %v6799
        %v6849 = vcombine.high %v6783, %v6799
        %v6851 = vunpack.c.l.s4 1934713408
        %v6852 = vunpack.c.0.s8 %v6851
        %v6853 = vlaneseq
        %v6854 = vshrl.u32 %v6853, 7
        %v6855 = vsub.s32 %v6852, %v6854
        %v6856 = vrot.slane %v6848, %v6855
        %v6858 = vunpack.c.l.s4 1934713408
        %v6859 = vunpack.c.0.s8 %v6858
        %v6860 = vlaneseq
        %v6861 = vshrl.u32 %v6860, 7
        %v6862 = vsub.s32 %v6859, %v6861
        %v6863 = vrot.slane %v6849, %v6862
        %v6864 = vcombine.low %v6808, %v6824
        %v6865 = vcombine.high %v6808, %v6824
        %v6867 = vunpack.c.l.s4 1934713408
        %v6868 = vunpack.c.0.s8 %v6867
        %v6869 = vlaneseq
        %v6870 = vshrl.u32 %v6869, 7
        %v6871 = vsub.s32 %v6868, %v6870
        %v6872 = vrot.slane %v6864, %v6871
        %v6874 = vunpack.c.l.s4 1934713408
        %v6875 = vunpack.c.0.s8 %v6874
        %v6876 = vlaneseq
        %v6877 = vshrl.u32 %v6876, 7
        %v6878 = vsub.s32 %v6875, %v6877
        %v6879 = vrot.slane %v6865, %v6878
        %v6880 = vcombine.low %v6815, %v6831
        %v6881 = vcombine.high %v6815, %v6831
        %v6883 = vunpack.c.l.s4 1934713408
        %v6884 = vunpack.c.0.s8 %v6883
        %v6885 = vlaneseq
        %v6886 = vshrl.u32 %v6885, 7
        %v6887 = vsub.s32 %v6884, %v6886
        %v6888 = vrot.slane %v6880, %v6887
        %v6890 = vunpack.c.l.s4 1934713408
        %v6891 = vunpack.c.0.s8 %v6890
        %v6892 = vlaneseq
        %v6893 = vshrl.u32 %v6892, 7
        %v6894 = vsub.s32 %v6891, %v6893
        %v6895 = vrot.slane %v6881, %v6894
        %v6896 = vcombine.low %v6840, %v6872
        %v6897 = vcombine.high %v6840, %v6872
        %v6898 = vcombine.low %v6847, %v6879
        %v6899 = vcombine.high %v6847, %v6879
        %v6900 = vcombine.low %v6856, %v6888
        %v6901 = vcombine.high %v6856, %v6888
        %v6902 = vcombine.low %v6863, %v6895
        %v6903 = vcombine.high %v6863, %v6895
        %v6904 = vcombine.low %v6629, %v6641
        %v6905 = vcombine.high %v6629, %v6641
        %v6907 = vunpack.c.l.s4 1983009808
        %v6908 = vunpack.c.0.s8 %v6907
        %v6909 = vlaneseq
        %v6910 = vshrl.u32 %v6909, 7
        %v6911 = vsub.s32 %v6908, %v6910
        %v6912 = vrot.slane %v6904, %v6911
        %v6914 = vunpack.c.l.s4 1983009808
        %v6915 = vunpack.c.0.s8 %v6914
        %v6916 = vlaneseq
        %v6917 = vshrl.u32 %v6916, 7
        %v6918 = vsub.s32 %v6915, %v6917
        %v6919 = vrot.slane %v6905, %v6918
        %v6920 = vcombine.low %v6635, %v6647
        %v6921 = vcombine.high %v6635, %v6647
        %v6923 = vunpack.c.l.s4 1983009808
        %v6924 = vunpack.c.0.s8 %v6923
        %v6925 = vlaneseq
        %v6926 = vshrl.u32 %v6925, 7
        %v6927 = vsub.s32 %v6924, %v6926
        %v6928 = vrot.slane %v6920, %v6927
        %v6930 = vunpack.c.l.s4 1983009808
        %v6931 = vunpack.c.0.s8 %v6930
        %v6932 = vlaneseq
        %v6933 = vshrl.u32 %v6932, 7
        %v6934 = vsub.s32 %v6931, %v6933
        %v6935 = vrot.slane %v6921, %v6934
        %v6936 = vcombine.low %v6653, %v6665
        %v6937 = vcombine.high %v6653, %v6665
        %v6939 = vunpack.c.l.s4 1983009808
        %v6940 = vunpack.c.0.s8 %v6939
        %v6941 = vlaneseq
        %v6942 = vshrl.u32 %v6941, 7
        %v6943 = vsub.s32 %v6940, %v6942
        %v6944 = vrot.slane %v6936, %v6943
        %v6946 = vunpack.c.l.s4 1983009808
        %v6947 = vunpack.c.0.s8 %v6946
        %v6948 = vlaneseq
        %v6949 = vshrl.u32 %v6948, 7
        %v6950 = vsub.s32 %v6947, %v6949
        %v6951 = vrot.slane %v6937, %v6950
        %v6952 = vcombine.low %v6659, %v6671
        %v6953 = vcombine.high %v6659, %v6671
        %v6955 = vunpack.c.l.s4 1983009808
        %v6956 = vunpack.c.0.s8 %v6955
        %v6957 = vlaneseq
        %v6958 = vshrl.u32 %v6957, 7
        %v6959 = vsub.s32 %v6956, %v6958
        %v6960 = vrot.slane %v6952, %v6959
        %v6962 = vunpack.c.l.s4 1983009808
        %v6963 = vunpack.c.0.s8 %v6962
        %v6964 = vlaneseq
        %v6965 = vshrl.u32 %v6964, 7
        %v6966 = vsub.s32 %v6963, %v6965
        %v6967 = vrot.slane %v6953, %v6966
        %v6968 = vcombine.low %v6912, %v6928
        %v6969 = vcombine.high %v6912, %v6928
        %v6971 = vunpack.c.l.s4 1934713408
        %v6972 = vunpack.c.0.s8 %v6971
        %v6973 = vlaneseq
        %v6974 = vshrl.u32 %v6973, 7
        %v6975 = vsub.s32 %v6972, %v6974
        %v6976 = vrot.slane %v6968, %v6975
        %v6978 = vunpack.c.l.s4 1934713408
        %v6979 = vunpack.c.0.s8 %v6978
        %v6980 = vlaneseq
        %v6981 = vshrl.u32 %v6980, 7
        %v6982 = vsub.s32 %v6979, %v6981
        %v6983 = vrot.slane %v6969, %v6982
        %v6984 = vcombine.low %v6919, %v6935
        %v6985 = vcombine.high %v6919, %v6935
        %v6987 = vunpack.c.l.s4 1934713408
        %v6988 = vunpack.c.0.s8 %v6987
        %v6989 = vlaneseq
        %v6990 = vshrl.u32 %v6989, 7
        %v6991 = vsub.s32 %v6988, %v6990
        %v6992 = vrot.slane %v6984, %v6991
        %v6994 = vunpack.c.l.s4 1934713408
        %v6995 = vunpack.c.0.s8 %v6994
        %v6996 = vlaneseq
        %v6997 = vshrl.u32 %v6996, 7
        %v6998 = vsub.s32 %v6995, %v6997
        %v6999 = vrot.slane %v6985, %v6998
        %v7000 = vcombine.low %v6944, %v6960
        %v7001 = vcombine.high %v6944, %v6960
        %v7003 = vunpack.c.l.s4 1934713408
        %v7004 = vunpack.c.0.s8 %v7003
        %v7005 = vlaneseq
        %v7006 = vshrl.u32 %v7005, 7
        %v7007 = vsub.s32 %v7004, %v7006
        %v7008 = vrot.slane %v7000, %v7007
        %v7010 = vunpack.c.l.s4 1934713408
        %v7011 = vunpack.c.0.s8 %v7010
        %v7012 = vlaneseq
        %v7013 = vshrl.u32 %v7012, 7
        %v7014 = vsub.s32 %v7011, %v7013
        %v7015 = vrot.slane %v7001, %v7014
        %v7016 = vcombine.low %v6951, %v6967
        %v7017 = vcombine.high %v6951, %v6967
        %v7019 = vunpack.c.l.s4 1934713408
        %v7020 = vunpack.c.0.s8 %v7019
        %v7021 = vlaneseq
        %v7022 = vshrl.u32 %v7021, 7
        %v7023 = vsub.s32 %v7020, %v7022
        %v7024 = vrot.slane %v7016, %v7023
        %v7026 = vunpack.c.l.s4 1934713408
        %v7027 = vunpack.c.0.s8 %v7026
        %v7028 = vlaneseq
        %v7029 = vshrl.u32 %v7028, 7
        %v7030 = vsub.s32 %v7027, %v7029
        %v7031 = vrot.slane %v7017, %v7030
        %v7032 = vcombine.low %v6976, %v7008
        %v7033 = vcombine.high %v6976, %v7008
        %v7034 = vcombine.low %v6983, %v7015
        %v7035 = vcombine.high %v6983, %v7015
        %v7036 = vcombine.low %v6992, %v7024
        %v7037 = vcombine.high %v6992, %v7024
        %v7038 = vcombine.low %v6999, %v7031
        %v7039 = vcombine.high %v6999, %v7031
        %v7040 = vcombine.low %v735, %v6685
        %v7041 = vcombine.high %v735, %v6685
        %v7043 = vunpack.c.l.s4 1983009808
        %v7044 = vunpack.c.0.s8 %v7043
        %v7045 = vlaneseq
        %v7046 = vshrl.u32 %v7045, 7
        %v7047 = vsub.s32 %v7044, %v7046
        %v7048 = vrot.slane %v7040, %v7047
        %v7050 = vunpack.c.l.s4 1983009808
        %v7051 = vunpack.c.0.s8 %v7050
        %v7052 = vlaneseq
        %v7053 = vshrl.u32 %v7052, 7
        %v7054 = vsub.s32 %v7051, %v7053
        %v7055 = vrot.slane %v7041, %v7054
        %v7056 = vcombine.low %v6679, %v6691
        %v7057 = vcombine.high %v6679, %v6691
        %v7059 = vunpack.c.l.s4 1983009808
        %v7060 = vunpack.c.0.s8 %v7059
        %v7061 = vlaneseq
        %v7062 = vshrl.u32 %v7061, 7
        %v7063 = vsub.s32 %v7060, %v7062
        %v7064 = vrot.slane %v7056, %v7063
        %v7066 = vunpack.c.l.s4 1983009808
        %v7067 = vunpack.c.0.s8 %v7066
        %v7068 = vlaneseq
        %v7069 = vshrl.u32 %v7068, 7
        %v7070 = vsub.s32 %v7067, %v7069
        %v7071 = vrot.slane %v7057, %v7070
        %v7072 = vcombine.low %v6697, %v6709
        %v7073 = vcombine.high %v6697, %v6709
        %v7075 = vunpack.c.l.s4 1983009808
        %v7076 = vunpack.c.0.s8 %v7075
        %v7077 = vlaneseq
        %v7078 = vshrl.u32 %v7077, 7
        %v7079 = vsub.s32 %v7076, %v7078
        %v7080 = vrot.slane %v7072, %v7079
        %v7082 = vunpack.c.l.s4 1983009808
        %v7083 = vunpack.c.0.s8 %v7082
        %v7084 = vlaneseq
        %v7085 = vshrl.u32 %v7084, 7
        %v7086 = vsub.s32 %v7083, %v7085
        %v7087 = vrot.slane %v7073, %v7086
        %v7088 = vcombine.low %v6703, %v6715
        %v7089 = vcombine.high %v6703, %v6715
        %v7091 = vunpack.c.l.s4 1983009808
        %v7092 = vunpack.c.0.s8 %v7091
        %v7093 = vlaneseq
        %v7094 = vshrl.u32 %v7093, 7
        %v7095 = vsub.s32 %v7092, %v7094
        %v7096 = vrot.slane %v7088, %v7095
        %v7098 = vunpack.c.l.s4 1983009808
        %v7099 = vunpack.c.0.s8 %v7098
        %v7100 = vlaneseq
        %v7101 = vshrl.u32 %v7100, 7
        %v7102 = vsub.s32 %v7099, %v7101
        %v7103 = vrot.slane %v7089, %v7102
        %v7104 = vcombine.low %v7048, %v7064
        %v7105 = vcombine.high %v7048, %v7064
        %v7107 = vunpack.c.l.s4 1934713408
        %v7108 = vunpack.c.0.s8 %v7107
        %v7109 = vlaneseq
        %v7110 = vshrl.u32 %v7109, 7
        %v7111 = vsub.s32 %v7108, %v7110
        %v7112 = vrot.slane %v7104, %v7111
        %v7114 = vunpack.c.l.s4 1934713408
        %v7115 = vunpack.c.0.s8 %v7114
        %v7116 = vlaneseq
        %v7117 = vshrl.u32 %v7116, 7
        %v7118 = vsub.s32 %v7115, %v7117
        %v7119 = vrot.slane %v7105, %v7118
        %v7120 = vcombine.low %v7055, %v7071
        %v7121 = vcombine.high %v7055, %v7071
        %v7123 = vunpack.c.l.s4 1934713408
        %v7124 = vunpack.c.0.s8 %v7123
        %v7125 = vlaneseq
        %v7126 = vshrl.u32 %v7125, 7
        %v7127 = vsub.s32 %v7124, %v7126
        %v7128 = vrot.slane %v7120, %v7127
        %v7130 = vunpack.c.l.s4 1934713408
        %v7131 = vunpack.c.0.s8 %v7130
        %v7132 = vlaneseq
        %v7133 = vshrl.u32 %v7132, 7
        %v7134 = vsub.s32 %v7131, %v7133
        %v7135 = vrot.slane %v7121, %v7134
        %v7136 = vcombine.low %v7080, %v7096
        %v7137 = vcombine.high %v7080, %v7096
        %v7139 = vunpack.c.l.s4 1934713408
        %v7140 = vunpack.c.0.s8 %v7139
        %v7141 = vlaneseq
        %v7142 = vshrl.u32 %v7141, 7
        %v7143 = vsub.s32 %v7140, %v7142
        %v7144 = vrot.slane %v7136, %v7143
        %v7146 = vunpack.c.l.s4 1934713408
        %v7147 = vunpack.c.0.s8 %v7146
        %v7148 = vlaneseq
        %v7149 = vshrl.u32 %v7148, 7
        %v7150 = vsub.s32 %v7147, %v7149
        %v7151 = vrot.slane %v7137, %v7150
        %v7152 = vcombine.low %v7087, %v7103
        %v7153 = vcombine.high %v7087, %v7103
        %v7155 = vunpack.c.l.s4 1934713408
        %v7156 = vunpack.c.0.s8 %v7155
        %v7157 = vlaneseq
        %v7158 = vshrl.u32 %v7157, 7
        %v7159 = vsub.s32 %v7156, %v7158
        %v7160 = vrot.slane %v7152, %v7159
        %v7162 = vunpack.c.l.s4 1934713408
        %v7163 = vunpack.c.0.s8 %v7162
        %v7164 = vlaneseq
        %v7165 = vshrl.u32 %v7164, 7
        %v7166 = vsub.s32 %v7163, %v7165
        %v7167 = vrot.slane %v7153, %v7166
        %v7168 = vcombine.low %v7112, %v7144
        %v7169 = vcombine.high %v7112, %v7144
        %v7170 = vcombine.low %v7119, %v7151
        %v7171 = vcombine.high %v7119, %v7151
        %v7172 = vcombine.low %v7128, %v7160
        %v7173 = vcombine.high %v7128, %v7160
        %v7174 = vcombine.low %v7135, %v7167
        %v7175 = vcombine.high %v7135, %v7167
        %v7176 = vcombine.low %v6721, %v6733
        %v7177 = vcombine.high %v6721, %v6733
        %v7179 = vunpack.c.l.s4 1983009808
        %v7180 = vunpack.c.0.s8 %v7179
        %v7181 = vlaneseq
        %v7182 = vshrl.u32 %v7181, 7
        %v7183 = vsub.s32 %v7180, %v7182
        %v7184 = vrot.slane %v7176, %v7183
        %v7186 = vunpack.c.l.s4 1983009808
        %v7187 = vunpack.c.0.s8 %v7186
        %v7188 = vlaneseq
        %v7189 = vshrl.u32 %v7188, 7
        %v7190 = vsub.s32 %v7187, %v7189
        %v7191 = vrot.slane %v7177, %v7190
        %v7192 = vcombine.low %v6727, %v6739
        %v7193 = vcombine.high %v6727, %v6739
        %v7195 = vunpack.c.l.s4 1983009808
        %v7196 = vunpack.c.0.s8 %v7195
        %v7197 = vlaneseq
        %v7198 = vshrl.u32 %v7197, 7
        %v7199 = vsub.s32 %v7196, %v7198
        %v7200 = vrot.slane %v7192, %v7199
        %v7202 = vunpack.c.l.s4 1983009808
        %v7203 = vunpack.c.0.s8 %v7202
        %v7204 = vlaneseq
        %v7205 = vshrl.u32 %v7204, 7
        %v7206 = vsub.s32 %v7203, %v7205
        %v7207 = vrot.slane %v7193, %v7206
        %v7208 = vcombine.low %v6745, %v6757
        %v7209 = vcombine.high %v6745, %v6757
        %v7211 = vunpack.c.l.s4 1983009808
        %v7212 = vunpack.c.0.s8 %v7211
        %v7213 = vlaneseq
        %v7214 = vshrl.u32 %v7213, 7
        %v7215 = vsub.s32 %v7212, %v7214
        %v7216 = vrot.slane %v7208, %v7215
        %v7218 = vunpack.c.l.s4 1983009808
        %v7219 = vunpack.c.0.s8 %v7218
        %v7220 = vlaneseq
        %v7221 = vshrl.u32 %v7220, 7
        %v7222 = vsub.s32 %v7219, %v7221
        %v7223 = vrot.slane %v7209, %v7222
        %v7224 = vcombine.low %v6751, %v6763
        %v7225 = vcombine.high %v6751, %v6763
        %v7227 = vunpack.c.l.s4 1983009808
        %v7228 = vunpack.c.0.s8 %v7227
        %v7229 = vlaneseq
        %v7230 = vshrl.u32 %v7229, 7
        %v7231 = vsub.s32 %v7228, %v7230
        %v7232 = vrot.slane %v7224, %v7231
        %v7234 = vunpack.c.l.s4 1983009808
        %v7235 = vunpack.c.0.s8 %v7234
        %v7236 = vlaneseq
        %v7237 = vshrl.u32 %v7236, 7
        %v7238 = vsub.s32 %v7235, %v7237
        %v7239 = vrot.slane %v7225, %v7238
        %v7240 = vcombine.low %v7184, %v7200
        %v7241 = vcombine.high %v7184, %v7200
        %v7243 = vunpack.c.l.s4 1934713408
        %v7244 = vunpack.c.0.s8 %v7243
        %v7245 = vlaneseq
        %v7246 = vshrl.u32 %v7245, 7
        %v7247 = vsub.s32 %v7244, %v7246
        %v7248 = vrot.slane %v7240, %v7247
        %v7250 = vunpack.c.l.s4 1934713408
        %v7251 = vunpack.c.0.s8 %v7250
        %v7252 = vlaneseq
        %v7253 = vshrl.u32 %v7252, 7
        %v7254 = vsub.s32 %v7251, %v7253
        %v7255 = vrot.slane %v7241, %v7254
        %v7256 = vcombine.low %v7191, %v7207
        %v7257 = vcombine.high %v7191, %v7207
        %v7259 = vunpack.c.l.s4 1934713408
        %v7260 = vunpack.c.0.s8 %v7259
        %v7261 = vlaneseq
        %v7262 = vshrl.u32 %v7261, 7
        %v7263 = vsub.s32 %v7260, %v7262
        %v7264 = vrot.slane %v7256, %v7263
        %v7266 = vunpack.c.l.s4 1934713408
        %v7267 = vunpack.c.0.s8 %v7266
        %v7268 = vlaneseq
        %v7269 = vshrl.u32 %v7268, 7
        %v7270 = vsub.s32 %v7267, %v7269
        %v7271 = vrot.slane %v7257, %v7270
        %v7272 = vcombine.low %v7216, %v7232
        %v7273 = vcombine.high %v7216, %v7232
        %v7275 = vunpack.c.l.s4 1934713408
        %v7276 = vunpack.c.0.s8 %v7275
        %v7277 = vlaneseq
        %v7278 = vshrl.u32 %v7277, 7
        %v7279 = vsub.s32 %v7276, %v7278
        %v7280 = vrot.slane %v7272, %v7279
        %v7282 = vunpack.c.l.s4 1934713408
        %v7283 = vunpack.c.0.s8 %v7282
        %v7284 = vlaneseq
        %v7285 = vshrl.u32 %v7284, 7
        %v7286 = vsub.s32 %v7283, %v7285
        %v7287 = vrot.slane %v7273, %v7286
        %v7288 = vcombine.low %v7223, %v7239
        %v7289 = vcombine.high %v7223, %v7239
        %v7291 = vunpack.c.l.s4 1934713408
        %v7292 = vunpack.c.0.s8 %v7291
        %v7293 = vlaneseq
        %v7294 = vshrl.u32 %v7293, 7
        %v7295 = vsub.s32 %v7292, %v7294
        %v7296 = vrot.slane %v7288, %v7295
        %v7298 = vunpack.c.l.s4 1934713408
        %v7299 = vunpack.c.0.s8 %v7298
        %v7300 = vlaneseq
        %v7301 = vshrl.u32 %v7300, 7
        %v7302 = vsub.s32 %v7299, %v7301
        %v7303 = vrot.slane %v7289, %v7302
        %v7304 = vcombine.low %v7248, %v7280
        %v7305 = vcombine.high %v7248, %v7280
        %v7306 = vcombine.low %v7255, %v7287
        %v7307 = vcombine.high %v7255, %v7287
        %v7308 = vcombine.low %v7264, %v7296
        %v7309 = vcombine.high %v7264, %v7296
        %v7310 = vcombine.low %v7271, %v7303
        %v7311 = vcombine.high %v7271, %v7303
        %v7312 = vcombine.low %v739, %v6595
        %v7313 = vcombine.high %v739, %v6595
        %v7315 = vunpack.c.l.s4 1983009808
        %v7316 = vunpack.c.0.s8 %v7315
        %v7317 = vlaneseq
        %v7318 = vshrl.u32 %v7317, 7
        %v7319 = vsub.s32 %v7316, %v7318
        %v7320 = vrot.slane %v7312, %v7319
        %v7322 = vunpack.c.l.s4 1983009808
        %v7323 = vunpack.c.0.s8 %v7322
        %v7324 = vlaneseq
        %v7325 = vshrl.u32 %v7324, 7
        %v7326 = vsub.s32 %v7323, %v7325
        %v7327 = vrot.slane %v7313, %v7326
        %v7328 = vcombine.low %v6589, %v6601
        %v7329 = vcombine.high %v6589, %v6601
        %v7331 = vunpack.c.l.s4 1983009808
        %v7332 = vunpack.c.0.s8 %v7331
        %v7333 = vlaneseq
        %v7334 = vshrl.u32 %v7333, 7
        %v7335 = vsub.s32 %v7332, %v7334
        %v7336 = vrot.slane %v7328, %v7335
        %v7338 = vunpack.c.l.s4 1983009808
        %v7339 = vunpack.c.0.s8 %v7338
        %v7340 = vlaneseq
        %v7341 = vshrl.u32 %v7340, 7
        %v7342 = vsub.s32 %v7339, %v7341
        %v7343 = vrot.slane %v7329, %v7342
        %v7344 = vcombine.low %v6607, %v6619
        %v7345 = vcombine.high %v6607, %v6619
        %v7347 = vunpack.c.l.s4 1983009808
        %v7348 = vunpack.c.0.s8 %v7347
        %v7349 = vlaneseq
        %v7350 = vshrl.u32 %v7349, 7
        %v7351 = vsub.s32 %v7348, %v7350
        %v7352 = vrot.slane %v7344, %v7351
        %v7354 = vunpack.c.l.s4 1983009808
        %v7355 = vunpack.c.0.s8 %v7354
        %v7356 = vlaneseq
        %v7357 = vshrl.u32 %v7356, 7
        %v7358 = vsub.s32 %v7355, %v7357
        %v7359 = vrot.slane %v7345, %v7358
        %v7360 = vcombine.low %v6613, %v6625
        %v7361 = vcombine.high %v6613, %v6625
        %v7363 = vunpack.c.l.s4 1983009808
        %v7364 = vunpack.c.0.s8 %v7363
        %v7365 = vlaneseq
        %v7366 = vshrl.u32 %v7365, 7
        %v7367 = vsub.s32 %v7364, %v7366
        %v7368 = vrot.slane %v7360, %v7367
        %v7370 = vunpack.c.l.s4 1983009808
        %v7371 = vunpack.c.0.s8 %v7370
        %v7372 = vlaneseq
        %v7373 = vshrl.u32 %v7372, 7
        %v7374 = vsub.s32 %v7371, %v7373
        %v7375 = vrot.slane %v7361, %v7374
        %v7376 = vcombine.low %v7320, %v7336
        %v7377 = vcombine.high %v7320, %v7336
        %v7379 = vunpack.c.l.s4 1934713408
        %v7380 = vunpack.c.0.s8 %v7379
        %v7381 = vlaneseq
        %v7382 = vshrl.u32 %v7381, 7
        %v7383 = vsub.s32 %v7380, %v7382
        %v7384 = vrot.slane %v7376, %v7383
        %v7386 = vunpack.c.l.s4 1934713408
        %v7387 = vunpack.c.0.s8 %v7386
        %v7388 = vlaneseq
        %v7389 = vshrl.u32 %v7388, 7
        %v7390 = vsub.s32 %v7387, %v7389
        %v7391 = vrot.slane %v7377, %v7390
        %v7392 = vcombine.low %v7327, %v7343
        %v7393 = vcombine.high %v7327, %v7343
        %v7395 = vunpack.c.l.s4 1934713408
        %v7396 = vunpack.c.0.s8 %v7395
        %v7397 = vlaneseq
        %v7398 = vshrl.u32 %v7397, 7
        %v7399 = vsub.s32 %v7396, %v7398
        %v7400 = vrot.slane %v7392, %v7399
        %v7402 = vunpack.c.l.s4 1934713408
        %v7403 = vunpack.c.0.s8 %v7402
        %v7404 = vlaneseq
        %v7405 = vshrl.u32 %v7404, 7
        %v7406 = vsub.s32 %v7403, %v7405
        %v7407 = vrot.slane %v7393, %v7406
        %v7408 = vcombine.low %v7352, %v7368
        %v7409 = vcombine.high %v7352, %v7368
        %v7411 = vunpack.c.l.s4 1934713408
        %v7412 = vunpack.c.0.s8 %v7411
        %v7413 = vlaneseq
        %v7414 = vshrl.u32 %v7413, 7
        %v7415 = vsub.s32 %v7412, %v7414
        %v7416 = vrot.slane %v7408, %v7415
        %v7418 = vunpack.c.l.s4 1934713408
        %v7419 = vunpack.c.0.s8 %v7418
        %v7420 = vlaneseq
        %v7421 = vshrl.u32 %v7420, 7
        %v7422 = vsub.s32 %v7419, %v7421
        %v7423 = vrot.slane %v7409, %v7422
        %v7424 = vcombine.low %v7359, %v7375
        %v7425 = vcombine.high %v7359, %v7375
        %v7427 = vunpack.c.l.s4 1934713408
        %v7428 = vunpack.c.0.s8 %v7427
        %v7429 = vlaneseq
        %v7430 = vshrl.u32 %v7429, 7
        %v7431 = vsub.s32 %v7428, %v7430
        %v7432 = vrot.slane %v7424, %v7431
        %v7434 = vunpack.c.l.s4 1934713408
        %v7435 = vunpack.c.0.s8 %v7434
        %v7436 = vlaneseq
        %v7437 = vshrl.u32 %v7436, 7
        %v7438 = vsub.s32 %v7435, %v7437
        %v7439 = vrot.slane %v7425, %v7438
        %v7440 = vcombine.low %v7384, %v7416
        %v7441 = vcombine.high %v7384, %v7416
        %v7442 = vcombine.low %v7391, %v7423
        %v7443 = vcombine.high %v7391, %v7423
        %v7444 = vcombine.low %v7400, %v7432
        %v7445 = vcombine.high %v7400, %v7432
        %v7446 = vcombine.low %v7407, %v7439
        %v7447 = vcombine.high %v7407, %v7439
        %v7448 = vcombine.low %v6631, %v6643
        %v7449 = vcombine.high %v6631, %v6643
        %v7451 = vunpack.c.l.s4 1983009808
        %v7452 = vunpack.c.0.s8 %v7451
        %v7453 = vlaneseq
        %v7454 = vshrl.u32 %v7453, 7
        %v7455 = vsub.s32 %v7452, %v7454
        %v7456 = vrot.slane %v7448, %v7455
        %v7458 = vunpack.c.l.s4 1983009808
        %v7459 = vunpack.c.0.s8 %v7458
        %v7460 = vlaneseq
        %v7461 = vshrl.u32 %v7460, 7
        %v7462 = vsub.s32 %v7459, %v7461
        %v7463 = vrot.slane %v7449, %v7462
        %v7464 = vcombine.low %v6637, %v6649
        %v7465 = vcombine.high %v6637, %v6649
        %v7467 = vunpack.c.l.s4 1983009808
        %v7468 = vunpack.c.0.s8 %v7467
        %v7469 = vlaneseq
        %v7470 = vshrl.u32 %v7469, 7
        %v7471 = vsub.s32 %v7468, %v7470
        %v7472 = vrot.slane %v7464, %v7471
        %v7474 = vunpack.c.l.s4 1983009808
        %v7475 = vunpack.c.0.s8 %v7474
        %v7476 = vlaneseq
        %v7477 = vshrl.u32 %v7476, 7
        %v7478 = vsub.s32 %v7475, %v7477
        %v7479 = vrot.slane %v7465, %v7478
        %v7480 = vcombine.low %v6655, %v6667
        %v7481 = vcombine.high %v6655, %v6667
        %v7483 = vunpack.c.l.s4 1983009808
        %v7484 = vunpack.c.0.s8 %v7483
        %v7485 = vlaneseq
        %v7486 = vshrl.u32 %v7485, 7
        %v7487 = vsub.s32 %v7484, %v7486
        %v7488 = vrot.slane %v7480, %v7487
        %v7490 = vunpack.c.l.s4 1983009808
        %v7491 = vunpack.c.0.s8 %v7490
        %v7492 = vlaneseq
        %v7493 = vshrl.u32 %v7492, 7
        %v7494 = vsub.s32 %v7491, %v7493
        %v7495 = vrot.slane %v7481, %v7494
        %v7496 = vcombine.low %v6661, %v6673
        %v7497 = vcombine.high %v6661, %v6673
        %v7499 = vunpack.c.l.s4 1983009808
        %v7500 = vunpack.c.0.s8 %v7499
        %v7501 = vlaneseq
        %v7502 = vshrl.u32 %v7501, 7
        %v7503 = vsub.s32 %v7500, %v7502
        %v7504 = vrot.slane %v7496, %v7503
        %v7506 = vunpack.c.l.s4 1983009808
        %v7507 = vunpack.c.0.s8 %v7506
        %v7508 = vlaneseq
        %v7509 = vshrl.u32 %v7508, 7
        %v7510 = vsub.s32 %v7507, %v7509
        %v7511 = vrot.slane %v7497, %v7510
        %v7512 = vcombine.low %v7456, %v7472
        %v7513 = vcombine.high %v7456, %v7472
        %v7515 = vunpack.c.l.s4 1934713408
        %v7516 = vunpack.c.0.s8 %v7515
        %v7517 = vlaneseq
        %v7518 = vshrl.u32 %v7517, 7
        %v7519 = vsub.s32 %v7516, %v7518
        %v7520 = vrot.slane %v7512, %v7519
        %v7522 = vunpack.c.l.s4 1934713408
        %v7523 = vunpack.c.0.s8 %v7522
        %v7524 = vlaneseq
        %v7525 = vshrl.u32 %v7524, 7
        %v7526 = vsub.s32 %v7523, %v7525
        %v7527 = vrot.slane %v7513, %v7526
        %v7528 = vcombine.low %v7463, %v7479
        %v7529 = vcombine.high %v7463, %v7479
        %v7531 = vunpack.c.l.s4 1934713408
        %v7532 = vunpack.c.0.s8 %v7531
        %v7533 = vlaneseq
        %v7534 = vshrl.u32 %v7533, 7
        %v7535 = vsub.s32 %v7532, %v7534
        %v7536 = vrot.slane %v7528, %v7535
        %v7538 = vunpack.c.l.s4 1934713408
        %v7539 = vunpack.c.0.s8 %v7538
        %v7540 = vlaneseq
        %v7541 = vshrl.u32 %v7540, 7
        %v7542 = vsub.s32 %v7539, %v7541
        %v7543 = vrot.slane %v7529, %v7542
        %v7544 = vcombine.low %v7488, %v7504
        %v7545 = vcombine.high %v7488, %v7504
        %v7547 = vunpack.c.l.s4 1934713408
        %v7548 = vunpack.c.0.s8 %v7547
        %v7549 = vlaneseq
        %v7550 = vshrl.u32 %v7549, 7
        %v7551 = vsub.s32 %v7548, %v7550
        %v7552 = vrot.slane %v7544, %v7551
        %v7554 = vunpack.c.l.s4 1934713408
        %v7555 = vunpack.c.0.s8 %v7554
        %v7556 = vlaneseq
        %v7557 = vshrl.u32 %v7556, 7
        %v7558 = vsub.s32 %v7555, %v7557
        %v7559 = vrot.slane %v7545, %v7558
        %v7560 = vcombine.low %v7495, %v7511
        %v7561 = vcombine.high %v7495, %v7511
        %v7563 = vunpack.c.l.s4 1934713408
        %v7564 = vunpack.c.0.s8 %v7563
        %v7565 = vlaneseq
        %v7566 = vshrl.u32 %v7565, 7
        %v7567 = vsub.s32 %v7564, %v7566
        %v7568 = vrot.slane %v7560, %v7567
        %v7570 = vunpack.c.l.s4 1934713408
        %v7571 = vunpack.c.0.s8 %v7570
        %v7572 = vlaneseq
        %v7573 = vshrl.u32 %v7572, 7
        %v7574 = vsub.s32 %v7571, %v7573
        %v7575 = vrot.slane %v7561, %v7574
        %v7576 = vcombine.low %v7520, %v7552
        %v7577 = vcombine.high %v7520, %v7552
        %v7578 = vcombine.low %v7527, %v7559
        %v7579 = vcombine.high %v7527, %v7559
        %v7580 = vcombine.low %v7536, %v7568
        %v7581 = vcombine.high %v7536, %v7568
        %v7582 = vcombine.low %v7543, %v7575
        %v7583 = vcombine.high %v7543, %v7575
        %v7584 = vcombine.low %v741, %v6687
        %v7585 = vcombine.high %v741, %v6687
        %v7587 = vunpack.c.l.s4 1983009808
        %v7588 = vunpack.c.0.s8 %v7587
        %v7589 = vlaneseq
        %v7590 = vshrl.u32 %v7589, 7
        %v7591 = vsub.s32 %v7588, %v7590
        %v7592 = vrot.slane %v7584, %v7591
        %v7594 = vunpack.c.l.s4 1983009808
        %v7595 = vunpack.c.0.s8 %v7594
        %v7596 = vlaneseq
        %v7597 = vshrl.u32 %v7596, 7
        %v7598 = vsub.s32 %v7595, %v7597
        %v7599 = vrot.slane %v7585, %v7598
        %v7600 = vcombine.low %v6681, %v6693
        %v7601 = vcombine.high %v6681, %v6693
        %v7603 = vunpack.c.l.s4 1983009808
        %v7604 = vunpack.c.0.s8 %v7603
        %v7605 = vlaneseq
        %v7606 = vshrl.u32 %v7605, 7
        %v7607 = vsub.s32 %v7604, %v7606
        %v7608 = vrot.slane %v7600, %v7607
        %v7610 = vunpack.c.l.s4 1983009808
        %v7611 = vunpack.c.0.s8 %v7610
        %v7612 = vlaneseq
        %v7613 = vshrl.u32 %v7612, 7
        %v7614 = vsub.s32 %v7611, %v7613
        %v7615 = vrot.slane %v7601, %v7614
        %v7616 = vcombine.low %v6699, %v6711
        %v7617 = vcombine.high %v6699, %v6711
        %v7619 = vunpack.c.l.s4 1983009808
        %v7620 = vunpack.c.0.s8 %v7619
        %v7621 = vlaneseq
        %v7622 = vshrl.u32 %v7621, 7
        %v7623 = vsub.s32 %v7620, %v7622
        %v7624 = vrot.slane %v7616, %v7623
        %v7626 = vunpack.c.l.s4 1983009808
        %v7627 = vunpack.c.0.s8 %v7626
        %v7628 = vlaneseq
        %v7629 = vshrl.u32 %v7628, 7
        %v7630 = vsub.s32 %v7627, %v7629
        %v7631 = vrot.slane %v7617, %v7630
        %v7632 = vcombine.low %v6705, %v6717
        %v7633 = vcombine.high %v6705, %v6717
        %v7635 = vunpack.c.l.s4 1983009808
        %v7636 = vunpack.c.0.s8 %v7635
        %v7637 = vlaneseq
        %v7638 = vshrl.u32 %v7637, 7
        %v7639 = vsub.s32 %v7636, %v7638
        %v7640 = vrot.slane %v7632, %v7639
        %v7642 = vunpack.c.l.s4 1983009808
        %v7643 = vunpack.c.0.s8 %v7642
        %v7644 = vlaneseq
        %v7645 = vshrl.u32 %v7644, 7
        %v7646 = vsub.s32 %v7643, %v7645
        %v7647 = vrot.slane %v7633, %v7646
        %v7648 = vcombine.low %v7592, %v7608
        %v7649 = vcombine.high %v7592, %v7608
        %v7651 = vunpack.c.l.s4 1934713408
        %v7652 = vunpack.c.0.s8 %v7651
        %v7653 = vlaneseq
        %v7654 = vshrl.u32 %v7653, 7
        %v7655 = vsub.s32 %v7652, %v7654
        %v7656 = vrot.slane %v7648, %v7655
        %v7658 = vunpack.c.l.s4 1934713408
        %v7659 = vunpack.c.0.s8 %v7658
        %v7660 = vlaneseq
        %v7661 = vshrl.u32 %v7660, 7
        %v7662 = vsub.s32 %v7659, %v7661
        %v7663 = vrot.slane %v7649, %v7662
        %v7664 = vcombine.low %v7599, %v7615
        %v7665 = vcombine.high %v7599, %v7615
        %v7667 = vunpack.c.l.s4 1934713408
        %v7668 = vunpack.c.0.s8 %v7667
        %v7669 = vlaneseq
        %v7670 = vshrl.u32 %v7669, 7
        %v7671 = vsub.s32 %v7668, %v7670
        %v7672 = vrot.slane %v7664, %v7671
        %v7674 = vunpack.c.l.s4 1934713408
        %v7675 = vunpack.c.0.s8 %v7674
        %v7676 = vlaneseq
        %v7677 = vshrl.u32 %v7676, 7
        %v7678 = vsub.s32 %v7675, %v7677
        %v7679 = vrot.slane %v7665, %v7678
        %v7680 = vcombine.low %v7624, %v7640
        %v7681 = vcombine.high %v7624, %v7640
        %v7683 = vunpack.c.l.s4 1934713408
        %v7684 = vunpack.c.0.s8 %v7683
        %v7685 = vlaneseq
        %v7686 = vshrl.u32 %v7685, 7
        %v7687 = vsub.s32 %v7684, %v7686
        %v7688 = vrot.slane %v7680, %v7687
        %v7690 = vunpack.c.l.s4 1934713408
        %v7691 = vunpack.c.0.s8 %v7690
        %v7692 = vlaneseq
        %v7693 = vshrl.u32 %v7692, 7
        %v7694 = vsub.s32 %v7691, %v7693
        %v7695 = vrot.slane %v7681, %v7694
        %v7696 = vcombine.low %v7631, %v7647
        %v7697 = vcombine.high %v7631, %v7647
        %v7699 = vunpack.c.l.s4 1934713408
        %v7700 = vunpack.c.0.s8 %v7699
        %v7701 = vlaneseq
        %v7702 = vshrl.u32 %v7701, 7
        %v7703 = vsub.s32 %v7700, %v7702
        %v7704 = vrot.slane %v7696, %v7703
        %v7706 = vunpack.c.l.s4 1934713408
        %v7707 = vunpack.c.0.s8 %v7706
        %v7708 = vlaneseq
        %v7709 = vshrl.u32 %v7708, 7
        %v7710 = vsub.s32 %v7707, %v7709
        %v7711 = vrot.slane %v7697, %v7710
        %v7712 = vcombine.low %v7656, %v7688
        %v7713 = vcombine.high %v7656, %v7688
        %v7714 = vcombine.low %v7663, %v7695
        %v7715 = vcombine.high %v7663, %v7695
        %v7716 = vcombine.low %v7672, %v7704
        %v7717 = vcombine.high %v7672, %v7704
        %v7718 = vcombine.low %v7679, %v7711
        %v7719 = vcombine.high %v7679, %v7711
        %v7720 = vcombine.low %v6723, %v6735
        %v7721 = vcombine.high %v6723, %v6735
        %v7723 = vunpack.c.l.s4 1983009808
        %v7724 = vunpack.c.0.s8 %v7723
        %v7725 = vlaneseq
        %v7726 = vshrl.u32 %v7725, 7
        %v7727 = vsub.s32 %v7724, %v7726
        %v7728 = vrot.slane %v7720, %v7727
        %v7730 = vunpack.c.l.s4 1983009808
        %v7731 = vunpack.c.0.s8 %v7730
        %v7732 = vlaneseq
        %v7733 = vshrl.u32 %v7732, 7
        %v7734 = vsub.s32 %v7731, %v7733
        %v7735 = vrot.slane %v7721, %v7734
        %v7736 = vcombine.low %v6729, %v6741
        %v7737 = vcombine.high %v6729, %v6741
        %v7739 = vunpack.c.l.s4 1983009808
        %v7740 = vunpack.c.0.s8 %v7739
        %v7741 = vlaneseq
        %v7742 = vshrl.u32 %v7741, 7
        %v7743 = vsub.s32 %v7740, %v7742
        %v7744 = vrot.slane %v7736, %v7743
        %v7746 = vunpack.c.l.s4 1983009808
        %v7747 = vunpack.c.0.s8 %v7746
        %v7748 = vlaneseq
        %v7749 = vshrl.u32 %v7748, 7
        %v7750 = vsub.s32 %v7747, %v7749
        %v7751 = vrot.slane %v7737, %v7750
        %v7752 = vcombine.low %v6747, %v6759
        %v7753 = vcombine.high %v6747, %v6759
        %v7755 = vunpack.c.l.s4 1983009808
        %v7756 = vunpack.c.0.s8 %v7755
        %v7757 = vlaneseq
        %v7758 = vshrl.u32 %v7757, 7
        %v7759 = vsub.s32 %v7756, %v7758
        %v7760 = vrot.slane %v7752, %v7759
        %v7762 = vunpack.c.l.s4 1983009808
        %v7763 = vunpack.c.0.s8 %v7762
        %v7764 = vlaneseq
        %v7765 = vshrl.u32 %v7764, 7
        %v7766 = vsub.s32 %v7763, %v7765
        %v7767 = vrot.slane %v7753, %v7766
        %v7768 = vcombine.low %v6753, %v6765
        %v7769 = vcombine.high %v6753, %v6765
        %v7771 = vunpack.c.l.s4 1983009808
        %v7772 = vunpack.c.0.s8 %v7771
        %v7773 = vlaneseq
        %v7774 = vshrl.u32 %v7773, 7
        %v7775 = vsub.s32 %v7772, %v7774
        %v7776 = vrot.slane %v7768, %v7775
        %v7778 = vunpack.c.l.s4 1983009808
        %v7779 = vunpack.c.0.s8 %v7778
        %v7780 = vlaneseq
        %v7781 = vshrl.u32 %v7780, 7
        %v7782 = vsub.s32 %v7779, %v7781
        %v7783 = vrot.slane %v7769, %v7782
        %v7784 = vcombine.low %v7728, %v7744
        %v7785 = vcombine.high %v7728, %v7744
        %v7787 = vunpack.c.l.s4 1934713408
        %v7788 = vunpack.c.0.s8 %v7787
        %v7789 = vlaneseq
        %v7790 = vshrl.u32 %v7789, 7
        %v7791 = vsub.s32 %v7788, %v7790
        %v7792 = vrot.slane %v7784, %v7791
        %v7794 = vunpack.c.l.s4 1934713408
        %v7795 = vunpack.c.0.s8 %v7794
        %v7796 = vlaneseq
        %v7797 = vshrl.u32 %v7796, 7
        %v7798 = vsub.s32 %v7795, %v7797
        %v7799 = vrot.slane %v7785, %v7798
        %v7800 = vcombine.low %v7735, %v7751
        %v7801 = vcombine.high %v7735, %v7751
        %v7803 = vunpack.c.l.s4 1934713408
        %v7804 = vunpack.c.0.s8 %v7803
        %v7805 = vlaneseq
        %v7806 = vshrl.u32 %v7805, 7
        %v7807 = vsub.s32 %v7804, %v7806
        %v7808 = vrot.slane %v7800, %v7807
        %v7810 = vunpack.c.l.s4 1934713408
        %v7811 = vunpack.c.0.s8 %v7810
        %v7812 = vlaneseq
        %v7813 = vshrl.u32 %v7812, 7
        %v7814 = vsub.s32 %v7811, %v7813
        %v7815 = vrot.slane %v7801, %v7814
        %v7816 = vcombine.low %v7760, %v7776
        %v7817 = vcombine.high %v7760, %v7776
        %v7819 = vunpack.c.l.s4 1934713408
        %v7820 = vunpack.c.0.s8 %v7819
        %v7821 = vlaneseq
        %v7822 = vshrl.u32 %v7821, 7
        %v7823 = vsub.s32 %v7820, %v7822
        %v7824 = vrot.slane %v7816, %v7823
        %v7826 = vunpack.c.l.s4 1934713408
        %v7827 = vunpack.c.0.s8 %v7826
        %v7828 = vlaneseq
        %v7829 = vshrl.u32 %v7828, 7
        %v7830 = vsub.s32 %v7827, %v7829
        %v7831 = vrot.slane %v7817, %v7830
        %v7832 = vcombine.low %v7767, %v7783
        %v7833 = vcombine.high %v7767, %v7783
        %v7835 = vunpack.c.l.s4 1934713408
        %v7836 = vunpack.c.0.s8 %v7835
        %v7837 = vlaneseq
        %v7838 = vshrl.u32 %v7837, 7
        %v7839 = vsub.s32 %v7836, %v7838
        %v7840 = vrot.slane %v7832, %v7839
        %v7842 = vunpack.c.l.s4 1934713408
        %v7843 = vunpack.c.0.s8 %v7842
        %v7844 = vlaneseq
        %v7845 = vshrl.u32 %v7844, 7
        %v7846 = vsub.s32 %v7843, %v7845
        %v7847 = vrot.slane %v7833, %v7846
        %v7848 = vcombine.low %v7792, %v7824
        %v7849 = vcombine.high %v7792, %v7824
        %v7850 = vcombine.low %v7799, %v7831
        %v7851 = vcombine.high %v7799, %v7831
        %v7852 = vcombine.low %v7808, %v7840
        %v7853 = vcombine.high %v7808, %v7840
        %v7854 = vcombine.low %v7815, %v7847
        %v7855 = vcombine.high %v7815, %v7847
        %7856 = vxpose.xlu0.b32.start [1/16] %v6896, 128
        %7857 = vxpose.xlu0.b32.cont [2/16] %v7032, 128
        %7858 = vxpose.xlu0.b32.cont [3/16] %v7168, 128
        %7859 = vxpose.xlu0.b32.cont [4/16] %v7304, 128
        %7860 = vxpose.xlu0.b32.cont [5/16] 0.0, 128
        %7861 = vxpose.xlu0.b32.cont [6/16] 0.0, 128
        %7862 = vxpose.xlu0.b32.cont [7/16] 0.0, 128
        %7863 = vxpose.xlu0.b32.cont [8/16] 0.0, 128
        %7864 = vxpose.xlu0.b32.cont [9/16] 0.0, 128
        %7865 = vxpose.xlu0.b32.cont [10/16] 0.0, 128
        %7866 = vxpose.xlu0.b32.cont [11/16] 0.0, 128
        %7867 = vxpose.xlu0.b32.cont [12/16] 0.0, 128
        %7868 = vxpose.xlu0.b32.cont [13/16] 0.0, 128
        %7869 = vxpose.xlu0.b32.cont [14/16] 0.0, 128
        %7870 = vxpose.xlu0.b32.cont [15/16] 0.0, 128
        %7871 = vxpose.xlu0.b32.end [16/16] 0.0, 128
        %v7872 = vpop.trf.xlu0
        %v7873 = vpop.trf.xlu0
        %v7874 = vpop.trf.xlu0
        %v7875 = vpop.trf.xlu0
        %v7876 = vpop.trf.xlu0
        %v7877 = vpop.trf.xlu0
        %v7878 = vpop.trf.xlu0
        %v7879 = vpop.trf.xlu0
        %v7880 = vpop.trf.xlu0
        %v7881 = vpop.trf.xlu0
        %v7882 = vpop.trf.xlu0
        %v7883 = vpop.trf.xlu0
        %v7884 = vpop.trf.xlu0
        %v7885 = vpop.trf.xlu0
        %v7886 = vpop.trf.xlu0
        %v7887 = vpop.trf.xlu0
        %7888 = vxpose.xlu0.b32.start [1/16] %v6897, 128
        %7889 = vxpose.xlu0.b32.cont [2/16] %v7033, 128
        %7890 = vxpose.xlu0.b32.cont [3/16] %v7169, 128
        %7891 = vxpose.xlu0.b32.cont [4/16] %v7305, 128
        %7892 = vxpose.xlu0.b32.cont [5/16] 0.0, 128
        %7893 = vxpose.xlu0.b32.cont [6/16] 0.0, 128
        %7894 = vxpose.xlu0.b32.cont [7/16] 0.0, 128
        %7895 = vxpose.xlu0.b32.cont [8/16] 0.0, 128
        %7896 = vxpose.xlu0.b32.cont [9/16] 0.0, 128
        %7897 = vxpose.xlu0.b32.cont [10/16] 0.0, 128
        %7898 = vxpose.xlu0.b32.cont [11/16] 0.0, 128
        %7899 = vxpose.xlu0.b32.cont [12/16] 0.0, 128
        %7900 = vxpose.xlu0.b32.cont [13/16] 0.0, 128
        %7901 = vxpose.xlu0.b32.cont [14/16] 0.0, 128
        %7902 = vxpose.xlu0.b32.cont [15/16] 0.0, 128
        %7903 = vxpose.xlu0.b32.end [16/16] 0.0, 128
        %v7904 = vpop.trf.xlu0
        %v7905 = vpop.trf.xlu0
        %v7906 = vpop.trf.xlu0
        %v7907 = vpop.trf.xlu0
        %v7908 = vpop.trf.xlu0
        %v7909 = vpop.trf.xlu0
        %v7910 = vpop.trf.xlu0
        %v7911 = vpop.trf.xlu0
        %v7912 = vpop.trf.xlu0
        %v7913 = vpop.trf.xlu0
        %v7914 = vpop.trf.xlu0
        %v7915 = vpop.trf.xlu0
        %v7916 = vpop.trf.xlu0
        %v7917 = vpop.trf.xlu0
        %v7918 = vpop.trf.xlu0
        %v7919 = vpop.trf.xlu0
        %7920 = vxpose.xlu0.b32.start [1/16] %v6898, 128
        %7921 = vxpose.xlu0.b32.cont [2/16] %v7034, 128
        %7922 = vxpose.xlu0.b32.cont [3/16] %v7170, 128
        %7923 = vxpose.xlu0.b32.cont [4/16] %v7306, 128
        %7924 = vxpose.xlu0.b32.cont [5/16] 0.0, 128
        %7925 = vxpose.xlu0.b32.cont [6/16] 0.0, 128
        %7926 = vxpose.xlu0.b32.cont [7/16] 0.0, 128
        %7927 = vxpose.xlu0.b32.cont [8/16] 0.0, 128
        %7928 = vxpose.xlu0.b32.cont [9/16] 0.0, 128
        %7929 = vxpose.xlu0.b32.cont [10/16] 0.0, 128
        %7930 = vxpose.xlu0.b32.cont [11/16] 0.0, 128
        %7931 = vxpose.xlu0.b32.cont [12/16] 0.0, 128
        %7932 = vxpose.xlu0.b32.cont [13/16] 0.0, 128
        %7933 = vxpose.xlu0.b32.cont [14/16] 0.0, 128
        %7934 = vxpose.xlu0.b32.cont [15/16] 0.0, 128
        %7935 = vxpose.xlu0.b32.end [16/16] 0.0, 128
        %v7936 = vpop.trf.xlu0
        %v7937 = vpop.trf.xlu0
        %v7938 = vpop.trf.xlu0
        %v7939 = vpop.trf.xlu0
        %v7940 = vpop.trf.xlu0
        %v7941 = vpop.trf.xlu0
        %v7942 = vpop.trf.xlu0
        %v7943 = vpop.trf.xlu0
        %v7944 = vpop.trf.xlu0
        %v7945 = vpop.trf.xlu0
        %v7946 = vpop.trf.xlu0
        %v7947 = vpop.trf.xlu0
        %v7948 = vpop.trf.xlu0
        %v7949 = vpop.trf.xlu0
        %v7950 = vpop.trf.xlu0
        %v7951 = vpop.trf.xlu0
        %7952 = vxpose.xlu0.b32.start [1/16] %v6899, 128
        %7953 = vxpose.xlu0.b32.cont [2/16] %v7035, 128
        %7954 = vxpose.xlu0.b32.cont [3/16] %v7171, 128
        %7955 = vxpose.xlu0.b32.cont [4/16] %v7307, 128
        %7956 = vxpose.xlu0.b32.cont [5/16] 0.0, 128
        %7957 = vxpose.xlu0.b32.cont [6/16] 0.0, 128
        %7958 = vxpose.xlu0.b32.cont [7/16] 0.0, 128
        %7959 = vxpose.xlu0.b32.cont [8/16] 0.0, 128
        %7960 = vxpose.xlu0.b32.cont [9/16] 0.0, 128
        %7961 = vxpose.xlu0.b32.cont [10/16] 0.0, 128
        %7962 = vxpose.xlu0.b32.cont [11/16] 0.0, 128
        %7963 = vxpose.xlu0.b32.cont [12/16] 0.0, 128
        %7964 = vxpose.xlu0.b32.cont [13/16] 0.0, 128
        %7965 = vxpose.xlu0.b32.cont [14/16] 0.0, 128
        %7966 = vxpose.xlu0.b32.cont [15/16] 0.0, 128
        %7967 = vxpose.xlu0.b32.end [16/16] 0.0, 128
        %v7968 = vpop.trf.xlu0
        %v7969 = vpop.trf.xlu0
        %v7970 = vpop.trf.xlu0
        %v7971 = vpop.trf.xlu0
        %v7972 = vpop.trf.xlu0
        %v7973 = vpop.trf.xlu0
        %v7974 = vpop.trf.xlu0
        %v7975 = vpop.trf.xlu0
        %v7976 = vpop.trf.xlu0
        %v7977 = vpop.trf.xlu0
        %v7978 = vpop.trf.xlu0
        %v7979 = vpop.trf.xlu0
        %v7980 = vpop.trf.xlu0
        %v7981 = vpop.trf.xlu0
        %v7982 = vpop.trf.xlu0
        %v7983 = vpop.trf.xlu0
        %7984 = vxpose.xlu0.b32.start [1/16] %v6900, 128
        %7985 = vxpose.xlu0.b32.cont [2/16] %v7036, 128
        %7986 = vxpose.xlu0.b32.cont [3/16] %v7172, 128
        %7987 = vxpose.xlu0.b32.cont [4/16] %v7308, 128
        %7988 = vxpose.xlu0.b32.cont [5/16] 0.0, 128
        %7989 = vxpose.xlu0.b32.cont [6/16] 0.0, 128
        %7990 = vxpose.xlu0.b32.cont [7/16] 0.0, 128
        %7991 = vxpose.xlu0.b32.cont [8/16] 0.0, 128
        %7992 = vxpose.xlu0.b32.cont [9/16] 0.0, 128
        %7993 = vxpose.xlu0.b32.cont [10/16] 0.0, 128
        %7994 = vxpose.xlu0.b32.cont [11/16] 0.0, 128
        %7995 = vxpose.xlu0.b32.cont [12/16] 0.0, 128
        %7996 = vxpose.xlu0.b32.cont [13/16] 0.0, 128
        %7997 = vxpose.xlu0.b32.cont [14/16] 0.0, 128
        %7998 = vxpose.xlu0.b32.cont [15/16] 0.0, 128
        %7999 = vxpose.xlu0.b32.end [16/16] 0.0, 128
        %v8000 = vpop.trf.xlu0
        %v8001 = vpop.trf.xlu0
        %v8002 = vpop.trf.xlu0
        %v8003 = vpop.trf.xlu0
        %v8004 = vpop.trf.xlu0
        %v8005 = vpop.trf.xlu0
        %v8006 = vpop.trf.xlu0
        %v8007 = vpop.trf.xlu0
        %v8008 = vpop.trf.xlu0
        %v8009 = vpop.trf.xlu0
        %v8010 = vpop.trf.xlu0
        %v8011 = vpop.trf.xlu0
        %v8012 = vpop.trf.xlu0
        %v8013 = vpop.trf.xlu0
        %v8014 = vpop.trf.xlu0
        %v8015 = vpop.trf.xlu0
        %8016 = vxpose.xlu0.b32.start [1/16] %v6901, 128
        %8017 = vxpose.xlu0.b32.cont [2/16] %v7037, 128
        %8018 = vxpose.xlu0.b32.cont [3/16] %v7173, 128
        %8019 = vxpose.xlu0.b32.cont [4/16] %v7309, 128
        %8020 = vxpose.xlu0.b32.cont [5/16] 0.0, 128
        %8021 = vxpose.xlu0.b32.cont [6/16] 0.0, 128
        %8022 = vxpose.xlu0.b32.cont [7/16] 0.0, 128
        %8023 = vxpose.xlu0.b32.cont [8/16] 0.0, 128
        %8024 = vxpose.xlu0.b32.cont [9/16] 0.0, 128
        %8025 = vxpose.xlu0.b32.cont [10/16] 0.0, 128
        %8026 = vxpose.xlu0.b32.cont [11/16] 0.0, 128
        %8027 = vxpose.xlu0.b32.cont [12/16] 0.0, 128
        %8028 = vxpose.xlu0.b32.cont [13/16] 0.0, 128
        %8029 = vxpose.xlu0.b32.cont [14/16] 0.0, 128
        %8030 = vxpose.xlu0.b32.cont [15/16] 0.0, 128
        %8031 = vxpose.xlu0.b32.end [16/16] 0.0, 128
        %v8032 = vpop.trf.xlu0
        %v8033 = vpop.trf.xlu0
        %v8034 = vpop.trf.xlu0
        %v8035 = vpop.trf.xlu0
        %v8036 = vpop.trf.xlu0
        %v8037 = vpop.trf.xlu0
        %v8038 = vpop.trf.xlu0
        %v8039 = vpop.trf.xlu0
        %v8040 = vpop.trf.xlu0
        %v8041 = vpop.trf.xlu0
        %v8042 = vpop.trf.xlu0
        %v8043 = vpop.trf.xlu0
        %v8044 = vpop.trf.xlu0
        %v8045 = vpop.trf.xlu0
        %v8046 = vpop.trf.xlu0
        %v8047 = vpop.trf.xlu0
        %8048 = vxpose.xlu0.b32.start [1/16] %v6902, 128
        %8049 = vxpose.xlu0.b32.cont [2/16] %v7038, 128
        %8050 = vxpose.xlu0.b32.cont [3/16] %v7174, 128
        %8051 = vxpose.xlu0.b32.cont [4/16] %v7310, 128
        %8052 = vxpose.xlu0.b32.cont [5/16] 0.0, 128
        %8053 = vxpose.xlu0.b32.cont [6/16] 0.0, 128
        %8054 = vxpose.xlu0.b32.cont [7/16] 0.0, 128
        %8055 = vxpose.xlu0.b32.cont [8/16] 0.0, 128
        %8056 = vxpose.xlu0.b32.cont [9/16] 0.0, 128
        %8057 = vxpose.xlu0.b32.cont [10/16] 0.0, 128
        %8058 = vxpose.xlu0.b32.cont [11/16] 0.0, 128
        %8059 = vxpose.xlu0.b32.cont [12/16] 0.0, 128
        %8060 = vxpose.xlu0.b32.cont [13/16] 0.0, 128
        %8061 = vxpose.xlu0.b32.cont [14/16] 0.0, 128
        %8062 = vxpose.xlu0.b32.cont [15/16] 0.0, 128
        %8063 = vxpose.xlu0.b32.end [16/16] 0.0, 128
        %v8064 = vpop.trf.xlu0
        %v8065 = vpop.trf.xlu0
        %v8066 = vpop.trf.xlu0
        %v8067 = vpop.trf.xlu0
        %v8068 = vpop.trf.xlu0
        %v8069 = vpop.trf.xlu0
        %v8070 = vpop.trf.xlu0
        %v8071 = vpop.trf.xlu0
        %v8072 = vpop.trf.xlu0
        %v8073 = vpop.trf.xlu0
        %v8074 = vpop.trf.xlu0
        %v8075 = vpop.trf.xlu0
        %v8076 = vpop.trf.xlu0
        %v8077 = vpop.trf.xlu0
        %v8078 = vpop.trf.xlu0
        %v8079 = vpop.trf.xlu0
        %8080 = vxpose.xlu0.b32.start [1/16] %v6903, 128
        %8081 = vxpose.xlu0.b32.cont [2/16] %v7039, 128
        %8082 = vxpose.xlu0.b32.cont [3/16] %v7175, 128
        %8083 = vxpose.xlu0.b32.cont [4/16] %v7311, 128
        %8084 = vxpose.xlu0.b32.cont [5/16] 0.0, 128
        %8085 = vxpose.xlu0.b32.cont [6/16] 0.0, 128
        %8086 = vxpose.xlu0.b32.cont [7/16] 0.0, 128
        %8087 = vxpose.xlu0.b32.cont [8/16] 0.0, 128
        %8088 = vxpose.xlu0.b32.cont [9/16] 0.0, 128
        %8089 = vxpose.xlu0.b32.cont [10/16] 0.0, 128
        %8090 = vxpose.xlu0.b32.cont [11/16] 0.0, 128
        %8091 = vxpose.xlu0.b32.cont [12/16] 0.0, 128
        %8092 = vxpose.xlu0.b32.cont [13/16] 0.0, 128
        %8093 = vxpose.xlu0.b32.cont [14/16] 0.0, 128
        %8094 = vxpose.xlu0.b32.cont [15/16] 0.0, 128
        %8095 = vxpose.xlu0.b32.end [16/16] 0.0, 128
        %v8096 = vpop.trf.xlu0
        %v8097 = vpop.trf.xlu0
        %v8098 = vpop.trf.xlu0
        %v8099 = vpop.trf.xlu0
        %v8100 = vpop.trf.xlu0
        %v8101 = vpop.trf.xlu0
        %v8102 = vpop.trf.xlu0
        %v8103 = vpop.trf.xlu0
        %v8104 = vpop.trf.xlu0
        %v8105 = vpop.trf.xlu0
        %v8106 = vpop.trf.xlu0
        %v8107 = vpop.trf.xlu0
        %v8108 = vpop.trf.xlu0
        %v8109 = vpop.trf.xlu0
        %v8110 = vpop.trf.xlu0
        %v8111 = vpop.trf.xlu0
        %8112 = vxpose.xlu0.b32.start [1/16] %v7440, 128
        %8113 = vxpose.xlu0.b32.cont [2/16] %v7576, 128
        %8114 = vxpose.xlu0.b32.cont [3/16] %v7712, 128
        %8115 = vxpose.xlu0.b32.cont [4/16] %v7848, 128
        %8116 = vxpose.xlu0.b32.cont [5/16] 0.0, 128
        %8117 = vxpose.xlu0.b32.cont [6/16] 0.0, 128
        %8118 = vxpose.xlu0.b32.cont [7/16] 0.0, 128
        %8119 = vxpose.xlu0.b32.cont [8/16] 0.0, 128
        %8120 = vxpose.xlu0.b32.cont [9/16] 0.0, 128
        %8121 = vxpose.xlu0.b32.cont [10/16] 0.0, 128
        %8122 = vxpose.xlu0.b32.cont [11/16] 0.0, 128
        %8123 = vxpose.xlu0.b32.cont [12/16] 0.0, 128
        %8124 = vxpose.xlu0.b32.cont [13/16] 0.0, 128
        %8125 = vxpose.xlu0.b32.cont [14/16] 0.0, 128
        %8126 = vxpose.xlu0.b32.cont [15/16] 0.0, 128
        %8127 = vxpose.xlu0.b32.end [16/16] 0.0, 128
        %v8128 = vpop.trf.xlu0
        %v8129 = vpop.trf.xlu0
        %v8130 = vpop.trf.xlu0
        %v8131 = vpop.trf.xlu0
        %v8132 = vpop.trf.xlu0
        %v8133 = vpop.trf.xlu0
        %v8134 = vpop.trf.xlu0
        %v8135 = vpop.trf.xlu0
        %v8136 = vpop.trf.xlu0
        %v8137 = vpop.trf.xlu0
        %v8138 = vpop.trf.xlu0
        %v8139 = vpop.trf.xlu0
        %v8140 = vpop.trf.xlu0
        %v8141 = vpop.trf.xlu0
        %v8142 = vpop.trf.xlu0
        %v8143 = vpop.trf.xlu0
        %8144 = vxpose.xlu0.b32.start [1/16] %v7441, 128
        %8145 = vxpose.xlu0.b32.cont [2/16] %v7577, 128
        %8146 = vxpose.xlu0.b32.cont [3/16] %v7713, 128
        %8147 = vxpose.xlu0.b32.cont [4/16] %v7849, 128
        %8148 = vxpose.xlu0.b32.cont [5/16] 0.0, 128
        %8149 = vxpose.xlu0.b32.cont [6/16] 0.0, 128
        %8150 = vxpose.xlu0.b32.cont [7/16] 0.0, 128
        %8151 = vxpose.xlu0.b32.cont [8/16] 0.0, 128
        %8152 = vxpose.xlu0.b32.cont [9/16] 0.0, 128
        %8153 = vxpose.xlu0.b32.cont [10/16] 0.0, 128
        %8154 = vxpose.xlu0.b32.cont [11/16] 0.0, 128
        %8155 = vxpose.xlu0.b32.cont [12/16] 0.0, 128
        %8156 = vxpose.xlu0.b32.cont [13/16] 0.0, 128
        %8157 = vxpose.xlu0.b32.cont [14/16] 0.0, 128
        %8158 = vxpose.xlu0.b32.cont [15/16] 0.0, 128
        %8159 = vxpose.xlu0.b32.end [16/16] 0.0, 128
        %v8160 = vpop.trf.xlu0
        %v8161 = vpop.trf.xlu0
        %v8162 = vpop.trf.xlu0
        %v8163 = vpop.trf.xlu0
        %v8164 = vpop.trf.xlu0
        %v8165 = vpop.trf.xlu0
        %v8166 = vpop.trf.xlu0
        %v8167 = vpop.trf.xlu0
        %v8168 = vpop.trf.xlu0
        %v8169 = vpop.trf.xlu0
        %v8170 = vpop.trf.xlu0
        %v8171 = vpop.trf.xlu0
        %v8172 = vpop.trf.xlu0
        %v8173 = vpop.trf.xlu0
        %v8174 = vpop.trf.xlu0
        %v8175 = vpop.trf.xlu0
        %8176 = vxpose.xlu0.b32.start [1/16] %v7442, 128
        %8177 = vxpose.xlu0.b32.cont [2/16] %v7578, 128
        %8178 = vxpose.xlu0.b32.cont [3/16] %v7714, 128
        %8179 = vxpose.xlu0.b32.cont [4/16] %v7850, 128
        %8180 = vxpose.xlu0.b32.cont [5/16] 0.0, 128
        %8181 = vxpose.xlu0.b32.cont [6/16] 0.0, 128
        %8182 = vxpose.xlu0.b32.cont [7/16] 0.0, 128
        %8183 = vxpose.xlu0.b32.cont [8/16] 0.0, 128
        %8184 = vxpose.xlu0.b32.cont [9/16] 0.0, 128
        %8185 = vxpose.xlu0.b32.cont [10/16] 0.0, 128
        %8186 = vxpose.xlu0.b32.cont [11/16] 0.0, 128
        %8187 = vxpose.xlu0.b32.cont [12/16] 0.0, 128
        %8188 = vxpose.xlu0.b32.cont [13/16] 0.0, 128
        %8189 = vxpose.xlu0.b32.cont [14/16] 0.0, 128
        %8190 = vxpose.xlu0.b32.cont [15/16] 0.0, 128
        %8191 = vxpose.xlu0.b32.end [16/16] 0.0, 128
        %v8192 = vpop.trf.xlu0
        %v8193 = vpop.trf.xlu0
        %v8194 = vpop.trf.xlu0
        %v8195 = vpop.trf.xlu0
        %v8196 = vpop.trf.xlu0
        %v8197 = vpop.trf.xlu0
        %v8198 = vpop.trf.xlu0
        %v8199 = vpop.trf.xlu0
        %v8200 = vpop.trf.xlu0
        %v8201 = vpop.trf.xlu0
        %v8202 = vpop.trf.xlu0
        %v8203 = vpop.trf.xlu0
        %v8204 = vpop.trf.xlu0
        %v8205 = vpop.trf.xlu0
        %v8206 = vpop.trf.xlu0
        %v8207 = vpop.trf.xlu0
        %8208 = vxpose.xlu0.b32.start [1/16] %v7443, 128
        %8209 = vxpose.xlu0.b32.cont [2/16] %v7579, 128
        %8210 = vxpose.xlu0.b32.cont [3/16] %v7715, 128
        %8211 = vxpose.xlu0.b32.cont [4/16] %v7851, 128
        %8212 = vxpose.xlu0.b32.cont [5/16] 0.0, 128
        %8213 = vxpose.xlu0.b32.cont [6/16] 0.0, 128
        %8214 = vxpose.xlu0.b32.cont [7/16] 0.0, 128
        %8215 = vxpose.xlu0.b32.cont [8/16] 0.0, 128
        %8216 = vxpose.xlu0.b32.cont [9/16] 0.0, 128
        %8217 = vxpose.xlu0.b32.cont [10/16] 0.0, 128
        %8218 = vxpose.xlu0.b32.cont [11/16] 0.0, 128
        %8219 = vxpose.xlu0.b32.cont [12/16] 0.0, 128
        %8220 = vxpose.xlu0.b32.cont [13/16] 0.0, 128
        %8221 = vxpose.xlu0.b32.cont [14/16] 0.0, 128
        %8222 = vxpose.xlu0.b32.cont [15/16] 0.0, 128
        %8223 = vxpose.xlu0.b32.end [16/16] 0.0, 128
        %v8224 = vpop.trf.xlu0
        %v8225 = vpop.trf.xlu0
        %v8226 = vpop.trf.xlu0
        %v8227 = vpop.trf.xlu0
        %v8228 = vpop.trf.xlu0
        %v8229 = vpop.trf.xlu0
        %v8230 = vpop.trf.xlu0
        %v8231 = vpop.trf.xlu0
        %v8232 = vpop.trf.xlu0
        %v8233 = vpop.trf.xlu0
        %v8234 = vpop.trf.xlu0
        %v8235 = vpop.trf.xlu0
        %v8236 = vpop.trf.xlu0
        %v8237 = vpop.trf.xlu0
        %v8238 = vpop.trf.xlu0
        %v8239 = vpop.trf.xlu0
        %8240 = vxpose.xlu0.b32.start [1/16] %v7444, 128
        %8241 = vxpose.xlu0.b32.cont [2/16] %v7580, 128
        %8242 = vxpose.xlu0.b32.cont [3/16] %v7716, 128
        %8243 = vxpose.xlu0.b32.cont [4/16] %v7852, 128
        %8244 = vxpose.xlu0.b32.cont [5/16] 0.0, 128
        %8245 = vxpose.xlu0.b32.cont [6/16] 0.0, 128
        %8246 = vxpose.xlu0.b32.cont [7/16] 0.0, 128
        %8247 = vxpose.xlu0.b32.cont [8/16] 0.0, 128
        %8248 = vxpose.xlu0.b32.cont [9/16] 0.0, 128
        %8249 = vxpose.xlu0.b32.cont [10/16] 0.0, 128
        %8250 = vxpose.xlu0.b32.cont [11/16] 0.0, 128
        %8251 = vxpose.xlu0.b32.cont [12/16] 0.0, 128
        %8252 = vxpose.xlu0.b32.cont [13/16] 0.0, 128
        %8253 = vxpose.xlu0.b32.cont [14/16] 0.0, 128
        %8254 = vxpose.xlu0.b32.cont [15/16] 0.0, 128
        %8255 = vxpose.xlu0.b32.end [16/16] 0.0, 128
        %v8256 = vpop.trf.xlu0
        %v8257 = vpop.trf.xlu0
        %v8258 = vpop.trf.xlu0
        %v8259 = vpop.trf.xlu0
        %v8260 = vpop.trf.xlu0
        %v8261 = vpop.trf.xlu0
        %v8262 = vpop.trf.xlu0
        %v8263 = vpop.trf.xlu0
        %v8264 = vpop.trf.xlu0
        %v8265 = vpop.trf.xlu0
        %v8266 = vpop.trf.xlu0
        %v8267 = vpop.trf.xlu0
        %v8268 = vpop.trf.xlu0
        %v8269 = vpop.trf.xlu0
        %v8270 = vpop.trf.xlu0
        %v8271 = vpop.trf.xlu0
        %8272 = vxpose.xlu0.b32.start [1/16] %v7445, 128
        %8273 = vxpose.xlu0.b32.cont [2/16] %v7581, 128
        %8274 = vxpose.xlu0.b32.cont [3/16] %v7717, 128
        %8275 = vxpose.xlu0.b32.cont [4/16] %v7853, 128
        %8276 = vxpose.xlu0.b32.cont [5/16] 0.0, 128
        %8277 = vxpose.xlu0.b32.cont [6/16] 0.0, 128
        %8278 = vxpose.xlu0.b32.cont [7/16] 0.0, 128
        %8279 = vxpose.xlu0.b32.cont [8/16] 0.0, 128
        %8280 = vxpose.xlu0.b32.cont [9/16] 0.0, 128
        %8281 = vxpose.xlu0.b32.cont [10/16] 0.0, 128
        %8282 = vxpose.xlu0.b32.cont [11/16] 0.0, 128
        %8283 = vxpose.xlu0.b32.cont [12/16] 0.0, 128
        %8284 = vxpose.xlu0.b32.cont [13/16] 0.0, 128
        %8285 = vxpose.xlu0.b32.cont [14/16] 0.0, 128
        %8286 = vxpose.xlu0.b32.cont [15/16] 0.0, 128
        %8287 = vxpose.xlu0.b32.end [16/16] 0.0, 128
        %v8288 = vpop.trf.xlu0
        %v8289 = vpop.trf.xlu0
        %v8290 = vpop.trf.xlu0
        %v8291 = vpop.trf.xlu0
        %v8292 = vpop.trf.xlu0
        %v8293 = vpop.trf.xlu0
        %v8294 = vpop.trf.xlu0
        %v8295 = vpop.trf.xlu0
        %v8296 = vpop.trf.xlu0
        %v8297 = vpop.trf.xlu0
        %v8298 = vpop.trf.xlu0
        %v8299 = vpop.trf.xlu0
        %v8300 = vpop.trf.xlu0
        %v8301 = vpop.trf.xlu0
        %v8302 = vpop.trf.xlu0
        %v8303 = vpop.trf.xlu0
        %8304 = vxpose.xlu0.b32.start [1/16] %v7446, 128
        %8305 = vxpose.xlu0.b32.cont [2/16] %v7582, 128
        %8306 = vxpose.xlu0.b32.cont [3/16] %v7718, 128
        %8307 = vxpose.xlu0.b32.cont [4/16] %v7854, 128
        %8308 = vxpose.xlu0.b32.cont [5/16] 0.0, 128
        %8309 = vxpose.xlu0.b32.cont [6/16] 0.0, 128
        %8310 = vxpose.xlu0.b32.cont [7/16] 0.0, 128
        %8311 = vxpose.xlu0.b32.cont [8/16] 0.0, 128
        %8312 = vxpose.xlu0.b32.cont [9/16] 0.0, 128
        %8313 = vxpose.xlu0.b32.cont [10/16] 0.0, 128
        %8314 = vxpose.xlu0.b32.cont [11/16] 0.0, 128
        %8315 = vxpose.xlu0.b32.cont [12/16] 0.0, 128
        %8316 = vxpose.xlu0.b32.cont [13/16] 0.0, 128
        %8317 = vxpose.xlu0.b32.cont [14/16] 0.0, 128
        %8318 = vxpose.xlu0.b32.cont [15/16] 0.0, 128
        %8319 = vxpose.xlu0.b32.end [16/16] 0.0, 128
        %v8320 = vpop.trf.xlu0
        %v8321 = vpop.trf.xlu0
        %v8322 = vpop.trf.xlu0
        %v8323 = vpop.trf.xlu0
        %v8324 = vpop.trf.xlu0
        %v8325 = vpop.trf.xlu0
        %v8326 = vpop.trf.xlu0
        %v8327 = vpop.trf.xlu0
        %v8328 = vpop.trf.xlu0
        %v8329 = vpop.trf.xlu0
        %v8330 = vpop.trf.xlu0
        %v8331 = vpop.trf.xlu0
        %v8332 = vpop.trf.xlu0
        %v8333 = vpop.trf.xlu0
        %v8334 = vpop.trf.xlu0
        %v8335 = vpop.trf.xlu0
        %8336 = vxpose.xlu0.b32.start [1/16] %v7447, 128
        %8337 = vxpose.xlu0.b32.cont [2/16] %v7583, 128
        %8338 = vxpose.xlu0.b32.cont [3/16] %v7719, 128
        %8339 = vxpose.xlu0.b32.cont [4/16] %v7855, 128
        %8340 = vxpose.xlu0.b32.cont [5/16] 0.0, 128
        %8341 = vxpose.xlu0.b32.cont [6/16] 0.0, 128
        %8342 = vxpose.xlu0.b32.cont [7/16] 0.0, 128
        %8343 = vxpose.xlu0.b32.cont [8/16] 0.0, 128
        %8344 = vxpose.xlu0.b32.cont [9/16] 0.0, 128
        %8345 = vxpose.xlu0.b32.cont [10/16] 0.0, 128
        %8346 = vxpose.xlu0.b32.cont [11/16] 0.0, 128
        %8347 = vxpose.xlu0.b32.cont [12/16] 0.0, 128
        %8348 = vxpose.xlu0.b32.cont [13/16] 0.0, 128
        %8349 = vxpose.xlu0.b32.cont [14/16] 0.0, 128
        %8350 = vxpose.xlu0.b32.cont [15/16] 0.0, 128
        %8351 = vxpose.xlu0.b32.end [16/16] 0.0, 128
        %v8352 = vpop.trf.xlu0
        %v8353 = vpop.trf.xlu0
        %v8354 = vpop.trf.xlu0
        %v8355 = vpop.trf.xlu0
        %v8356 = vpop.trf.xlu0
        %v8357 = vpop.trf.xlu0
        %v8358 = vpop.trf.xlu0
        %v8359 = vpop.trf.xlu0
        %v8360 = vpop.trf.xlu0
        %v8361 = vpop.trf.xlu0
        %v8362 = vpop.trf.xlu0
        %v8363 = vpop.trf.xlu0
        %v8364 = vpop.trf.xlu0
        %v8365 = vpop.trf.xlu0
        %v8366 = vpop.trf.xlu0
        %v8367 = vpop.trf.xlu0
        %v8368 = vmul.f32 %v6552, %v7872
        %v8369 = vmul.f32 %v6553, %v7872
        %v8370 = vmul.f32 %v6554, %v7872
        %v8371 = vmul.f32 %v6555, %v7872
        %v8372 = vmul.f32 %v6556, %v7872
        %v8373 = vmul.f32 %v6557, %v7872
        %v8374 = vmul.f32 %v6558, %v7872
        %v8375 = vmul.f32 %v6559, %v7872
        %v8376 = vmul.f32 %v6560, %v8000
        %v8377 = vmul.f32 %v6561, %v8000
        %v8378 = vmul.f32 %v6562, %v8000
        %v8379 = vmul.f32 %v6563, %v8000
        %v8380 = vmul.f32 %v6564, %v8000
        %v8381 = vmul.f32 %v6565, %v8000
        %v8382 = vmul.f32 %v6566, %v8000
        %v8383 = vmul.f32 %v6567, %v8000
        %v8384 = vmul.f32 %v6568, %v8128
        %v8385 = vmul.f32 %v6569, %v8128
        %v8386 = vmul.f32 %v6570, %v8128
        %v8387 = vmul.f32 %v6571, %v8128
        %v8388 = vmul.f32 %v6572, %v8128
        %v8389 = vmul.f32 %v6573, %v8128
        %v8390 = vmul.f32 %v6574, %v8128
        %v8391 = vmul.f32 %v6575, %v8128
        %v8392 = vmul.f32 %v6576, %v8256
        %v8393 = vmul.f32 %v6577, %v8256
        %v8394 = vmul.f32 %v6578, %v8256
        %v8395 = vmul.f32 %v6579, %v8256
        %v8396 = vmul.f32 %v6580, %v8256
        %v8397 = vmul.f32 %v6581, %v8256
        %v8398 = vmul.f32 %v6582, %v8256
        %v8399 = vmul.f32 %v6583, %v8256
        %v8400 = vsel %vm5975, %v8368, 0.0
        %v8401 = vrot.slane %v8400, 4
        %v8402 = vadd.f32 %v8400, %v8401
        %v8403 = vrot.slane %v8402, 2
        %v8404 = vadd.f32 %v8402, %v8403
        %v8405 = vrot.slane %v8404, 1
        %v8406 = vadd.f32 %v8404, %v8405
        %v8407 = vsel %vm5975, %v8369, 0.0
        %v8408 = vrot.slane %v8407, 4
        %v8409 = vadd.f32 %v8407, %v8408
        %v8410 = vrot.slane %v8409, 2
        %v8411 = vadd.f32 %v8409, %v8410
        %v8412 = vrot.slane %v8411, 1
        %v8413 = vadd.f32 %v8411, %v8412
        %v8414 = vsel %vm5975, %v8370, 0.0
        %v8415 = vrot.slane %v8414, 4
        %v8416 = vadd.f32 %v8414, %v8415
        %v8417 = vrot.slane %v8416, 2
        %v8418 = vadd.f32 %v8416, %v8417
        %v8419 = vrot.slane %v8418, 1
        %v8420 = vadd.f32 %v8418, %v8419
        %v8421 = vsel %vm5975, %v8371, 0.0
        %v8422 = vrot.slane %v8421, 4
        %v8423 = vadd.f32 %v8421, %v8422
        %v8424 = vrot.slane %v8423, 2
        %v8425 = vadd.f32 %v8423, %v8424
        %v8426 = vrot.slane %v8425, 1
        %v8427 = vadd.f32 %v8425, %v8426
        %v8428 = vsel %vm5975, %v8372, 0.0
        %v8429 = vrot.slane %v8428, 4
        %v8430 = vadd.f32 %v8428, %v8429
        %v8431 = vrot.slane %v8430, 2
        %v8432 = vadd.f32 %v8430, %v8431
        %v8433 = vrot.slane %v8432, 1
        %v8434 = vadd.f32 %v8432, %v8433
        %v8435 = vsel %vm5975, %v8373, 0.0
        %v8436 = vrot.slane %v8435, 4
        %v8437 = vadd.f32 %v8435, %v8436
        %v8438 = vrot.slane %v8437, 2
        %v8439 = vadd.f32 %v8437, %v8438
        %v8440 = vrot.slane %v8439, 1
        %v8441 = vadd.f32 %v8439, %v8440
        %v8442 = vsel %vm5975, %v8374, 0.0
        %v8443 = vrot.slane %v8442, 4
        %v8444 = vadd.f32 %v8442, %v8443
        %v8445 = vrot.slane %v8444, 2
        %v8446 = vadd.f32 %v8444, %v8445
        %v8447 = vrot.slane %v8446, 1
        %v8448 = vadd.f32 %v8446, %v8447
        %v8449 = vsel %vm5975, %v8375, 0.0
        %v8450 = vrot.slane %v8449, 4
        %v8451 = vadd.f32 %v8449, %v8450
        %v8452 = vrot.slane %v8451, 2
        %v8453 = vadd.f32 %v8451, %v8452
        %v8454 = vrot.slane %v8453, 1
        %v8455 = vadd.f32 %v8453, %v8454
        %v8456 = vsel %vm5975, %v8376, 0.0
        %v8457 = vrot.slane %v8456, 4
        %v8458 = vadd.f32 %v8456, %v8457
        %v8459 = vrot.slane %v8458, 2
        %v8460 = vadd.f32 %v8458, %v8459
        %v8461 = vrot.slane %v8460, 1
        %v8462 = vadd.f32 %v8460, %v8461
        %v8463 = vsel %vm5975, %v8377, 0.0
        %v8464 = vrot.slane %v8463, 4
        %v8465 = vadd.f32 %v8463, %v8464
        %v8466 = vrot.slane %v8465, 2
        %v8467 = vadd.f32 %v8465, %v8466
        %v8468 = vrot.slane %v8467, 1
        %v8469 = vadd.f32 %v8467, %v8468
        %v8470 = vsel %vm5975, %v8378, 0.0
        %v8471 = vrot.slane %v8470, 4
        %v8472 = vadd.f32 %v8470, %v8471
        %v8473 = vrot.slane %v8472, 2
        %v8474 = vadd.f32 %v8472, %v8473
        %v8475 = vrot.slane %v8474, 1
        %v8476 = vadd.f32 %v8474, %v8475
        %v8477 = vsel %vm5975, %v8379, 0.0
        %v8478 = vrot.slane %v8477, 4
        %v8479 = vadd.f32 %v8477, %v8478
        %v8480 = vrot.slane %v8479, 2
        %v8481 = vadd.f32 %v8479, %v8480
        %v8482 = vrot.slane %v8481, 1
        %v8483 = vadd.f32 %v8481, %v8482
        %v8484 = vsel %vm5975, %v8380, 0.0
        %v8485 = vrot.slane %v8484, 4
        %v8486 = vadd.f32 %v8484, %v8485
        %v8487 = vrot.slane %v8486, 2
        %v8488 = vadd.f32 %v8486, %v8487
        %v8489 = vrot.slane %v8488, 1
        %v8490 = vadd.f32 %v8488, %v8489
        %v8491 = vsel %vm5975, %v8381, 0.0
        %v8492 = vrot.slane %v8491, 4
        %v8493 = vadd.f32 %v8491, %v8492
        %v8494 = vrot.slane %v8493, 2
        %v8495 = vadd.f32 %v8493, %v8494
        %v8496 = vrot.slane %v8495, 1
        %v8497 = vadd.f32 %v8495, %v8496
        %v8498 = vsel %vm5975, %v8382, 0.0
        %v8499 = vrot.slane %v8498, 4
        %v8500 = vadd.f32 %v8498, %v8499
        %v8501 = vrot.slane %v8500, 2
        %v8502 = vadd.f32 %v8500, %v8501
        %v8503 = vrot.slane %v8502, 1
        %v8504 = vadd.f32 %v8502, %v8503
        %v8505 = vsel %vm5975, %v8383, 0.0
        %v8506 = vrot.slane %v8505, 4
        %v8507 = vadd.f32 %v8505, %v8506
        %v8508 = vrot.slane %v8507, 2
        %v8509 = vadd.f32 %v8507, %v8508
        %v8510 = vrot.slane %v8509, 1
        %v8511 = vadd.f32 %v8509, %v8510
        %v8512 = vsel %vm5975, %v8384, 0.0
        %v8513 = vrot.slane %v8512, 4
        %v8514 = vadd.f32 %v8512, %v8513
        %v8515 = vrot.slane %v8514, 2
        %v8516 = vadd.f32 %v8514, %v8515
        %v8517 = vrot.slane %v8516, 1
        %v8518 = vadd.f32 %v8516, %v8517
        %v8519 = vsel %vm5975, %v8385, 0.0
        %v8520 = vrot.slane %v8519, 4
        %v8521 = vadd.f32 %v8519, %v8520
        %v8522 = vrot.slane %v8521, 2
        %v8523 = vadd.f32 %v8521, %v8522
        %v8524 = vrot.slane %v8523, 1
        %v8525 = vadd.f32 %v8523, %v8524
        %v8526 = vsel %vm5975, %v8386, 0.0
        %v8527 = vrot.slane %v8526, 4
        %v8528 = vadd.f32 %v8526, %v8527
        %v8529 = vrot.slane %v8528, 2
        %v8530 = vadd.f32 %v8528, %v8529
        %v8531 = vrot.slane %v8530, 1
        %v8532 = vadd.f32 %v8530, %v8531
        %v8533 = vsel %vm5975, %v8387, 0.0
        %v8534 = vrot.slane %v8533, 4
        %v8535 = vadd.f32 %v8533, %v8534
        %v8536 = vrot.slane %v8535, 2
        %v8537 = vadd.f32 %v8535, %v8536
        %v8538 = vrot.slane %v8537, 1
        %v8539 = vadd.f32 %v8537, %v8538
        %v8540 = vsel %vm5975, %v8388, 0.0
        %v8541 = vrot.slane %v8540, 4
        %v8542 = vadd.f32 %v8540, %v8541
        %v8543 = vrot.slane %v8542, 2
        %v8544 = vadd.f32 %v8542, %v8543
        %v8545 = vrot.slane %v8544, 1
        %v8546 = vadd.f32 %v8544, %v8545
        %v8547 = vsel %vm5975, %v8389, 0.0
        %v8548 = vrot.slane %v8547, 4
        %v8549 = vadd.f32 %v8547, %v8548
        %v8550 = vrot.slane %v8549, 2
        %v8551 = vadd.f32 %v8549, %v8550
        %v8552 = vrot.slane %v8551, 1
        %v8553 = vadd.f32 %v8551, %v8552
        %v8554 = vsel %vm5975, %v8390, 0.0
        %v8555 = vrot.slane %v8554, 4
        %v8556 = vadd.f32 %v8554, %v8555
        %v8557 = vrot.slane %v8556, 2
        %v8558 = vadd.f32 %v8556, %v8557
        %v8559 = vrot.slane %v8558, 1
        %v8560 = vadd.f32 %v8558, %v8559
        %v8561 = vsel %vm5975, %v8391, 0.0
        %v8562 = vrot.slane %v8561, 4
        %v8563 = vadd.f32 %v8561, %v8562
        %v8564 = vrot.slane %v8563, 2
        %v8565 = vadd.f32 %v8563, %v8564
        %v8566 = vrot.slane %v8565, 1
        %v8567 = vadd.f32 %v8565, %v8566
        %v8568 = vsel %vm5975, %v8392, 0.0
        %v8569 = vrot.slane %v8568, 4
        %v8570 = vadd.f32 %v8568, %v8569
        %v8571 = vrot.slane %v8570, 2
        %v8572 = vadd.f32 %v8570, %v8571
        %v8573 = vrot.slane %v8572, 1
        %v8574 = vadd.f32 %v8572, %v8573
        %v8575 = vsel %vm5975, %v8393, 0.0
        %v8576 = vrot.slane %v8575, 4
        %v8577 = vadd.f32 %v8575, %v8576
        %v8578 = vrot.slane %v8577, 2
        %v8579 = vadd.f32 %v8577, %v8578
        %v8580 = vrot.slane %v8579, 1
        %v8581 = vadd.f32 %v8579, %v8580
        %v8582 = vsel %vm5975, %v8394, 0.0
        %v8583 = vrot.slane %v8582, 4
        %v8584 = vadd.f32 %v8582, %v8583
        %v8585 = vrot.slane %v8584, 2
        %v8586 = vadd.f32 %v8584, %v8585
        %v8587 = vrot.slane %v8586, 1
        %v8588 = vadd.f32 %v8586, %v8587
        %v8589 = vsel %vm5975, %v8395, 0.0
        %v8590 = vrot.slane %v8589, 4
        %v8591 = vadd.f32 %v8589, %v8590
        %v8592 = vrot.slane %v8591, 2
        %v8593 = vadd.f32 %v8591, %v8592
        %v8594 = vrot.slane %v8593, 1
        %v8595 = vadd.f32 %v8593, %v8594
        %v8596 = vsel %vm5975, %v8396, 0.0
        %v8597 = vrot.slane %v8596, 4
        %v8598 = vadd.f32 %v8596, %v8597
        %v8599 = vrot.slane %v8598, 2
        %v8600 = vadd.f32 %v8598, %v8599
        %v8601 = vrot.slane %v8600, 1
        %v8602 = vadd.f32 %v8600, %v8601
        %v8603 = vsel %vm5975, %v8397, 0.0
        %v8604 = vrot.slane %v8603, 4
        %v8605 = vadd.f32 %v8603, %v8604
        %v8606 = vrot.slane %v8605, 2
        %v8607 = vadd.f32 %v8605, %v8606
        %v8608 = vrot.slane %v8607, 1
        %v8609 = vadd.f32 %v8607, %v8608
        %v8610 = vsel %vm5975, %v8398, 0.0
        %v8611 = vrot.slane %v8610, 4
        %v8612 = vadd.f32 %v8610, %v8611
        %v8613 = vrot.slane %v8612, 2
        %v8614 = vadd.f32 %v8612, %v8613
        %v8615 = vrot.slane %v8614, 1
        %v8616 = vadd.f32 %v8614, %v8615
        %v8617 = vsel %vm5975, %v8399, 0.0
        %v8618 = vrot.slane %v8617, 4
        %v8619 = vadd.f32 %v8617, %v8618
        %v8620 = vrot.slane %v8619, 2
        %v8621 = vadd.f32 %v8619, %v8620
        %v8622 = vrot.slane %v8621, 1
        %v8623 = vadd.f32 %v8621, %v8622
        %v8624 = vmul.f32 %v6552, %v7904
        %v8625 = vmul.f32 %v6553, %v7904
        %v8626 = vmul.f32 %v6554, %v7904
        %v8627 = vmul.f32 %v6555, %v7904
        %v8628 = vmul.f32 %v6556, %v7904
        %v8629 = vmul.f32 %v6557, %v7904
        %v8630 = vmul.f32 %v6558, %v7904
        %v8631 = vmul.f32 %v6559, %v7904
        %v8632 = vmul.f32 %v6560, %v8032
        %v8633 = vmul.f32 %v6561, %v8032
        %v8634 = vmul.f32 %v6562, %v8032
        %v8635 = vmul.f32 %v6563, %v8032
        %v8636 = vmul.f32 %v6564, %v8032
        %v8637 = vmul.f32 %v6565, %v8032
        %v8638 = vmul.f32 %v6566, %v8032
        %v8639 = vmul.f32 %v6567, %v8032
        %v8640 = vmul.f32 %v6568, %v8160
        %v8641 = vmul.f32 %v6569, %v8160
        %v8642 = vmul.f32 %v6570, %v8160
        %v8643 = vmul.f32 %v6571, %v8160
        %v8644 = vmul.f32 %v6572, %v8160
        %v8645 = vmul.f32 %v6573, %v8160
        %v8646 = vmul.f32 %v6574, %v8160
        %v8647 = vmul.f32 %v6575, %v8160
        %v8648 = vmul.f32 %v6576, %v8288
        %v8649 = vmul.f32 %v6577, %v8288
        %v8650 = vmul.f32 %v6578, %v8288
        %v8651 = vmul.f32 %v6579, %v8288
        %v8652 = vmul.f32 %v6580, %v8288
        %v8653 = vmul.f32 %v6581, %v8288
        %v8654 = vmul.f32 %v6582, %v8288
        %v8655 = vmul.f32 %v6583, %v8288
        %v8656 = vsel %vm5975, %v8624, 0.0
        %v8657 = vrot.slane %v8656, 4
        %v8658 = vadd.f32 %v8656, %v8657
        %v8659 = vrot.slane %v8658, 2
        %v8660 = vadd.f32 %v8658, %v8659
        %v8661 = vrot.slane %v8660, 1
        %v8662 = vadd.f32 %v8660, %v8661
        %v8663 = vsel %vm5975, %v8625, 0.0
        %v8664 = vrot.slane %v8663, 4
        %v8665 = vadd.f32 %v8663, %v8664
        %v8666 = vrot.slane %v8665, 2
        %v8667 = vadd.f32 %v8665, %v8666
        %v8668 = vrot.slane %v8667, 1
        %v8669 = vadd.f32 %v8667, %v8668
        %v8670 = vsel %vm5975, %v8626, 0.0
        %v8671 = vrot.slane %v8670, 4
        %v8672 = vadd.f32 %v8670, %v8671
        %v8673 = vrot.slane %v8672, 2
        %v8674 = vadd.f32 %v8672, %v8673
        %v8675 = vrot.slane %v8674, 1
        %v8676 = vadd.f32 %v8674, %v8675
        %v8677 = vsel %vm5975, %v8627, 0.0
        %v8678 = vrot.slane %v8677, 4
        %v8679 = vadd.f32 %v8677, %v8678
        %v8680 = vrot.slane %v8679, 2
        %v8681 = vadd.f32 %v8679, %v8680
        %v8682 = vrot.slane %v8681, 1
        %v8683 = vadd.f32 %v8681, %v8682
        %v8684 = vsel %vm5975, %v8628, 0.0
        %v8685 = vrot.slane %v8684, 4
        %v8686 = vadd.f32 %v8684, %v8685
        %v8687 = vrot.slane %v8686, 2
        %v8688 = vadd.f32 %v8686, %v8687
        %v8689 = vrot.slane %v8688, 1
        %v8690 = vadd.f32 %v8688, %v8689
        %v8691 = vsel %vm5975, %v8629, 0.0
        %v8692 = vrot.slane %v8691, 4
        %v8693 = vadd.f32 %v8691, %v8692
        %v8694 = vrot.slane %v8693, 2
        %v8695 = vadd.f32 %v8693, %v8694
        %v8696 = vrot.slane %v8695, 1
        %v8697 = vadd.f32 %v8695, %v8696
        %v8698 = vsel %vm5975, %v8630, 0.0
        %v8699 = vrot.slane %v8698, 4
        %v8700 = vadd.f32 %v8698, %v8699
        %v8701 = vrot.slane %v8700, 2
        %v8702 = vadd.f32 %v8700, %v8701
        %v8703 = vrot.slane %v8702, 1
        %v8704 = vadd.f32 %v8702, %v8703
        %v8705 = vsel %vm5975, %v8631, 0.0
        %v8706 = vrot.slane %v8705, 4
        %v8707 = vadd.f32 %v8705, %v8706
        %v8708 = vrot.slane %v8707, 2
        %v8709 = vadd.f32 %v8707, %v8708
        %v8710 = vrot.slane %v8709, 1
        %v8711 = vadd.f32 %v8709, %v8710
        %v8712 = vsel %vm5975, %v8632, 0.0
        %v8713 = vrot.slane %v8712, 4
        %v8714 = vadd.f32 %v8712, %v8713
        %v8715 = vrot.slane %v8714, 2
        %v8716 = vadd.f32 %v8714, %v8715
        %v8717 = vrot.slane %v8716, 1
        %v8718 = vadd.f32 %v8716, %v8717
        %v8719 = vsel %vm5975, %v8633, 0.0
        %v8720 = vrot.slane %v8719, 4
        %v8721 = vadd.f32 %v8719, %v8720
        %v8722 = vrot.slane %v8721, 2
        %v8723 = vadd.f32 %v8721, %v8722
        %v8724 = vrot.slane %v8723, 1
        %v8725 = vadd.f32 %v8723, %v8724
        %v8726 = vsel %vm5975, %v8634, 0.0
        %v8727 = vrot.slane %v8726, 4
        %v8728 = vadd.f32 %v8726, %v8727
        %v8729 = vrot.slane %v8728, 2
        %v8730 = vadd.f32 %v8728, %v8729
        %v8731 = vrot.slane %v8730, 1
        %v8732 = vadd.f32 %v8730, %v8731
        %v8733 = vsel %vm5975, %v8635, 0.0
        %v8734 = vrot.slane %v8733, 4
        %v8735 = vadd.f32 %v8733, %v8734
        %v8736 = vrot.slane %v8735, 2
        %v8737 = vadd.f32 %v8735, %v8736
        %v8738 = vrot.slane %v8737, 1
        %v8739 = vadd.f32 %v8737, %v8738
        %v8740 = vsel %vm5975, %v8636, 0.0
        %v8741 = vrot.slane %v8740, 4
        %v8742 = vadd.f32 %v8740, %v8741
        %v8743 = vrot.slane %v8742, 2
        %v8744 = vadd.f32 %v8742, %v8743
        %v8745 = vrot.slane %v8744, 1
        %v8746 = vadd.f32 %v8744, %v8745
        %v8747 = vsel %vm5975, %v8637, 0.0
        %v8748 = vrot.slane %v8747, 4
        %v8749 = vadd.f32 %v8747, %v8748
        %v8750 = vrot.slane %v8749, 2
        %v8751 = vadd.f32 %v8749, %v8750
        %v8752 = vrot.slane %v8751, 1
        %v8753 = vadd.f32 %v8751, %v8752
        %v8754 = vsel %vm5975, %v8638, 0.0
        %v8755 = vrot.slane %v8754, 4
        %v8756 = vadd.f32 %v8754, %v8755
        %v8757 = vrot.slane %v8756, 2
        %v8758 = vadd.f32 %v8756, %v8757
        %v8759 = vrot.slane %v8758, 1
        %v8760 = vadd.f32 %v8758, %v8759
        %v8761 = vsel %vm5975, %v8639, 0.0
        %v8762 = vrot.slane %v8761, 4
        %v8763 = vadd.f32 %v8761, %v8762
        %v8764 = vrot.slane %v8763, 2
        %v8765 = vadd.f32 %v8763, %v8764
        %v8766 = vrot.slane %v8765, 1
        %v8767 = vadd.f32 %v8765, %v8766
        %v8768 = vsel %vm5975, %v8640, 0.0
        %v8769 = vrot.slane %v8768, 4
        %v8770 = vadd.f32 %v8768, %v8769
        %v8771 = vrot.slane %v8770, 2
        %v8772 = vadd.f32 %v8770, %v8771
        %v8773 = vrot.slane %v8772, 1
        %v8774 = vadd.f32 %v8772, %v8773
        %v8775 = vsel %vm5975, %v8641, 0.0
        %v8776 = vrot.slane %v8775, 4
        %v8777 = vadd.f32 %v8775, %v8776
        %v8778 = vrot.slane %v8777, 2
        %v8779 = vadd.f32 %v8777, %v8778
        %v8780 = vrot.slane %v8779, 1
        %v8781 = vadd.f32 %v8779, %v8780
        %v8782 = vsel %vm5975, %v8642, 0.0
        %v8783 = vrot.slane %v8782, 4
        %v8784 = vadd.f32 %v8782, %v8783
        %v8785 = vrot.slane %v8784, 2
        %v8786 = vadd.f32 %v8784, %v8785
        %v8787 = vrot.slane %v8786, 1
        %v8788 = vadd.f32 %v8786, %v8787
        %v8789 = vsel %vm5975, %v8643, 0.0
        %v8790 = vrot.slane %v8789, 4
        %v8791 = vadd.f32 %v8789, %v8790
        %v8792 = vrot.slane %v8791, 2
        %v8793 = vadd.f32 %v8791, %v8792
        %v8794 = vrot.slane %v8793, 1
        %v8795 = vadd.f32 %v8793, %v8794
        %v8796 = vsel %vm5975, %v8644, 0.0
        %v8797 = vrot.slane %v8796, 4
        %v8798 = vadd.f32 %v8796, %v8797
        %v8799 = vrot.slane %v8798, 2
        %v8800 = vadd.f32 %v8798, %v8799
        %v8801 = vrot.slane %v8800, 1
        %v8802 = vadd.f32 %v8800, %v8801
        %v8803 = vsel %vm5975, %v8645, 0.0
        %v8804 = vrot.slane %v8803, 4
        %v8805 = vadd.f32 %v8803, %v8804
        %v8806 = vrot.slane %v8805, 2
        %v8807 = vadd.f32 %v8805, %v8806
        %v8808 = vrot.slane %v8807, 1
        %v8809 = vadd.f32 %v8807, %v8808
        %v8810 = vsel %vm5975, %v8646, 0.0
        %v8811 = vrot.slane %v8810, 4
        %v8812 = vadd.f32 %v8810, %v8811
        %v8813 = vrot.slane %v8812, 2
        %v8814 = vadd.f32 %v8812, %v8813
        %v8815 = vrot.slane %v8814, 1
        %v8816 = vadd.f32 %v8814, %v8815
        %v8817 = vsel %vm5975, %v8647, 0.0
        %v8818 = vrot.slane %v8817, 4
        %v8819 = vadd.f32 %v8817, %v8818
        %v8820 = vrot.slane %v8819, 2
        %v8821 = vadd.f32 %v8819, %v8820
        %v8822 = vrot.slane %v8821, 1
        %v8823 = vadd.f32 %v8821, %v8822
        %v8824 = vsel %vm5975, %v8648, 0.0
        %v8825 = vrot.slane %v8824, 4
        %v8826 = vadd.f32 %v8824, %v8825
        %v8827 = vrot.slane %v8826, 2
        %v8828 = vadd.f32 %v8826, %v8827
        %v8829 = vrot.slane %v8828, 1
        %v8830 = vadd.f32 %v8828, %v8829
        %v8831 = vsel %vm5975, %v8649, 0.0
        %v8832 = vrot.slane %v8831, 4
        %v8833 = vadd.f32 %v8831, %v8832
        %v8834 = vrot.slane %v8833, 2
        %v8835 = vadd.f32 %v8833, %v8834
        %v8836 = vrot.slane %v8835, 1
        %v8837 = vadd.f32 %v8835, %v8836
        %v8838 = vsel %vm5975, %v8650, 0.0
        %v8839 = vrot.slane %v8838, 4
        %v8840 = vadd.f32 %v8838, %v8839
        %v8841 = vrot.slane %v8840, 2
        %v8842 = vadd.f32 %v8840, %v8841
        %v8843 = vrot.slane %v8842, 1
        %v8844 = vadd.f32 %v8842, %v8843
        %v8845 = vsel %vm5975, %v8651, 0.0
        %v8846 = vrot.slane %v8845, 4
        %v8847 = vadd.f32 %v8845, %v8846
        %v8848 = vrot.slane %v8847, 2
        %v8849 = vadd.f32 %v8847, %v8848
        %v8850 = vrot.slane %v8849, 1
        %v8851 = vadd.f32 %v8849, %v8850
        %v8852 = vsel %vm5975, %v8652, 0.0
        %v8853 = vrot.slane %v8852, 4
        %v8854 = vadd.f32 %v8852, %v8853
        %v8855 = vrot.slane %v8854, 2
        %v8856 = vadd.f32 %v8854, %v8855
        %v8857 = vrot.slane %v8856, 1
        %v8858 = vadd.f32 %v8856, %v8857
        %v8859 = vsel %vm5975, %v8653, 0.0
        %v8860 = vrot.slane %v8859, 4
        %v8861 = vadd.f32 %v8859, %v8860
        %v8862 = vrot.slane %v8861, 2
        %v8863 = vadd.f32 %v8861, %v8862
        %v8864 = vrot.slane %v8863, 1
        %v8865 = vadd.f32 %v8863, %v8864
        %v8866 = vsel %vm5975, %v8654, 0.0
        %v8867 = vrot.slane %v8866, 4
        %v8868 = vadd.f32 %v8866, %v8867
        %v8869 = vrot.slane %v8868, 2
        %v8870 = vadd.f32 %v8868, %v8869
        %v8871 = vrot.slane %v8870, 1
        %v8872 = vadd.f32 %v8870, %v8871
        %v8873 = vsel %vm5975, %v8655, 0.0
        %v8874 = vrot.slane %v8873, 4
        %v8875 = vadd.f32 %v8873, %v8874
        %v8876 = vrot.slane %v8875, 2
        %v8877 = vadd.f32 %v8875, %v8876
        %v8878 = vrot.slane %v8877, 1
        %v8879 = vadd.f32 %v8877, %v8878
        %v8880 = vmul.f32 %v6552, %v7936
        %v8881 = vmul.f32 %v6553, %v7936
        %v8882 = vmul.f32 %v6554, %v7936
        %v8883 = vmul.f32 %v6555, %v7936
        %v8884 = vmul.f32 %v6556, %v7936
        %v8885 = vmul.f32 %v6557, %v7936
        %v8886 = vmul.f32 %v6558, %v7936
        %v8887 = vmul.f32 %v6559, %v7936
        %v8888 = vmul.f32 %v6560, %v8064
        %v8889 = vmul.f32 %v6561, %v8064
        %v8890 = vmul.f32 %v6562, %v8064
        %v8891 = vmul.f32 %v6563, %v8064
        %v8892 = vmul.f32 %v6564, %v8064
        %v8893 = vmul.f32 %v6565, %v8064
        %v8894 = vmul.f32 %v6566, %v8064
        %v8895 = vmul.f32 %v6567, %v8064
        %v8896 = vmul.f32 %v6568, %v8192
        %v8897 = vmul.f32 %v6569, %v8192
        %v8898 = vmul.f32 %v6570, %v8192
        %v8899 = vmul.f32 %v6571, %v8192
        %v8900 = vmul.f32 %v6572, %v8192
        %v8901 = vmul.f32 %v6573, %v8192
        %v8902 = vmul.f32 %v6574, %v8192
        %v8903 = vmul.f32 %v6575, %v8192
        %v8904 = vmul.f32 %v6576, %v8320
        %v8905 = vmul.f32 %v6577, %v8320
        %v8906 = vmul.f32 %v6578, %v8320
        %v8907 = vmul.f32 %v6579, %v8320
        %v8908 = vmul.f32 %v6580, %v8320
        %v8909 = vmul.f32 %v6581, %v8320
        %v8910 = vmul.f32 %v6582, %v8320
        %v8911 = vmul.f32 %v6583, %v8320
        %v8912 = vsel %vm5975, %v8880, 0.0
        %v8913 = vrot.slane %v8912, 4
        %v8914 = vadd.f32 %v8912, %v8913
        %v8915 = vrot.slane %v8914, 2
        %v8916 = vadd.f32 %v8914, %v8915
        %v8917 = vrot.slane %v8916, 1
        %v8918 = vadd.f32 %v8916, %v8917
        %v8919 = vsel %vm5975, %v8881, 0.0
        %v8920 = vrot.slane %v8919, 4
        %v8921 = vadd.f32 %v8919, %v8920
        %v8922 = vrot.slane %v8921, 2
        %v8923 = vadd.f32 %v8921, %v8922
        %v8924 = vrot.slane %v8923, 1
        %v8925 = vadd.f32 %v8923, %v8924
        %v8926 = vsel %vm5975, %v8882, 0.0
        %v8927 = vrot.slane %v8926, 4
        %v8928 = vadd.f32 %v8926, %v8927
        %v8929 = vrot.slane %v8928, 2
        %v8930 = vadd.f32 %v8928, %v8929
        %v8931 = vrot.slane %v8930, 1
        %v8932 = vadd.f32 %v8930, %v8931
        %v8933 = vsel %vm5975, %v8883, 0.0
        %v8934 = vrot.slane %v8933, 4
        %v8935 = vadd.f32 %v8933, %v8934
        %v8936 = vrot.slane %v8935, 2
        %v8937 = vadd.f32 %v8935, %v8936
        %v8938 = vrot.slane %v8937, 1
        %v8939 = vadd.f32 %v8937, %v8938
        %v8940 = vsel %vm5975, %v8884, 0.0
        %v8941 = vrot.slane %v8940, 4
        %v8942 = vadd.f32 %v8940, %v8941
        %v8943 = vrot.slane %v8942, 2
        %v8944 = vadd.f32 %v8942, %v8943
        %v8945 = vrot.slane %v8944, 1
        %v8946 = vadd.f32 %v8944, %v8945
        %v8947 = vsel %vm5975, %v8885, 0.0
        %v8948 = vrot.slane %v8947, 4
        %v8949 = vadd.f32 %v8947, %v8948
        %v8950 = vrot.slane %v8949, 2
        %v8951 = vadd.f32 %v8949, %v8950
        %v8952 = vrot.slane %v8951, 1
        %v8953 = vadd.f32 %v8951, %v8952
        %v8954 = vsel %vm5975, %v8886, 0.0
        %v8955 = vrot.slane %v8954, 4
        %v8956 = vadd.f32 %v8954, %v8955
        %v8957 = vrot.slane %v8956, 2
        %v8958 = vadd.f32 %v8956, %v8957
        %v8959 = vrot.slane %v8958, 1
        %v8960 = vadd.f32 %v8958, %v8959
        %v8961 = vsel %vm5975, %v8887, 0.0
        %v8962 = vrot.slane %v8961, 4
        %v8963 = vadd.f32 %v8961, %v8962
        %v8964 = vrot.slane %v8963, 2
        %v8965 = vadd.f32 %v8963, %v8964
        %v8966 = vrot.slane %v8965, 1
        %v8967 = vadd.f32 %v8965, %v8966
        %v8968 = vsel %vm5975, %v8888, 0.0
        %v8969 = vrot.slane %v8968, 4
        %v8970 = vadd.f32 %v8968, %v8969
        %v8971 = vrot.slane %v8970, 2
        %v8972 = vadd.f32 %v8970, %v8971
        %v8973 = vrot.slane %v8972, 1
        %v8974 = vadd.f32 %v8972, %v8973
        %v8975 = vsel %vm5975, %v8889, 0.0
        %v8976 = vrot.slane %v8975, 4
        %v8977 = vadd.f32 %v8975, %v8976
        %v8978 = vrot.slane %v8977, 2
        %v8979 = vadd.f32 %v8977, %v8978
        %v8980 = vrot.slane %v8979, 1
        %v8981 = vadd.f32 %v8979, %v8980
        %v8982 = vsel %vm5975, %v8890, 0.0
        %v8983 = vrot.slane %v8982, 4
        %v8984 = vadd.f32 %v8982, %v8983
        %v8985 = vrot.slane %v8984, 2
        %v8986 = vadd.f32 %v8984, %v8985
        %v8987 = vrot.slane %v8986, 1
        %v8988 = vadd.f32 %v8986, %v8987
        %v8989 = vsel %vm5975, %v8891, 0.0
        %v8990 = vrot.slane %v8989, 4
        %v8991 = vadd.f32 %v8989, %v8990
        %v8992 = vrot.slane %v8991, 2
        %v8993 = vadd.f32 %v8991, %v8992
        %v8994 = vrot.slane %v8993, 1
        %v8995 = vadd.f32 %v8993, %v8994
        %v8996 = vsel %vm5975, %v8892, 0.0
        %v8997 = vrot.slane %v8996, 4
        %v8998 = vadd.f32 %v8996, %v8997
        %v8999 = vrot.slane %v8998, 2
        %v9000 = vadd.f32 %v8998, %v8999
        %v9001 = vrot.slane %v9000, 1
        %v9002 = vadd.f32 %v9000, %v9001
        %v9003 = vsel %vm5975, %v8893, 0.0
        %v9004 = vrot.slane %v9003, 4
        %v9005 = vadd.f32 %v9003, %v9004
        %v9006 = vrot.slane %v9005, 2
        %v9007 = vadd.f32 %v9005, %v9006
        %v9008 = vrot.slane %v9007, 1
        %v9009 = vadd.f32 %v9007, %v9008
        %v9010 = vsel %vm5975, %v8894, 0.0
        %v9011 = vrot.slane %v9010, 4
        %v9012 = vadd.f32 %v9010, %v9011
        %v9013 = vrot.slane %v9012, 2
        %v9014 = vadd.f32 %v9012, %v9013
        %v9015 = vrot.slane %v9014, 1
        %v9016 = vadd.f32 %v9014, %v9015
        %v9017 = vsel %vm5975, %v8895, 0.0
        %v9018 = vrot.slane %v9017, 4
        %v9019 = vadd.f32 %v9017, %v9018
        %v9020 = vrot.slane %v9019, 2
        %v9021 = vadd.f32 %v9019, %v9020
        %v9022 = vrot.slane %v9021, 1
        %v9023 = vadd.f32 %v9021, %v9022
        %v9024 = vsel %vm5975, %v8896, 0.0
        %v9025 = vrot.slane %v9024, 4
        %v9026 = vadd.f32 %v9024, %v9025
        %v9027 = vrot.slane %v9026, 2
        %v9028 = vadd.f32 %v9026, %v9027
        %v9029 = vrot.slane %v9028, 1
        %v9030 = vadd.f32 %v9028, %v9029
        %v9031 = vsel %vm5975, %v8897, 0.0
        %v9032 = vrot.slane %v9031, 4
        %v9033 = vadd.f32 %v9031, %v9032
        %v9034 = vrot.slane %v9033, 2
        %v9035 = vadd.f32 %v9033, %v9034
        %v9036 = vrot.slane %v9035, 1
        %v9037 = vadd.f32 %v9035, %v9036
        %v9038 = vsel %vm5975, %v8898, 0.0
        %v9039 = vrot.slane %v9038, 4
        %v9040 = vadd.f32 %v9038, %v9039
        %v9041 = vrot.slane %v9040, 2
        %v9042 = vadd.f32 %v9040, %v9041
        %v9043 = vrot.slane %v9042, 1
        %v9044 = vadd.f32 %v9042, %v9043
        %v9045 = vsel %vm5975, %v8899, 0.0
        %v9046 = vrot.slane %v9045, 4
        %v9047 = vadd.f32 %v9045, %v9046
        %v9048 = vrot.slane %v9047, 2
        %v9049 = vadd.f32 %v9047, %v9048
        %v9050 = vrot.slane %v9049, 1
        %v9051 = vadd.f32 %v9049, %v9050
        %v9052 = vsel %vm5975, %v8900, 0.0
        %v9053 = vrot.slane %v9052, 4
        %v9054 = vadd.f32 %v9052, %v9053
        %v9055 = vrot.slane %v9054, 2
        %v9056 = vadd.f32 %v9054, %v9055
        %v9057 = vrot.slane %v9056, 1
        %v9058 = vadd.f32 %v9056, %v9057
        %v9059 = vsel %vm5975, %v8901, 0.0
        %v9060 = vrot.slane %v9059, 4
        %v9061 = vadd.f32 %v9059, %v9060
        %v9062 = vrot.slane %v9061, 2
        %v9063 = vadd.f32 %v9061, %v9062
        %v9064 = vrot.slane %v9063, 1
        %v9065 = vadd.f32 %v9063, %v9064
        %v9066 = vsel %vm5975, %v8902, 0.0
        %v9067 = vrot.slane %v9066, 4
        %v9068 = vadd.f32 %v9066, %v9067
        %v9069 = vrot.slane %v9068, 2
        %v9070 = vadd.f32 %v9068, %v9069
        %v9071 = vrot.slane %v9070, 1
        %v9072 = vadd.f32 %v9070, %v9071
        %v9073 = vsel %vm5975, %v8903, 0.0
        %v9074 = vrot.slane %v9073, 4
        %v9075 = vadd.f32 %v9073, %v9074
        %v9076 = vrot.slane %v9075, 2
        %v9077 = vadd.f32 %v9075, %v9076
        %v9078 = vrot.slane %v9077, 1
        %v9079 = vadd.f32 %v9077, %v9078
        %v9080 = vsel %vm5975, %v8904, 0.0
        %v9081 = vrot.slane %v9080, 4
        %v9082 = vadd.f32 %v9080, %v9081
        %v9083 = vrot.slane %v9082, 2
        %v9084 = vadd.f32 %v9082, %v9083
        %v9085 = vrot.slane %v9084, 1
        %v9086 = vadd.f32 %v9084, %v9085
        %v9087 = vsel %vm5975, %v8905, 0.0
        %v9088 = vrot.slane %v9087, 4
        %v9089 = vadd.f32 %v9087, %v9088
        %v9090 = vrot.slane %v9089, 2
        %v9091 = vadd.f32 %v9089, %v9090
        %v9092 = vrot.slane %v9091, 1
        %v9093 = vadd.f32 %v9091, %v9092
        %v9094 = vsel %vm5975, %v8906, 0.0
        %v9095 = vrot.slane %v9094, 4
        %v9096 = vadd.f32 %v9094, %v9095
        %v9097 = vrot.slane %v9096, 2
        %v9098 = vadd.f32 %v9096, %v9097
        %v9099 = vrot.slane %v9098, 1
        %v9100 = vadd.f32 %v9098, %v9099
        %v9101 = vsel %vm5975, %v8907, 0.0
        %v9102 = vrot.slane %v9101, 4
        %v9103 = vadd.f32 %v9101, %v9102
        %v9104 = vrot.slane %v9103, 2
        %v9105 = vadd.f32 %v9103, %v9104
        %v9106 = vrot.slane %v9105, 1
        %v9107 = vadd.f32 %v9105, %v9106
        %v9108 = vsel %vm5975, %v8908, 0.0
        %v9109 = vrot.slane %v9108, 4
        %v9110 = vadd.f32 %v9108, %v9109
        %v9111 = vrot.slane %v9110, 2
        %v9112 = vadd.f32 %v9110, %v9111
        %v9113 = vrot.slane %v9112, 1
        %v9114 = vadd.f32 %v9112, %v9113
        %v9115 = vsel %vm5975, %v8909, 0.0
        %v9116 = vrot.slane %v9115, 4
        %v9117 = vadd.f32 %v9115, %v9116
        %v9118 = vrot.slane %v9117, 2
        %v9119 = vadd.f32 %v9117, %v9118
        %v9120 = vrot.slane %v9119, 1
        %v9121 = vadd.f32 %v9119, %v9120
        %v9122 = vsel %vm5975, %v8910, 0.0
        %v9123 = vrot.slane %v9122, 4
        %v9124 = vadd.f32 %v9122, %v9123
        %v9125 = vrot.slane %v9124, 2
        %v9126 = vadd.f32 %v9124, %v9125
        %v9127 = vrot.slane %v9126, 1
        %v9128 = vadd.f32 %v9126, %v9127
        %v9129 = vsel %vm5975, %v8911, 0.0
        %v9130 = vrot.slane %v9129, 4
        %v9131 = vadd.f32 %v9129, %v9130
        %v9132 = vrot.slane %v9131, 2
        %v9133 = vadd.f32 %v9131, %v9132
        %v9134 = vrot.slane %v9133, 1
        %v9135 = vadd.f32 %v9133, %v9134
        %v9136 = vmul.f32 %v6552, %v7968
        %v9137 = vmul.f32 %v6553, %v7968
        %v9138 = vmul.f32 %v6554, %v7968
        %v9139 = vmul.f32 %v6555, %v7968
        %v9140 = vmul.f32 %v6556, %v7968
        %v9141 = vmul.f32 %v6557, %v7968
        %v9142 = vmul.f32 %v6558, %v7968
        %v9143 = vmul.f32 %v6559, %v7968
        %v9144 = vmul.f32 %v6560, %v8096
        %v9145 = vmul.f32 %v6561, %v8096
        %v9146 = vmul.f32 %v6562, %v8096
        %v9147 = vmul.f32 %v6563, %v8096
        %v9148 = vmul.f32 %v6564, %v8096
        %v9149 = vmul.f32 %v6565, %v8096
        %v9150 = vmul.f32 %v6566, %v8096
        %v9151 = vmul.f32 %v6567, %v8096
        %v9152 = vmul.f32 %v6568, %v8224
        %v9153 = vmul.f32 %v6569, %v8224
        %v9154 = vmul.f32 %v6570, %v8224
        %v9155 = vmul.f32 %v6571, %v8224
        %v9156 = vmul.f32 %v6572, %v8224
        %v9157 = vmul.f32 %v6573, %v8224
        %v9158 = vmul.f32 %v6574, %v8224
        %v9159 = vmul.f32 %v6575, %v8224
        %v9160 = vmul.f32 %v6576, %v8352
        %v9161 = vmul.f32 %v6577, %v8352
        %v9162 = vmul.f32 %v6578, %v8352
        %v9163 = vmul.f32 %v6579, %v8352
        %v9164 = vmul.f32 %v6580, %v8352
        %v9165 = vmul.f32 %v6581, %v8352
        %v9166 = vmul.f32 %v6582, %v8352
        %v9167 = vmul.f32 %v6583, %v8352
        %v9168 = vsel %vm5975, %v9136, 0.0
        %v9169 = vrot.slane %v9168, 4
        %v9170 = vadd.f32 %v9168, %v9169
        %v9171 = vrot.slane %v9170, 2
        %v9172 = vadd.f32 %v9170, %v9171
        %v9173 = vrot.slane %v9172, 1
        %v9174 = vadd.f32 %v9172, %v9173
        %v9175 = vsel %vm5975, %v9137, 0.0
        %v9176 = vrot.slane %v9175, 4
        %v9177 = vadd.f32 %v9175, %v9176
        %v9178 = vrot.slane %v9177, 2
        %v9179 = vadd.f32 %v9177, %v9178
        %v9180 = vrot.slane %v9179, 1
        %v9181 = vadd.f32 %v9179, %v9180
        %v9182 = vsel %vm5975, %v9138, 0.0
        %v9183 = vrot.slane %v9182, 4
        %v9184 = vadd.f32 %v9182, %v9183
        %v9185 = vrot.slane %v9184, 2
        %v9186 = vadd.f32 %v9184, %v9185
        %v9187 = vrot.slane %v9186, 1
        %v9188 = vadd.f32 %v9186, %v9187
        %v9189 = vsel %vm5975, %v9139, 0.0
        %v9190 = vrot.slane %v9189, 4
        %v9191 = vadd.f32 %v9189, %v9190
        %v9192 = vrot.slane %v9191, 2
        %v9193 = vadd.f32 %v9191, %v9192
        %v9194 = vrot.slane %v9193, 1
        %v9195 = vadd.f32 %v9193, %v9194
        %v9196 = vsel %vm5975, %v9140, 0.0
        %v9197 = vrot.slane %v9196, 4
        %v9198 = vadd.f32 %v9196, %v9197
        %v9199 = vrot.slane %v9198, 2
        %v9200 = vadd.f32 %v9198, %v9199
        %v9201 = vrot.slane %v9200, 1
        %v9202 = vadd.f32 %v9200, %v9201
        %v9203 = vsel %vm5975, %v9141, 0.0
        %v9204 = vrot.slane %v9203, 4
        %v9205 = vadd.f32 %v9203, %v9204
        %v9206 = vrot.slane %v9205, 2
        %v9207 = vadd.f32 %v9205, %v9206
        %v9208 = vrot.slane %v9207, 1
        %v9209 = vadd.f32 %v9207, %v9208
        %v9210 = vsel %vm5975, %v9142, 0.0
        %v9211 = vrot.slane %v9210, 4
        %v9212 = vadd.f32 %v9210, %v9211
        %v9213 = vrot.slane %v9212, 2
        %v9214 = vadd.f32 %v9212, %v9213
        %v9215 = vrot.slane %v9214, 1
        %v9216 = vadd.f32 %v9214, %v9215
        %v9217 = vsel %vm5975, %v9143, 0.0
        %v9218 = vrot.slane %v9217, 4
        %v9219 = vadd.f32 %v9217, %v9218
        %v9220 = vrot.slane %v9219, 2
        %v9221 = vadd.f32 %v9219, %v9220
        %v9222 = vrot.slane %v9221, 1
        %v9223 = vadd.f32 %v9221, %v9222
        %v9224 = vsel %vm5975, %v9144, 0.0
        %v9225 = vrot.slane %v9224, 4
        %v9226 = vadd.f32 %v9224, %v9225
        %v9227 = vrot.slane %v9226, 2
        %v9228 = vadd.f32 %v9226, %v9227
        %v9229 = vrot.slane %v9228, 1
        %v9230 = vadd.f32 %v9228, %v9229
        %v9231 = vsel %vm5975, %v9145, 0.0
        %v9232 = vrot.slane %v9231, 4
        %v9233 = vadd.f32 %v9231, %v9232
        %v9234 = vrot.slane %v9233, 2
        %v9235 = vadd.f32 %v9233, %v9234
        %v9236 = vrot.slane %v9235, 1
        %v9237 = vadd.f32 %v9235, %v9236
        %v9238 = vsel %vm5975, %v9146, 0.0
        %v9239 = vrot.slane %v9238, 4
        %v9240 = vadd.f32 %v9238, %v9239
        %v9241 = vrot.slane %v9240, 2
        %v9242 = vadd.f32 %v9240, %v9241
        %v9243 = vrot.slane %v9242, 1
        %v9244 = vadd.f32 %v9242, %v9243
        %v9245 = vsel %vm5975, %v9147, 0.0
        %v9246 = vrot.slane %v9245, 4
        %v9247 = vadd.f32 %v9245, %v9246
        %v9248 = vrot.slane %v9247, 2
        %v9249 = vadd.f32 %v9247, %v9248
        %v9250 = vrot.slane %v9249, 1
        %v9251 = vadd.f32 %v9249, %v9250
        %v9252 = vsel %vm5975, %v9148, 0.0
        %v9253 = vrot.slane %v9252, 4
        %v9254 = vadd.f32 %v9252, %v9253
        %v9255 = vrot.slane %v9254, 2
        %v9256 = vadd.f32 %v9254, %v9255
        %v9257 = vrot.slane %v9256, 1
        %v9258 = vadd.f32 %v9256, %v9257
        %v9259 = vsel %vm5975, %v9149, 0.0
        %v9260 = vrot.slane %v9259, 4
        %v9261 = vadd.f32 %v9259, %v9260
        %v9262 = vrot.slane %v9261, 2
        %v9263 = vadd.f32 %v9261, %v9262
        %v9264 = vrot.slane %v9263, 1
        %v9265 = vadd.f32 %v9263, %v9264
        %v9266 = vsel %vm5975, %v9150, 0.0
        %v9267 = vrot.slane %v9266, 4
        %v9268 = vadd.f32 %v9266, %v9267
        %v9269 = vrot.slane %v9268, 2
        %v9270 = vadd.f32 %v9268, %v9269
        %v9271 = vrot.slane %v9270, 1
        %v9272 = vadd.f32 %v9270, %v9271
        %v9273 = vsel %vm5975, %v9151, 0.0
        %v9274 = vrot.slane %v9273, 4
        %v9275 = vadd.f32 %v9273, %v9274
        %v9276 = vrot.slane %v9275, 2
        %v9277 = vadd.f32 %v9275, %v9276
        %v9278 = vrot.slane %v9277, 1
        %v9279 = vadd.f32 %v9277, %v9278
        %v9280 = vsel %vm5975, %v9152, 0.0
        %v9281 = vrot.slane %v9280, 4
        %v9282 = vadd.f32 %v9280, %v9281
        %v9283 = vrot.slane %v9282, 2
        %v9284 = vadd.f32 %v9282, %v9283
        %v9285 = vrot.slane %v9284, 1
        %v9286 = vadd.f32 %v9284, %v9285
        %v9287 = vsel %vm5975, %v9153, 0.0
        %v9288 = vrot.slane %v9287, 4
        %v9289 = vadd.f32 %v9287, %v9288
        %v9290 = vrot.slane %v9289, 2
        %v9291 = vadd.f32 %v9289, %v9290
        %v9292 = vrot.slane %v9291, 1
        %v9293 = vadd.f32 %v9291, %v9292
        %v9294 = vsel %vm5975, %v9154, 0.0
        %v9295 = vrot.slane %v9294, 4
        %v9296 = vadd.f32 %v9294, %v9295
        %v9297 = vrot.slane %v9296, 2
        %v9298 = vadd.f32 %v9296, %v9297
        %v9299 = vrot.slane %v9298, 1
        %v9300 = vadd.f32 %v9298, %v9299
        %v9301 = vsel %vm5975, %v9155, 0.0
        %v9302 = vrot.slane %v9301, 4
        %v9303 = vadd.f32 %v9301, %v9302
        %v9304 = vrot.slane %v9303, 2
        %v9305 = vadd.f32 %v9303, %v9304
        %v9306 = vrot.slane %v9305, 1
        %v9307 = vadd.f32 %v9305, %v9306
        %v9308 = vsel %vm5975, %v9156, 0.0
        %v9309 = vrot.slane %v9308, 4
        %v9310 = vadd.f32 %v9308, %v9309
        %v9311 = vrot.slane %v9310, 2
        %v9312 = vadd.f32 %v9310, %v9311
        %v9313 = vrot.slane %v9312, 1
        %v9314 = vadd.f32 %v9312, %v9313
        %v9315 = vsel %vm5975, %v9157, 0.0
        %v9316 = vrot.slane %v9315, 4
        %v9317 = vadd.f32 %v9315, %v9316
        %v9318 = vrot.slane %v9317, 2
        %v9319 = vadd.f32 %v9317, %v9318
        %v9320 = vrot.slane %v9319, 1
        %v9321 = vadd.f32 %v9319, %v9320
        %v9322 = vsel %vm5975, %v9158, 0.0
        %v9323 = vrot.slane %v9322, 4
        %v9324 = vadd.f32 %v9322, %v9323
        %v9325 = vrot.slane %v9324, 2
        %v9326 = vadd.f32 %v9324, %v9325
        %v9327 = vrot.slane %v9326, 1
        %v9328 = vadd.f32 %v9326, %v9327
        %v9329 = vsel %vm5975, %v9159, 0.0
        %v9330 = vrot.slane %v9329, 4
        %v9331 = vadd.f32 %v9329, %v9330
        %v9332 = vrot.slane %v9331, 2
        %v9333 = vadd.f32 %v9331, %v9332
        %v9334 = vrot.slane %v9333, 1
        %v9335 = vadd.f32 %v9333, %v9334
        %v9336 = vsel %vm5975, %v9160, 0.0
        %v9337 = vrot.slane %v9336, 4
        %v9338 = vadd.f32 %v9336, %v9337
        %v9339 = vrot.slane %v9338, 2
        %v9340 = vadd.f32 %v9338, %v9339
        %v9341 = vrot.slane %v9340, 1
        %v9342 = vadd.f32 %v9340, %v9341
        %v9343 = vsel %vm5975, %v9161, 0.0
        %v9344 = vrot.slane %v9343, 4
        %v9345 = vadd.f32 %v9343, %v9344
        %v9346 = vrot.slane %v9345, 2
        %v9347 = vadd.f32 %v9345, %v9346
        %v9348 = vrot.slane %v9347, 1
        %v9349 = vadd.f32 %v9347, %v9348
        %v9350 = vsel %vm5975, %v9162, 0.0
        %v9351 = vrot.slane %v9350, 4
        %v9352 = vadd.f32 %v9350, %v9351
        %v9353 = vrot.slane %v9352, 2
        %v9354 = vadd.f32 %v9352, %v9353
        %v9355 = vrot.slane %v9354, 1
        %v9356 = vadd.f32 %v9354, %v9355
        %v9357 = vsel %vm5975, %v9163, 0.0
        %v9358 = vrot.slane %v9357, 4
        %v9359 = vadd.f32 %v9357, %v9358
        %v9360 = vrot.slane %v9359, 2
        %v9361 = vadd.f32 %v9359, %v9360
        %v9362 = vrot.slane %v9361, 1
        %v9363 = vadd.f32 %v9361, %v9362
        %v9364 = vsel %vm5975, %v9164, 0.0
        %v9365 = vrot.slane %v9364, 4
        %v9366 = vadd.f32 %v9364, %v9365
        %v9367 = vrot.slane %v9366, 2
        %v9368 = vadd.f32 %v9366, %v9367
        %v9369 = vrot.slane %v9368, 1
        %v9370 = vadd.f32 %v9368, %v9369
        %v9371 = vsel %vm5975, %v9165, 0.0
        %v9372 = vrot.slane %v9371, 4
        %v9373 = vadd.f32 %v9371, %v9372
        %v9374 = vrot.slane %v9373, 2
        %v9375 = vadd.f32 %v9373, %v9374
        %v9376 = vrot.slane %v9375, 1
        %v9377 = vadd.f32 %v9375, %v9376
        %v9378 = vsel %vm5975, %v9166, 0.0
        %v9379 = vrot.slane %v9378, 4
        %v9380 = vadd.f32 %v9378, %v9379
        %v9381 = vrot.slane %v9380, 2
        %v9382 = vadd.f32 %v9380, %v9381
        %v9383 = vrot.slane %v9382, 1
        %v9384 = vadd.f32 %v9382, %v9383
        %v9385 = vsel %vm5975, %v9167, 0.0
        %v9386 = vrot.slane %v9385, 4
        %v9387 = vadd.f32 %v9385, %v9386
        %v9388 = vrot.slane %v9387, 2
        %v9389 = vadd.f32 %v9387, %v9388
        %v9390 = vrot.slane %v9389, 1
        %v9391 = vadd.f32 %v9389, %v9390
        %v9520 = vrot.slane %v8413, 7
        %vm9521 = vcmask 1041409
        %v9522 = vsel %vm9521, %v9520, %v8406
        %v9523 = vrot.slane %v8420, 6
        %vm9524 = vcmask 1042434
        %v9525 = vsel %vm9524, %v9523, %v9522
        %v9526 = vrot.slane %v8427, 5
        %vm9527 = vcmask 1043459
        %v9528 = vsel %vm9527, %v9526, %v9525
        %v9529 = vrot.slane %v8434, 4
        %vm9530 = vcmask 1044484
        %v9531 = vsel %vm9530, %v9529, %v9528
        %v9532 = vrot.slane %v8441, 3
        %vm9533 = vcmask 1045509
        %v9534 = vsel %vm9533, %v9532, %v9531
        %v9535 = vrot.slane %v8448, 2
        %vm9536 = vcmask 1046534
        %v9537 = vsel %vm9536, %v9535, %v9534
        %v9538 = vrot.slane %v8455, 1
        %vm9539 = vcmask 1047559
        %v9540 = vsel %vm9539, %v9538, %v9537
        %v9541 = vrot.slane %v8669, 7
        %v9542 = vsel %vm9521, %v9541, %v8662
        %v9543 = vrot.slane %v8676, 6
        %v9544 = vsel %vm9524, %v9543, %v9542
        %v9545 = vrot.slane %v8683, 5
        %v9546 = vsel %vm9527, %v9545, %v9544
        %v9547 = vrot.slane %v8690, 4
        %v9548 = vsel %vm9530, %v9547, %v9546
        %v9549 = vrot.slane %v8697, 3
        %v9550 = vsel %vm9533, %v9549, %v9548
        %v9551 = vrot.slane %v8704, 2
        %v9552 = vsel %vm9536, %v9551, %v9550
        %v9553 = vrot.slane %v8711, 1
        %v9554 = vsel %vm9539, %v9553, %v9552
        %v9555 = vrot.slane %v8925, 7
        %v9556 = vsel %vm9521, %v9555, %v8918
        %v9557 = vrot.slane %v8932, 6
        %v9558 = vsel %vm9524, %v9557, %v9556
        %v9559 = vrot.slane %v8939, 5
        %v9560 = vsel %vm9527, %v9559, %v9558
        %v9561 = vrot.slane %v8946, 4
        %v9562 = vsel %vm9530, %v9561, %v9560
        %v9563 = vrot.slane %v8953, 3
        %v9564 = vsel %vm9533, %v9563, %v9562
        %v9565 = vrot.slane %v8960, 2
        %v9566 = vsel %vm9536, %v9565, %v9564
        %v9567 = vrot.slane %v8967, 1
        %v9568 = vsel %vm9539, %v9567, %v9566
        %v9569 = vrot.slane %v9181, 7
        %v9570 = vsel %vm9521, %v9569, %v9174
        %v9571 = vrot.slane %v9188, 6
        %v9572 = vsel %vm9524, %v9571, %v9570
        %v9573 = vrot.slane %v9195, 5
        %v9574 = vsel %vm9527, %v9573, %v9572
        %v9575 = vrot.slane %v9202, 4
        %v9576 = vsel %vm9530, %v9575, %v9574
        %v9577 = vrot.slane %v9209, 3
        %v9578 = vsel %vm9533, %v9577, %v9576
        %v9579 = vrot.slane %v9216, 2
        %v9580 = vsel %vm9536, %v9579, %v9578
        %v9581 = vrot.slane %v9223, 1
        %v9582 = vsel %vm9539, %v9581, %v9580
        %v9583 = vrot.slane %v8469, 7
        %v9584 = vsel %vm9521, %v9583, %v8462
        %v9585 = vrot.slane %v8476, 6
        %v9586 = vsel %vm9524, %v9585, %v9584
        %v9587 = vrot.slane %v8483, 5
        %v9588 = vsel %vm9527, %v9587, %v9586
        %v9589 = vrot.slane %v8490, 4
        %v9590 = vsel %vm9530, %v9589, %v9588
        %v9591 = vrot.slane %v8497, 3
        %v9592 = vsel %vm9533, %v9591, %v9590
        %v9593 = vrot.slane %v8504, 2
        %v9594 = vsel %vm9536, %v9593, %v9592
        %v9595 = vrot.slane %v8511, 1
        %v9596 = vsel %vm9539, %v9595, %v9594
        %v9597 = vrot.slane %v8725, 7
        %v9598 = vsel %vm9521, %v9597, %v8718
        %v9599 = vrot.slane %v8732, 6
        %v9600 = vsel %vm9524, %v9599, %v9598
        %v9601 = vrot.slane %v8739, 5
        %v9602 = vsel %vm9527, %v9601, %v9600
        %v9603 = vrot.slane %v8746, 4
        %v9604 = vsel %vm9530, %v9603, %v9602
        %v9605 = vrot.slane %v8753, 3
        %v9606 = vsel %vm9533, %v9605, %v9604
        %v9607 = vrot.slane %v8760, 2
        %v9608 = vsel %vm9536, %v9607, %v9606
        %v9609 = vrot.slane %v8767, 1
        %v9610 = vsel %vm9539, %v9609, %v9608
        %v9611 = vrot.slane %v8981, 7
        %v9612 = vsel %vm9521, %v9611, %v8974
        %v9613 = vrot.slane %v8988, 6
        %v9614 = vsel %vm9524, %v9613, %v9612
        %v9615 = vrot.slane %v8995, 5
        %v9616 = vsel %vm9527, %v9615, %v9614
        %v9617 = vrot.slane %v9002, 4
        %v9618 = vsel %vm9530, %v9617, %v9616
        %v9619 = vrot.slane %v9009, 3
        %v9620 = vsel %vm9533, %v9619, %v9618
        %v9621 = vrot.slane %v9016, 2
        %v9622 = vsel %vm9536, %v9621, %v9620
        %v9623 = vrot.slane %v9023, 1
        %v9624 = vsel %vm9539, %v9623, %v9622
        %v9625 = vrot.slane %v9237, 7
        %v9626 = vsel %vm9521, %v9625, %v9230
        %v9627 = vrot.slane %v9244, 6
        %v9628 = vsel %vm9524, %v9627, %v9626
        %v9629 = vrot.slane %v9251, 5
        %v9630 = vsel %vm9527, %v9629, %v9628
        %v9631 = vrot.slane %v9258, 4
        %v9632 = vsel %vm9530, %v9631, %v9630
        %v9633 = vrot.slane %v9265, 3
        %v9634 = vsel %vm9533, %v9633, %v9632
        %v9635 = vrot.slane %v9272, 2
        %v9636 = vsel %vm9536, %v9635, %v9634
        %v9637 = vrot.slane %v9279, 1
        %v9638 = vsel %vm9539, %v9637, %v9636
        %v9639 = vrot.slane %v8525, 7
        %v9640 = vsel %vm9521, %v9639, %v8518
        %v9641 = vrot.slane %v8532, 6
        %v9642 = vsel %vm9524, %v9641, %v9640
        %v9643 = vrot.slane %v8539, 5
        %v9644 = vsel %vm9527, %v9643, %v9642
        %v9645 = vrot.slane %v8546, 4
        %v9646 = vsel %vm9530, %v9645, %v9644
        %v9647 = vrot.slane %v8553, 3
        %v9648 = vsel %vm9533, %v9647, %v9646
        %v9649 = vrot.slane %v8560, 2
        %v9650 = vsel %vm9536, %v9649, %v9648
        %v9651 = vrot.slane %v8567, 1
        %v9652 = vsel %vm9539, %v9651, %v9650
        %v9653 = vrot.slane %v8781, 7
        %v9654 = vsel %vm9521, %v9653, %v8774
        %v9655 = vrot.slane %v8788, 6
        %v9656 = vsel %vm9524, %v9655, %v9654
        %v9657 = vrot.slane %v8795, 5
        %v9658 = vsel %vm9527, %v9657, %v9656
        %v9659 = vrot.slane %v8802, 4
        %v9660 = vsel %vm9530, %v9659, %v9658
        %v9661 = vrot.slane %v8809, 3
        %v9662 = vsel %vm9533, %v9661, %v9660
        %v9663 = vrot.slane %v8816, 2
        %v9664 = vsel %vm9536, %v9663, %v9662
        %v9665 = vrot.slane %v8823, 1
        %v9666 = vsel %vm9539, %v9665, %v9664
        %v9667 = vrot.slane %v9037, 7
        %v9668 = vsel %vm9521, %v9667, %v9030
        %v9669 = vrot.slane %v9044, 6
        %v9670 = vsel %vm9524, %v9669, %v9668
        %v9671 = vrot.slane %v9051, 5
        %v9672 = vsel %vm9527, %v9671, %v9670
        %v9673 = vrot.slane %v9058, 4
        %v9674 = vsel %vm9530, %v9673, %v9672
        %v9675 = vrot.slane %v9065, 3
        %v9676 = vsel %vm9533, %v9675, %v9674
        %v9677 = vrot.slane %v9072, 2
        %v9678 = vsel %vm9536, %v9677, %v9676
        %v9679 = vrot.slane %v9079, 1
        %v9680 = vsel %vm9539, %v9679, %v9678
        %v9681 = vrot.slane %v9293, 7
        %v9682 = vsel %vm9521, %v9681, %v9286
        %v9683 = vrot.slane %v9300, 6
        %v9684 = vsel %vm9524, %v9683, %v9682
        %v9685 = vrot.slane %v9307, 5
        %v9686 = vsel %vm9527, %v9685, %v9684
        %v9687 = vrot.slane %v9314, 4
        %v9688 = vsel %vm9530, %v9687, %v9686
        %v9689 = vrot.slane %v9321, 3
        %v9690 = vsel %vm9533, %v9689, %v9688
        %v9691 = vrot.slane %v9328, 2
        %v9692 = vsel %vm9536, %v9691, %v9690
        %v9693 = vrot.slane %v9335, 1
        %v9694 = vsel %vm9539, %v9693, %v9692
        %v9695 = vrot.slane %v8581, 7
        %v9696 = vsel %vm9521, %v9695, %v8574
        %v9697 = vrot.slane %v8588, 6
        %v9698 = vsel %vm9524, %v9697, %v9696
        %v9699 = vrot.slane %v8595, 5
        %v9700 = vsel %vm9527, %v9699, %v9698
        %v9701 = vrot.slane %v8602, 4
        %v9702 = vsel %vm9530, %v9701, %v9700
        %v9703 = vrot.slane %v8609, 3
        %v9704 = vsel %vm9533, %v9703, %v9702
        %v9705 = vrot.slane %v8616, 2
        %v9706 = vsel %vm9536, %v9705, %v9704
        %v9707 = vrot.slane %v8623, 1
        %v9708 = vsel %vm9539, %v9707, %v9706
        %v9709 = vrot.slane %v8837, 7
        %v9710 = vsel %vm9521, %v9709, %v8830
        %v9711 = vrot.slane %v8844, 6
        %v9712 = vsel %vm9524, %v9711, %v9710
        %v9713 = vrot.slane %v8851, 5
        %v9714 = vsel %vm9527, %v9713, %v9712
        %v9715 = vrot.slane %v8858, 4
        %v9716 = vsel %vm9530, %v9715, %v9714
        %v9717 = vrot.slane %v8865, 3
        %v9718 = vsel %vm9533, %v9717, %v9716
        %v9719 = vrot.slane %v8872, 2
        %v9720 = vsel %vm9536, %v9719, %v9718
        %v9721 = vrot.slane %v8879, 1
        %v9722 = vsel %vm9539, %v9721, %v9720
        %v9723 = vrot.slane %v9093, 7
        %v9724 = vsel %vm9521, %v9723, %v9086
        %v9725 = vrot.slane %v9100, 6
        %v9726 = vsel %vm9524, %v9725, %v9724
        %v9727 = vrot.slane %v9107, 5
        %v9728 = vsel %vm9527, %v9727, %v9726
        %v9729 = vrot.slane %v9114, 4
        %v9730 = vsel %vm9530, %v9729, %v9728
        %v9731 = vrot.slane %v9121, 3
        %v9732 = vsel %vm9533, %v9731, %v9730
        %v9733 = vrot.slane %v9128, 2
        %v9734 = vsel %vm9536, %v9733, %v9732
        %v9735 = vrot.slane %v9135, 1
        %v9736 = vsel %vm9539, %v9735, %v9734
        %v9737 = vrot.slane %v9349, 7
        %v9738 = vsel %vm9521, %v9737, %v9342
        %v9739 = vrot.slane %v9356, 6
        %v9740 = vsel %vm9524, %v9739, %v9738
        %v9741 = vrot.slane %v9363, 5
        %v9742 = vsel %vm9527, %v9741, %v9740
        %v9743 = vrot.slane %v9370, 4
        %v9744 = vsel %vm9530, %v9743, %v9742
        %v9745 = vrot.slane %v9377, 3
        %v9746 = vsel %vm9533, %v9745, %v9744
        %v9747 = vrot.slane %v9384, 2
        %v9748 = vsel %vm9536, %v9747, %v9746
        %v9749 = vrot.slane %v9391, 1
        %v9750 = vsel %vm9539, %v9749, %v9748
        %9767 = vxpose.xlu0.b32.start [1/16] %v9540, 128
        %9768 = vxpose.xlu0.b32.cont [2/16] 0.0, 128
        %9769 = vxpose.xlu0.b32.cont [3/16] 0.0, 128
        %9770 = vxpose.xlu0.b32.cont [4/16] 0.0, 128
        %9771 = vxpose.xlu0.b32.cont [5/16] 0.0, 128
        %9772 = vxpose.xlu0.b32.cont [6/16] 0.0, 128
        %9773 = vxpose.xlu0.b32.cont [7/16] 0.0, 128
        %9774 = vxpose.xlu0.b32.cont [8/16] 0.0, 128
        %9775 = vxpose.xlu0.b32.cont [9/16] 0.0, 128
        %9776 = vxpose.xlu0.b32.cont [10/16] 0.0, 128
        %9777 = vxpose.xlu0.b32.cont [11/16] 0.0, 128
        %9778 = vxpose.xlu0.b32.cont [12/16] 0.0, 128
        %9779 = vxpose.xlu0.b32.cont [13/16] 0.0, 128
        %9780 = vxpose.xlu0.b32.cont [14/16] 0.0, 128
        %9781 = vxpose.xlu0.b32.cont [15/16] 0.0, 128
        %9782 = vxpose.xlu0.b32.end [16/16] 0.0, 128
        %v9783 = vpop.trf.xlu0
        %v9784 = vpop.trf.xlu0
        %v9785 = vpop.trf.xlu0
        %v9786 = vpop.trf.xlu0
        %v9787 = vpop.trf.xlu0
        %v9788 = vpop.trf.xlu0
        %v9789 = vpop.trf.xlu0
        %v9790 = vpop.trf.xlu0
        %v9791 = vpop.trf.xlu0
        %v9792 = vpop.trf.xlu0
        %v9793 = vpop.trf.xlu0
        %v9794 = vpop.trf.xlu0
        %v9795 = vpop.trf.xlu0
        %v9796 = vpop.trf.xlu0
        %v9797 = vpop.trf.xlu0
        %v9798 = vpop.trf.xlu0
        %9799 = vxpose.xlu0.b32.start [1/16] %v9554, 128
        %9800 = vxpose.xlu0.b32.cont [2/16] 0.0, 128
        %9801 = vxpose.xlu0.b32.cont [3/16] 0.0, 128
        %9802 = vxpose.xlu0.b32.cont [4/16] 0.0, 128
        %9803 = vxpose.xlu0.b32.cont [5/16] 0.0, 128
        %9804 = vxpose.xlu0.b32.cont [6/16] 0.0, 128
        %9805 = vxpose.xlu0.b32.cont [7/16] 0.0, 128
        %9806 = vxpose.xlu0.b32.cont [8/16] 0.0, 128
        %9807 = vxpose.xlu0.b32.cont [9/16] 0.0, 128
        %9808 = vxpose.xlu0.b32.cont [10/16] 0.0, 128
        %9809 = vxpose.xlu0.b32.cont [11/16] 0.0, 128
        %9810 = vxpose.xlu0.b32.cont [12/16] 0.0, 128
        %9811 = vxpose.xlu0.b32.cont [13/16] 0.0, 128
        %9812 = vxpose.xlu0.b32.cont [14/16] 0.0, 128
        %9813 = vxpose.xlu0.b32.cont [15/16] 0.0, 128
        %9814 = vxpose.xlu0.b32.end [16/16] 0.0, 128
        %v9815 = vpop.trf.xlu0
        %v9816 = vpop.trf.xlu0
        %v9817 = vpop.trf.xlu0
        %v9818 = vpop.trf.xlu0
        %v9819 = vpop.trf.xlu0
        %v9820 = vpop.trf.xlu0
        %v9821 = vpop.trf.xlu0
        %v9822 = vpop.trf.xlu0
        %v9823 = vpop.trf.xlu0
        %v9824 = vpop.trf.xlu0
        %v9825 = vpop.trf.xlu0
        %v9826 = vpop.trf.xlu0
        %v9827 = vpop.trf.xlu0
        %v9828 = vpop.trf.xlu0
        %v9829 = vpop.trf.xlu0
        %v9830 = vpop.trf.xlu0
        %9831 = vxpose.xlu0.b32.start [1/16] %v9568, 128
        %9832 = vxpose.xlu0.b32.cont [2/16] 0.0, 128
        %9833 = vxpose.xlu0.b32.cont [3/16] 0.0, 128
        %9834 = vxpose.xlu0.b32.cont [4/16] 0.0, 128
        %9835 = vxpose.xlu0.b32.cont [5/16] 0.0, 128
        %9836 = vxpose.xlu0.b32.cont [6/16] 0.0, 128
        %9837 = vxpose.xlu0.b32.cont [7/16] 0.0, 128
        %9838 = vxpose.xlu0.b32.cont [8/16] 0.0, 128
        %9839 = vxpose.xlu0.b32.cont [9/16] 0.0, 128
        %9840 = vxpose.xlu0.b32.cont [10/16] 0.0, 128
        %9841 = vxpose.xlu0.b32.cont [11/16] 0.0, 128
        %9842 = vxpose.xlu0.b32.cont [12/16] 0.0, 128
        %9843 = vxpose.xlu0.b32.cont [13/16] 0.0, 128
        %9844 = vxpose.xlu0.b32.cont [14/16] 0.0, 128
        %9845 = vxpose.xlu0.b32.cont [15/16] 0.0, 128
        %9846 = vxpose.xlu0.b32.end [16/16] 0.0, 128
        %v9847 = vpop.trf.xlu0
        %v9848 = vpop.trf.xlu0
        %v9849 = vpop.trf.xlu0
        %v9850 = vpop.trf.xlu0
        %v9851 = vpop.trf.xlu0
        %v9852 = vpop.trf.xlu0
        %v9853 = vpop.trf.xlu0
        %v9854 = vpop.trf.xlu0
        %v9855 = vpop.trf.xlu0
        %v9856 = vpop.trf.xlu0
        %v9857 = vpop.trf.xlu0
        %v9858 = vpop.trf.xlu0
        %v9859 = vpop.trf.xlu0
        %v9860 = vpop.trf.xlu0
        %v9861 = vpop.trf.xlu0
        %v9862 = vpop.trf.xlu0
        %9863 = vxpose.xlu0.b32.start [1/16] %v9582, 128
        %9864 = vxpose.xlu0.b32.cont [2/16] 0.0, 128
        %9865 = vxpose.xlu0.b32.cont [3/16] 0.0, 128
        %9866 = vxpose.xlu0.b32.cont [4/16] 0.0, 128
        %9867 = vxpose.xlu0.b32.cont [5/16] 0.0, 128
        %9868 = vxpose.xlu0.b32.cont [6/16] 0.0, 128
        %9869 = vxpose.xlu0.b32.cont [7/16] 0.0, 128
        %9870 = vxpose.xlu0.b32.cont [8/16] 0.0, 128
        %9871 = vxpose.xlu0.b32.cont [9/16] 0.0, 128
        %9872 = vxpose.xlu0.b32.cont [10/16] 0.0, 128
        %9873 = vxpose.xlu0.b32.cont [11/16] 0.0, 128
        %9874 = vxpose.xlu0.b32.cont [12/16] 0.0, 128
        %9875 = vxpose.xlu0.b32.cont [13/16] 0.0, 128
        %9876 = vxpose.xlu0.b32.cont [14/16] 0.0, 128
        %9877 = vxpose.xlu0.b32.cont [15/16] 0.0, 128
        %9878 = vxpose.xlu0.b32.end [16/16] 0.0, 128
        %v9879 = vpop.trf.xlu0
        %v9880 = vpop.trf.xlu0
        %v9881 = vpop.trf.xlu0
        %v9882 = vpop.trf.xlu0
        %v9883 = vpop.trf.xlu0
        %v9884 = vpop.trf.xlu0
        %v9885 = vpop.trf.xlu0
        %v9886 = vpop.trf.xlu0
        %v9887 = vpop.trf.xlu0
        %v9888 = vpop.trf.xlu0
        %v9889 = vpop.trf.xlu0
        %v9890 = vpop.trf.xlu0
        %v9891 = vpop.trf.xlu0
        %v9892 = vpop.trf.xlu0
        %v9893 = vpop.trf.xlu0
        %v9894 = vpop.trf.xlu0
        %9895 = vxpose.xlu0.b32.start [1/16] %v9596, 128
        %9896 = vxpose.xlu0.b32.cont [2/16] 0.0, 128
        %9897 = vxpose.xlu0.b32.cont [3/16] 0.0, 128
        %9898 = vxpose.xlu0.b32.cont [4/16] 0.0, 128
        %9899 = vxpose.xlu0.b32.cont [5/16] 0.0, 128
        %9900 = vxpose.xlu0.b32.cont [6/16] 0.0, 128
        %9901 = vxpose.xlu0.b32.cont [7/16] 0.0, 128
        %9902 = vxpose.xlu0.b32.cont [8/16] 0.0, 128
        %9903 = vxpose.xlu0.b32.cont [9/16] 0.0, 128
        %9904 = vxpose.xlu0.b32.cont [10/16] 0.0, 128
        %9905 = vxpose.xlu0.b32.cont [11/16] 0.0, 128
        %9906 = vxpose.xlu0.b32.cont [12/16] 0.0, 128
        %9907 = vxpose.xlu0.b32.cont [13/16] 0.0, 128
        %9908 = vxpose.xlu0.b32.cont [14/16] 0.0, 128
        %9909 = vxpose.xlu0.b32.cont [15/16] 0.0, 128
        %9910 = vxpose.xlu0.b32.end [16/16] 0.0, 128
        %v9911 = vpop.trf.xlu0
        %v9912 = vpop.trf.xlu0
        %v9913 = vpop.trf.xlu0
        %v9914 = vpop.trf.xlu0
        %v9915 = vpop.trf.xlu0
        %v9916 = vpop.trf.xlu0
        %v9917 = vpop.trf.xlu0
        %v9918 = vpop.trf.xlu0
        %v9919 = vpop.trf.xlu0
        %v9920 = vpop.trf.xlu0
        %v9921 = vpop.trf.xlu0
        %v9922 = vpop.trf.xlu0
        %v9923 = vpop.trf.xlu0
        %v9924 = vpop.trf.xlu0
        %v9925 = vpop.trf.xlu0
        %v9926 = vpop.trf.xlu0
        %9927 = vxpose.xlu0.b32.start [1/16] %v9610, 128
        %9928 = vxpose.xlu0.b32.cont [2/16] 0.0, 128
        %9929 = vxpose.xlu0.b32.cont [3/16] 0.0, 128
        %9930 = vxpose.xlu0.b32.cont [4/16] 0.0, 128
        %9931 = vxpose.xlu0.b32.cont [5/16] 0.0, 128
        %9932 = vxpose.xlu0.b32.cont [6/16] 0.0, 128
        %9933 = vxpose.xlu0.b32.cont [7/16] 0.0, 128
        %9934 = vxpose.xlu0.b32.cont [8/16] 0.0, 128
        %9935 = vxpose.xlu0.b32.cont [9/16] 0.0, 128
        %9936 = vxpose.xlu0.b32.cont [10/16] 0.0, 128
        %9937 = vxpose.xlu0.b32.cont [11/16] 0.0, 128
        %9938 = vxpose.xlu0.b32.cont [12/16] 0.0, 128
        %9939 = vxpose.xlu0.b32.cont [13/16] 0.0, 128
        %9940 = vxpose.xlu0.b32.cont [14/16] 0.0, 128
        %9941 = vxpose.xlu0.b32.cont [15/16] 0.0, 128
        %9942 = vxpose.xlu0.b32.end [16/16] 0.0, 128
        %v9943 = vpop.trf.xlu0
        %v9944 = vpop.trf.xlu0
        %v9945 = vpop.trf.xlu0
        %v9946 = vpop.trf.xlu0
        %v9947 = vpop.trf.xlu0
        %v9948 = vpop.trf.xlu0
        %v9949 = vpop.trf.xlu0
        %v9950 = vpop.trf.xlu0
        %v9951 = vpop.trf.xlu0
        %v9952 = vpop.trf.xlu0
        %v9953 = vpop.trf.xlu0
        %v9954 = vpop.trf.xlu0
        %v9955 = vpop.trf.xlu0
        %v9956 = vpop.trf.xlu0
        %v9957 = vpop.trf.xlu0
        %v9958 = vpop.trf.xlu0
        %9959 = vxpose.xlu0.b32.start [1/16] %v9624, 128
        %9960 = vxpose.xlu0.b32.cont [2/16] 0.0, 128
        %9961 = vxpose.xlu0.b32.cont [3/16] 0.0, 128
        %9962 = vxpose.xlu0.b32.cont [4/16] 0.0, 128
        %9963 = vxpose.xlu0.b32.cont [5/16] 0.0, 128
        %9964 = vxpose.xlu0.b32.cont [6/16] 0.0, 128
        %9965 = vxpose.xlu0.b32.cont [7/16] 0.0, 128
        %9966 = vxpose.xlu0.b32.cont [8/16] 0.0, 128
        %9967 = vxpose.xlu0.b32.cont [9/16] 0.0, 128
        %9968 = vxpose.xlu0.b32.cont [10/16] 0.0, 128
        %9969 = vxpose.xlu0.b32.cont [11/16] 0.0, 128
        %9970 = vxpose.xlu0.b32.cont [12/16] 0.0, 128
        %9971 = vxpose.xlu0.b32.cont [13/16] 0.0, 128
        %9972 = vxpose.xlu0.b32.cont [14/16] 0.0, 128
        %9973 = vxpose.xlu0.b32.cont [15/16] 0.0, 128
        %9974 = vxpose.xlu0.b32.end [16/16] 0.0, 128
        %v9975 = vpop.trf.xlu0
        %v9976 = vpop.trf.xlu0
        %v9977 = vpop.trf.xlu0
        %v9978 = vpop.trf.xlu0
        %v9979 = vpop.trf.xlu0
        %v9980 = vpop.trf.xlu0
        %v9981 = vpop.trf.xlu0
        %v9982 = vpop.trf.xlu0
        %v9983 = vpop.trf.xlu0
        %v9984 = vpop.trf.xlu0
        %v9985 = vpop.trf.xlu0
        %v9986 = vpop.trf.xlu0
        %v9987 = vpop.trf.xlu0
        %v9988 = vpop.trf.xlu0
        %v9989 = vpop.trf.xlu0
        %v9990 = vpop.trf.xlu0
        %9991 = vxpose.xlu0.b32.start [1/16] %v9638, 128
        %9992 = vxpose.xlu0.b32.cont [2/16] 0.0, 128
        %9993 = vxpose.xlu0.b32.cont [3/16] 0.0, 128
        %9994 = vxpose.xlu0.b32.cont [4/16] 0.0, 128
        %9995 = vxpose.xlu0.b32.cont [5/16] 0.0, 128
        %9996 = vxpose.xlu0.b32.cont [6/16] 0.0, 128
        %9997 = vxpose.xlu0.b32.cont [7/16] 0.0, 128
        %9998 = vxpose.xlu0.b32.cont [8/16] 0.0, 128
        %9999 = vxpose.xlu0.b32.cont [9/16] 0.0, 128
        %10000 = vxpose.xlu0.b32.cont [10/16] 0.0, 128
        %10001 = vxpose.xlu0.b32.cont [11/16] 0.0, 128
        %10002 = vxpose.xlu0.b32.cont [12/16] 0.0, 128
        %10003 = vxpose.xlu0.b32.cont [13/16] 0.0, 128
        %10004 = vxpose.xlu0.b32.cont [14/16] 0.0, 128
        %10005 = vxpose.xlu0.b32.cont [15/16] 0.0, 128
        %10006 = vxpose.xlu0.b32.end [16/16] 0.0, 128
        %v10007 = vpop.trf.xlu0
        %v10008 = vpop.trf.xlu0
        %v10009 = vpop.trf.xlu0
        %v10010 = vpop.trf.xlu0
        %v10011 = vpop.trf.xlu0
        %v10012 = vpop.trf.xlu0
        %v10013 = vpop.trf.xlu0
        %v10014 = vpop.trf.xlu0
        %v10015 = vpop.trf.xlu0
        %v10016 = vpop.trf.xlu0
        %v10017 = vpop.trf.xlu0
        %v10018 = vpop.trf.xlu0
        %v10019 = vpop.trf.xlu0
        %v10020 = vpop.trf.xlu0
        %v10021 = vpop.trf.xlu0
        %v10022 = vpop.trf.xlu0
        %10023 = vxpose.xlu0.b32.start [1/16] %v9652, 128
        %10024 = vxpose.xlu0.b32.cont [2/16] 0.0, 128
        %10025 = vxpose.xlu0.b32.cont [3/16] 0.0, 128
        %10026 = vxpose.xlu0.b32.cont [4/16] 0.0, 128
        %10027 = vxpose.xlu0.b32.cont [5/16] 0.0, 128
        %10028 = vxpose.xlu0.b32.cont [6/16] 0.0, 128
        %10029 = vxpose.xlu0.b32.cont [7/16] 0.0, 128
        %10030 = vxpose.xlu0.b32.cont [8/16] 0.0, 128
        %10031 = vxpose.xlu0.b32.cont [9/16] 0.0, 128
        %10032 = vxpose.xlu0.b32.cont [10/16] 0.0, 128
        %10033 = vxpose.xlu0.b32.cont [11/16] 0.0, 128
        %10034 = vxpose.xlu0.b32.cont [12/16] 0.0, 128
        %10035 = vxpose.xlu0.b32.cont [13/16] 0.0, 128
        %10036 = vxpose.xlu0.b32.cont [14/16] 0.0, 128
        %10037 = vxpose.xlu0.b32.cont [15/16] 0.0, 128
        %10038 = vxpose.xlu0.b32.end [16/16] 0.0, 128
        %v10039 = vpop.trf.xlu0
        %v10040 = vpop.trf.xlu0
        %v10041 = vpop.trf.xlu0
        %v10042 = vpop.trf.xlu0
        %v10043 = vpop.trf.xlu0
        %v10044 = vpop.trf.xlu0
        %v10045 = vpop.trf.xlu0
        %v10046 = vpop.trf.xlu0
        %v10047 = vpop.trf.xlu0
        %v10048 = vpop.trf.xlu0
        %v10049 = vpop.trf.xlu0
        %v10050 = vpop.trf.xlu0
        %v10051 = vpop.trf.xlu0
        %v10052 = vpop.trf.xlu0
        %v10053 = vpop.trf.xlu0
        %v10054 = vpop.trf.xlu0
        %10055 = vxpose.xlu0.b32.start [1/16] %v9666, 128
        %10056 = vxpose.xlu0.b32.cont [2/16] 0.0, 128
        %10057 = vxpose.xlu0.b32.cont [3/16] 0.0, 128
        %10058 = vxpose.xlu0.b32.cont [4/16] 0.0, 128
        %10059 = vxpose.xlu0.b32.cont [5/16] 0.0, 128
        %10060 = vxpose.xlu0.b32.cont [6/16] 0.0, 128
        %10061 = vxpose.xlu0.b32.cont [7/16] 0.0, 128
        %10062 = vxpose.xlu0.b32.cont [8/16] 0.0, 128
        %10063 = vxpose.xlu0.b32.cont [9/16] 0.0, 128
        %10064 = vxpose.xlu0.b32.cont [10/16] 0.0, 128
        %10065 = vxpose.xlu0.b32.cont [11/16] 0.0, 128
        %10066 = vxpose.xlu0.b32.cont [12/16] 0.0, 128
        %10067 = vxpose.xlu0.b32.cont [13/16] 0.0, 128
        %10068 = vxpose.xlu0.b32.cont [14/16] 0.0, 128
        %10069 = vxpose.xlu0.b32.cont [15/16] 0.0, 128
        %10070 = vxpose.xlu0.b32.end [16/16] 0.0, 128
        %v10071 = vpop.trf.xlu0
        %v10072 = vpop.trf.xlu0
        %v10073 = vpop.trf.xlu0
        %v10074 = vpop.trf.xlu0
        %v10075 = vpop.trf.xlu0
        %v10076 = vpop.trf.xlu0
        %v10077 = vpop.trf.xlu0
        %v10078 = vpop.trf.xlu0
        %v10079 = vpop.trf.xlu0
        %v10080 = vpop.trf.xlu0
        %v10081 = vpop.trf.xlu0
        %v10082 = vpop.trf.xlu0
        %v10083 = vpop.trf.xlu0
        %v10084 = vpop.trf.xlu0
        %v10085 = vpop.trf.xlu0
        %v10086 = vpop.trf.xlu0
        %10087 = vxpose.xlu0.b32.start [1/16] %v9680, 128
        %10088 = vxpose.xlu0.b32.cont [2/16] 0.0, 128
        %10089 = vxpose.xlu0.b32.cont [3/16] 0.0, 128
        %10090 = vxpose.xlu0.b32.cont [4/16] 0.0, 128
        %10091 = vxpose.xlu0.b32.cont [5/16] 0.0, 128
        %10092 = vxpose.xlu0.b32.cont [6/16] 0.0, 128
        %10093 = vxpose.xlu0.b32.cont [7/16] 0.0, 128
        %10094 = vxpose.xlu0.b32.cont [8/16] 0.0, 128
        %10095 = vxpose.xlu0.b32.cont [9/16] 0.0, 128
        %10096 = vxpose.xlu0.b32.cont [10/16] 0.0, 128
        %10097 = vxpose.xlu0.b32.cont [11/16] 0.0, 128
        %10098 = vxpose.xlu0.b32.cont [12/16] 0.0, 128
        %10099 = vxpose.xlu0.b32.cont [13/16] 0.0, 128
        %10100 = vxpose.xlu0.b32.cont [14/16] 0.0, 128
        %10101 = vxpose.xlu0.b32.cont [15/16] 0.0, 128
        %10102 = vxpose.xlu0.b32.end [16/16] 0.0, 128
        %v10103 = vpop.trf.xlu0
        %v10104 = vpop.trf.xlu0
        %v10105 = vpop.trf.xlu0
        %v10106 = vpop.trf.xlu0
        %v10107 = vpop.trf.xlu0
        %v10108 = vpop.trf.xlu0
        %v10109 = vpop.trf.xlu0
        %v10110 = vpop.trf.xlu0
        %v10111 = vpop.trf.xlu0
        %v10112 = vpop.trf.xlu0
        %v10113 = vpop.trf.xlu0
        %v10114 = vpop.trf.xlu0
        %v10115 = vpop.trf.xlu0
        %v10116 = vpop.trf.xlu0
        %v10117 = vpop.trf.xlu0
        %v10118 = vpop.trf.xlu0
        %10119 = vxpose.xlu0.b32.start [1/16] %v9694, 128
        %10120 = vxpose.xlu0.b32.cont [2/16] 0.0, 128
        %10121 = vxpose.xlu0.b32.cont [3/16] 0.0, 128
        %10122 = vxpose.xlu0.b32.cont [4/16] 0.0, 128
        %10123 = vxpose.xlu0.b32.cont [5/16] 0.0, 128
        %10124 = vxpose.xlu0.b32.cont [6/16] 0.0, 128
        %10125 = vxpose.xlu0.b32.cont [7/16] 0.0, 128
        %10126 = vxpose.xlu0.b32.cont [8/16] 0.0, 128
        %10127 = vxpose.xlu0.b32.cont [9/16] 0.0, 128
        %10128 = vxpose.xlu0.b32.cont [10/16] 0.0, 128
        %10129 = vxpose.xlu0.b32.cont [11/16] 0.0, 128
        %10130 = vxpose.xlu0.b32.cont [12/16] 0.0, 128
        %10131 = vxpose.xlu0.b32.cont [13/16] 0.0, 128
        %10132 = vxpose.xlu0.b32.cont [14/16] 0.0, 128
        %10133 = vxpose.xlu0.b32.cont [15/16] 0.0, 128
        %10134 = vxpose.xlu0.b32.end [16/16] 0.0, 128
        %v10135 = vpop.trf.xlu0
        %v10136 = vpop.trf.xlu0
        %v10137 = vpop.trf.xlu0
        %v10138 = vpop.trf.xlu0
        %v10139 = vpop.trf.xlu0
        %v10140 = vpop.trf.xlu0
        %v10141 = vpop.trf.xlu0
        %v10142 = vpop.trf.xlu0
        %v10143 = vpop.trf.xlu0
        %v10144 = vpop.trf.xlu0
        %v10145 = vpop.trf.xlu0
        %v10146 = vpop.trf.xlu0
        %v10147 = vpop.trf.xlu0
        %v10148 = vpop.trf.xlu0
        %v10149 = vpop.trf.xlu0
        %v10150 = vpop.trf.xlu0
        %10151 = vxpose.xlu0.b32.start [1/16] %v9708, 128
        %10152 = vxpose.xlu0.b32.cont [2/16] 0.0, 128
        %10153 = vxpose.xlu0.b32.cont [3/16] 0.0, 128
        %10154 = vxpose.xlu0.b32.cont [4/16] 0.0, 128
        %10155 = vxpose.xlu0.b32.cont [5/16] 0.0, 128
        %10156 = vxpose.xlu0.b32.cont [6/16] 0.0, 128
        %10157 = vxpose.xlu0.b32.cont [7/16] 0.0, 128
        %10158 = vxpose.xlu0.b32.cont [8/16] 0.0, 128
        %10159 = vxpose.xlu0.b32.cont [9/16] 0.0, 128
        %10160 = vxpose.xlu0.b32.cont [10/16] 0.0, 128
        %10161 = vxpose.xlu0.b32.cont [11/16] 0.0, 128
        %10162 = vxpose.xlu0.b32.cont [12/16] 0.0, 128
        %10163 = vxpose.xlu0.b32.cont [13/16] 0.0, 128
        %10164 = vxpose.xlu0.b32.cont [14/16] 0.0, 128
        %10165 = vxpose.xlu0.b32.cont [15/16] 0.0, 128
        %10166 = vxpose.xlu0.b32.end [16/16] 0.0, 128
        %v10167 = vpop.trf.xlu0
        %v10168 = vpop.trf.xlu0
        %v10169 = vpop.trf.xlu0
        %v10170 = vpop.trf.xlu0
        %v10171 = vpop.trf.xlu0
        %v10172 = vpop.trf.xlu0
        %v10173 = vpop.trf.xlu0
        %v10174 = vpop.trf.xlu0
        %v10175 = vpop.trf.xlu0
        %v10176 = vpop.trf.xlu0
        %v10177 = vpop.trf.xlu0
        %v10178 = vpop.trf.xlu0
        %v10179 = vpop.trf.xlu0
        %v10180 = vpop.trf.xlu0
        %v10181 = vpop.trf.xlu0
        %v10182 = vpop.trf.xlu0
        %10183 = vxpose.xlu0.b32.start [1/16] %v9722, 128
        %10184 = vxpose.xlu0.b32.cont [2/16] 0.0, 128
        %10185 = vxpose.xlu0.b32.cont [3/16] 0.0, 128
        %10186 = vxpose.xlu0.b32.cont [4/16] 0.0, 128
        %10187 = vxpose.xlu0.b32.cont [5/16] 0.0, 128
        %10188 = vxpose.xlu0.b32.cont [6/16] 0.0, 128
        %10189 = vxpose.xlu0.b32.cont [7/16] 0.0, 128
        %10190 = vxpose.xlu0.b32.cont [8/16] 0.0, 128
        %10191 = vxpose.xlu0.b32.cont [9/16] 0.0, 128
        %10192 = vxpose.xlu0.b32.cont [10/16] 0.0, 128
        %10193 = vxpose.xlu0.b32.cont [11/16] 0.0, 128
        %10194 = vxpose.xlu0.b32.cont [12/16] 0.0, 128
        %10195 = vxpose.xlu0.b32.cont [13/16] 0.0, 128
        %10196 = vxpose.xlu0.b32.cont [14/16] 0.0, 128
        %10197 = vxpose.xlu0.b32.cont [15/16] 0.0, 128
        %10198 = vxpose.xlu0.b32.end [16/16] 0.0, 128
        %v10199 = vpop.trf.xlu0
        %v10200 = vpop.trf.xlu0
        %v10201 = vpop.trf.xlu0
        %v10202 = vpop.trf.xlu0
        %v10203 = vpop.trf.xlu0
        %v10204 = vpop.trf.xlu0
        %v10205 = vpop.trf.xlu0
        %v10206 = vpop.trf.xlu0
        %v10207 = vpop.trf.xlu0
        %v10208 = vpop.trf.xlu0
        %v10209 = vpop.trf.xlu0
        %v10210 = vpop.trf.xlu0
        %v10211 = vpop.trf.xlu0
        %v10212 = vpop.trf.xlu0
        %v10213 = vpop.trf.xlu0
        %v10214 = vpop.trf.xlu0
        %10215 = vxpose.xlu0.b32.start [1/16] %v9736, 128
        %10216 = vxpose.xlu0.b32.cont [2/16] 0.0, 128
        %10217 = vxpose.xlu0.b32.cont [3/16] 0.0, 128
        %10218 = vxpose.xlu0.b32.cont [4/16] 0.0, 128
        %10219 = vxpose.xlu0.b32.cont [5/16] 0.0, 128
        %10220 = vxpose.xlu0.b32.cont [6/16] 0.0, 128
        %10221 = vxpose.xlu0.b32.cont [7/16] 0.0, 128
        %10222 = vxpose.xlu0.b32.cont [8/16] 0.0, 128
        %10223 = vxpose.xlu0.b32.cont [9/16] 0.0, 128
        %10224 = vxpose.xlu0.b32.cont [10/16] 0.0, 128
        %10225 = vxpose.xlu0.b32.cont [11/16] 0.0, 128
        %10226 = vxpose.xlu0.b32.cont [12/16] 0.0, 128
        %10227 = vxpose.xlu0.b32.cont [13/16] 0.0, 128
        %10228 = vxpose.xlu0.b32.cont [14/16] 0.0, 128
        %10229 = vxpose.xlu0.b32.cont [15/16] 0.0, 128
        %10230 = vxpose.xlu0.b32.end [16/16] 0.0, 128
        %v10231 = vpop.trf.xlu0
        %v10232 = vpop.trf.xlu0
        %v10233 = vpop.trf.xlu0
        %v10234 = vpop.trf.xlu0
        %v10235 = vpop.trf.xlu0
        %v10236 = vpop.trf.xlu0
        %v10237 = vpop.trf.xlu0
        %v10238 = vpop.trf.xlu0
        %v10239 = vpop.trf.xlu0
        %v10240 = vpop.trf.xlu0
        %v10241 = vpop.trf.xlu0
        %v10242 = vpop.trf.xlu0
        %v10243 = vpop.trf.xlu0
        %v10244 = vpop.trf.xlu0
        %v10245 = vpop.trf.xlu0
        %v10246 = vpop.trf.xlu0
        %10247 = vxpose.xlu0.b32.start [1/16] %v9750, 128
        %10248 = vxpose.xlu0.b32.cont [2/16] 0.0, 128
        %10249 = vxpose.xlu0.b32.cont [3/16] 0.0, 128
        %10250 = vxpose.xlu0.b32.cont [4/16] 0.0, 128
        %10251 = vxpose.xlu0.b32.cont [5/16] 0.0, 128
        %10252 = vxpose.xlu0.b32.cont [6/16] 0.0, 128
        %10253 = vxpose.xlu0.b32.cont [7/16] 0.0, 128
        %10254 = vxpose.xlu0.b32.cont [8/16] 0.0, 128
        %10255 = vxpose.xlu0.b32.cont [9/16] 0.0, 128
        %10256 = vxpose.xlu0.b32.cont [10/16] 0.0, 128
        %10257 = vxpose.xlu0.b32.cont [11/16] 0.0, 128
        %10258 = vxpose.xlu0.b32.cont [12/16] 0.0, 128
        %10259 = vxpose.xlu0.b32.cont [13/16] 0.0, 128
        %10260 = vxpose.xlu0.b32.cont [14/16] 0.0, 128
        %10261 = vxpose.xlu0.b32.cont [15/16] 0.0, 128
        %10262 = vxpose.xlu0.b32.end [16/16] 0.0, 128
        %v10263 = vpop.trf.xlu0
        %v10264 = vpop.trf.xlu0
        %v10265 = vpop.trf.xlu0
        %v10266 = vpop.trf.xlu0
        %v10267 = vpop.trf.xlu0
        %v10268 = vpop.trf.xlu0
        %v10269 = vpop.trf.xlu0
        %v10270 = vpop.trf.xlu0
        %v10271 = vpop.trf.xlu0
        %v10272 = vpop.trf.xlu0
        %v10273 = vpop.trf.xlu0
        %v10274 = vpop.trf.xlu0
        %v10275 = vpop.trf.xlu0
        %v10276 = vpop.trf.xlu0
        %v10277 = vpop.trf.xlu0
        %v10278 = vpop.trf.xlu0
        %v10279 = vcombine.low %v9783, %v9847
        %v10280 = vcombine.high %v9783, %v9847
        %v10282 = vunpack.c.l.s4 1983009808
        %v10283 = vunpack.c.0.s8 %v10282
        %v10284 = vlaneseq
        %v10285 = vshrl.u32 %v10284, 7
        %v10286 = vsub.s32 %v10283, %v10285
        %v10287 = vrot.slane %v10279, %v10286
        %v10289 = vunpack.c.l.s4 1983009808
        %v10290 = vunpack.c.0.s8 %v10289
        %v10291 = vlaneseq
        %v10292 = vshrl.u32 %v10291, 7
        %v10293 = vsub.s32 %v10290, %v10292
        %v10294 = vrot.slane %v10280, %v10293
        %v10295 = vcombine.low %v9815, %v9879
        %v10296 = vcombine.high %v9815, %v9879
        %v10298 = vunpack.c.l.s4 1983009808
        %v10299 = vunpack.c.0.s8 %v10298
        %v10300 = vlaneseq
        %v10301 = vshrl.u32 %v10300, 7
        %v10302 = vsub.s32 %v10299, %v10301
        %v10303 = vrot.slane %v10295, %v10302
        %v10305 = vunpack.c.l.s4 1983009808
        %v10306 = vunpack.c.0.s8 %v10305
        %v10307 = vlaneseq
        %v10308 = vshrl.u32 %v10307, 7
        %v10309 = vsub.s32 %v10306, %v10308
        %v10310 = vrot.slane %v10296, %v10309
        %v10311 = vcombine.low %v9911, %v9975
        %v10312 = vcombine.high %v9911, %v9975
        %v10314 = vunpack.c.l.s4 1983009808
        %v10315 = vunpack.c.0.s8 %v10314
        %v10316 = vlaneseq
        %v10317 = vshrl.u32 %v10316, 7
        %v10318 = vsub.s32 %v10315, %v10317
        %v10319 = vrot.slane %v10311, %v10318
        %v10321 = vunpack.c.l.s4 1983009808
        %v10322 = vunpack.c.0.s8 %v10321
        %v10323 = vlaneseq
        %v10324 = vshrl.u32 %v10323, 7
        %v10325 = vsub.s32 %v10322, %v10324
        %v10326 = vrot.slane %v10312, %v10325
        %v10327 = vcombine.low %v9943, %v10007
        %v10328 = vcombine.high %v9943, %v10007
        %v10330 = vunpack.c.l.s4 1983009808
        %v10331 = vunpack.c.0.s8 %v10330
        %v10332 = vlaneseq
        %v10333 = vshrl.u32 %v10332, 7
        %v10334 = vsub.s32 %v10331, %v10333
        %v10335 = vrot.slane %v10327, %v10334
        %v10337 = vunpack.c.l.s4 1983009808
        %v10338 = vunpack.c.0.s8 %v10337
        %v10339 = vlaneseq
        %v10340 = vshrl.u32 %v10339, 7
        %v10341 = vsub.s32 %v10338, %v10340
        %v10342 = vrot.slane %v10328, %v10341
        %v10343 = vcombine.low %v10287, %v10303
        %v10344 = vcombine.high %v10287, %v10303
        %v10346 = vunpack.c.l.s4 1934713408
        %v10347 = vunpack.c.0.s8 %v10346
        %v10348 = vlaneseq
        %v10349 = vshrl.u32 %v10348, 7
        %v10350 = vsub.s32 %v10347, %v10349
        %v10351 = vrot.slane %v10343, %v10350
        %v10353 = vunpack.c.l.s4 1934713408
        %v10354 = vunpack.c.0.s8 %v10353
        %v10355 = vlaneseq
        %v10356 = vshrl.u32 %v10355, 7
        %v10357 = vsub.s32 %v10354, %v10356
        %v10358 = vrot.slane %v10344, %v10357
        %v10359 = vcombine.low %v10294, %v10310
        %v10360 = vcombine.high %v10294, %v10310
        %v10362 = vunpack.c.l.s4 1934713408
        %v10363 = vunpack.c.0.s8 %v10362
        %v10364 = vlaneseq
        %v10365 = vshrl.u32 %v10364, 7
        %v10366 = vsub.s32 %v10363, %v10365
        %v10367 = vrot.slane %v10359, %v10366
        %v10369 = vunpack.c.l.s4 1934713408
        %v10370 = vunpack.c.0.s8 %v10369
        %v10371 = vlaneseq
        %v10372 = vshrl.u32 %v10371, 7
        %v10373 = vsub.s32 %v10370, %v10372
        %v10374 = vrot.slane %v10360, %v10373
        %v10375 = vcombine.low %v10319, %v10335
        %v10376 = vcombine.high %v10319, %v10335
        %v10378 = vunpack.c.l.s4 1934713408
        %v10379 = vunpack.c.0.s8 %v10378
        %v10380 = vlaneseq
        %v10381 = vshrl.u32 %v10380, 7
        %v10382 = vsub.s32 %v10379, %v10381
        %v10383 = vrot.slane %v10375, %v10382
        %v10385 = vunpack.c.l.s4 1934713408
        %v10386 = vunpack.c.0.s8 %v10385
        %v10387 = vlaneseq
        %v10388 = vshrl.u32 %v10387, 7
        %v10389 = vsub.s32 %v10386, %v10388
        %v10390 = vrot.slane %v10376, %v10389
        %v10391 = vcombine.low %v10326, %v10342
        %v10392 = vcombine.high %v10326, %v10342
        %v10394 = vunpack.c.l.s4 1934713408
        %v10395 = vunpack.c.0.s8 %v10394
        %v10396 = vlaneseq
        %v10397 = vshrl.u32 %v10396, 7
        %v10398 = vsub.s32 %v10395, %v10397
        %v10399 = vrot.slane %v10391, %v10398
        %v10401 = vunpack.c.l.s4 1934713408
        %v10402 = vunpack.c.0.s8 %v10401
        %v10403 = vlaneseq
        %v10404 = vshrl.u32 %v10403, 7
        %v10405 = vsub.s32 %v10402, %v10404
        %v10406 = vrot.slane %v10392, %v10405
        %v10407 = vcombine.low %v10351, %v10383
        %v10408 = vcombine.high %v10351, %v10383
        %v10409 = vcombine.low %v10358, %v10390
        %v10410 = vcombine.high %v10358, %v10390
        %v10411 = vcombine.low %v10367, %v10399
        %v10412 = vcombine.high %v10367, %v10399
        %v10413 = vcombine.low %v10374, %v10406
        %v10414 = vcombine.high %v10374, %v10406
        %v10415 = vcombine.low %v10039, %v10103
        %v10416 = vcombine.high %v10039, %v10103
        %v10418 = vunpack.c.l.s4 1983009808
        %v10419 = vunpack.c.0.s8 %v10418
        %v10420 = vlaneseq
        %v10421 = vshrl.u32 %v10420, 7
        %v10422 = vsub.s32 %v10419, %v10421
        %v10423 = vrot.slane %v10415, %v10422
        %v10425 = vunpack.c.l.s4 1983009808
        %v10426 = vunpack.c.0.s8 %v10425
        %v10427 = vlaneseq
        %v10428 = vshrl.u32 %v10427, 7
        %v10429 = vsub.s32 %v10426, %v10428
        %v10430 = vrot.slane %v10416, %v10429
        %v10431 = vcombine.low %v10071, %v10135
        %v10432 = vcombine.high %v10071, %v10135
        %v10434 = vunpack.c.l.s4 1983009808
        %v10435 = vunpack.c.0.s8 %v10434
        %v10436 = vlaneseq
        %v10437 = vshrl.u32 %v10436, 7
        %v10438 = vsub.s32 %v10435, %v10437
        %v10439 = vrot.slane %v10431, %v10438
        %v10441 = vunpack.c.l.s4 1983009808
        %v10442 = vunpack.c.0.s8 %v10441
        %v10443 = vlaneseq
        %v10444 = vshrl.u32 %v10443, 7
        %v10445 = vsub.s32 %v10442, %v10444
        %v10446 = vrot.slane %v10432, %v10445
        %v10447 = vcombine.low %v10167, %v10231
        %v10448 = vcombine.high %v10167, %v10231
        %v10450 = vunpack.c.l.s4 1983009808
        %v10451 = vunpack.c.0.s8 %v10450
        %v10452 = vlaneseq
        %v10453 = vshrl.u32 %v10452, 7
        %v10454 = vsub.s32 %v10451, %v10453
        %v10455 = vrot.slane %v10447, %v10454
        %v10457 = vunpack.c.l.s4 1983009808
        %v10458 = vunpack.c.0.s8 %v10457
        %v10459 = vlaneseq
        %v10460 = vshrl.u32 %v10459, 7
        %v10461 = vsub.s32 %v10458, %v10460
        %v10462 = vrot.slane %v10448, %v10461
        %v10463 = vcombine.low %v10199, %v10263
        %v10464 = vcombine.high %v10199, %v10263
        %v10466 = vunpack.c.l.s4 1983009808
        %v10467 = vunpack.c.0.s8 %v10466
        %v10468 = vlaneseq
        %v10469 = vshrl.u32 %v10468, 7
        %v10470 = vsub.s32 %v10467, %v10469
        %v10471 = vrot.slane %v10463, %v10470
        %v10473 = vunpack.c.l.s4 1983009808
        %v10474 = vunpack.c.0.s8 %v10473
        %v10475 = vlaneseq
        %v10476 = vshrl.u32 %v10475, 7
        %v10477 = vsub.s32 %v10474, %v10476
        %v10478 = vrot.slane %v10464, %v10477
        %v10479 = vcombine.low %v10423, %v10439
        %v10480 = vcombine.high %v10423, %v10439
        %v10482 = vunpack.c.l.s4 1934713408
        %v10483 = vunpack.c.0.s8 %v10482
        %v10484 = vlaneseq
        %v10485 = vshrl.u32 %v10484, 7
        %v10486 = vsub.s32 %v10483, %v10485
        %v10487 = vrot.slane %v10479, %v10486
        %v10489 = vunpack.c.l.s4 1934713408
        %v10490 = vunpack.c.0.s8 %v10489
        %v10491 = vlaneseq
        %v10492 = vshrl.u32 %v10491, 7
        %v10493 = vsub.s32 %v10490, %v10492
        %v10494 = vrot.slane %v10480, %v10493
        %v10495 = vcombine.low %v10430, %v10446
        %v10496 = vcombine.high %v10430, %v10446
        %v10498 = vunpack.c.l.s4 1934713408
        %v10499 = vunpack.c.0.s8 %v10498
        %v10500 = vlaneseq
        %v10501 = vshrl.u32 %v10500, 7
        %v10502 = vsub.s32 %v10499, %v10501
        %v10503 = vrot.slane %v10495, %v10502
        %v10505 = vunpack.c.l.s4 1934713408
        %v10506 = vunpack.c.0.s8 %v10505
        %v10507 = vlaneseq
        %v10508 = vshrl.u32 %v10507, 7
        %v10509 = vsub.s32 %v10506, %v10508
        %v10510 = vrot.slane %v10496, %v10509
        %v10511 = vcombine.low %v10455, %v10471
        %v10512 = vcombine.high %v10455, %v10471
        %v10514 = vunpack.c.l.s4 1934713408
        %v10515 = vunpack.c.0.s8 %v10514
        %v10516 = vlaneseq
        %v10517 = vshrl.u32 %v10516, 7
        %v10518 = vsub.s32 %v10515, %v10517
        %v10519 = vrot.slane %v10511, %v10518
        %v10521 = vunpack.c.l.s4 1934713408
        %v10522 = vunpack.c.0.s8 %v10521
        %v10523 = vlaneseq
        %v10524 = vshrl.u32 %v10523, 7
        %v10525 = vsub.s32 %v10522, %v10524
        %v10526 = vrot.slane %v10512, %v10525
        %v10527 = vcombine.low %v10462, %v10478
        %v10528 = vcombine.high %v10462, %v10478
        %v10530 = vunpack.c.l.s4 1934713408
        %v10531 = vunpack.c.0.s8 %v10530
        %v10532 = vlaneseq
        %v10533 = vshrl.u32 %v10532, 7
        %v10534 = vsub.s32 %v10531, %v10533
        %v10535 = vrot.slane %v10527, %v10534
        %v10537 = vunpack.c.l.s4 1934713408
        %v10538 = vunpack.c.0.s8 %v10537
        %v10539 = vlaneseq
        %v10540 = vshrl.u32 %v10539, 7
        %v10541 = vsub.s32 %v10538, %v10540
        %v10542 = vrot.slane %v10528, %v10541
        %v10543 = vcombine.low %v10487, %v10519
        %v10544 = vcombine.high %v10487, %v10519
        %v10545 = vcombine.low %v10494, %v10526
        %v10546 = vcombine.high %v10494, %v10526
        %v10547 = vcombine.low %v10503, %v10535
        %v10548 = vcombine.high %v10503, %v10535
        %v10549 = vcombine.low %v10510, %v10542
        %v10550 = vcombine.high %v10510, %v10542
        %v10551 = vcombine.low %v9784, %v9848
        %v10552 = vcombine.high %v9784, %v9848
        %v10554 = vunpack.c.l.s4 1983009808
        %v10555 = vunpack.c.0.s8 %v10554
        %v10556 = vlaneseq
        %v10557 = vshrl.u32 %v10556, 7
        %v10558 = vsub.s32 %v10555, %v10557
        %v10559 = vrot.slane %v10551, %v10558
        %v10561 = vunpack.c.l.s4 1983009808
        %v10562 = vunpack.c.0.s8 %v10561
        %v10563 = vlaneseq
        %v10564 = vshrl.u32 %v10563, 7
        %v10565 = vsub.s32 %v10562, %v10564
        %v10566 = vrot.slane %v10552, %v10565
        %v10567 = vcombine.low %v9816, %v9880
        %v10568 = vcombine.high %v9816, %v9880
        %v10570 = vunpack.c.l.s4 1983009808
        %v10571 = vunpack.c.0.s8 %v10570
        %v10572 = vlaneseq
        %v10573 = vshrl.u32 %v10572, 7
        %v10574 = vsub.s32 %v10571, %v10573
        %v10575 = vrot.slane %v10567, %v10574
        %v10577 = vunpack.c.l.s4 1983009808
        %v10578 = vunpack.c.0.s8 %v10577
        %v10579 = vlaneseq
        %v10580 = vshrl.u32 %v10579, 7
        %v10581 = vsub.s32 %v10578, %v10580
        %v10582 = vrot.slane %v10568, %v10581
        %v10583 = vcombine.low %v9912, %v9976
        %v10584 = vcombine.high %v9912, %v9976
        %v10586 = vunpack.c.l.s4 1983009808
        %v10587 = vunpack.c.0.s8 %v10586
        %v10588 = vlaneseq
        %v10589 = vshrl.u32 %v10588, 7
        %v10590 = vsub.s32 %v10587, %v10589
        %v10591 = vrot.slane %v10583, %v10590
        %v10593 = vunpack.c.l.s4 1983009808
        %v10594 = vunpack.c.0.s8 %v10593
        %v10595 = vlaneseq
        %v10596 = vshrl.u32 %v10595, 7
        %v10597 = vsub.s32 %v10594, %v10596
        %v10598 = vrot.slane %v10584, %v10597
        %v10599 = vcombine.low %v9944, %v10008
        %v10600 = vcombine.high %v9944, %v10008
        %v10602 = vunpack.c.l.s4 1983009808
        %v10603 = vunpack.c.0.s8 %v10602
        %v10604 = vlaneseq
        %v10605 = vshrl.u32 %v10604, 7
        %v10606 = vsub.s32 %v10603, %v10605
        %v10607 = vrot.slane %v10599, %v10606
        %v10609 = vunpack.c.l.s4 1983009808
        %v10610 = vunpack.c.0.s8 %v10609
        %v10611 = vlaneseq
        %v10612 = vshrl.u32 %v10611, 7
        %v10613 = vsub.s32 %v10610, %v10612
        %v10614 = vrot.slane %v10600, %v10613
        %v10615 = vcombine.low %v10559, %v10575
        %v10616 = vcombine.high %v10559, %v10575
        %v10618 = vunpack.c.l.s4 1934713408
        %v10619 = vunpack.c.0.s8 %v10618
        %v10620 = vlaneseq
        %v10621 = vshrl.u32 %v10620, 7
        %v10622 = vsub.s32 %v10619, %v10621
        %v10623 = vrot.slane %v10615, %v10622
        %v10625 = vunpack.c.l.s4 1934713408
        %v10626 = vunpack.c.0.s8 %v10625
        %v10627 = vlaneseq
        %v10628 = vshrl.u32 %v10627, 7
        %v10629 = vsub.s32 %v10626, %v10628
        %v10630 = vrot.slane %v10616, %v10629
        %v10631 = vcombine.low %v10566, %v10582
        %v10632 = vcombine.high %v10566, %v10582
        %v10634 = vunpack.c.l.s4 1934713408
        %v10635 = vunpack.c.0.s8 %v10634
        %v10636 = vlaneseq
        %v10637 = vshrl.u32 %v10636, 7
        %v10638 = vsub.s32 %v10635, %v10637
        %v10639 = vrot.slane %v10631, %v10638
        %v10641 = vunpack.c.l.s4 1934713408
        %v10642 = vunpack.c.0.s8 %v10641
        %v10643 = vlaneseq
        %v10644 = vshrl.u32 %v10643, 7
        %v10645 = vsub.s32 %v10642, %v10644
        %v10646 = vrot.slane %v10632, %v10645
        %v10647 = vcombine.low %v10591, %v10607
        %v10648 = vcombine.high %v10591, %v10607
        %v10650 = vunpack.c.l.s4 1934713408
        %v10651 = vunpack.c.0.s8 %v10650
        %v10652 = vlaneseq
        %v10653 = vshrl.u32 %v10652, 7
        %v10654 = vsub.s32 %v10651, %v10653
        %v10655 = vrot.slane %v10647, %v10654
        %v10657 = vunpack.c.l.s4 1934713408
        %v10658 = vunpack.c.0.s8 %v10657
        %v10659 = vlaneseq
        %v10660 = vshrl.u32 %v10659, 7
        %v10661 = vsub.s32 %v10658, %v10660
        %v10662 = vrot.slane %v10648, %v10661
        %v10663 = vcombine.low %v10598, %v10614
        %v10664 = vcombine.high %v10598, %v10614
        %v10666 = vunpack.c.l.s4 1934713408
        %v10667 = vunpack.c.0.s8 %v10666
        %v10668 = vlaneseq
        %v10669 = vshrl.u32 %v10668, 7
        %v10670 = vsub.s32 %v10667, %v10669
        %v10671 = vrot.slane %v10663, %v10670
        %v10673 = vunpack.c.l.s4 1934713408
        %v10674 = vunpack.c.0.s8 %v10673
        %v10675 = vlaneseq
        %v10676 = vshrl.u32 %v10675, 7
        %v10677 = vsub.s32 %v10674, %v10676
        %v10678 = vrot.slane %v10664, %v10677
        %v10679 = vcombine.low %v10623, %v10655
        %v10680 = vcombine.high %v10623, %v10655
        %v10681 = vcombine.low %v10630, %v10662
        %v10682 = vcombine.high %v10630, %v10662
        %v10683 = vcombine.low %v10639, %v10671
        %v10684 = vcombine.high %v10639, %v10671
        %v10685 = vcombine.low %v10646, %v10678
        %v10686 = vcombine.high %v10646, %v10678
        %v10687 = vcombine.low %v10040, %v10104
        %v10688 = vcombine.high %v10040, %v10104
        %v10690 = vunpack.c.l.s4 1983009808
        %v10691 = vunpack.c.0.s8 %v10690
        %v10692 = vlaneseq
        %v10693 = vshrl.u32 %v10692, 7
        %v10694 = vsub.s32 %v10691, %v10693
        %v10695 = vrot.slane %v10687, %v10694
        %v10697 = vunpack.c.l.s4 1983009808
        %v10698 = vunpack.c.0.s8 %v10697
        %v10699 = vlaneseq
        %v10700 = vshrl.u32 %v10699, 7
        %v10701 = vsub.s32 %v10698, %v10700
        %v10702 = vrot.slane %v10688, %v10701
        %v10703 = vcombine.low %v10072, %v10136
        %v10704 = vcombine.high %v10072, %v10136
        %v10706 = vunpack.c.l.s4 1983009808
        %v10707 = vunpack.c.0.s8 %v10706
        %v10708 = vlaneseq
        %v10709 = vshrl.u32 %v10708, 7
        %v10710 = vsub.s32 %v10707, %v10709
        %v10711 = vrot.slane %v10703, %v10710
        %v10713 = vunpack.c.l.s4 1983009808
        %v10714 = vunpack.c.0.s8 %v10713
        %v10715 = vlaneseq
        %v10716 = vshrl.u32 %v10715, 7
        %v10717 = vsub.s32 %v10714, %v10716
        %v10718 = vrot.slane %v10704, %v10717
        %v10719 = vcombine.low %v10168, %v10232
        %v10720 = vcombine.high %v10168, %v10232
        %v10722 = vunpack.c.l.s4 1983009808
        %v10723 = vunpack.c.0.s8 %v10722
        %v10724 = vlaneseq
        %v10725 = vshrl.u32 %v10724, 7
        %v10726 = vsub.s32 %v10723, %v10725
        %v10727 = vrot.slane %v10719, %v10726
        %v10729 = vunpack.c.l.s4 1983009808
        %v10730 = vunpack.c.0.s8 %v10729
        %v10731 = vlaneseq
        %v10732 = vshrl.u32 %v10731, 7
        %v10733 = vsub.s32 %v10730, %v10732
        %v10734 = vrot.slane %v10720, %v10733
        %v10735 = vcombine.low %v10200, %v10264
        %v10736 = vcombine.high %v10200, %v10264
        %v10738 = vunpack.c.l.s4 1983009808
        %v10739 = vunpack.c.0.s8 %v10738
        %v10740 = vlaneseq
        %v10741 = vshrl.u32 %v10740, 7
        %v10742 = vsub.s32 %v10739, %v10741
        %v10743 = vrot.slane %v10735, %v10742
        %v10745 = vunpack.c.l.s4 1983009808
        %v10746 = vunpack.c.0.s8 %v10745
        %v10747 = vlaneseq
        %v10748 = vshrl.u32 %v10747, 7
        %v10749 = vsub.s32 %v10746, %v10748
        %v10750 = vrot.slane %v10736, %v10749
        %v10751 = vcombine.low %v10695, %v10711
        %v10752 = vcombine.high %v10695, %v10711
        %v10754 = vunpack.c.l.s4 1934713408
        %v10755 = vunpack.c.0.s8 %v10754
        %v10756 = vlaneseq
        %v10757 = vshrl.u32 %v10756, 7
        %v10758 = vsub.s32 %v10755, %v10757
        %v10759 = vrot.slane %v10751, %v10758
        %v10761 = vunpack.c.l.s4 1934713408
        %v10762 = vunpack.c.0.s8 %v10761
        %v10763 = vlaneseq
        %v10764 = vshrl.u32 %v10763, 7
        %v10765 = vsub.s32 %v10762, %v10764
        %v10766 = vrot.slane %v10752, %v10765
        %v10767 = vcombine.low %v10702, %v10718
        %v10768 = vcombine.high %v10702, %v10718
        %v10770 = vunpack.c.l.s4 1934713408
        %v10771 = vunpack.c.0.s8 %v10770
        %v10772 = vlaneseq
        %v10773 = vshrl.u32 %v10772, 7
        %v10774 = vsub.s32 %v10771, %v10773
        %v10775 = vrot.slane %v10767, %v10774
        %v10777 = vunpack.c.l.s4 1934713408
        %v10778 = vunpack.c.0.s8 %v10777
        %v10779 = vlaneseq
        %v10780 = vshrl.u32 %v10779, 7
        %v10781 = vsub.s32 %v10778, %v10780
        %v10782 = vrot.slane %v10768, %v10781
        %v10783 = vcombine.low %v10727, %v10743
        %v10784 = vcombine.high %v10727, %v10743
        %v10786 = vunpack.c.l.s4 1934713408
        %v10787 = vunpack.c.0.s8 %v10786
        %v10788 = vlaneseq
        %v10789 = vshrl.u32 %v10788, 7
        %v10790 = vsub.s32 %v10787, %v10789
        %v10791 = vrot.slane %v10783, %v10790
        %v10793 = vunpack.c.l.s4 1934713408
        %v10794 = vunpack.c.0.s8 %v10793
        %v10795 = vlaneseq
        %v10796 = vshrl.u32 %v10795, 7
        %v10797 = vsub.s32 %v10794, %v10796
        %v10798 = vrot.slane %v10784, %v10797
        %v10799 = vcombine.low %v10734, %v10750
        %v10800 = vcombine.high %v10734, %v10750
        %v10802 = vunpack.c.l.s4 1934713408
        %v10803 = vunpack.c.0.s8 %v10802
        %v10804 = vlaneseq
        %v10805 = vshrl.u32 %v10804, 7
        %v10806 = vsub.s32 %v10803, %v10805
        %v10807 = vrot.slane %v10799, %v10806
        %v10809 = vunpack.c.l.s4 1934713408
        %v10810 = vunpack.c.0.s8 %v10809
        %v10811 = vlaneseq
        %v10812 = vshrl.u32 %v10811, 7
        %v10813 = vsub.s32 %v10810, %v10812
        %v10814 = vrot.slane %v10800, %v10813
        %v10815 = vcombine.low %v10759, %v10791
        %v10816 = vcombine.high %v10759, %v10791
        %v10817 = vcombine.low %v10766, %v10798
        %v10818 = vcombine.high %v10766, %v10798
        %v10819 = vcombine.low %v10775, %v10807
        %v10820 = vcombine.high %v10775, %v10807
        %v10821 = vcombine.low %v10782, %v10814
        %v10822 = vcombine.high %v10782, %v10814
        %v10823 = vcombine.low %v9785, %v9849
        %v10824 = vcombine.high %v9785, %v9849
        %v10826 = vunpack.c.l.s4 1983009808
        %v10827 = vunpack.c.0.s8 %v10826
        %v10828 = vlaneseq
        %v10829 = vshrl.u32 %v10828, 7
        %v10830 = vsub.s32 %v10827, %v10829
        %v10831 = vrot.slane %v10823, %v10830
        %v10833 = vunpack.c.l.s4 1983009808
        %v10834 = vunpack.c.0.s8 %v10833
        %v10835 = vlaneseq
        %v10836 = vshrl.u32 %v10835, 7
        %v10837 = vsub.s32 %v10834, %v10836
        %v10838 = vrot.slane %v10824, %v10837
        %v10839 = vcombine.low %v9817, %v9881
        %v10840 = vcombine.high %v9817, %v9881
        %v10842 = vunpack.c.l.s4 1983009808
        %v10843 = vunpack.c.0.s8 %v10842
        %v10844 = vlaneseq
        %v10845 = vshrl.u32 %v10844, 7
        %v10846 = vsub.s32 %v10843, %v10845
        %v10847 = vrot.slane %v10839, %v10846
        %v10849 = vunpack.c.l.s4 1983009808
        %v10850 = vunpack.c.0.s8 %v10849
        %v10851 = vlaneseq
        %v10852 = vshrl.u32 %v10851, 7
        %v10853 = vsub.s32 %v10850, %v10852
        %v10854 = vrot.slane %v10840, %v10853
        %v10855 = vcombine.low %v9913, %v9977
        %v10856 = vcombine.high %v9913, %v9977
        %v10858 = vunpack.c.l.s4 1983009808
        %v10859 = vunpack.c.0.s8 %v10858
        %v10860 = vlaneseq
        %v10861 = vshrl.u32 %v10860, 7
        %v10862 = vsub.s32 %v10859, %v10861
        %v10863 = vrot.slane %v10855, %v10862
        %v10865 = vunpack.c.l.s4 1983009808
        %v10866 = vunpack.c.0.s8 %v10865
        %v10867 = vlaneseq
        %v10868 = vshrl.u32 %v10867, 7
        %v10869 = vsub.s32 %v10866, %v10868
        %v10870 = vrot.slane %v10856, %v10869
        %v10871 = vcombine.low %v9945, %v10009
        %v10872 = vcombine.high %v9945, %v10009
        %v10874 = vunpack.c.l.s4 1983009808
        %v10875 = vunpack.c.0.s8 %v10874
        %v10876 = vlaneseq
        %v10877 = vshrl.u32 %v10876, 7
        %v10878 = vsub.s32 %v10875, %v10877
        %v10879 = vrot.slane %v10871, %v10878
        %v10881 = vunpack.c.l.s4 1983009808
        %v10882 = vunpack.c.0.s8 %v10881
        %v10883 = vlaneseq
        %v10884 = vshrl.u32 %v10883, 7
        %v10885 = vsub.s32 %v10882, %v10884
        %v10886 = vrot.slane %v10872, %v10885
        %v10887 = vcombine.low %v10831, %v10847
        %v10888 = vcombine.high %v10831, %v10847
        %v10890 = vunpack.c.l.s4 1934713408
        %v10891 = vunpack.c.0.s8 %v10890
        %v10892 = vlaneseq
        %v10893 = vshrl.u32 %v10892, 7
        %v10894 = vsub.s32 %v10891, %v10893
        %v10895 = vrot.slane %v10887, %v10894
        %v10897 = vunpack.c.l.s4 1934713408
        %v10898 = vunpack.c.0.s8 %v10897
        %v10899 = vlaneseq
        %v10900 = vshrl.u32 %v10899, 7
        %v10901 = vsub.s32 %v10898, %v10900
        %v10902 = vrot.slane %v10888, %v10901
        %v10903 = vcombine.low %v10838, %v10854
        %v10904 = vcombine.high %v10838, %v10854
        %v10906 = vunpack.c.l.s4 1934713408
        %v10907 = vunpack.c.0.s8 %v10906
        %v10908 = vlaneseq
        %v10909 = vshrl.u32 %v10908, 7
        %v10910 = vsub.s32 %v10907, %v10909
        %v10911 = vrot.slane %v10903, %v10910
        %v10913 = vunpack.c.l.s4 1934713408
        %v10914 = vunpack.c.0.s8 %v10913
        %v10915 = vlaneseq
        %v10916 = vshrl.u32 %v10915, 7
        %v10917 = vsub.s32 %v10914, %v10916
        %v10918 = vrot.slane %v10904, %v10917
        %v10919 = vcombine.low %v10863, %v10879
        %v10920 = vcombine.high %v10863, %v10879
        %v10922 = vunpack.c.l.s4 1934713408
        %v10923 = vunpack.c.0.s8 %v10922
        %v10924 = vlaneseq
        %v10925 = vshrl.u32 %v10924, 7
        %v10926 = vsub.s32 %v10923, %v10925
        %v10927 = vrot.slane %v10919, %v10926
        %v10929 = vunpack.c.l.s4 1934713408
        %v10930 = vunpack.c.0.s8 %v10929
        %v10931 = vlaneseq
        %v10932 = vshrl.u32 %v10931, 7
        %v10933 = vsub.s32 %v10930, %v10932
        %v10934 = vrot.slane %v10920, %v10933
        %v10935 = vcombine.low %v10870, %v10886
        %v10936 = vcombine.high %v10870, %v10886
        %v10938 = vunpack.c.l.s4 1934713408
        %v10939 = vunpack.c.0.s8 %v10938
        %v10940 = vlaneseq
        %v10941 = vshrl.u32 %v10940, 7
        %v10942 = vsub.s32 %v10939, %v10941
        %v10943 = vrot.slane %v10935, %v10942
        %v10945 = vunpack.c.l.s4 1934713408
        %v10946 = vunpack.c.0.s8 %v10945
        %v10947 = vlaneseq
        %v10948 = vshrl.u32 %v10947, 7
        %v10949 = vsub.s32 %v10946, %v10948
        %v10950 = vrot.slane %v10936, %v10949
        %v10951 = vcombine.low %v10895, %v10927
        %v10952 = vcombine.high %v10895, %v10927
        %v10953 = vcombine.low %v10902, %v10934
        %v10954 = vcombine.high %v10902, %v10934
        %v10955 = vcombine.low %v10911, %v10943
        %v10956 = vcombine.high %v10911, %v10943
        %v10957 = vcombine.low %v10918, %v10950
        %v10958 = vcombine.high %v10918, %v10950
        %v10959 = vcombine.low %v10041, %v10105
        %v10960 = vcombine.high %v10041, %v10105
        %v10962 = vunpack.c.l.s4 1983009808
        %v10963 = vunpack.c.0.s8 %v10962
        %v10964 = vlaneseq
        %v10965 = vshrl.u32 %v10964, 7
        %v10966 = vsub.s32 %v10963, %v10965
        %v10967 = vrot.slane %v10959, %v10966
        %v10969 = vunpack.c.l.s4 1983009808
        %v10970 = vunpack.c.0.s8 %v10969
        %v10971 = vlaneseq
        %v10972 = vshrl.u32 %v10971, 7
        %v10973 = vsub.s32 %v10970, %v10972
        %v10974 = vrot.slane %v10960, %v10973
        %v10975 = vcombine.low %v10073, %v10137
        %v10976 = vcombine.high %v10073, %v10137
        %v10978 = vunpack.c.l.s4 1983009808
        %v10979 = vunpack.c.0.s8 %v10978
        %v10980 = vlaneseq
        %v10981 = vshrl.u32 %v10980, 7
        %v10982 = vsub.s32 %v10979, %v10981
        %v10983 = vrot.slane %v10975, %v10982
        %v10985 = vunpack.c.l.s4 1983009808
        %v10986 = vunpack.c.0.s8 %v10985
        %v10987 = vlaneseq
        %v10988 = vshrl.u32 %v10987, 7
        %v10989 = vsub.s32 %v10986, %v10988
        %v10990 = vrot.slane %v10976, %v10989
        %v10991 = vcombine.low %v10169, %v10233
        %v10992 = vcombine.high %v10169, %v10233
        %v10994 = vunpack.c.l.s4 1983009808
        %v10995 = vunpack.c.0.s8 %v10994
        %v10996 = vlaneseq
        %v10997 = vshrl.u32 %v10996, 7
        %v10998 = vsub.s32 %v10995, %v10997
        %v10999 = vrot.slane %v10991, %v10998
        %v11001 = vunpack.c.l.s4 1983009808
        %v11002 = vunpack.c.0.s8 %v11001
        %v11003 = vlaneseq
        %v11004 = vshrl.u32 %v11003, 7
        %v11005 = vsub.s32 %v11002, %v11004
        %v11006 = vrot.slane %v10992, %v11005
        %v11007 = vcombine.low %v10201, %v10265
        %v11008 = vcombine.high %v10201, %v10265
        %v11010 = vunpack.c.l.s4 1983009808
        %v11011 = vunpack.c.0.s8 %v11010
        %v11012 = vlaneseq
        %v11013 = vshrl.u32 %v11012, 7
        %v11014 = vsub.s32 %v11011, %v11013
        %v11015 = vrot.slane %v11007, %v11014
        %v11017 = vunpack.c.l.s4 1983009808
        %v11018 = vunpack.c.0.s8 %v11017
        %v11019 = vlaneseq
        %v11020 = vshrl.u32 %v11019, 7
        %v11021 = vsub.s32 %v11018, %v11020
        %v11022 = vrot.slane %v11008, %v11021
        %v11023 = vcombine.low %v10967, %v10983
        %v11024 = vcombine.high %v10967, %v10983
        %v11026 = vunpack.c.l.s4 1934713408
        %v11027 = vunpack.c.0.s8 %v11026
        %v11028 = vlaneseq
        %v11029 = vshrl.u32 %v11028, 7
        %v11030 = vsub.s32 %v11027, %v11029
        %v11031 = vrot.slane %v11023, %v11030
        %v11033 = vunpack.c.l.s4 1934713408
        %v11034 = vunpack.c.0.s8 %v11033
        %v11035 = vlaneseq
        %v11036 = vshrl.u32 %v11035, 7
        %v11037 = vsub.s32 %v11034, %v11036
        %v11038 = vrot.slane %v11024, %v11037
        %v11039 = vcombine.low %v10974, %v10990
        %v11040 = vcombine.high %v10974, %v10990
        %v11042 = vunpack.c.l.s4 1934713408
        %v11043 = vunpack.c.0.s8 %v11042
        %v11044 = vlaneseq
        %v11045 = vshrl.u32 %v11044, 7
        %v11046 = vsub.s32 %v11043, %v11045
        %v11047 = vrot.slane %v11039, %v11046
        %v11049 = vunpack.c.l.s4 1934713408
        %v11050 = vunpack.c.0.s8 %v11049
        %v11051 = vlaneseq
        %v11052 = vshrl.u32 %v11051, 7
        %v11053 = vsub.s32 %v11050, %v11052
        %v11054 = vrot.slane %v11040, %v11053
        %v11055 = vcombine.low %v10999, %v11015
        %v11056 = vcombine.high %v10999, %v11015
        %v11058 = vunpack.c.l.s4 1934713408
        %v11059 = vunpack.c.0.s8 %v11058
        %v11060 = vlaneseq
        %v11061 = vshrl.u32 %v11060, 7
        %v11062 = vsub.s32 %v11059, %v11061
        %v11063 = vrot.slane %v11055, %v11062
        %v11065 = vunpack.c.l.s4 1934713408
        %v11066 = vunpack.c.0.s8 %v11065
        %v11067 = vlaneseq
        %v11068 = vshrl.u32 %v11067, 7
        %v11069 = vsub.s32 %v11066, %v11068
        %v11070 = vrot.slane %v11056, %v11069
        %v11071 = vcombine.low %v11006, %v11022
        %v11072 = vcombine.high %v11006, %v11022
        %v11074 = vunpack.c.l.s4 1934713408
        %v11075 = vunpack.c.0.s8 %v11074
        %v11076 = vlaneseq
        %v11077 = vshrl.u32 %v11076, 7
        %v11078 = vsub.s32 %v11075, %v11077
        %v11079 = vrot.slane %v11071, %v11078
        %v11081 = vunpack.c.l.s4 1934713408
        %v11082 = vunpack.c.0.s8 %v11081
        %v11083 = vlaneseq
        %v11084 = vshrl.u32 %v11083, 7
        %v11085 = vsub.s32 %v11082, %v11084
        %v11086 = vrot.slane %v11072, %v11085
        %v11087 = vcombine.low %v11031, %v11063
        %v11088 = vcombine.high %v11031, %v11063
        %v11089 = vcombine.low %v11038, %v11070
        %v11090 = vcombine.high %v11038, %v11070
        %v11091 = vcombine.low %v11047, %v11079
        %v11092 = vcombine.high %v11047, %v11079
        %v11093 = vcombine.low %v11054, %v11086
        %v11094 = vcombine.high %v11054, %v11086
        %v11095 = vcombine.low %v9786, %v9850
        %v11096 = vcombine.high %v9786, %v9850
        %v11098 = vunpack.c.l.s4 1983009808
        %v11099 = vunpack.c.0.s8 %v11098
        %v11100 = vlaneseq
        %v11101 = vshrl.u32 %v11100, 7
        %v11102 = vsub.s32 %v11099, %v11101
        %v11103 = vrot.slane %v11095, %v11102
        %v11105 = vunpack.c.l.s4 1983009808
        %v11106 = vunpack.c.0.s8 %v11105
        %v11107 = vlaneseq
        %v11108 = vshrl.u32 %v11107, 7
        %v11109 = vsub.s32 %v11106, %v11108
        %v11110 = vrot.slane %v11096, %v11109
        %v11111 = vcombine.low %v9818, %v9882
        %v11112 = vcombine.high %v9818, %v9882
        %v11114 = vunpack.c.l.s4 1983009808
        %v11115 = vunpack.c.0.s8 %v11114
        %v11116 = vlaneseq
        %v11117 = vshrl.u32 %v11116, 7
        %v11118 = vsub.s32 %v11115, %v11117
        %v11119 = vrot.slane %v11111, %v11118
        %v11121 = vunpack.c.l.s4 1983009808
        %v11122 = vunpack.c.0.s8 %v11121
        %v11123 = vlaneseq
        %v11124 = vshrl.u32 %v11123, 7
        %v11125 = vsub.s32 %v11122, %v11124
        %v11126 = vrot.slane %v11112, %v11125
        %v11127 = vcombine.low %v9914, %v9978
        %v11128 = vcombine.high %v9914, %v9978
        %v11130 = vunpack.c.l.s4 1983009808
        %v11131 = vunpack.c.0.s8 %v11130
        %v11132 = vlaneseq
        %v11133 = vshrl.u32 %v11132, 7
        %v11134 = vsub.s32 %v11131, %v11133
        %v11135 = vrot.slane %v11127, %v11134
        %v11137 = vunpack.c.l.s4 1983009808
        %v11138 = vunpack.c.0.s8 %v11137
        %v11139 = vlaneseq
        %v11140 = vshrl.u32 %v11139, 7
        %v11141 = vsub.s32 %v11138, %v11140
        %v11142 = vrot.slane %v11128, %v11141
        %v11143 = vcombine.low %v9946, %v10010
        %v11144 = vcombine.high %v9946, %v10010
        %v11146 = vunpack.c.l.s4 1983009808
        %v11147 = vunpack.c.0.s8 %v11146
        %v11148 = vlaneseq
        %v11149 = vshrl.u32 %v11148, 7
        %v11150 = vsub.s32 %v11147, %v11149
        %v11151 = vrot.slane %v11143, %v11150
        %v11153 = vunpack.c.l.s4 1983009808
        %v11154 = vunpack.c.0.s8 %v11153
        %v11155 = vlaneseq
        %v11156 = vshrl.u32 %v11155, 7
        %v11157 = vsub.s32 %v11154, %v11156
        %v11158 = vrot.slane %v11144, %v11157
        %v11159 = vcombine.low %v11103, %v11119
        %v11160 = vcombine.high %v11103, %v11119
        %v11162 = vunpack.c.l.s4 1934713408
        %v11163 = vunpack.c.0.s8 %v11162
        %v11164 = vlaneseq
        %v11165 = vshrl.u32 %v11164, 7
        %v11166 = vsub.s32 %v11163, %v11165
        %v11167 = vrot.slane %v11159, %v11166
        %v11169 = vunpack.c.l.s4 1934713408
        %v11170 = vunpack.c.0.s8 %v11169
        %v11171 = vlaneseq
        %v11172 = vshrl.u32 %v11171, 7
        %v11173 = vsub.s32 %v11170, %v11172
        %v11174 = vrot.slane %v11160, %v11173
        %v11175 = vcombine.low %v11110, %v11126
        %v11176 = vcombine.high %v11110, %v11126
        %v11178 = vunpack.c.l.s4 1934713408
        %v11179 = vunpack.c.0.s8 %v11178
        %v11180 = vlaneseq
        %v11181 = vshrl.u32 %v11180, 7
        %v11182 = vsub.s32 %v11179, %v11181
        %v11183 = vrot.slane %v11175, %v11182
        %v11185 = vunpack.c.l.s4 1934713408
        %v11186 = vunpack.c.0.s8 %v11185
        %v11187 = vlaneseq
        %v11188 = vshrl.u32 %v11187, 7
        %v11189 = vsub.s32 %v11186, %v11188
        %v11190 = vrot.slane %v11176, %v11189
        %v11191 = vcombine.low %v11135, %v11151
        %v11192 = vcombine.high %v11135, %v11151
        %v11194 = vunpack.c.l.s4 1934713408
        %v11195 = vunpack.c.0.s8 %v11194
        %v11196 = vlaneseq
        %v11197 = vshrl.u32 %v11196, 7
        %v11198 = vsub.s32 %v11195, %v11197
        %v11199 = vrot.slane %v11191, %v11198
        %v11201 = vunpack.c.l.s4 1934713408
        %v11202 = vunpack.c.0.s8 %v11201
        %v11203 = vlaneseq
        %v11204 = vshrl.u32 %v11203, 7
        %v11205 = vsub.s32 %v11202, %v11204
        %v11206 = vrot.slane %v11192, %v11205
        %v11207 = vcombine.low %v11142, %v11158
        %v11208 = vcombine.high %v11142, %v11158
        %v11210 = vunpack.c.l.s4 1934713408
        %v11211 = vunpack.c.0.s8 %v11210
        %v11212 = vlaneseq
        %v11213 = vshrl.u32 %v11212, 7
        %v11214 = vsub.s32 %v11211, %v11213
        %v11215 = vrot.slane %v11207, %v11214
        %v11217 = vunpack.c.l.s4 1934713408
        %v11218 = vunpack.c.0.s8 %v11217
        %v11219 = vlaneseq
        %v11220 = vshrl.u32 %v11219, 7
        %v11221 = vsub.s32 %v11218, %v11220
        %v11222 = vrot.slane %v11208, %v11221
        %v11223 = vcombine.low %v11167, %v11199
        %v11224 = vcombine.high %v11167, %v11199
        %v11225 = vcombine.low %v11174, %v11206
        %v11226 = vcombine.high %v11174, %v11206
        %v11227 = vcombine.low %v11183, %v11215
        %v11228 = vcombine.high %v11183, %v11215
        %v11229 = vcombine.low %v11190, %v11222
        %v11230 = vcombine.high %v11190, %v11222
        %v11231 = vcombine.low %v10042, %v10106
        %v11232 = vcombine.high %v10042, %v10106
        %v11234 = vunpack.c.l.s4 1983009808
        %v11235 = vunpack.c.0.s8 %v11234
        %v11236 = vlaneseq
        %v11237 = vshrl.u32 %v11236, 7
        %v11238 = vsub.s32 %v11235, %v11237
        %v11239 = vrot.slane %v11231, %v11238
        %v11241 = vunpack.c.l.s4 1983009808
        %v11242 = vunpack.c.0.s8 %v11241
        %v11243 = vlaneseq
        %v11244 = vshrl.u32 %v11243, 7
        %v11245 = vsub.s32 %v11242, %v11244
        %v11246 = vrot.slane %v11232, %v11245
        %v11247 = vcombine.low %v10074, %v10138
        %v11248 = vcombine.high %v10074, %v10138
        %v11250 = vunpack.c.l.s4 1983009808
        %v11251 = vunpack.c.0.s8 %v11250
        %v11252 = vlaneseq
        %v11253 = vshrl.u32 %v11252, 7
        %v11254 = vsub.s32 %v11251, %v11253
        %v11255 = vrot.slane %v11247, %v11254
        %v11257 = vunpack.c.l.s4 1983009808
        %v11258 = vunpack.c.0.s8 %v11257
        %v11259 = vlaneseq
        %v11260 = vshrl.u32 %v11259, 7
        %v11261 = vsub.s32 %v11258, %v11260
        %v11262 = vrot.slane %v11248, %v11261
        %v11263 = vcombine.low %v10170, %v10234
        %v11264 = vcombine.high %v10170, %v10234
        %v11266 = vunpack.c.l.s4 1983009808
        %v11267 = vunpack.c.0.s8 %v11266
        %v11268 = vlaneseq
        %v11269 = vshrl.u32 %v11268, 7
        %v11270 = vsub.s32 %v11267, %v11269
        %v11271 = vrot.slane %v11263, %v11270
        %v11273 = vunpack.c.l.s4 1983009808
        %v11274 = vunpack.c.0.s8 %v11273
        %v11275 = vlaneseq
        %v11276 = vshrl.u32 %v11275, 7
        %v11277 = vsub.s32 %v11274, %v11276
        %v11278 = vrot.slane %v11264, %v11277
        %v11279 = vcombine.low %v10202, %v10266
        %v11280 = vcombine.high %v10202, %v10266
        %v11282 = vunpack.c.l.s4 1983009808
        %v11283 = vunpack.c.0.s8 %v11282
        %v11284 = vlaneseq
        %v11285 = vshrl.u32 %v11284, 7
        %v11286 = vsub.s32 %v11283, %v11285
        %v11287 = vrot.slane %v11279, %v11286
        %v11289 = vunpack.c.l.s4 1983009808
        %v11290 = vunpack.c.0.s8 %v11289
        %v11291 = vlaneseq
        %v11292 = vshrl.u32 %v11291, 7
        %v11293 = vsub.s32 %v11290, %v11292
        %v11294 = vrot.slane %v11280, %v11293
        %v11295 = vcombine.low %v11239, %v11255
        %v11296 = vcombine.high %v11239, %v11255
        %v11298 = vunpack.c.l.s4 1934713408
        %v11299 = vunpack.c.0.s8 %v11298
        %v11300 = vlaneseq
        %v11301 = vshrl.u32 %v11300, 7
        %v11302 = vsub.s32 %v11299, %v11301
        %v11303 = vrot.slane %v11295, %v11302
        %v11305 = vunpack.c.l.s4 1934713408
        %v11306 = vunpack.c.0.s8 %v11305
        %v11307 = vlaneseq
        %v11308 = vshrl.u32 %v11307, 7
        %v11309 = vsub.s32 %v11306, %v11308
        %v11310 = vrot.slane %v11296, %v11309
        %v11311 = vcombine.low %v11246, %v11262
        %v11312 = vcombine.high %v11246, %v11262
        %v11314 = vunpack.c.l.s4 1934713408
        %v11315 = vunpack.c.0.s8 %v11314
        %v11316 = vlaneseq
        %v11317 = vshrl.u32 %v11316, 7
        %v11318 = vsub.s32 %v11315, %v11317
        %v11319 = vrot.slane %v11311, %v11318
        %v11321 = vunpack.c.l.s4 1934713408
        %v11322 = vunpack.c.0.s8 %v11321
        %v11323 = vlaneseq
        %v11324 = vshrl.u32 %v11323, 7
        %v11325 = vsub.s32 %v11322, %v11324
        %v11326 = vrot.slane %v11312, %v11325
        %v11327 = vcombine.low %v11271, %v11287
        %v11328 = vcombine.high %v11271, %v11287
        %v11330 = vunpack.c.l.s4 1934713408
        %v11331 = vunpack.c.0.s8 %v11330
        %v11332 = vlaneseq
        %v11333 = vshrl.u32 %v11332, 7
        %v11334 = vsub.s32 %v11331, %v11333
        %v11335 = vrot.slane %v11327, %v11334
        %v11337 = vunpack.c.l.s4 1934713408
        %v11338 = vunpack.c.0.s8 %v11337
        %v11339 = vlaneseq
        %v11340 = vshrl.u32 %v11339, 7
        %v11341 = vsub.s32 %v11338, %v11340
        %v11342 = vrot.slane %v11328, %v11341
        %v11343 = vcombine.low %v11278, %v11294
        %v11344 = vcombine.high %v11278, %v11294
        %v11346 = vunpack.c.l.s4 1934713408
        %v11347 = vunpack.c.0.s8 %v11346
        %v11348 = vlaneseq
        %v11349 = vshrl.u32 %v11348, 7
        %v11350 = vsub.s32 %v11347, %v11349
        %v11351 = vrot.slane %v11343, %v11350
        %v11353 = vunpack.c.l.s4 1934713408
        %v11354 = vunpack.c.0.s8 %v11353
        %v11355 = vlaneseq
        %v11356 = vshrl.u32 %v11355, 7
        %v11357 = vsub.s32 %v11354, %v11356
        %v11358 = vrot.slane %v11344, %v11357
        %v11359 = vcombine.low %v11303, %v11335
        %v11360 = vcombine.high %v11303, %v11335
        %v11361 = vcombine.low %v11310, %v11342
        %v11362 = vcombine.high %v11310, %v11342
        %v11363 = vcombine.low %v11319, %v11351
        %v11364 = vcombine.high %v11319, %v11351
        %v11365 = vcombine.low %v11326, %v11358
        %v11366 = vcombine.high %v11326, %v11358
        %11369 = vrot.lane.b32.xlu0 %v10408, 8
        %v11370 = vpop.permute.xlu0 %11369
        %11371 = vrot.lane.b32.xlu0 %v10544, 8
        %v11372 = vpop.permute.xlu0 %11371
        %11377 = vrot.lane.b32.xlu0 %v10409, 16
        %v11378 = vpop.permute.xlu0 %11377
        %11379 = vrot.lane.b32.xlu0 %v10545, 16
        %v11380 = vpop.permute.xlu0 %11379
        %11385 = vrot.lane.b32.xlu0 %v10410, 24
        %v11386 = vpop.permute.xlu0 %11385
        %11387 = vrot.lane.b32.xlu0 %v10546, 24
        %v11388 = vpop.permute.xlu0 %11387
        %11393 = vrot.lane.b32.xlu0 %v10411, 32
        %v11394 = vpop.permute.xlu0 %11393
        %11395 = vrot.lane.b32.xlu0 %v10547, 32
        %v11396 = vpop.permute.xlu0 %11395
        %11401 = vrot.lane.b32.xlu0 %v10412, 40
        %v11402 = vpop.permute.xlu0 %11401
        %11403 = vrot.lane.b32.xlu0 %v10548, 40
        %v11404 = vpop.permute.xlu0 %11403
        %11409 = vrot.lane.b32.xlu0 %v10413, 48
        %v11410 = vpop.permute.xlu0 %11409
        %11411 = vrot.lane.b32.xlu0 %v10549, 48
        %v11412 = vpop.permute.xlu0 %11411
        %11417 = vrot.lane.b32.xlu0 %v10414, 56
        %v11418 = vpop.permute.xlu0 %11417
        %11419 = vrot.lane.b32.xlu0 %v10550, 56
        %v11420 = vpop.permute.xlu0 %11419
        %11425 = vrot.lane.b32.xlu0 %v10679, 64
        %v11426 = vpop.permute.xlu0 %11425
        %11427 = vrot.lane.b32.xlu0 %v10815, 64
        %v11428 = vpop.permute.xlu0 %11427
        %11433 = vrot.lane.b32.xlu0 %v10680, 72
        %v11434 = vpop.permute.xlu0 %11433
        %11435 = vrot.lane.b32.xlu0 %v10816, 72
        %v11436 = vpop.permute.xlu0 %11435
        %11441 = vrot.lane.b32.xlu0 %v10681, 80
        %v11442 = vpop.permute.xlu0 %11441
        %11443 = vrot.lane.b32.xlu0 %v10817, 80
        %v11444 = vpop.permute.xlu0 %11443
        %11449 = vrot.lane.b32.xlu0 %v10682, 88
        %v11450 = vpop.permute.xlu0 %11449
        %11451 = vrot.lane.b32.xlu0 %v10818, 88
        %v11452 = vpop.permute.xlu0 %11451
        %11457 = vrot.lane.b32.xlu0 %v10683, 96
        %v11458 = vpop.permute.xlu0 %11457
        %11459 = vrot.lane.b32.xlu0 %v10819, 96
        %v11460 = vpop.permute.xlu0 %11459
        %11465 = vrot.lane.b32.xlu0 %v10684, 104
        %v11466 = vpop.permute.xlu0 %11465
        %11467 = vrot.lane.b32.xlu0 %v10820, 104
        %v11468 = vpop.permute.xlu0 %11467
        %11473 = vrot.lane.b32.xlu0 %v10685, 112
        %v11474 = vpop.permute.xlu0 %11473
        %11475 = vrot.lane.b32.xlu0 %v10821, 112
        %v11476 = vpop.permute.xlu0 %11475
        %11481 = vrot.lane.b32.xlu0 %v10686, 120
        %v11482 = vpop.permute.xlu0 %11481
        %11483 = vrot.lane.b32.xlu0 %v10822, 120
        %v11484 = vpop.permute.xlu0 %11483
        %11489 = vrot.lane.b32.xlu0 %v10952, 8
        %v11490 = vpop.permute.xlu0 %11489
        %11491 = vrot.lane.b32.xlu0 %v11088, 8
        %v11492 = vpop.permute.xlu0 %11491
        %11497 = vrot.lane.b32.xlu0 %v10953, 16
        %v11498 = vpop.permute.xlu0 %11497
        %11499 = vrot.lane.b32.xlu0 %v11089, 16
        %v11500 = vpop.permute.xlu0 %11499
        %11505 = vrot.lane.b32.xlu0 %v10954, 24
        %v11506 = vpop.permute.xlu0 %11505
        %11507 = vrot.lane.b32.xlu0 %v11090, 24
        %v11508 = vpop.permute.xlu0 %11507
        %11513 = vrot.lane.b32.xlu0 %v10955, 32
        %v11514 = vpop.permute.xlu0 %11513
        %11515 = vrot.lane.b32.xlu0 %v11091, 32
        %v11516 = vpop.permute.xlu0 %11515
        %11521 = vrot.lane.b32.xlu0 %v10956, 40
        %v11522 = vpop.permute.xlu0 %11521
        %11523 = vrot.lane.b32.xlu0 %v11092, 40
        %v11524 = vpop.permute.xlu0 %11523
        %11529 = vrot.lane.b32.xlu0 %v10957, 48
        %v11530 = vpop.permute.xlu0 %11529
        %11531 = vrot.lane.b32.xlu0 %v11093, 48
        %v11532 = vpop.permute.xlu0 %11531
        %11537 = vrot.lane.b32.xlu0 %v10958, 56
        %v11538 = vpop.permute.xlu0 %11537
        %11539 = vrot.lane.b32.xlu0 %v11094, 56
        %v11540 = vpop.permute.xlu0 %11539
        %11545 = vrot.lane.b32.xlu0 %v11223, 64
        %v11546 = vpop.permute.xlu0 %11545
        %11547 = vrot.lane.b32.xlu0 %v11359, 64
        %v11548 = vpop.permute.xlu0 %11547
        %11553 = vrot.lane.b32.xlu0 %v11224, 72
        %v11554 = vpop.permute.xlu0 %11553
        %11555 = vrot.lane.b32.xlu0 %v11360, 72
        %v11556 = vpop.permute.xlu0 %11555
        %11561 = vrot.lane.b32.xlu0 %v11225, 80
        %v11562 = vpop.permute.xlu0 %11561
        %11563 = vrot.lane.b32.xlu0 %v11361, 80
        %v11564 = vpop.permute.xlu0 %11563
        %11569 = vrot.lane.b32.xlu0 %v11226, 88
        %v11570 = vpop.permute.xlu0 %11569
        %11571 = vrot.lane.b32.xlu0 %v11362, 88
        %v11572 = vpop.permute.xlu0 %11571
        %11577 = vrot.lane.b32.xlu0 %v11227, 96
        %v11578 = vpop.permute.xlu0 %11577
        %11579 = vrot.lane.b32.xlu0 %v11363, 96
        %v11580 = vpop.permute.xlu0 %11579
        %11585 = vrot.lane.b32.xlu0 %v11228, 104
        %v11586 = vpop.permute.xlu0 %11585
        %11587 = vrot.lane.b32.xlu0 %v11364, 104
        %v11588 = vpop.permute.xlu0 %11587
        %11593 = vrot.lane.b32.xlu0 %v11229, 112
        %v11594 = vpop.permute.xlu0 %11593
        %11595 = vrot.lane.b32.xlu0 %v11365, 112
        %v11596 = vpop.permute.xlu0 %11595
        %11601 = vrot.lane.b32.xlu0 %v11230, 120
        %v11602 = vpop.permute.xlu0 %11601
        %11603 = vrot.lane.b32.xlu0 %v11366, 120
        %v11604 = vpop.permute.xlu0 %11603
        %vm11607 = vcmask 64512
        %v11608 = vsel %vm11607, %v10407, %v11370
        %v11609 = vsel %vm11607, %v10543, %v11372
        %v11610 = vsel %vm623, %v11608, %v11378
        %v11611 = vsel %vm623, %v11609, %v11380
        %vm11612 = vcmask 195584
        %v11613 = vsel %vm11612, %v11610, %v11386
        %v11614 = vsel %vm11612, %v11611, %v11388
        %v11615 = vsel %vm5975, %v11613, %v11394
        %v11616 = vsel %vm5975, %v11614, %v11396
        %vm11617 = vcmask 326656
        %v11618 = vsel %vm11617, %v11615, %v11402
        %v11619 = vsel %vm11617, %v11616, %v11404
        %vm11620 = vcmask 392192
        %v11621 = vsel %vm11620, %v11618, %v11410
        %v11622 = vsel %vm11620, %v11619, %v11412
        %vm11623 = vcmask 457728
        %v11624 = vsel %vm11623, %v11621, %v11418
        %v11625 = vsel %vm11623, %v11622, %v11420
        %vm11626 = vcmask 523264
        %v11627 = vsel %vm11626, %v11624, %v11426
        %v11628 = vsel %vm11626, %v11625, %v11428
        %vm11629 = vcmask 588800
        %v11630 = vsel %vm11629, %v11627, %v11434
        %v11631 = vsel %vm11629, %v11628, %v11436
        %vm11632 = vcmask 654336
        %v11633 = vsel %vm11632, %v11630, %v11442
        %v11634 = vsel %vm11632, %v11631, %v11444
        %vm11635 = vcmask 719872
        %v11636 = vsel %vm11635, %v11633, %v11450
        %v11637 = vsel %vm11635, %v11634, %v11452
        %vm11638 = vcmask 785408
        %v11639 = vsel %vm11638, %v11636, %v11458
        %v11640 = vsel %vm11638, %v11637, %v11460
        %vm11641 = vcmask 850944
        %v11642 = vsel %vm11641, %v11639, %v11466
        %v11643 = vsel %vm11641, %v11640, %v11468
        %vm11644 = vcmask 916480
        %v11645 = vsel %vm11644, %v11642, %v11474
        %v11646 = vsel %vm11644, %v11643, %v11476
        %vm11647 = vcmask 982016
        %v11648 = vsel %vm11647, %v11645, %v11482
        %v11649 = vsel %vm11647, %v11646, %v11484
        %v11650 = vsel %vm11607, %v10951, %v11490
        %v11651 = vsel %vm11607, %v11087, %v11492
        %v11652 = vsel %vm623, %v11650, %v11498
        %v11653 = vsel %vm623, %v11651, %v11500
        %v11654 = vsel %vm11612, %v11652, %v11506
        %v11655 = vsel %vm11612, %v11653, %v11508
        %v11656 = vsel %vm5975, %v11654, %v11514
        %v11657 = vsel %vm5975, %v11655, %v11516
        %v11658 = vsel %vm11617, %v11656, %v11522
        %v11659 = vsel %vm11617, %v11657, %v11524
        %v11660 = vsel %vm11620, %v11658, %v11530
        %v11661 = vsel %vm11620, %v11659, %v11532
        %v11662 = vsel %vm11623, %v11660, %v11538
        %v11663 = vsel %vm11623, %v11661, %v11540
        %v11664 = vsel %vm11626, %v11662, %v11546
        %v11665 = vsel %vm11626, %v11663, %v11548
        %v11666 = vsel %vm11629, %v11664, %v11554
        %v11667 = vsel %vm11629, %v11665, %v11556
        %v11668 = vsel %vm11632, %v11666, %v11562
        %v11669 = vsel %vm11632, %v11667, %v11564
        %v11670 = vsel %vm11635, %v11668, %v11570
        %v11671 = vsel %vm11635, %v11669, %v11572
        %v11672 = vsel %vm11638, %v11670, %v11578
        %v11673 = vsel %vm11638, %v11671, %v11580
        %v11674 = vsel %vm11641, %v11672, %v11586
        %v11675 = vsel %vm11641, %v11673, %v11588
        %v11676 = vsel %vm11644, %v11674, %v11594
        %v11677 = vsel %vm11644, %v11675, %v11596
        %v11678 = vsel %vm11647, %v11676, %v11602
        %v11679 = vsel %vm11647, %v11677, %v11604
        %v11680 = vld [vmem:[%s7] sm:$0xff]
        %v11681 = vld [vmem:[%s7 + $0x8] sm:$0xff]
        %v11682 = vld [vmem:[%s8] sm:$0xff]
        %v11683 = vld [vmem:[%s8 + $0x8] sm:$0xff]
        %11685 = vset.pattern.permute.xlu0 0
        %11686 = vperm.xlu0 %11685, %v11682
        %v11687 = vpop.permute.xlu0 %11686
        %11690 = vset.pattern.permute.xlu0 0
        %11691 = vperm.xlu0 %11690, %v11683
        %v11692 = vpop.permute.xlu0 %11691
        %v11695 = vsel %vm623, %v11680, 0
        %v11698 = vsel %vm623, %v11681, 0
        %11700 = vmatprep.subr.mxu0 %v11678
        %11701 = vmatpush1.msra.mxu0 %v11648
        %11702 = vmatprep.subr.mxu0 %v11679
        %11703 = vmatpush1.msra.mxu0 %v11649
        %11704 = vmatprep.subr.mxu0 0.0
        %11705 = vmatpush1.msra.mxu0 0.0
        %11706 = vmatprep.subr.mxu0 0.0
        %11707 = vmatpush1.msra.mxu0 0.0
        %11708 = vmatprep.subr.mxu0 0.0
        %11709 = vmatpush1.msra.mxu0 0.0
        %11710 = vmatprep.subr.mxu0 0.0
        %11711 = vmatpush1.msra.mxu0 0.0
        %11712 = vmatprep.subr.mxu0 0.0
        %11713 = vmatpush1.msra.mxu0 0.0
        %11714 = vmatprep.subr.mxu0 0.0
        %11715 = vmatpush1.msra.mxu0 0.0
        %11716 = vmatprep.subr.mxu0 0.0
        %11717 = vmatpush1.msra.mxu0 0.0
        %11718 = vmatprep.subr.mxu0 0.0
        %11719 = vmatpush1.msra.mxu0 0.0
        %11720 = vmatprep.subr.mxu0 0.0
        %11721 = vmatpush1.msra.mxu0 0.0
        %11722 = vmatprep.subr.mxu0 0.0
        %11723 = vmatpush1.msra.mxu0 0.0
        %11724 = vmatprep.subr.mxu0 0.0
        %11725 = vmatpush1.msra.mxu0 0.0
        %11726 = vmatprep.subr.mxu0 0.0
        %11727 = vmatpush1.msra.mxu0 0.0
        %11728 = vmatprep.subr.mxu0 0.0
        %11729 = vmatpush1.msra.mxu0 0.0
        %11730 = vmatprep.subr.mxu0 0.0
        %11731 = vmatpush1.msra.mxu0 0.0
        %11732 = vmatprep.subr.mxu0 0.0
        %11733 = vmatpush1.msra.mxu0 0.0
        %11734 = vmatprep.subr.mxu0 0.0
        %11735 = vmatpush1.msra.mxu0 0.0
        %11736 = vmatprep.subr.mxu0 0.0
        %11737 = vmatpush1.msra.mxu0 0.0
        %11738 = vmatprep.subr.mxu0 0.0
        %11739 = vmatpush1.msra.mxu0 0.0
        %11740 = vmatprep.subr.mxu0 0.0
        %11741 = vmatpush1.msra.mxu0 0.0
        %11742 = vmatprep.subr.mxu0 0.0
        %11743 = vmatpush1.msra.mxu0 0.0
        %11744 = vmatprep.subr.mxu0 0.0
        %11745 = vmatpush1.msra.mxu0 0.0
        %11746 = vmatprep.subr.mxu0 0.0
        %11747 = vmatpush1.msra.mxu0 0.0
        %11748 = vmatprep.subr.mxu0 0.0
        %11749 = vmatpush1.msra.mxu0 0.0
        %11750 = vmatprep.subr.mxu0 0.0
        %11751 = vmatpush1.msra.mxu0 0.0
        %11752 = vmatprep.subr.mxu0 0.0
        %11753 = vmatpush1.msra.mxu0 0.0
        %11754 = vmatprep.subr.mxu0 0.0
        %11755 = vmatpush1.msra.mxu0 0.0
        %11756 = vmatprep.subr.mxu0 0.0
        %11757 = vmatpush1.msra.mxu0 0.0
        %11758 = vmatprep.subr.mxu0 0.0
        %11759 = vmatpush1.msra.mxu0 0.0
        %11760 = vmatprep.subr.mxu0 0.0
        %11761 = vmatpush1.msra.mxu0 0.0
        %11762 = vmatprep.subr.mxu0 0.0
        %11763 = vmatpush1.msra.mxu0 0.0
        %11764 = vmatprep.mubr.f32.mxu0 0.0
        %11765 = vmatmul.mubr.f32.gmra.mrb[0].mxu0 %v11695
        %v11766 = vpop.f32.mrb[0].mxu0
        %v11767 = vadd.f32 %v11687, %v11766
        %v11768 = vpop.f32.mrb[0].mxu0
        %v11769 = vadd.f32 %v11687, %v11768
        %11770 = vmatprep.mubr.f32.mxu0 0.0
        %11771 = vmatmul.mubr.f32.gmra.mrb[0].mxu0 %v11698
        %v11772 = vpop.f32.mrb[0].mxu0
        %v11773 = vadd.f32 %v11692, %v11772
        %v11774 = vpop.f32.mrb[0].mxu0
        %v11775 = vadd.f32 %v11692, %v11774
        %11776 = vdwg.mxu0
        %v11777 = vadd.f32 %v490, %v11767
        %v11778 = vadd.f32 %v492, %v11769
        %v11779 = vadd.f32 %v496, %v11773
        %v11780 = vadd.f32 %v498, %v11775
        %11781 = vst [vmem:[%s382] sm:$0xff] %v11777
        %11782 = vst [vmem:[%s382 + $0x8] sm:$0xff] %v11778
        %11783 = vst [vmem:[%s382 + $0x10] sm:$0xff] %v11779
        %11784 = vst [vmem:[%s382 + $0x18] sm:$0xff] %v11780
        %s11785 = sand.u32 %s238, 1
        %s11786 = sand.u32 %s238, 1
        %s11787 = smul.addr %s11786, 32
        %s11788 = scalar_lea.vmem [#allocation3], %s11787
        // Predicated region
        $region80: #{center_pivot_conv4d_forward.1} parent=74 // pred_check
          %p11789 = pneg %p248
        $region81: #{center_pivot_conv4d_forward.1} parent=74 // pred_check_branch
          %11791 = sbr.rel (%p11789) target = $region83
        $region82: #{center_pivot_conv4d_forward.1} parent=74 // pred_region
          %s11792 = smul.u32 2, %s25
          %s11793 = smul.addr %s24, 8
          %s11794 = sadd.s32 %s11792, %s11793
          %s11795 = smul.addr %s11794, 8
          %s11796 = scalar_lea.vmem %s9, %s11795
          // Predicated region
          $region84: #{center_pivot_conv4d_forward.1} parent=82 // pred_check
            _
          $region85: #{center_pivot_conv4d_forward.1} parent=82 // pred_check_branch
            %11798 = sbr.rel (0) target = $region87
          $region86: #{center_pivot_conv4d_forward.1} parent=82 // pred_region
            // Predicated region
            $region88: #{center_pivot_conv4d_forward.1} parent=86 // pred_check
              _
            $region89: #{center_pivot_conv4d_forward.1} parent=86 // pred_check_branch
              %11800 = sbr.rel (0) target = $region91
            $region90: #{center_pivot_conv4d_forward.1} parent=86 // pred_region
              loop: start=0, step=1, limit=1
              $region92: #{center_pivot_conv4d_forward.1} parent=90 // loop_pre_header
                _
              $region93: #{center_pivot_conv4d_forward.1} parent=90 // loop_header
                %s11802 = sphi 0, %s11806
                %p11803 = scmp.ge.s32.totalorder %s11802, 1
                %s11807 = sphi %s11788, %s11788
                %s11808 = sphi %s11796, %s11796
              $region94: #{center_pivot_conv4d_forward.1} parent=90 // loop_header_branch
                %11805 = sbr.rel (%p11803) target = $region98
              $region95: #{center_pivot_conv4d_forward.1} parent=90 // loop_body
                %v11809 = vld [vmem:[%s11807] sm:$0xff]
                %11810 = vst [vmem:[%s11808] sm:$0xff] %v11809
                %v11811 = vld [vmem:[%s11807 + $0x8] sm:$0xff]
                %11812 = vst [vmem:[%s11808 + $0x8] sm:$0xff] %v11811
                %v11813 = vld [vmem:[%s11807 + $0x10] sm:$0xff]
                %11814 = vst [vmem:[%s11808 + $0x20] sm:$0xff] %v11813
                %v11815 = vld [vmem:[%s11807 + $0x18] sm:$0xff]
                %11816 = vst [vmem:[%s11808 + $0x28] sm:$0xff] %v11815
              $region96: #{center_pivot_conv4d_forward.1} parent=90 // loop_footer
                %s11806 = sadd.s32 1, %s11802
              $region97: #{center_pivot_conv4d_forward.1} parent=90 // loop_footer_branch
                %11801 = sbr.rel target = $region93
              $region98: #{center_pivot_conv4d_forward.1} parent=90 // loop_exit
                _
            $region91: #{center_pivot_conv4d_forward.1} parent=86 // pred_fallthru
              _
            // Predicated region
            $region99: #{center_pivot_conv4d_forward.1} parent=86 // pred_check
              _
            $region100: #{center_pivot_conv4d_forward.1} parent=86 // pred_check_branch
              %11818 = sbr.rel target = $region102
            $region101: #{center_pivot_conv4d_forward.1} parent=86 // pred_region
              _
            $region102: #{center_pivot_conv4d_forward.1} parent=86 // pred_fallthru
              _
          $region87: #{center_pivot_conv4d_forward.1} parent=82 // pred_fallthru
            _
          %11819 = vnop
        $region83: #{center_pivot_conv4d_forward.1} parent=74 // pred_fallthru
          _
      $region75: #{center_pivot_conv4d_forward.1} parent=5 // pred_fallthru
        _
      %p11820 = scmp.le.s32.totalorder 2, %s15
      // Predicated region
      $region103: #{center_pivot_conv4d_forward.1} parent=5 // pred_check
        %p11821 = pneg %p11820
      $region104: #{center_pivot_conv4d_forward.1} parent=5 // pred_check_branch
        %11823 = sbr.rel (%p11821) target = $region106
      $region105: #{center_pivot_conv4d_forward.1} parent=5 // pred_region
        %s11824 = ssub.s32 %s15, 2
        // Predicated region
        $region107: #{center_pivot_conv4d_forward.1} parent=105 // pred_check
          %p11825 = pneg %p254
        $region108: #{center_pivot_conv4d_forward.1} parent=105 // pred_check_branch
          %11827 = sbr.rel (%p11825) target = $region110
        $region109: #{center_pivot_conv4d_forward.1} parent=105 // pred_region
          %s11828 = sand.u32 %s239, 1
          %s11829 = sand.u32 %s239, 1
          %s11830 = smul.addr %s11829, 32
          %s11831 = scalar_lea.vmem [#allocation3], %s11830
        $region110: #{center_pivot_conv4d_forward.1} parent=105 // pred_fallthru
          _
      $region106: #{center_pivot_conv4d_forward.1} parent=5 // pred_fallthru
        _
    $region6: #{center_pivot_conv4d_forward.1} parent=1 // loop_footer
      %s19 = sadd.s32 1, %s15
    $region7: #{center_pivot_conv4d_forward.1} parent=1 // loop_footer_branch
      %14 = sbr.rel target = $region3
    $region8: #{center_pivot_conv4d_forward.1} parent=1 // loop_exit
      _

</llo_original>
